<compile_context>
chip_gen: v5e
topology: v5e:2x2
jax: 0.10.0
libtpu: 0.0.40
codegen_flags: <defaults>
</compile_context>

<pallas_src>
import jax
import jax.numpy as jnp
from jax.experimental import pallas as pl
from jax.experimental.pallas import tpu as pltpu

EPS = 1e-5
LANES = 128
STAGE3_TILE = 512


# ------------------------------- small helpers --------------------------------

def _round_up(x, m):
    return (x + m - 1) // m * m


def _pick_vmem_limit():
    """Scoped-VMEM budget by generation: tight on v7x (64 MiB/TC), big on v5e/v6e."""
    try:
        kind = jax.devices()[0].device_kind.lower()
    except Exception:
        return 64 * 1024 * 1024
    if "v7" in kind or "7x" in kind:
        return 48 * 1024 * 1024
    if "v5" in kind or "v6" in kind:
        return 96 * 1024 * 1024
    return 64 * 1024 * 1024


# ----------------------------- in-kernel helpers -------------------------------

def _fill_padded(pad_ref, img_f32):
    """Write img (H, W, Cp) into the interior of the (H+2, W+2, Cp) bf16 halo scratch.

    Only the 1-wide border is zeroed (the interior is fully overwritten every grid
    step), removing the old full-scratch zero-fill sweep.
    """
    H, W, _ = img_f32.shape
    Cp = pad_ref.shape[-1]
    zrow = jnp.zeros((1, W + 2, Cp), pad_ref.dtype)
    zcol = jnp.zeros((H, 1, Cp), pad_ref.dtype)
    pad_ref[0:1, :, :] = zrow
    pad_ref[H + 1:H + 2, :, :] = zrow
    pad_ref[1:H + 1, 0:1, :] = zcol
    pad_ref[1:H + 1, W + 1:W + 2, :] = zcol
    pad_ref[1:H + 1, 1:W + 1, :] = img_f32.astype(pad_ref.dtype)


def _conv3x3_accumulate(pad_ref, w_ref, acc_ref, H, W):
    """3x3 conv: per kh one (HW, 3*Cp) x (3*Cp, Cout) bf16 dot, f32 scratch accumulate."""
    Cp = pad_ref.shape[-1]
    for kh in range(3):
        patch = jnp.concatenate(
            [pad_ref[kh:kh + H, kw:kw + W, :] for kw in range(3)], axis=-1
        ).reshape(H * W, 3 * Cp)
        contrib = jnp.dot(patch, w_ref[kh], preferred_element_type=jnp.float32)
        if kh == 0:
            acc_ref[...] = contrib
        else:
            acc_ref[...] += contrib


def _emit_out_and_stats(acc_ref, y_ref, st_ref):
    """Store the conv result in bf16 and per-block per-channel [sum; sumsq] in f32."""
    acc = acc_ref[...]
    y_ref[0] = acc.astype(y_ref.dtype)
    st_ref[0] = jnp.concatenate(
        [jnp.sum(acc, axis=0, keepdims=True),
         jnp.sum(acc * acc, axis=0, keepdims=True)], axis=0)


# --------------------------------- kernels -------------------------------------

def conv1_stats_kernel(x_ref, w_ref, y_ref, st_ref, pad_ref, acc_ref):
    """conv3x3(Cp -> 2Cp) for one image; bf16 conv output + BN1 partial stats."""
    _, H, W, _ = x_ref.shape
    _fill_padded(pad_ref, x_ref[0])
    _conv3x3_accumulate(pad_ref, w_ref, acc_ref, H, W)
    _emit_out_and_stats(acc_ref, y_ref, st_ref)


def glu_conv2_stats_kernel(y1_ref, sc1_ref, sh1_ref, w_ref, y_ref, st_ref,
                           pad_ref, acc_ref):
    """BN1-apply + GLU + conv3x3(Cp -> Cp) for one image; bf16 output + BN2 partials."""
    Hp2, Wp2, Cp = pad_ref.shape
    H, W = Hp2 - 2, Wp2 - 2
    h = y1_ref[0].astype(jnp.float32) * sc1_ref[...] + sh1_ref[...]   # BN1 apply (f32)
    a = h[:, :Cp] * jax.nn.sigmoid(h[:, Cp:])                         # GLU, lane-aligned halves
    _fill_padded(pad_ref, a.reshape(H, W, Cp))
    _conv3x3_accumulate(pad_ref, w_ref, acc_ref, H, W)
    _emit_out_and_stats(acc_ref, y_ref, st_ref)


def bn2_residual_kernel(y2_ref, sc2_ref, sh2_ref, res_ref, o_ref):
    """BN2-apply + residual add on lane-dense row tiles."""
    o_ref[...] = (y2_ref[...].astype(jnp.float32) * sc2_ref[...]
                  + sh2_ref[...] + res_ref[...])


# --------------------------------- JAX glue ------------------------------------

def _prep_w1(w1, C, Cp):
    """(2C, C, 3, 3) -> (3, 3*Cp, 2Cp) bf16 with kw folded into K.

    Value half of the output channels -> cols [0, C); gate half -> cols [Cp, Cp+C)
    so the GLU split lands exactly on a 128-lane boundary.
    """
    wt = jnp.transpose(w1, (2, 3, 1, 0))                    # (kh, kw, cin, cout)
    full = jnp.zeros((3, 3, Cp, 2 * Cp), jnp.float32)
    full = full.at[:, :, :C, :C].set(wt[..., :C])
    full = full.at[:, :, :C, Cp:Cp + C].set(wt[..., C:])
    return full.reshape(3, 3 * Cp, 2 * Cp).astype(jnp.bfloat16)


def _prep_w2(w2, C, Cp):
    wt = jnp.transpose(w2, (2, 3, 1, 0))                    # (kh, kw, cin, cout)
    full = jnp.zeros((3, 3, Cp, Cp), jnp.float32).at[:, :, :C, :C].set(wt)
    return full.reshape(3, 3 * Cp, Cp).astype(jnp.bfloat16)


def _place_glu_halves(vec, C, Cp, fill):
    out = jnp.full((2 * Cp,), fill, jnp.float32)
    return out.at[:C].set(vec[:C]).at[Cp:Cp + C].set(vec[C:])


def _pad_tail(vec, Cp, fill):
    C = vec.shape[0]
    return jnp.full((Cp,), fill, jnp.float32).at[:C].set(vec)


def _bn_affine(partial_stats, gamma, beta, count):
    """(nblocks, 2, C) partial [sum, sumsq] -> per-channel (1, C) scale/shift (training BN)."""
    s = jnp.sum(partial_stats[:, 0, :], axis=0)
    sq = jnp.sum(partial_stats[:, 1, :], axis=0)
    mean = s / count
    var = jnp.maximum(sq / count - mean * mean, 0.0)        # biased (training) variance
    scale = gamma * jax.lax.rsqrt(var + EPS)
    shift = beta - mean * scale
    return scale.reshape(1, -1), shift.reshape(1, -1)


def res_block_forward(x_nchw, params):
    N, C, H, W = x_nchw.shape
    Cp = _round_up(C, LANES)
    C2p = 2 * Cp
    HW = H * W
    M = N * HW
    vmem_limit = _pick_vmem_limit()

    # NHWC, channels zero-padded to a multiple of 128 lanes.
    # TODO(synk): the NCHW<->NHWC transposes and channel pad/slice are extra HBM
    # passes; keep NHWC lane-padded activations end-to-end when adjacent layers allow.
    x_nhwc = jnp.transpose(x_nchw, (0, 2, 3, 1)).astype(jnp.float32)
    x_p = jnp.pad(x_nhwc, ((0, 0), (0, 0), (0, 0), (0, Cp - C)))

    w1 = _prep_w1(params["w1"], C, Cp)
    w2 = _prep_w2(params["w2"], C, Cp)

    conv_params = pltpu.CompilerParams(
        dimension_semantics=("parallel",), vmem_limit_bytes=vmem_limit)

    # ---- stage 1: conv3x3(C -> 2C) + BN1 batch-stat partials (grid over images) ----
    # TODO(synk): for very large H*W (v7x's 64 MiB VMEM) add a halo row-block grid axis.
    y1, st1 = pl.pallas_call(
        conv1_stats_kernel,
        grid=(N,),
        in_specs=[pl.BlockSpec((1, H, W, Cp), lambda i: (i, 0, 0, 0)),
                  pl.BlockSpec((3, 3 * Cp, C2p), lambda i: (0, 0, 0))],
        out_specs=[pl.BlockSpec((1, HW, C2p), lambda i: (i, 0, 0)),
                   pl.BlockSpec((1, 2, C2p), lambda i: (i, 0, 0))],
        out_shape=(jax.ShapeDtypeStruct((N, HW, C2p), jnp.bfloat16),
                   jax.ShapeDtypeStruct((N, 2, C2p), jnp.float32)),
        scratch_shapes=[pltpu.VMEM((H + 2, W + 2, Cp), jnp.bfloat16),
                        pltpu.VMEM((HW, C2p), jnp.float32)],
        compiler_params=conv_params,
        cost_estimate=pl.CostEstimate(
            flops=2 * M * 9 * Cp * C2p, transcendentals=0,
            bytes_accessed=4 * M * Cp + 2 * M * C2p + 2 * 9 * Cp * C2p),
    )(x_p, w1)

    scale1, shift1 = _bn_affine(
        st1,
        _place_glu_halves(params["gamma1"], C, Cp, 1.0),
        _place_glu_halves(params["beta1"], C, Cp, 0.0),
        M)

    # ---- stage 2: BN1-apply + GLU + conv3x3(C -> C) + BN2 partials ----
    y2, st2 = pl.pallas_call(
        glu_conv2_stats_kernel,
        grid=(N,),
        in_specs=[pl.BlockSpec((1, HW, C2p), lambda i: (i, 0, 0)),
                  pl.BlockSpec((1, C2p), lambda i: (0, 0)),
                  pl.BlockSpec((1, C2p), lambda i: (0, 0)),
                  pl.BlockSpec((3, 3 * Cp, Cp), lambda i: (0, 0, 0))],
        out_specs=[pl.BlockSpec((1, HW, Cp), lambda i: (i, 0, 0)),
                   pl.BlockSpec((1, 2, Cp), lambda i: (i, 0, 0))],
        out_shape=(jax.ShapeDtypeStruct((N, HW, Cp), jnp.bfloat16),
                   jax.ShapeDtypeStruct((N, 2, Cp), jnp.float32)),
        scratch_shapes=[pltpu.VMEM((H + 2, W + 2, Cp), jnp.bfloat16),
                        pltpu.VMEM((HW, Cp), jnp.float32)],
        compiler_params=conv_params,
        cost_estimate=pl.CostEstimate(
            flops=2 * M * 9 * Cp * Cp + 6 * M * C2p, transcendentals=M * Cp,
            bytes_accessed=2 * M * C2p + 2 * M * Cp + 2 * 9 * Cp * Cp),
    )(y1, scale1, shift1, w2)

    scale2, shift2 = _bn_affine(
        st2, _pad_tail(params["gamma2"], Cp, 1.0), _pad_tail(params["beta2"], Cp, 0.0), M)

    # ---- stage 3: BN2-apply + residual (fixed lane-dense row tile, cdiv grid) ----
    tile_m = min(STAGE3_TILE, _round_up(M, 8))
    Mp = _round_up(M, tile_m)
    y2_2d = y2.reshape(M, Cp)
    res2d = x_p.reshape(M, Cp)
    if Mp != M:                                    # pad rows so the tile divides evenly
        y2_2d = jnp.pad(y2_2d, ((0, Mp - M), (0, 0)))
        res2d = jnp.pad(res2d, ((0, Mp - M), (0, 0)))

    out2d = pl.pallas_call(
        bn2_residual_kernel,
        grid=(pl.cdiv(Mp, tile_m),),
        in_specs=[pl.BlockSpec((tile_m, Cp), lambda i: (i, 0)),
                  pl.BlockSpec((1, Cp), lambda i: (0, 0)),
                  pl.BlockSpec((1, Cp), lambda i: (0, 0)),
                  pl.BlockSpec((tile_m, Cp), lambda i: (i, 0))],
        out_specs=pl.BlockSpec((tile_m, Cp), lambda i: (i, 0)),
        out_shape=jax.ShapeDtypeStruct((Mp, Cp), jnp.float32),
        input_output_aliases={3: 0},               # residual buffer reused as output
        compiler_params=pltpu.CompilerParams(
            dimension_semantics=("parallel",), vmem_limit_bytes=vmem_limit),
        cost_estimate=pl.CostEstimate(
            flops=3 * M * Cp, transcendentals=0,
            bytes_accessed=2 * M * Cp + 4 * M * Cp + 4 * M * Cp),
    )(y2_2d, scale2, shift2, res2d)

    out_nhwc = out2d[:M].reshape(N, H, W, Cp)[..., :C]
    return jnp.transpose(out_nhwc, (0, 3, 1, 2))   # back to NCHW


# ------------------------------ pure-JAX reference -----------------------------

def ref_forward(x, params):
    """Reference at matched matmul precision (bf16 MXU inputs, f32 accumulation)."""
    def conv(h, w):
        return jax.lax.conv_general_dilated(
            h.astype(jnp.bfloat16), w.astype(jnp.bfloat16), (1, 1), ((1, 1), (1, 1)),
            dimension_numbers=("NCHW", "OIHW", "NCHW"),
            preferred_element_type=jnp.float32)

    def bn(h, g, b):
        mean = jnp.mean(h, axis=(0, 2, 3), keepdims=True)
        var = jnp.mean((h - mean) ** 2, axis=(0, 2, 3), keepdims=True)
        return (h - mean) * jax.lax.rsqrt(var + EPS) * g.reshape(1, -1, 1, 1) \
            + b.reshape(1, -1, 1, 1)

    c = x.shape[1]
    h = bn(conv(x, params["w1"]), params["gamma1"], params["beta1"])
    h = h[:, :c] * jax.nn.sigmoid(h[:, c:])
    h = bn(conv(h, params["w2"]), params["gamma2"], params["beta2"])
    return h + x


# ------------------------------------ main --------------------------------------

if __name__ == "__main__":
    N, C, H, W = 2, 4, 16, 16
    key = jax.random.PRNGKey(0)
    kx, kw1, kw2 = jax.random.split(key, 3)

    x = jax.random.normal(kx, (N, C, H, W), dtype=jnp.float32)
    params = {
        "w1": 0.1 * jax.random.normal(kw1, (2 * C, C, 3, 3), dtype=jnp.float32),
        "gamma1": jnp.ones((2 * C,), jnp.float32),   # nn.BatchNorm2d default init
        "beta1": jnp.zeros((2 * C,), jnp.float32),
        "w2": 0.1 * jax.random.normal(kw2, (C, C, 3, 3), dtype=jnp.float32),
        "gamma2": jnp.ones((C,), jnp.float32),
        "beta2": jnp.zeros((C,), jnp.float32),
    }

    out = jax.jit(res_block_forward)(x, params)
    jax.block_until_ready(out)

    ref = ref_forward(x, params)
    assert out.shape == (N, C, H, W)
    err = float(jnp.max(jnp.abs(out - ref)))
    # bf16 MXU inputs + bf16-stored y1/y2 intermediates (f32 BN stats/elementwise math)
    # vs. an f32-intermediate reference -> allow bf16-level rounding skew.
    assert jnp.allclose(out, ref, atol=2e-2, rtol=2e-2), f"max abs err {err}"

    print("KERNEL_OK")
</pallas_src>

<mosaic_0001>
module attributes {stable_mosaic.version = 11 : i64} {
  func.func @conv1_stats_kernel(%arg0: i32, %arg1: memref<1x16x16x128xf32, #tpu.memory_space<vmem>>, %arg2: memref<3x384x256xbf16, #tpu.memory_space<vmem>>, %arg3: memref<1x256x256xbf16, #tpu.memory_space<vmem>>, %arg4: memref<1x2x256xf32, #tpu.memory_space<vmem>>, %arg5: memref<18x18x128xbf16, #tpu.memory_space<vmem>>, %arg6: memref<256x256xf32, #tpu.memory_space<vmem>>) attributes {dimension_semantics = [#tpu.dimension_semantics<parallel>], iteration_bounds = array<i64: 2>, scalar_prefetch = 0 : i64, scratch_operands = 2 : i64, tpu.core_type = #tpu.core_type<tc>, window_params = [{transform_indices = @transform_0, window_bounds = array<i64: 1, 16, 16, 128>}, {pipeline_mode = #tpu.pipeline_mode<synchronous>, transform_indices = @transform_1, window_bounds = array<i64: 3, 384, 256>}, {transform_indices = @transform_2, window_bounds = array<i64: 1, 256, 256>}, {transform_indices = @transform_3, window_bounds = array<i64: 1, 2, 256>}]} {
    %c0 = arith.constant 0 : index
    %c0_0 = arith.constant 0 : index
    %c0_1 = arith.constant 0 : index
    %c0_2 = arith.constant 0 : index
    %0 = vector.load %arg1[%c0, %c0_0, %c0_1, %c0_2] : memref<1x16x16x128xf32, #tpu.memory_space<vmem>>, vector<1x16x16x128xf32>
    %1 = vector.shape_cast %0 : vector<1x16x16x128xf32> to vector<16x16x128xf32>
    %cst = arith.constant 0.000000e+00 : bf16
    %2 = vector.broadcast %cst : bf16 to vector<1x18x128xbf16>
    %cst_3 = arith.constant 0.000000e+00 : bf16
    %3 = vector.broadcast %cst_3 : bf16 to vector<16x1x128xbf16>
    %c0_4 = arith.constant 0 : index
    %c0_5 = arith.constant 0 : index
    %c0_6 = arith.constant 0 : index
    %4 = vector.load %arg5[%c0_4, %c0_5, %c0_6] : memref<18x18x128xbf16, #tpu.memory_space<vmem>>, vector<1x18x128xbf16>
    tpu.vector_store %arg5[%c0_4, %c0_5, %c0_6], %2 {strides = array<i32>} : memref<18x18x128xbf16, #tpu.memory_space<vmem>>, vector<1x18x128xbf16>,
    %c17 = arith.constant 17 : index
    %c0_7 = arith.constant 0 : index
    %c0_8 = arith.constant 0 : index
    %5 = vector.load %arg5[%c17, %c0_7, %c0_8] : memref<18x18x128xbf16, #tpu.memory_space<vmem>>, vector<1x18x128xbf16>
    tpu.vector_store %arg5[%c17, %c0_7, %c0_8], %2 {strides = array<i32>} : memref<18x18x128xbf16, #tpu.memory_space<vmem>>, vector<1x18x128xbf16>,
    %c1 = arith.constant 1 : index
    %c0_9 = arith.constant 0 : index
    %c0_10 = arith.constant 0 : index
    %6 = vector.load %arg5[%c1, %c0_9, %c0_10] : memref<18x18x128xbf16, #tpu.memory_space<vmem>>, vector<16x1x128xbf16>
    tpu.vector_store %arg5[%c1, %c0_9, %c0_10], %3 {strides = array<i32>} : memref<18x18x128xbf16, #tpu.memory_space<vmem>>, vector<16x1x128xbf16>,
    %c1_11 = arith.constant 1 : index
    %c17_12 = arith.constant 17 : index
    %c0_13 = arith.constant 0 : index
    %7 = vector.load %arg5[%c1_11, %c17_12, %c0_13] : memref<18x18x128xbf16, #tpu.memory_space<vmem>>, vector<16x1x128xbf16>
    tpu.vector_store %arg5[%c1_11, %c17_12, %c0_13], %3 {strides = array<i32>} : memref<18x18x128xbf16, #tpu.memory_space<vmem>>, vector<16x1x128xbf16>,
    %8 = arith.truncf %1 : vector<16x16x128xf32> to vector<16x16x128xbf16>
    %c1_14 = arith.constant 1 : index
    %c1_15 = arith.constant 1 : index
    %c0_16 = arith.constant 0 : index
    %9 = vector.load %arg5[%c1_14, %c1_15, %c0_16] : memref<18x18x128xbf16, #tpu.memory_space<vmem>>, vector<16x16x128xbf16>
    tpu.vector_store %arg5[%c1_14, %c1_15, %c0_16], %8 {strides = array<i32>} : memref<18x18x128xbf16, #tpu.memory_space<vmem>>, vector<16x16x128xbf16>,
    %c0_17 = arith.constant 0 : index
    %c0_18 = arith.constant 0 : index
    %c0_19 = arith.constant 0 : index
    %10 = vector.load %arg5[%c0_17, %c0_18, %c0_19] : memref<18x18x128xbf16, #tpu.memory_space<vmem>>, vector<16x16x128xbf16>
    %c0_20 = arith.constant 0 : index
    %c1_21 = arith.constant 1 : index
    %c0_22 = arith.constant 0 : index
    %11 = vector.load %arg5[%c0_20, %c1_21, %c0_22] : memref<18x18x128xbf16, #tpu.memory_space<vmem>>, vector<16x16x128xbf16>
    %c0_23 = arith.constant 0 : index
    %c2 = arith.constant 2 : index
    %c0_24 = arith.constant 0 : index
    %12 = vector.load %arg5[%c0_23, %c2, %c0_24] : memref<18x18x128xbf16, #tpu.memory_space<vmem>>, vector<16x16x128xbf16>
    %13 = tpu.concatenate %10, %11, %12 in 2 : vector<16x16x128xbf16>, vector<16x16x128xbf16>, vector<16x16x128xbf16> -> vector<16x16x384xbf16>
    %14 = vector.shape_cast %13 : vector<16x16x384xbf16> to vector<256x384xbf16>
    %c0_25 = arith.constant 0 : index
    %c0_26 = arith.constant 0 : index
    %c0_27 = arith.constant 0 : index
    %15 = vector.load %arg2[%c0_25, %c0_26, %c0_27] : memref<3x384x256xbf16, #tpu.memory_space<vmem>>, vector<1x384x256xbf16>
    %16 = vector.shape_cast %15 : vector<1x384x256xbf16> to vector<384x256xbf16>
    %cst_28 = arith.constant dense<0.000000e+00> : vector<256x256xf32>
    %17 = tpu.matmul %14, %16, %cst_28 {dimension_numbers = #tpu.dot_dimension_numbers<[1], [0], [0], [1], [0, 0, 1, 1], [], []>} : vector<256x384xbf16>, vector<384x256xbf16>, vector<256x256xf32> -> vector<256x256xf32>
    %c0_29 = arith.constant 0 : index
    %c0_30 = arith.constant 0 : index
    %18 = vector.load %arg6[%c0_29, %c0_30] : memref<256x256xf32, #tpu.memory_space<vmem>>, vector<256x256xf32>
    tpu.vector_store %arg6[%c0_29, %c0_30], %17 {strides = array<i32>} : memref<256x256xf32, #tpu.memory_space<vmem>>, vector<256x256xf32>,
    %c1_31 = arith.constant 1 : index
    %c0_32 = arith.constant 0 : index
    %c0_33 = arith.constant 0 : index
    %19 = vector.load %arg5[%c1_31, %c0_32, %c0_33] : memref<18x18x128xbf16, #tpu.memory_space<vmem>>, vector<16x16x128xbf16>
    %c1_34 = arith.constant 1 : index
    %c1_35 = arith.constant 1 : index
    %c0_36 = arith.constant 0 : index
    %20 = vector.load %arg5[%c1_34, %c1_35, %c0_36] : memref<18x18x128xbf16, #tpu.memory_space<vmem>>, vector<16x16x128xbf16>
    %c1_37 = arith.constant 1 : index
    %c2_38 = arith.constant 2 : index
    %c0_39 = arith.constant 0 : index
    %21 = vector.load %arg5[%c1_37, %c2_38, %c0_39] : memref<18x18x128xbf16, #tpu.memory_space<vmem>>, vector<16x16x128xbf16>
    %22 = tpu.concatenate %19, %20, %21 in 2 : vector<16x16x128xbf16>, vector<16x16x128xbf16>, vector<16x16x128xbf16> -> vector<16x16x384xbf16>
    %23 = vector.shape_cast %22 : vector<16x16x384xbf16> to vector<256x384xbf16>
    %c1_40 = arith.constant 1 : index
    %c0_41 = arith.constant 0 : index
    %c0_42 = arith.constant 0 : index
    %24 = vector.load %arg2[%c1_40, %c0_41, %c0_42] : memref<3x384x256xbf16, #tpu.memory_space<vmem>>, vector<1x384x256xbf16>
    %25 = vector.shape_cast %24 : vector<1x384x256xbf16> to vector<384x256xbf16>
    %cst_43 = arith.constant dense<0.000000e+00> : vector<256x256xf32>
    %26 = tpu.matmul %23, %25, %cst_43 {dimension_numbers = #tpu.dot_dimension_numbers<[1], [0], [0], [1], [0, 0, 1, 1], [], []>} : vector<256x384xbf16>, vector<384x256xbf16>, vector<256x256xf32> -> vector<256x256xf32>
    %c0_44 = arith.constant 0 : index
    %c0_45 = arith.constant 0 : index
    %27 = vector.load %arg6[%c0_44, %c0_45] : memref<256x256xf32, #tpu.memory_space<vmem>>, vector<256x256xf32>
    %28 = arith.addf %27, %26 : vector<256x256xf32>
    %c0_46 = arith.constant 0 : index
    %c0_47 = arith.constant 0 : index
    %29 = vector.load %arg6[%c0_46, %c0_47] : memref<256x256xf32, #tpu.memory_space<vmem>>, vector<256x256xf32>
    tpu.vector_store %arg6[%c0_46, %c0_47], %28 {strides = array<i32>} : memref<256x256xf32, #tpu.memory_space<vmem>>, vector<256x256xf32>,
    %c2_48 = arith.constant 2 : index
    %c0_49 = arith.constant 0 : index
    %c0_50 = arith.constant 0 : index
    %30 = vector.load %arg5[%c2_48, %c0_49, %c0_50] : memref<18x18x128xbf16, #tpu.memory_space<vmem>>, vector<16x16x128xbf16>
    %c2_51 = arith.constant 2 : index
    %c1_52 = arith.constant 1 : index
    %c0_53 = arith.constant 0 : index
    %31 = vector.load %arg5[%c2_51, %c1_52, %c0_53] : memref<18x18x128xbf16, #tpu.memory_space<vmem>>, vector<16x16x128xbf16>
    %c2_54 = arith.constant 2 : index
    %c2_55 = arith.constant 2 : index
    %c0_56 = arith.constant 0 : index
    %32 = vector.load %arg5[%c2_54, %c2_55, %c0_56] : memref<18x18x128xbf16, #tpu.memory_space<vmem>>, vector<16x16x128xbf16>
    %33 = tpu.concatenate %30, %31, %32 in 2 : vector<16x16x128xbf16>, vector<16x16x128xbf16>, vector<16x16x128xbf16> -> vector<16x16x384xbf16>
    %34 = vector.shape_cast %33 : vector<16x16x384xbf16> to vector<256x384xbf16>
    %c2_57 = arith.constant 2 : index
    %c0_58 = arith.constant 0 : index
    %c0_59 = arith.constant 0 : index
    %35 = vector.load %arg2[%c2_57, %c0_58, %c0_59] : memref<3x384x256xbf16, #tpu.memory_space<vmem>>, vector<1x384x256xbf16>
    %36 = vector.shape_cast %35 : vector<1x384x256xbf16> to vector<384x256xbf16>
    %cst_60 = arith.constant dense<0.000000e+00> : vector<256x256xf32>
    %37 = tpu.matmul %34, %36, %cst_60 {dimension_numbers = #tpu.dot_dimension_numbers<[1], [0], [0], [1], [0, 0, 1, 1], [], []>} : vector<256x384xbf16>, vector<384x256xbf16>, vector<256x256xf32> -> vector<256x256xf32>
    %c0_61 = arith.constant 0 : index
    %c0_62 = arith.constant 0 : index
    %38 = vector.load %arg6[%c0_61, %c0_62] : memref<256x256xf32, #tpu.memory_space<vmem>>, vector<256x256xf32>
    %39 = arith.addf %38, %37 : vector<256x256xf32>
    %c0_63 = arith.constant 0 : index
    %c0_64 = arith.constant 0 : index
    %40 = vector.load %arg6[%c0_63, %c0_64] : memref<256x256xf32, #tpu.memory_space<vmem>>, vector<256x256xf32>
    tpu.vector_store %arg6[%c0_63, %c0_64], %39 {strides = array<i32>} : memref<256x256xf32, #tpu.memory_space<vmem>>, vector<256x256xf32>,
    %c0_65 = arith.constant 0 : index
    %c0_66 = arith.constant 0 : index
    %41 = vector.load %arg6[%c0_65, %c0_66] : memref<256x256xf32, #tpu.memory_space<vmem>>, vector<256x256xf32>
    %42 = arith.truncf %41 : vector<256x256xf32> to vector<256x256xbf16>
    %c0_67 = arith.constant 0 : index
    %c0_68 = arith.constant 0 : index
    %c0_69 = arith.constant 0 : index
    %43 = vector.load %arg3[%c0_67, %c0_68, %c0_69] : memref<1x256x256xbf16, #tpu.memory_space<vmem>>, vector<1x256x256xbf16>
    %44 = vector.shape_cast %43 : vector<1x256x256xbf16> to vector<256x256xbf16>
    %45 = vector.shape_cast %42 : vector<256x256xbf16> to vector<1x256x256xbf16>
    tpu.vector_store %arg3[%c0_67, %c0_68, %c0_69], %45 {strides = array<i32>} : memref<1x256x256xbf16, #tpu.memory_space<vmem>>, vector<1x256x256xbf16>,
    %cst_70 = arith.constant dense<0.000000e+00> : vector<256xf32>
    %46 = vector.multi_reduction <add>, %41, %cst_70 [0] : vector<256x256xf32> to vector<256xf32>
    %47 = vector.shape_cast %46 : vector<256xf32> to vector<1x256xf32>
    %48 = arith.mulf %41, %41 : vector<256x256xf32>
    %cst_71 = arith.constant dense<0.000000e+00> : vector<256xf32>
    %49 = vector.multi_reduction <add>, %48, %cst_71 [0] : vector<256x256xf32> to vector<256xf32>
    %50 = vector.shape_cast %49 : vector<256xf32> to vector<1x256xf32>
    %51 = tpu.concatenate %47, %50 in 0 : vector<1x256xf32>, vector<1x256xf32> -> vector<2x256xf32>
    %c0_72 = arith.constant 0 : index
    %c0_73 = arith.constant 0 : index
    %c0_74 = arith.constant 0 : index
    %52 = vector.load %arg4[%c0_72, %c0_73, %c0_74] : memref<1x2x256xf32, #tpu.memory_space<vmem>>, vector<1x2x256xf32>
    %53 = vector.shape_cast %52 : vector<1x2x256xf32> to vector<2x256xf32>
    %54 = vector.shape_cast %51 : vector<2x256xf32> to vector<1x2x256xf32>
    tpu.vector_store %arg4[%c0_72, %c0_73, %c0_74], %54 {strides = array<i32>} : memref<1x2x256xf32, #tpu.memory_space<vmem>>, vector<1x2x256xf32>,
    return
  }
  func.func @transform_0(%arg0: i32) -> (i32, i32, i32, i32) {
    %c0_i32 = arith.constant 0 : i32
    %c0_i32_0 = arith.constant 0 : i32
    %c0_i32_1 = arith.constant 0 : i32
    %c0_i32_2 = arith.constant 0 : i32
    return %arg0, %c0_i32, %c0_i32_0, %c0_i32_1 : i32, i32, i32, i32
  }
  func.func @transform_1(%arg0: i32) -> (i32, i32, i32) {
    %c0_i32 = arith.constant 0 : i32
    %c0_i32_0 = arith.constant 0 : i32
    %c0_i32_1 = arith.constant 0 : i32
    %c0_i32_2 = arith.constant 0 : i32
    return %c0_i32, %c0_i32_0, %c0_i32_1 : i32, i32, i32
  }
  func.func @transform_2(%arg0: i32) -> (i32, i32, i32) {
    %c0_i32 = arith.constant 0 : i32
    %c0_i32_0 = arith.constant 0 : i32
    %c0_i32_1 = arith.constant 0 : i32
    return %arg0, %c0_i32, %c0_i32_0 : i32, i32, i32
  }
  func.func @transform_3(%arg0: i32) -> (i32, i32, i32) {
    %c0_i32 = arith.constant 0 : i32
    %c0_i32_0 = arith.constant 0 : i32
    %c0_i32_1 = arith.constant 0 : i32
    return %arg0, %c0_i32, %c0_i32_0 : i32, i32, i32
  }
}

module attributes {stable_mosaic.version = 11 : i64} {
  func.func @glu_conv2_stats_kernel(%arg0: i32, %arg1: memref<1x256x256xbf16, #tpu.memory_space<vmem>>, %arg2: memref<1x256xf32, #tpu.memory_space<vmem>>, %arg3: memref<1x256xf32, #tpu.memory_space<vmem>>, %arg4: memref<3x384x128xbf16, #tpu.memory_space<vmem>>, %arg5: memref<1x256x128xbf16, #tpu.memory_space<vmem>>, %arg6: memref<1x2x128xf32, #tpu.memory_space<vmem>>, %arg7: memref<18x18x128xbf16, #tpu.memory_space<vmem>>, %arg8: memref<256x128xf32, #tpu.memory_space<vmem>>) attributes {dimension_semantics = [#tpu.dimension_semantics<parallel>], iteration_bounds = array<i64: 2>, scalar_prefetch = 0 : i64, scratch_operands = 2 : i64, tpu.core_type = #tpu.core_type<tc>, window_params = [{transform_indices = @transform_0, window_bounds = array<i64: 1, 256, 256>}, {pipeline_mode = #tpu.pipeline_mode<synchronous>, transform_indices = @transform_1, window_bounds = array<i64: 1, 256>}, {pipeline_mode = #tpu.pipeline_mode<synchronous>, transform_indices = @transform_2, window_bounds = array<i64: 1, 256>}, {pipeline_mode = #tpu.pipeline_mode<synchronous>, transform_indices = @transform_3, window_bounds = array<i64: 3, 384, 128>}, {transform_indices = @transform_4, window_bounds = array<i64: 1, 256, 128>}, {transform_indices = @transform_5, window_bounds = array<i64: 1, 2, 128>}]} {
    %c0 = arith.constant 0 : index
    %c0_0 = arith.constant 0 : index
    %c0_1 = arith.constant 0 : index
    %0 = vector.load %arg1[%c0, %c0_0, %c0_1] : memref<1x256x256xbf16, #tpu.memory_space<vmem>>, vector<1x256x256xbf16>
    %1 = vector.shape_cast %0 : vector<1x256x256xbf16> to vector<256x256xbf16>
    %2 = arith.extf %1 : vector<256x256xbf16> to vector<256x256xf32>
    %c0_2 = arith.constant 0 : index
    %c0_3 = arith.constant 0 : index
    %3 = vector.load %arg2[%c0_2, %c0_3] : memref<1x256xf32, #tpu.memory_space<vmem>>, vector<1x256xf32>
    %4 = vector.broadcast %3 : vector<1x256xf32> to vector<256x256xf32>
    %5 = arith.mulf %2, %4 : vector<256x256xf32>
    %c0_4 = arith.constant 0 : index
    %c0_5 = arith.constant 0 : index
    %6 = vector.load %arg3[%c0_4, %c0_5] : memref<1x256xf32, #tpu.memory_space<vmem>>, vector<1x256xf32>
    %7 = vector.broadcast %6 : vector<1x256xf32> to vector<256x256xf32>
    %8 = arith.addf %5, %7 : vector<256x256xf32>
    %9 = vector.extract_strided_slice %8 {offsets = [0, 0], sizes = [256, 128], strides = [1, 1]} : vector<256x256xf32> to vector<256x128xf32>
    %10 = vector.extract_strided_slice %8 {offsets = [0, 128], sizes = [256, 128], strides = [1, 1]} : vector<256x256xf32> to vector<256x128xf32>
    %11 = arith.negf %10 : vector<256x128xf32>
    %12 = math.exp %11 : vector<256x128xf32>
    %cst = arith.constant 1.000000e+00 : f32
    %13 = vector.broadcast %cst : f32 to vector<256x128xf32>
    %14 = arith.addf %13, %12 : vector<256x128xf32>
    %15 = arith.divf %13, %14 : vector<256x128xf32>
    %16 = arith.mulf %9, %15 : vector<256x128xf32>
    %17 = vector.shape_cast %16 : vector<256x128xf32> to vector<16x16x128xf32>
    %cst_6 = arith.constant 0.000000e+00 : bf16
    %18 = vector.broadcast %cst_6 : bf16 to vector<1x18x128xbf16>
    %cst_7 = arith.constant 0.000000e+00 : bf16
    %19 = vector.broadcast %cst_7 : bf16 to vector<16x1x128xbf16>
    %c0_8 = arith.constant 0 : index
    %c0_9 = arith.constant 0 : index
    %c0_10 = arith.constant 0 : index
    %20 = vector.load %arg7[%c0_8, %c0_9, %c0_10] : memref<18x18x128xbf16, #tpu.memory_space<vmem>>, vector<1x18x128xbf16>
    tpu.vector_store %arg7[%c0_8, %c0_9, %c0_10], %18 {strides = array<i32>} : memref<18x18x128xbf16, #tpu.memory_space<vmem>>, vector<1x18x128xbf16>,
    %c17 = arith.constant 17 : index
    %c0_11 = arith.constant 0 : index
    %c0_12 = arith.constant 0 : index
    %21 = vector.load %arg7[%c17, %c0_11, %c0_12] : memref<18x18x128xbf16, #tpu.memory_space<vmem>>, vector<1x18x128xbf16>
    tpu.vector_store %arg7[%c17, %c0_11, %c0_12], %18 {strides = array<i32>} : memref<18x18x128xbf16, #tpu.memory_space<vmem>>, vector<1x18x128xbf16>,
    %c1 = arith.constant 1 : index
    %c0_13 = arith.constant 0 : index
    %c0_14 = arith.constant 0 : index
    %22 = vector.load %arg7[%c1, %c0_13, %c0_14] : memref<18x18x128xbf16, #tpu.memory_space<vmem>>, vector<16x1x128xbf16>
    tpu.vector_store %arg7[%c1, %c0_13, %c0_14], %19 {strides = array<i32>} : memref<18x18x128xbf16, #tpu.memory_space<vmem>>, vector<16x1x128xbf16>,
    %c1_15 = arith.constant 1 : index
    %c17_16 = arith.constant 17 : index
    %c0_17 = arith.constant 0 : index
    %23 = vector.load %arg7[%c1_15, %c17_16, %c0_17] : memref<18x18x128xbf16, #tpu.memory_space<vmem>>, vector<16x1x128xbf16>
    tpu.vector_store %arg7[%c1_15, %c17_16, %c0_17], %19 {strides = array<i32>} : memref<18x18x128xbf16, #tpu.memory_space<vmem>>, vector<16x1x128xbf16>,
    %24 = arith.truncf %17 : vector<16x16x128xf32> to vector<16x16x128xbf16>
    %c1_18 = arith.constant 1 : index
    %c1_19 = arith.constant 1 : index
    %c0_20 = arith.constant 0 : index
    %25 = vector.load %arg7[%c1_18, %c1_19, %c0_20] : memref<18x18x128xbf16, #tpu.memory_space<vmem>>, vector<16x16x128xbf16>
    tpu.vector_store %arg7[%c1_18, %c1_19, %c0_20], %24 {strides = array<i32>} : memref<18x18x128xbf16, #tpu.memory_space<vmem>>, vector<16x16x128xbf16>,
    %c0_21 = arith.constant 0 : index
    %c0_22 = arith.constant 0 : index
    %c0_23 = arith.constant 0 : index
    %26 = vector.load %arg7[%c0_21, %c0_22, %c0_23] : memref<18x18x128xbf16, #tpu.memory_space<vmem>>, vector<16x16x128xbf16>
    %c0_24 = arith.constant 0 : index
    %c1_25 = arith.constant 1 : index
    %c0_26 = arith.constant 0 : index
    %27 = vector.load %arg7[%c0_24, %c1_25, %c0_26] : memref<18x18x128xbf16, #tpu.memory_space<vmem>>, vector<16x16x128xbf16>
    %c0_27 = arith.constant 0 : index
    %c2 = arith.constant 2 : index
    %c0_28 = arith.constant 0 : index
    %28 = vector.load %arg7[%c0_27, %c2, %c0_28] : memref<18x18x128xbf16, #tpu.memory_space<vmem>>, vector<16x16x128xbf16>
    %29 = tpu.concatenate %26, %27, %28 in 2 : vector<16x16x128xbf16>, vector<16x16x128xbf16>, vector<16x16x128xbf16> -> vector<16x16x384xbf16>
    %30 = vector.shape_cast %29 : vector<16x16x384xbf16> to vector<256x384xbf16>
    %c0_29 = arith.constant 0 : index
    %c0_30 = arith.constant 0 : index
    %c0_31 = arith.constant 0 : index
    %31 = vector.load %arg4[%c0_29, %c0_30, %c0_31] : memref<3x384x128xbf16, #tpu.memory_space<vmem>>, vector<1x384x128xbf16>
    %32 = vector.shape_cast %31 : vector<1x384x128xbf16> to vector<384x128xbf16>
    %cst_32 = arith.constant dense<0.000000e+00> : vector<256x128xf32>
    %33 = tpu.matmul %30, %32, %cst_32 {dimension_numbers = #tpu.dot_dimension_numbers<[1], [0], [0], [1], [0, 0, 1, 1], [], []>} : vector<256x384xbf16>, vector<384x128xbf16>, vector<256x128xf32> -> vector<256x128xf32>
    %c0_33 = arith.constant 0 : index
    %c0_34 = arith.constant 0 : index
    %34 = vector.load %arg8[%c0_33, %c0_34] : memref<256x128xf32, #tpu.memory_space<vmem>>, vector<256x128xf32>
    tpu.vector_store %arg8[%c0_33, %c0_34], %33 {strides = array<i32>} : memref<256x128xf32, #tpu.memory_space<vmem>>, vector<256x128xf32>,
    %c1_35 = arith.constant 1 : index
    %c0_36 = arith.constant 0 : index
    %c0_37 = arith.constant 0 : index
    %35 = vector.load %arg7[%c1_35, %c0_36, %c0_37] : memref<18x18x128xbf16, #tpu.memory_space<vmem>>, vector<16x16x128xbf16>
    %c1_38 = arith.constant 1 : index
    %c1_39 = arith.constant 1 : index
    %c0_40 = arith.constant 0 : index
    %36 = vector.load %arg7[%c1_38, %c1_39, %c0_40] : memref<18x18x128xbf16, #tpu.memory_space<vmem>>, vector<16x16x128xbf16>
    %c1_41 = arith.constant 1 : index
    %c2_42 = arith.constant 2 : index
    %c0_43 = arith.constant 0 : index
    %37 = vector.load %arg7[%c1_41, %c2_42, %c0_43] : memref<18x18x128xbf16, #tpu.memory_space<vmem>>, vector<16x16x128xbf16>
    %38 = tpu.concatenate %35, %36, %37 in 2 : vector<16x16x128xbf16>, vector<16x16x128xbf16>, vector<16x16x128xbf16> -> vector<16x16x384xbf16>
    %39 = vector.shape_cast %38 : vector<16x16x384xbf16> to vector<256x384xbf16>
    %c1_44 = arith.constant 1 : index
    %c0_45 = arith.constant 0 : index
    %c0_46 = arith.constant 0 : index
    %40 = vector.load %arg4[%c1_44, %c0_45, %c0_46] : memref<3x384x128xbf16, #tpu.memory_space<vmem>>, vector<1x384x128xbf16>
    %41 = vector.shape_cast %40 : vector<1x384x128xbf16> to vector<384x128xbf16>
    %cst_47 = arith.constant dense<0.000000e+00> : vector<256x128xf32>
    %42 = tpu.matmul %39, %41, %cst_47 {dimension_numbers = #tpu.dot_dimension_numbers<[1], [0], [0], [1], [0, 0, 1, 1], [], []>} : vector<256x384xbf16>, vector<384x128xbf16>, vector<256x128xf32> -> vector<256x128xf32>
    %c0_48 = arith.constant 0 : index
    %c0_49 = arith.constant 0 : index
    %43 = vector.load %arg8[%c0_48, %c0_49] : memref<256x128xf32, #tpu.memory_space<vmem>>, vector<256x128xf32>
    %44 = arith.addf %43, %42 : vector<256x128xf32>
    %c0_50 = arith.constant 0 : index
    %c0_51 = arith.constant 0 : index
    %45 = vector.load %arg8[%c0_50, %c0_51] : memref<256x128xf32, #tpu.memory_space<vmem>>, vector<256x128xf32>
    tpu.vector_store %arg8[%c0_50, %c0_51], %44 {strides = array<i32>} : memref<256x128xf32, #tpu.memory_space<vmem>>, vector<256x128xf32>,
    %c2_52 = arith.constant 2 : index
    %c0_53 = arith.constant 0 : index
    %c0_54 = arith.constant 0 : index
    %46 = vector.load %arg7[%c2_52, %c0_53, %c0_54] : memref<18x18x128xbf16, #tpu.memory_space<vmem>>, vector<16x16x128xbf16>
    %c2_55 = arith.constant 2 : index
    %c1_56 = arith.constant 1 : index
    %c0_57 = arith.constant 0 : index
    %47 = vector.load %arg7[%c2_55, %c1_56, %c0_57] : memref<18x18x128xbf16, #tpu.memory_space<vmem>>, vector<16x16x128xbf16>
    %c2_58 = arith.constant 2 : index
    %c2_59 = arith.constant 2 : index
    %c0_60 = arith.constant 0 : index
    %48 = vector.load %arg7[%c2_58, %c2_59, %c0_60] : memref<18x18x128xbf16, #tpu.memory_space<vmem>>, vector<16x16x128xbf16>
    %49 = tpu.concatenate %46, %47, %48 in 2 : vector<16x16x128xbf16>, vector<16x16x128xbf16>, vector<16x16x128xbf16> -> vector<16x16x384xbf16>
    %50 = vector.shape_cast %49 : vector<16x16x384xbf16> to vector<256x384xbf16>
    %c2_61 = arith.constant 2 : index
    %c0_62 = arith.constant 0 : index
    %c0_63 = arith.constant 0 : index
    %51 = vector.load %arg4[%c2_61, %c0_62, %c0_63] : memref<3x384x128xbf16, #tpu.memory_space<vmem>>, vector<1x384x128xbf16>
    %52 = vector.shape_cast %51 : vector<1x384x128xbf16> to vector<384x128xbf16>
    %cst_64 = arith.constant dense<0.000000e+00> : vector<256x128xf32>
    %53 = tpu.matmul %50, %52, %cst_64 {dimension_numbers = #tpu.dot_dimension_numbers<[1], [0], [0], [1], [0, 0, 1, 1], [], []>} : vector<256x384xbf16>, vector<384x128xbf16>, vector<256x128xf32> -> vector<256x128xf32>
    %c0_65 = arith.constant 0 : index
    %c0_66 = arith.constant 0 : index
    %54 = vector.load %arg8[%c0_65, %c0_66] : memref<256x128xf32, #tpu.memory_space<vmem>>, vector<256x128xf32>
    %55 = arith.addf %54, %53 : vector<256x128xf32>
    %c0_67 = arith.constant 0 : index
    %c0_68 = arith.constant 0 : index
    %56 = vector.load %arg8[%c0_67, %c0_68] : memref<256x128xf32, #tpu.memory_space<vmem>>, vector<256x128xf32>
    tpu.vector_store %arg8[%c0_67, %c0_68], %55 {strides = array<i32>} : memref<256x128xf32, #tpu.memory_space<vmem>>, vector<256x128xf32>,
    %c0_69 = arith.constant 0 : index
    %c0_70 = arith.constant 0 : index
    %57 = vector.load %arg8[%c0_69, %c0_70] : memref<256x128xf32, #tpu.memory_space<vmem>>, vector<256x128xf32>
    %58 = arith.truncf %57 : vector<256x128xf32> to vector<256x128xbf16>
    %c0_71 = arith.constant 0 : index
    %c0_72 = arith.constant 0 : index
    %c0_73 = arith.constant 0 : index
    %59 = vector.load %arg5[%c0_71, %c0_72, %c0_73] : memref<1x256x128xbf16, #tpu.memory_space<vmem>>, vector<1x256x128xbf16>
    %60 = vector.shape_cast %59 : vector<1x256x128xbf16> to vector<256x128xbf16>
    %61 = vector.shape_cast %58 : vector<256x128xbf16> to vector<1x256x128xbf16>
    tpu.vector_store %arg5[%c0_71, %c0_72, %c0_73], %61 {strides = array<i32>} : memref<1x256x128xbf16, #tpu.memory_space<vmem>>, vector<1x256x128xbf16>,
    %cst_74 = arith.constant dense<0.000000e+00> : vector<128xf32>
    %62 = vector.multi_reduction <add>, %57, %cst_74 [0] : vector<256x128xf32> to vector<128xf32>
    %63 = vector.shape_cast %62 : vector<128xf32> to vector<1x128xf32>
    %64 = arith.mulf %57, %57 : vector<256x128xf32>
    %cst_75 = arith.constant dense<0.000000e+00> : vector<128xf32>
    %65 = vector.multi_reduction <add>, %64, %cst_75 [0] : vector<256x128xf32> to vector<128xf32>
    %66 = vector.shape_cast %65 : vector<128xf32> to vector<1x128xf32>
    %67 = tpu.concatenate %63, %66 in 0 : vector<1x128xf32>, vector<1x128xf32> -> vector<2x128xf32>
    %c0_76 = arith.constant 0 : index
    %c0_77 = arith.constant 0 : index
    %c0_78 = arith.constant 0 : index
    %68 = vector.load %arg6[%c0_76, %c0_77, %c0_78] : memref<1x2x128xf32, #tpu.memory_space<vmem>>, vector<1x2x128xf32>
    %69 = vector.shape_cast %68 : vector<1x2x128xf32> to vector<2x128xf32>
    %70 = vector.shape_cast %67 : vector<2x128xf32> to vector<1x2x128xf32>
    tpu.vector_store %arg6[%c0_76, %c0_77, %c0_78], %70 {strides = array<i32>} : memref<1x2x128xf32, #tpu.memory_space<vmem>>, vector<1x2x128xf32>,
    return
  }
  func.func @transform_0(%arg0: i32) -> (i32, i32, i32) {
    %c0_i32 = arith.constant 0 : i32
    %c0_i32_0 = arith.constant 0 : i32
    %c0_i32_1 = arith.constant 0 : i32
    return %arg0, %c0_i32, %c0_i32_0 : i32, i32, i32
  }
  func.func @transform_1(%arg0: i32) -> (i32, i32) {
    %c0_i32 = arith.constant 0 : i32
    %c0_i32_0 = arith.constant 0 : i32
    %c0_i32_1 = arith.constant 0 : i32
    return %c0_i32, %c0_i32_0 : i32, i32
  }
  func.func @transform_2(%arg0: i32) -> (i32, i32) {
    %c0_i32 = arith.constant 0 : i32
    %c0_i32_0 = arith.constant 0 : i32
    %c0_i32_1 = arith.constant 0 : i32
    return %c0_i32, %c0_i32_0 : i32, i32
  }
  func.func @transform_3(%arg0: i32) -> (i32, i32, i32) {
    %c0_i32 = arith.constant 0 : i32
    %c0_i32_0 = arith.constant 0 : i32
    %c0_i32_1 = arith.constant 0 : i32
    %c0_i32_2 = arith.constant 0 : i32
    return %c0_i32, %c0_i32_0, %c0_i32_1 : i32, i32, i32
  }
  func.func @transform_4(%arg0: i32) -> (i32, i32, i32) {
    %c0_i32 = arith.constant 0 : i32
    %c0_i32_0 = arith.constant 0 : i32
    %c0_i32_1 = arith.constant 0 : i32
    return %arg0, %c0_i32, %c0_i32_0 : i32, i32, i32
  }
  func.func @transform_5(%arg0: i32) -> (i32, i32, i32) {
    %c0_i32 = arith.constant 0 : i32
    %c0_i32_0 = arith.constant 0 : i32
    %c0_i32_1 = arith.constant 0 : i32
    return %arg0, %c0_i32, %c0_i32_0 : i32, i32, i32
  }
}

module attributes {stable_mosaic.version = 11 : i64} {
  func.func @bn2_residual_kernel(%arg0: i32, %arg1: memref<512x128xbf16, #tpu.memory_space<vmem>>, %arg2: memref<1x128xf32, #tpu.memory_space<vmem>>, %arg3: memref<1x128xf32, #tpu.memory_space<vmem>>, %arg4: memref<512x128xf32, #tpu.memory_space<vmem>>, %arg5: memref<512x128xf32, #tpu.memory_space<vmem>>) attributes {dimension_semantics = [#tpu.dimension_semantics<parallel>], iteration_bounds = array<i64: 1>, scalar_prefetch = 0 : i64, scratch_operands = 0 : i64, tpu.core_type = #tpu.core_type<tc>, window_params = [{transform_indices = @transform_0, window_bounds = array<i64: 512, 128>}, {pipeline_mode = #tpu.pipeline_mode<synchronous>, transform_indices = @transform_1, window_bounds = array<i64: 1, 128>}, {pipeline_mode = #tpu.pipeline_mode<synchronous>, transform_indices = @transform_2, window_bounds = array<i64: 1, 128>}, {transform_indices = @transform_3, window_bounds = array<i64: 512, 128>}, {transform_indices = @transform_4, window_bounds = array<i64: 512, 128>}]} {
    %c0 = arith.constant 0 : index
    %c0_0 = arith.constant 0 : index
    %0 = vector.load %arg1[%c0, %c0_0] : memref<512x128xbf16, #tpu.memory_space<vmem>>, vector<512x128xbf16>
    %1 = arith.extf %0 : vector<512x128xbf16> to vector<512x128xf32>
    %c0_1 = arith.constant 0 : index
    %c0_2 = arith.constant 0 : index
    %2 = vector.load %arg2[%c0_1, %c0_2] : memref<1x128xf32, #tpu.memory_space<vmem>>, vector<1x128xf32>
    %3 = vector.broadcast %2 : vector<1x128xf32> to vector<512x128xf32>
    %4 = arith.mulf %1, %3 : vector<512x128xf32>
    %c0_3 = arith.constant 0 : index
    %c0_4 = arith.constant 0 : index
    %5 = vector.load %arg3[%c0_3, %c0_4] : memref<1x128xf32, #tpu.memory_space<vmem>>, vector<1x128xf32>
    %6 = vector.broadcast %5 : vector<1x128xf32> to vector<512x128xf32>
    %7 = arith.addf %4, %6 : vector<512x128xf32>
    %c0_5 = arith.constant 0 : index
    %c0_6 = arith.constant 0 : index
    %8 = vector.load %arg4[%c0_5, %c0_6] : memref<512x128xf32, #tpu.memory_space<vmem>>, vector<512x128xf32>
    %9 = arith.addf %7, %8 : vector<512x128xf32>
    %c0_7 = arith.constant 0 : index
    %c0_8 = arith.constant 0 : index
    %10 = vector.load %arg5[%c0_7, %c0_8] : memref<512x128xf32, #tpu.memory_space<vmem>>, vector<512x128xf32>
    tpu.vector_store %arg5[%c0_7, %c0_8], %9 {strides = array<i32>} : memref<512x128xf32, #tpu.memory_space<vmem>>, vector<512x128xf32>,
    return
  }
  func.func @transform_0(%arg0: i32) -> (i32, i32) {
    %c0_i32 = arith.constant 0 : i32
    %c0_i32_0 = arith.constant 0 : i32
    return %arg0, %c0_i32 : i32, i32
  }
  func.func @transform_1(%arg0: i32) -> (i32, i32) {
    %c0_i32 = arith.constant 0 : i32
    %c0_i32_0 = arith.constant 0 : i32
    %c0_i32_1 = arith.constant 0 : i32
    return %c0_i32, %c0_i32_0 : i32, i32
  }
  func.func @transform_2(%arg0: i32) -> (i32, i32) {
    %c0_i32 = arith.constant 0 : i32
    %c0_i32_0 = arith.constant 0 : i32
    %c0_i32_1 = arith.constant 0 : i32
    return %c0_i32, %c0_i32_0 : i32, i32
  }
  func.func @transform_3(%arg0: i32) -> (i32, i32) {
    %c0_i32 = arith.constant 0 : i32
    %c0_i32_0 = arith.constant 0 : i32
    return %arg0, %c0_i32 : i32, i32
  }
  func.func @transform_4(%arg0: i32) -> (i32, i32) {
    %c0_i32 = arith.constant 0 : i32
    %c0_i32_0 = arith.constant 0 : i32
    return %arg0, %c0_i32 : i32, i32
  }
}

</mosaic_0001>

<llo_original>
// kernel: res_block_forward.5
$region0: #{res_block_forward.5}
  #allocation0 [shape = 'u32[]', space=smem, size = 0x4, offset = 0x4, fixed_abs, tag = 'smem constant byte address 0x4 - core index']
  #allocation1 [shape = 'u32[72,128]{1,0:T(1,128)}', space=vmem, size = 0x9000, scoped, tag = 'internal scratch']
  %s0 = inlined_call_operand.vmem [shape: bf16[512,128], index: 0, kind: input, shape index: {}]
  %s1 = inlined_call_operand.vmem [shape: f32[1,128], index: 1, kind: input, shape index: {}]
  %s2 = inlined_call_operand.vmem [shape: f32[1,128], index: 2, kind: input, shape index: {}]
  %s3 = inlined_call_operand.vmem [shape: f32[512,128], index: 3, kind: input, shape index: {}, may-alias: {3,4}]
  %s4 = inlined_call_operand.vmem [shape: f32[512,128], index: 4, kind: output, shape index: {}, may-alias: {3,4}]
  %s5 = sld [smem:[#allocation0]]
  $region26: #{res_block_forward.5} parent=0
    _
  %s7 = ssub.s32 1, %s5
  %s8 = scalar_select 0, %s7, %s5
  // Predicated region
  $region2: #{res_block_forward.5} parent=0 // pred_check
    _
  $region3: #{res_block_forward.5} parent=0 // pred_check_branch
    %10 = sbr.rel (0) target = $region5
  $region4: #{res_block_forward.5} parent=0 // pred_region
    _
  $region5: #{res_block_forward.5} parent=0 // pred_fallthru
    _
  // Predicated region
  $region6: #{res_block_forward.5} parent=0 // pred_check
    _
  $region7: #{res_block_forward.5} parent=0 // pred_check_branch
    %12 = sbr.rel (0) target = $region9
  $region8: #{res_block_forward.5} parent=0 // pred_region
    _
  $region9: #{res_block_forward.5} parent=0 // pred_fallthru
    _
  // Predicated region
  $region10: #{res_block_forward.5} parent=0 // pred_check
    _
  $region11: #{res_block_forward.5} parent=0 // pred_check_branch
    %14 = sbr.rel (0) target = $region13
  $region12: #{res_block_forward.5} parent=0 // pred_region
    _
  $region13: #{res_block_forward.5} parent=0 // pred_fallthru
    _
  // Predicated region
  $region14: #{res_block_forward.5} parent=0 // pred_check
    _
  $region15: #{res_block_forward.5} parent=0 // pred_check_branch
    %16 = sbr.rel (0) target = $region17
  $region16: #{res_block_forward.5} parent=0 // pred_region
    _
  $region17: #{res_block_forward.5} parent=0 // pred_fallthru
    _
  %v17 = vld [vmem:[%s0] sm:$0xf]
  %v18 = vld [vmem:[%s0 + $0x4] sm:$0xf]
  %v19 = vld [vmem:[%s0 + $0x8] sm:$0xf]
  %v20 = vld [vmem:[%s0 + $0xc] sm:$0xf]
  %v21 = vld [vmem:[%s0 + $0x10] sm:$0xf]
  %v22 = vld [vmem:[%s0 + $0x14] sm:$0xf]
  %v23 = vld [vmem:[%s0 + $0x18] sm:$0xf]
  %v24 = vld [vmem:[%s0 + $0x1c] sm:$0xf]
  %v25 = vld [vmem:[%s0 + $0x20] sm:$0xf]
  %v26 = vld [vmem:[%s0 + $0x24] sm:$0xf]
  %v27 = vld [vmem:[%s0 + $0x28] sm:$0xf]
  %v28 = vld [vmem:[%s0 + $0x2c] sm:$0xf]
  %v29 = vld [vmem:[%s0 + $0x30] sm:$0xf]
  %v30 = vld [vmem:[%s0 + $0x34] sm:$0xf]
  %v31 = vld [vmem:[%s0 + $0x38] sm:$0xf]
  %v32 = vld [vmem:[%s0 + $0x3c] sm:$0xf]
  %v33 = vld [vmem:[%s0 + $0x40] sm:$0xf]
  %v34 = vld [vmem:[%s0 + $0x44] sm:$0xf]
  %v35 = vld [vmem:[%s0 + $0x48] sm:$0xf]
  %v36 = vld [vmem:[%s0 + $0x4c] sm:$0xf]
  %v37 = vld [vmem:[%s0 + $0x50] sm:$0xf]
  %v38 = vld [vmem:[%s0 + $0x54] sm:$0xf]
  %v39 = vld [vmem:[%s0 + $0x58] sm:$0xf]
  %v40 = vld [vmem:[%s0 + $0x5c] sm:$0xf]
  %v41 = vld [vmem:[%s0 + $0x60] sm:$0xf]
  %v42 = vld [vmem:[%s0 + $0x64] sm:$0xf]
  %v43 = vld [vmem:[%s0 + $0x68] sm:$0xf]
  %v44 = vld [vmem:[%s0 + $0x6c] sm:$0xf]
  %v45 = vld [vmem:[%s0 + $0x70] sm:$0xf]
  %v46 = vld [vmem:[%s0 + $0x74] sm:$0xf]
  %v47 = vld [vmem:[%s0 + $0x78] sm:$0xf]
  %v48 = vld [vmem:[%s0 + $0x7c] sm:$0xf]
  %v49 = vld [vmem:[%s0 + $0x80] sm:$0xf]
  %v50 = vld [vmem:[%s0 + $0x84] sm:$0xf]
  %v51 = vld [vmem:[%s0 + $0x88] sm:$0xf]
  %v52 = vld [vmem:[%s0 + $0x8c] sm:$0xf]
  %v53 = vld [vmem:[%s0 + $0x90] sm:$0xf]
  %v54 = vld [vmem:[%s0 + $0x94] sm:$0xf]
  %v55 = vld [vmem:[%s0 + $0x98] sm:$0xf]
  %v56 = vld [vmem:[%s0 + $0x9c] sm:$0xf]
  %v57 = vld [vmem:[%s0 + $0xa0] sm:$0xf]
  %v58 = vld [vmem:[%s0 + $0xa4] sm:$0xf]
  %v59 = vld [vmem:[%s0 + $0xa8] sm:$0xf]
  %v60 = vld [vmem:[%s0 + $0xac] sm:$0xf]
  %v61 = vld [vmem:[%s0 + $0xb0] sm:$0xf]
  %v62 = vld [vmem:[%s0 + $0xb4] sm:$0xf]
  %v63 = vld [vmem:[%s0 + $0xb8] sm:$0xf]
  %v64 = vld [vmem:[%s0 + $0xbc] sm:$0xf]
  %v65 = vld [vmem:[%s0 + $0xc0] sm:$0xf]
  %v66 = vld [vmem:[%s0 + $0xc4] sm:$0xf]
  %v67 = vld [vmem:[%s0 + $0xc8] sm:$0xf]
  %v68 = vld [vmem:[%s0 + $0xcc] sm:$0xf]
  %v69 = vld [vmem:[%s0 + $0xd0] sm:$0xf]
  %v70 = vld [vmem:[%s0 + $0xd4] sm:$0xf]
  %v71 = vld [vmem:[%s0 + $0xd8] sm:$0xf]
  %v72 = vld [vmem:[%s0 + $0xdc] sm:$0xf]
  %v73 = vld [vmem:[%s0 + $0xe0] sm:$0xf]
  %v74 = vld [vmem:[%s0 + $0xe4] sm:$0xf]
  %v75 = vld [vmem:[%s0 + $0xe8] sm:$0xf]
  %v76 = vld [vmem:[%s0 + $0xec] sm:$0xf]
  %v77 = vld [vmem:[%s0 + $0xf0] sm:$0xf]
  %v78 = vld [vmem:[%s0 + $0xf4] sm:$0xf]
  %v79 = vld [vmem:[%s0 + $0xf8] sm:$0xf]
  %v80 = vld [vmem:[%s0 + $0xfc] sm:$0xf]
  %v81 = vunpack.c.l.bf16 %v17
  %v82 = vunpack.c.l.bf16 %v18
  %v83 = vunpack.c.l.bf16 %v19
  %v84 = vunpack.c.l.bf16 %v20
  %v85 = vunpack.c.l.bf16 %v21
  %v86 = vunpack.c.l.bf16 %v22
  %v87 = vunpack.c.l.bf16 %v23
  %v88 = vunpack.c.l.bf16 %v24
  %v89 = vunpack.c.l.bf16 %v25
  %v90 = vunpack.c.l.bf16 %v26
  %v91 = vunpack.c.l.bf16 %v27
  %v92 = vunpack.c.l.bf16 %v28
  %v93 = vunpack.c.l.bf16 %v29
  %v94 = vunpack.c.l.bf16 %v30
  %v95 = vunpack.c.l.bf16 %v31
  %v96 = vunpack.c.l.bf16 %v32
  %v97 = vunpack.c.l.bf16 %v33
  %v98 = vunpack.c.l.bf16 %v34
  %v99 = vunpack.c.l.bf16 %v35
  %v100 = vunpack.c.l.bf16 %v36
  %v101 = vunpack.c.l.bf16 %v37
  %v102 = vunpack.c.l.bf16 %v38
  %v103 = vunpack.c.l.bf16 %v39
  %v104 = vunpack.c.l.bf16 %v40
  %v105 = vunpack.c.l.bf16 %v41
  %v106 = vunpack.c.l.bf16 %v42
  %v107 = vunpack.c.l.bf16 %v43
  %v108 = vunpack.c.l.bf16 %v44
  %v109 = vunpack.c.l.bf16 %v45
  %v110 = vunpack.c.l.bf16 %v46
  %v111 = vunpack.c.l.bf16 %v47
  %v112 = vunpack.c.l.bf16 %v48
  %v113 = vunpack.c.l.bf16 %v49
  %v114 = vunpack.c.l.bf16 %v50
  %v115 = vunpack.c.l.bf16 %v51
  %v116 = vunpack.c.l.bf16 %v52
  %v117 = vunpack.c.l.bf16 %v53
  %v118 = vunpack.c.l.bf16 %v54
  %v119 = vunpack.c.l.bf16 %v55
  %v120 = vunpack.c.l.bf16 %v56
  %v121 = vunpack.c.l.bf16 %v57
  %v122 = vunpack.c.l.bf16 %v58
  %v123 = vunpack.c.l.bf16 %v59
  %v124 = vunpack.c.l.bf16 %v60
  %v125 = vunpack.c.l.bf16 %v61
  %v126 = vunpack.c.l.bf16 %v62
  %v127 = vunpack.c.l.bf16 %v63
  %v128 = vunpack.c.l.bf16 %v64
  %v129 = vunpack.c.l.bf16 %v65
  %v130 = vunpack.c.l.bf16 %v66
  %v131 = vunpack.c.l.bf16 %v67
  %v132 = vunpack.c.l.bf16 %v68
  %v133 = vunpack.c.l.bf16 %v69
  %v134 = vunpack.c.l.bf16 %v70
  %v135 = vunpack.c.l.bf16 %v71
  %v136 = vunpack.c.l.bf16 %v72
  %v137 = vunpack.c.l.bf16 %v73
  %v138 = vunpack.c.l.bf16 %v74
  %v139 = vunpack.c.l.bf16 %v75
  %v140 = vunpack.c.l.bf16 %v76
  %v141 = vunpack.c.l.bf16 %v77
  %v142 = vunpack.c.l.bf16 %v78
  %v143 = vunpack.c.l.bf16 %v79
  %v144 = vunpack.c.l.bf16 %v80
  %v145 = vld [vmem:[%s1] sm:$0x1]
  %v147 = vperm.slane %v145, 0
  %v149 = vmul.f32 %v81, %v147
  %v150 = vmul.f32 %v82, %v147
  %v151 = vmul.f32 %v83, %v147
  %v152 = vmul.f32 %v84, %v147
  %v153 = vmul.f32 %v85, %v147
  %v154 = vmul.f32 %v86, %v147
  %v155 = vmul.f32 %v87, %v147
  %v156 = vmul.f32 %v88, %v147
  %v157 = vmul.f32 %v89, %v147
  %v158 = vmul.f32 %v90, %v147
  %v159 = vmul.f32 %v91, %v147
  %v160 = vmul.f32 %v92, %v147
  %v161 = vmul.f32 %v93, %v147
  %v162 = vmul.f32 %v94, %v147
  %v163 = vmul.f32 %v95, %v147
  %v164 = vmul.f32 %v96, %v147
  %v165 = vmul.f32 %v97, %v147
  %v166 = vmul.f32 %v98, %v147
  %v167 = vmul.f32 %v99, %v147
  %v168 = vmul.f32 %v100, %v147
  %v169 = vmul.f32 %v101, %v147
  %v170 = vmul.f32 %v102, %v147
  %v171 = vmul.f32 %v103, %v147
  %v172 = vmul.f32 %v104, %v147
  %v173 = vmul.f32 %v105, %v147
  %v174 = vmul.f32 %v106, %v147
  %v175 = vmul.f32 %v107, %v147
  %v176 = vmul.f32 %v108, %v147
  %v177 = vmul.f32 %v109, %v147
  %v178 = vmul.f32 %v110, %v147
  %v179 = vmul.f32 %v111, %v147
  %v180 = vmul.f32 %v112, %v147
  %v181 = vmul.f32 %v113, %v147
  %v182 = vmul.f32 %v114, %v147
  %v183 = vmul.f32 %v115, %v147
  %v184 = vmul.f32 %v116, %v147
  %v185 = vmul.f32 %v117, %v147
  %v186 = vmul.f32 %v118, %v147
  %v187 = vmul.f32 %v119, %v147
  %v188 = vmul.f32 %v120, %v147
  %v189 = vmul.f32 %v121, %v147
  %v190 = vmul.f32 %v122, %v147
  %v191 = vmul.f32 %v123, %v147
  %v192 = vmul.f32 %v124, %v147
  %v193 = vmul.f32 %v125, %v147
  %v194 = vmul.f32 %v126, %v147
  %v195 = vmul.f32 %v127, %v147
  %v196 = vmul.f32 %v128, %v147
  %v197 = vmul.f32 %v129, %v147
  %v198 = vmul.f32 %v130, %v147
  %v199 = vmul.f32 %v131, %v147
  %v200 = vmul.f32 %v132, %v147
  %v201 = vmul.f32 %v133, %v147
  %v202 = vmul.f32 %v134, %v147
  %v203 = vmul.f32 %v135, %v147
  %v204 = vmul.f32 %v136, %v147
  %v205 = vmul.f32 %v137, %v147
  %v206 = vmul.f32 %v138, %v147
  %v207 = vmul.f32 %v139, %v147
  %v208 = vmul.f32 %v140, %v147
  %v209 = vmul.f32 %v141, %v147
  %v210 = vmul.f32 %v142, %v147
  %v211 = vmul.f32 %v143, %v147
  %v212 = vmul.f32 %v144, %v147
  %v213 = vld [vmem:[%s2] sm:$0x1]
  %v215 = vperm.slane %v213, 0
  %v217 = vadd.f32 %v149, %v215
  %v218 = vadd.f32 %v150, %v215
  %v219 = vadd.f32 %v151, %v215
  %v220 = vadd.f32 %v152, %v215
  %v221 = vadd.f32 %v153, %v215
  %v222 = vadd.f32 %v154, %v215
  %v223 = vadd.f32 %v155, %v215
  %v224 = vadd.f32 %v156, %v215
  %v225 = vadd.f32 %v157, %v215
  %v226 = vadd.f32 %v158, %v215
  %v227 = vadd.f32 %v159, %v215
  %v228 = vadd.f32 %v160, %v215
  %v229 = vadd.f32 %v161, %v215
  %v230 = vadd.f32 %v162, %v215
  %v231 = vadd.f32 %v163, %v215
  %v232 = vadd.f32 %v164, %v215
  %v233 = vadd.f32 %v165, %v215
  %v234 = vadd.f32 %v166, %v215
  %v235 = vadd.f32 %v167, %v215
  %v236 = vadd.f32 %v168, %v215
  %v237 = vadd.f32 %v169, %v215
  %v238 = vadd.f32 %v170, %v215
  %v239 = vadd.f32 %v171, %v215
  %v240 = vadd.f32 %v172, %v215
  %v241 = vadd.f32 %v173, %v215
  %v242 = vadd.f32 %v174, %v215
  %v243 = vadd.f32 %v175, %v215
  %v244 = vadd.f32 %v176, %v215
  %v245 = vadd.f32 %v177, %v215
  %v246 = vadd.f32 %v178, %v215
  %v247 = vadd.f32 %v179, %v215
  %v248 = vadd.f32 %v180, %v215
  %v249 = vadd.f32 %v181, %v215
  %v250 = vadd.f32 %v182, %v215
  %v251 = vadd.f32 %v183, %v215
  %v252 = vadd.f32 %v184, %v215
  %v253 = vadd.f32 %v185, %v215
  %v254 = vadd.f32 %v186, %v215
  %v255 = vadd.f32 %v187, %v215
  %v256 = vadd.f32 %v188, %v215
  %v257 = vadd.f32 %v189, %v215
  %v258 = vadd.f32 %v190, %v215
  %v259 = vadd.f32 %v191, %v215
  %v260 = vadd.f32 %v192, %v215
  %v261 = vadd.f32 %v193, %v215
  %v262 = vadd.f32 %v194, %v215
  %v263 = vadd.f32 %v195, %v215
  %v264 = vadd.f32 %v196, %v215
  %v265 = vadd.f32 %v197, %v215
  %v266 = vadd.f32 %v198, %v215
  %v267 = vadd.f32 %v199, %v215
  %v268 = vadd.f32 %v200, %v215
  %v269 = vadd.f32 %v201, %v215
  %v270 = vadd.f32 %v202, %v215
  %v271 = vadd.f32 %v203, %v215
  %v272 = vadd.f32 %v204, %v215
  %v273 = vadd.f32 %v205, %v215
  %v274 = vadd.f32 %v206, %v215
  %v275 = vadd.f32 %v207, %v215
  %v276 = vadd.f32 %v208, %v215
  %v277 = vadd.f32 %v209, %v215
  %v278 = vadd.f32 %v210, %v215
  %v279 = vadd.f32 %v211, %v215
  %v280 = vadd.f32 %v212, %v215
  %v281 = vld [vmem:[%s3] sm:$0xff]
  %v282 = vld [vmem:[%s3 + $0x8] sm:$0xff]
  %v283 = vld [vmem:[%s3 + $0x10] sm:$0xff]
  %v284 = vld [vmem:[%s3 + $0x18] sm:$0xff]
  %v285 = vld [vmem:[%s3 + $0x20] sm:$0xff]
  %v286 = vld [vmem:[%s3 + $0x28] sm:$0xff]
  %v287 = vld [vmem:[%s3 + $0x30] sm:$0xff]
  %v288 = vld [vmem:[%s3 + $0x38] sm:$0xff]
  %v289 = vld [vmem:[%s3 + $0x40] sm:$0xff]
  %v290 = vld [vmem:[%s3 + $0x48] sm:$0xff]
  %v291 = vld [vmem:[%s3 + $0x50] sm:$0xff]
  %v292 = vld [vmem:[%s3 + $0x58] sm:$0xff]
  %v293 = vld [vmem:[%s3 + $0x60] sm:$0xff]
  %v294 = vld [vmem:[%s3 + $0x68] sm:$0xff]
  %v295 = vld [vmem:[%s3 + $0x70] sm:$0xff]
  %v296 = vld [vmem:[%s3 + $0x78] sm:$0xff]
  %v297 = vld [vmem:[%s3 + $0x80] sm:$0xff]
  %v298 = vld [vmem:[%s3 + $0x88] sm:$0xff]
  %v299 = vld [vmem:[%s3 + $0x90] sm:$0xff]
  %v300 = vld [vmem:[%s3 + $0x98] sm:$0xff]
  %v301 = vld [vmem:[%s3 + $0xa0] sm:$0xff]
  %v302 = vld [vmem:[%s3 + $0xa8] sm:$0xff]
  %v303 = vld [vmem:[%s3 + $0xb0] sm:$0xff]
  %v304 = vld [vmem:[%s3 + $0xb8] sm:$0xff]
  %v305 = vld [vmem:[%s3 + $0xc0] sm:$0xff]
  %v306 = vld [vmem:[%s3 + $0xc8] sm:$0xff]
  %v307 = vld [vmem:[%s3 + $0xd0] sm:$0xff]
  %v308 = vld [vmem:[%s3 + $0xd8] sm:$0xff]
  %v309 = vld [vmem:[%s3 + $0xe0] sm:$0xff]
  %v310 = vld [vmem:[%s3 + $0xe8] sm:$0xff]
  %v311 = vld [vmem:[%s3 + $0xf0] sm:$0xff]
  %v312 = vld [vmem:[%s3 + $0xf8] sm:$0xff]
  %v313 = vld [vmem:[%s3 + $0x100] sm:$0xff]
  %v314 = vld [vmem:[%s3 + $0x108] sm:$0xff]
  %v315 = vld [vmem:[%s3 + $0x110] sm:$0xff]
  %v316 = vld [vmem:[%s3 + $0x118] sm:$0xff]
  %v317 = vld [vmem:[%s3 + $0x120] sm:$0xff]
  %v318 = vld [vmem:[%s3 + $0x128] sm:$0xff]
  %v319 = vld [vmem:[%s3 + $0x130] sm:$0xff]
  %v320 = vld [vmem:[%s3 + $0x138] sm:$0xff]
  %v321 = vld [vmem:[%s3 + $0x140] sm:$0xff]
  %v322 = vld [vmem:[%s3 + $0x148] sm:$0xff]
  %v323 = vld [vmem:[%s3 + $0x150] sm:$0xff]
  %v324 = vld [vmem:[%s3 + $0x158] sm:$0xff]
  %v325 = vld [vmem:[%s3 + $0x160] sm:$0xff]
  %v326 = vld [vmem:[%s3 + $0x168] sm:$0xff]
  %v327 = vld [vmem:[%s3 + $0x170] sm:$0xff]
  %v328 = vld [vmem:[%s3 + $0x178] sm:$0xff]
  %v329 = vld [vmem:[%s3 + $0x180] sm:$0xff]
  %v330 = vld [vmem:[%s3 + $0x188] sm:$0xff]
  %v331 = vld [vmem:[%s3 + $0x190] sm:$0xff]
  %v332 = vld [vmem:[%s3 + $0x198] sm:$0xff]
  %v333 = vld [vmem:[%s3 + $0x1a0] sm:$0xff]
  %v334 = vld [vmem:[%s3 + $0x1a8] sm:$0xff]
  %v335 = vld [vmem:[%s3 + $0x1b0] sm:$0xff]
  %v336 = vld [vmem:[%s3 + $0x1b8] sm:$0xff]
  %v337 = vld [vmem:[%s3 + $0x1c0] sm:$0xff]
  %v338 = vld [vmem:[%s3 + $0x1c8] sm:$0xff]
  %v339 = vld [vmem:[%s3 + $0x1d0] sm:$0xff]
  %v340 = vld [vmem:[%s3 + $0x1d8] sm:$0xff]
  %v341 = vld [vmem:[%s3 + $0x1e0] sm:$0xff]
  %v342 = vld [vmem:[%s3 + $0x1e8] sm:$0xff]
  %v343 = vld [vmem:[%s3 + $0x1f0] sm:$0xff]
  %v344 = vld [vmem:[%s3 + $0x1f8] sm:$0xff]
  %v345 = vadd.f32 %v217, %v281
  %v346 = vadd.f32 %v218, %v282
  %v347 = vadd.f32 %v219, %v283
  %v348 = vadd.f32 %v220, %v284
  %v349 = vadd.f32 %v221, %v285
  %v350 = vadd.f32 %v222, %v286
  %v351 = vadd.f32 %v223, %v287
  %v352 = vadd.f32 %v224, %v288
  %v353 = vadd.f32 %v225, %v289
  %v354 = vadd.f32 %v226, %v290
  %v355 = vadd.f32 %v227, %v291
  %v356 = vadd.f32 %v228, %v292
  %v357 = vadd.f32 %v229, %v293
  %v358 = vadd.f32 %v230, %v294
  %v359 = vadd.f32 %v231, %v295
  %v360 = vadd.f32 %v232, %v296
  %v361 = vadd.f32 %v233, %v297
  %v362 = vadd.f32 %v234, %v298
  %v363 = vadd.f32 %v235, %v299
  %v364 = vadd.f32 %v236, %v300
  %v365 = vadd.f32 %v237, %v301
  %v366 = vadd.f32 %v238, %v302
  %v367 = vadd.f32 %v239, %v303
  %v368 = vadd.f32 %v240, %v304
  %v369 = vadd.f32 %v241, %v305
  %v370 = vadd.f32 %v242, %v306
  %v371 = vadd.f32 %v243, %v307
  %v372 = vadd.f32 %v244, %v308
  %v373 = vadd.f32 %v245, %v309
  %v374 = vadd.f32 %v246, %v310
  %v375 = vadd.f32 %v247, %v311
  %v376 = vadd.f32 %v248, %v312
  %v377 = vadd.f32 %v249, %v313
  %v378 = vadd.f32 %v250, %v314
  %v379 = vadd.f32 %v251, %v315
  %v380 = vadd.f32 %v252, %v316
  %v381 = vadd.f32 %v253, %v317
  %v382 = vadd.f32 %v254, %v318
  %v383 = vadd.f32 %v255, %v319
  %v384 = vadd.f32 %v256, %v320
  %v385 = vadd.f32 %v257, %v321
  %v386 = vadd.f32 %v258, %v322
  %v387 = vadd.f32 %v259, %v323
  %v388 = vadd.f32 %v260, %v324
  %v389 = vadd.f32 %v261, %v325
  %v390 = vadd.f32 %v262, %v326
  %v391 = vadd.f32 %v263, %v327
  %v392 = vadd.f32 %v264, %v328
  %v393 = vadd.f32 %v265, %v329
  %v394 = vadd.f32 %v266, %v330
  %v395 = vadd.f32 %v267, %v331
  %v396 = vadd.f32 %v268, %v332
  %v397 = vadd.f32 %v269, %v333
  %v398 = vadd.f32 %v270, %v334
  %v399 = vadd.f32 %v271, %v335
  %v400 = vadd.f32 %v272, %v336
  %v401 = vadd.f32 %v273, %v337
  %v402 = vadd.f32 %v274, %v338
  %v403 = vadd.f32 %v275, %v339
  %v404 = vadd.f32 %v276, %v340
  %v405 = vadd.f32 %v277, %v341
  %v406 = vadd.f32 %v278, %v342
  %v407 = vadd.f32 %v279, %v343
  %v408 = vadd.f32 %v280, %v344
  %409 = vst [vmem:[%s4] sm:$0xff] %v345
  %410 = vst [vmem:[%s4 + $0x8] sm:$0xff] %v346
  %411 = vst [vmem:[%s4 + $0x10] sm:$0xff] %v347
  %412 = vst [vmem:[%s4 + $0x18] sm:$0xff] %v348
  %413 = vst [vmem:[%s4 + $0x20] sm:$0xff] %v349
  %414 = vst [vmem:[%s4 + $0x28] sm:$0xff] %v350
  %415 = vst [vmem:[%s4 + $0x30] sm:$0xff] %v351
  %416 = vst [vmem:[%s4 + $0x38] sm:$0xff] %v352
  %417 = vst [vmem:[%s4 + $0x40] sm:$0xff] %v353
  %418 = vst [vmem:[%s4 + $0x48] sm:$0xff] %v354
  %419 = vst [vmem:[%s4 + $0x50] sm:$0xff] %v355
  %420 = vst [vmem:[%s4 + $0x58] sm:$0xff] %v356
  %421 = vst [vmem:[%s4 + $0x60] sm:$0xff] %v357
  %422 = vst [vmem:[%s4 + $0x68] sm:$0xff] %v358
  %423 = vst [vmem:[%s4 + $0x70] sm:$0xff] %v359
  %424 = vst [vmem:[%s4 + $0x78] sm:$0xff] %v360
  %425 = vst [vmem:[%s4 + $0x80] sm:$0xff] %v361
  %426 = vst [vmem:[%s4 + $0x88] sm:$0xff] %v362
  %427 = vst [vmem:[%s4 + $0x90] sm:$0xff] %v363
  %428 = vst [vmem:[%s4 + $0x98] sm:$0xff] %v364
  %429 = vst [vmem:[%s4 + $0xa0] sm:$0xff] %v365
  %430 = vst [vmem:[%s4 + $0xa8] sm:$0xff] %v366
  %431 = vst [vmem:[%s4 + $0xb0] sm:$0xff] %v367
  %432 = vst [vmem:[%s4 + $0xb8] sm:$0xff] %v368
  %433 = vst [vmem:[%s4 + $0xc0] sm:$0xff] %v369
  %434 = vst [vmem:[%s4 + $0xc8] sm:$0xff] %v370
  %435 = vst [vmem:[%s4 + $0xd0] sm:$0xff] %v371
  %436 = vst [vmem:[%s4 + $0xd8] sm:$0xff] %v372
  %437 = vst [vmem:[%s4 + $0xe0] sm:$0xff] %v373
  %438 = vst [vmem:[%s4 + $0xe8] sm:$0xff] %v374
  %439 = vst [vmem:[%s4 + $0xf0] sm:$0xff] %v375
  %440 = vst [vmem:[%s4 + $0xf8] sm:$0xff] %v376
  %441 = vst [vmem:[%s4 + $0x100] sm:$0xff] %v377
  %442 = vst [vmem:[%s4 + $0x108] sm:$0xff] %v378
  %443 = vst [vmem:[%s4 + $0x110] sm:$0xff] %v379
  %444 = vst [vmem:[%s4 + $0x118] sm:$0xff] %v380
  %445 = vst [vmem:[%s4 + $0x120] sm:$0xff] %v381
  %446 = vst [vmem:[%s4 + $0x128] sm:$0xff] %v382
  %447 = vst [vmem:[%s4 + $0x130] sm:$0xff] %v383
  %448 = vst [vmem:[%s4 + $0x138] sm:$0xff] %v384
  %449 = vst [vmem:[%s4 + $0x140] sm:$0xff] %v385
  %450 = vst [vmem:[%s4 + $0x148] sm:$0xff] %v386
  %451 = vst [vmem:[%s4 + $0x150] sm:$0xff] %v387
  %452 = vst [vmem:[%s4 + $0x158] sm:$0xff] %v388
  %453 = vst [vmem:[%s4 + $0x160] sm:$0xff] %v389
  %454 = vst [vmem:[%s4 + $0x168] sm:$0xff] %v390
  %455 = vst [vmem:[%s4 + $0x170] sm:$0xff] %v391
  %456 = vst [vmem:[%s4 + $0x178] sm:$0xff] %v392
  %457 = vst [vmem:[%s4 + $0x180] sm:$0xff] %v393
  %458 = vst [vmem:[%s4 + $0x188] sm:$0xff] %v394
  %459 = vst [vmem:[%s4 + $0x190] sm:$0xff] %v395
  %460 = vst [vmem:[%s4 + $0x198] sm:$0xff] %v396
  %461 = vst [vmem:[%s4 + $0x1a0] sm:$0xff] %v397
  %462 = vst [vmem:[%s4 + $0x1a8] sm:$0xff] %v398
  %463 = vst [vmem:[%s4 + $0x1b0] sm:$0xff] %v399
  %464 = vst [vmem:[%s4 + $0x1b8] sm:$0xff] %v400
  %465 = vst [vmem:[%s4 + $0x1c0] sm:$0xff] %v401
  %466 = vst [vmem:[%s4 + $0x1c8] sm:$0xff] %v402
  %467 = vst [vmem:[%s4 + $0x1d0] sm:$0xff] %v403
  %468 = vst [vmem:[%s4 + $0x1d8] sm:$0xff] %v404
  %469 = vst [vmem:[%s4 + $0x1e0] sm:$0xff] %v405
  %470 = vst [vmem:[%s4 + $0x1e8] sm:$0xff] %v406
  %471 = vst [vmem:[%s4 + $0x1f0] sm:$0xff] %v407
  %472 = vst [vmem:[%s4 + $0x1f8] sm:$0xff] %v408
  // Predicated region
  $region18: #{res_block_forward.5} parent=0 // pred_check
    _
  $region19: #{res_block_forward.5} parent=0 // pred_check_branch
    %474 = sbr.rel (0) target = $region21
  $region20: #{res_block_forward.5} parent=0 // pred_region
    _
  $region21: #{res_block_forward.5} parent=0 // pred_fallthru
    _
  // Predicated region
  $region22: #{res_block_forward.5} parent=0 // pred_check
    _
  $region23: #{res_block_forward.5} parent=0 // pred_check_branch
    %476 = sbr.rel (0) target = $region25
  $region24: #{res_block_forward.5} parent=0 // pred_region
    _
  $region25: #{res_block_forward.5} parent=0 // pred_fallthru
    _

// kernel: res_block_forward.3
$region0: #{res_block_forward.3}
  #allocation0 [shape = 'u32[]', space=smem, size = 0x4, offset = 0x4, fixed_abs, tag = 'smem constant byte address 0x4 - core index']
  #allocation1 [shape = 'u32[72,128]{1,0:T(1,128)}', space=vmem, size = 0x9000, scoped, tag = 'internal scratch']
  #allocation2 [shape = 'bf16[18,18,128]{2,1,0:T(8,128)(2,1)}', space=vmem, size = 0x1b000, scoped, tag = 'scratch operand']
  #allocation3 [shape = 'f32[256,256]{1,0:T(8,128)}', space=vmem, size = 0x40000, scoped, tag = 'scratch operand']
  %s0 = inlined_call_operand.vmem [shape: f32[2,16,16,128], index: 0, kind: input, shape index: {}]
  %s1 = inlined_call_operand.vmem [shape: bf16[3,384,256], index: 1, kind: input, shape index: {}]
  %s2 = inlined_call_operand.vmem [shape: bf16[2,256,256], index: 2, kind: output, shape index: {0}]
  %s3 = inlined_call_operand.vmem [shape: f32[2,2,256], index: 3, kind: output, shape index: {1}]
  %4 = xla_tuple %s2, %s3
  %s5 = sld [smem:[#allocation0]]
  $region49: #{res_block_forward.3} parent=0
    _
  %s7 = ssub.s32 1, %s5
  %s8 = scalar_select 0, %s7, %s5
  loop: start=0, step=1, limit=4
  $region2: #{res_block_forward.3} parent=0 // loop_pre_header
    _
  $region3: #{res_block_forward.3} parent=0 // loop_header
    %s10 = sphi 0, %s14
    %p11 = scmp.ge.s32.totalorder %s10, 4
    %s20 = sphi 0, %s22
    %s23 = sphi 0, %s20
    %s24 = sphi 0, %s23
    %s40 = sphi 0, %s24
    %s44 = sphi 0, %s44
    %s46 = sphi 0, %s44
    %s47 = sphi 0, %s46
    %s61 = sphi 0, %s47
    %s67 = sphi 0, %s69
    %s70 = sphi 0, %s67
    %s71 = sphi 0, %s70
    %s87 = sphi 0, %s71
    %s93 = sphi 0, %s95
    %s96 = sphi 0, %s93
    %s97 = sphi 0, %s96
    %s113 = sphi 0, %s97
  $region4: #{res_block_forward.3} parent=0 // loop_header_branch
    %13 = sbr.rel (%p11) target = $region8
  $region5: #{res_block_forward.3} parent=0 // loop_body
    %s15 = ssub.s32 %s10, 1
    %s16 = ssub.s32 %s10, 2
    %s17 = sadd.s32 %s10, 1
    %s18 = ssub.s32 %s10, %s17
    %p19 = scmp.eq.s32.totalorder %s18, 0
    %s21 = sadd.s32 %s20, 1
    %s22 = scalar_select %p19, %s20, %s21
    %p25 = pneg %p19
    %p26 = scmp.eq.s32.totalorder %s10, 1
    %p27 = por %p25, %p26
    %p28 = scmp.ne.s32.totalorder %s20, %s23
    %p29 = scmp.eq.s32.totalorder %s10, 0
    %p30 = por %p28, %p29
    %p31 = scmp.ne.s32.totalorder %s20, %s23
    %p32 = scmp.eq.s32.totalorder %s15, 1
    %p33 = por %p31, %p32
    %p34 = scmp.ne.s32.totalorder %s23, %s24
    %p35 = scmp.eq.s32.totalorder %s15, 0
    %p36 = por %p34, %p35
    %p37 = scmp.ne.s32.totalorder %s23, %s24
    %p38 = scmp.eq.s32.totalorder %s16, 1
    %p39 = por %p37, %p38
    %p41 = scmp.ne.s32.totalorder %s24, %s40
    %p42 = scmp.eq.s32.totalorder %s16, 0
    %p43 = por %p41, %p42
    %s45 = sadd.s32 %s44, 1
    %p48 = scmp.eq.s32.totalorder %s10, 1
    %p49 = scmp.ne.s32.totalorder %s44, %s46
    %p50 = scmp.eq.s32.totalorder %s10, 0
    %p51 = por %p49, %p50
    %p52 = scmp.ne.s32.totalorder %s44, %s46
    %p53 = scmp.eq.s32.totalorder %s15, 1
    %p54 = por %p52, %p53
    %p55 = scmp.ne.s32.totalorder %s46, %s47
    %p56 = scmp.eq.s32.totalorder %s15, 0
    %p57 = por %p55, %p56
    %p58 = scmp.ne.s32.totalorder %s46, %s47
    %p59 = scmp.eq.s32.totalorder %s16, 1
    %p60 = por %p58, %p59
    %p62 = scmp.ne.s32.totalorder %s47, %s61
    %p63 = scmp.eq.s32.totalorder %s16, 0
    %p64 = por %p62, %p63
    %s65 = ssub.s32 %s10, %s17
    %p66 = scmp.eq.s32.totalorder %s65, 0
    %s68 = sadd.s32 %s67, 1
    %s69 = scalar_select %p66, %s67, %s68
    %p72 = pneg %p66
    %p73 = scmp.eq.s32.totalorder %s10, 1
    %p74 = por %p72, %p73
    %p75 = scmp.ne.s32.totalorder %s67, %s70
    %p76 = scmp.eq.s32.totalorder %s10, 0
    %p77 = por %p75, %p76
    %p78 = scmp.ne.s32.totalorder %s67, %s70
    %p79 = scmp.eq.s32.totalorder %s15, 1
    %p80 = por %p78, %p79
    %p81 = scmp.ne.s32.totalorder %s70, %s71
    %p82 = scmp.eq.s32.totalorder %s15, 0
    %p83 = por %p81, %p82
    %p84 = scmp.ne.s32.totalorder %s70, %s71
    %p85 = scmp.eq.s32.totalorder %s16, 1
    %p86 = por %p84, %p85
    %p88 = scmp.ne.s32.totalorder %s71, %s87
    %p89 = scmp.eq.s32.totalorder %s16, 0
    %p90 = por %p88, %p89
    %s91 = ssub.s32 %s10, %s17
    %p92 = scmp.eq.s32.totalorder %s91, 0
    %s94 = sadd.s32 %s93, 1
    %s95 = scalar_select %p92, %s93, %s94
    %p98 = pneg %p92
    %p99 = scmp.eq.s32.totalorder %s10, 1
    %p100 = por %p98, %p99
    %p101 = scmp.ne.s32.totalorder %s93, %s96
    %p102 = scmp.eq.s32.totalorder %s10, 0
    %p103 = por %p101, %p102
    %p104 = scmp.ne.s32.totalorder %s93, %s96
    %p105 = scmp.eq.s32.totalorder %s15, 1
    %p106 = por %p104, %p105
    %p107 = scmp.ne.s32.totalorder %s96, %s97
    %p108 = scmp.eq.s32.totalorder %s15, 0
    %p109 = por %p107, %p108
    %p110 = scmp.ne.s32.totalorder %s96, %s97
    %p111 = scmp.eq.s32.totalorder %s16, 1
    %p112 = por %p110, %p111
    %p114 = scmp.ne.s32.totalorder %s97, %s113
    %p115 = scmp.eq.s32.totalorder %s16, 0
    %p116 = por %p114, %p115
    %p117 = scmp.le.s32.totalorder 1, %s10
    %p118 = scmp.lt.s32.totalorder %s10, 3
    %p119 = pnand %p117, %p118
    %p120 = pneg %p119
    // Predicated region
    $region9: #{res_block_forward.3} parent=5 // pred_check
      _
    $region10: #{res_block_forward.3} parent=5 // pred_check_branch
      %122 = sbr.rel (%p119) target = $region12
    $region11: #{res_block_forward.3} parent=5 // pred_region
      %s123 = ssub.s32 %s10, 1
      // Predicated region
      $region13: #{res_block_forward.3} parent=11 // pred_check
        %p124 = pneg %p57
      $region14: #{res_block_forward.3} parent=11 // pred_check_branch
        %126 = sbr.rel (%p124) target = $region16
      $region15: #{res_block_forward.3} parent=11 // pred_region
        _
      $region16: #{res_block_forward.3} parent=11 // pred_fallthru
        _
    $region12: #{res_block_forward.3} parent=5 // pred_fallthru
      _
    %p127 = scmp.lt.s32.totalorder %s10, 2
    // Predicated region
    $region17: #{res_block_forward.3} parent=5 // pred_check
      %p128 = pneg %p127
    $region18: #{res_block_forward.3} parent=5 // pred_check_branch
      %130 = sbr.rel (%p128) target = $region20
    $region19: #{res_block_forward.3} parent=5 // pred_region
      // Predicated region
      $region21: #{res_block_forward.3} parent=19 // pred_check
        %p131 = pneg %p30
      $region22: #{res_block_forward.3} parent=19 // pred_check_branch
        %133 = sbr.rel (%p131) target = $region24
      $region23: #{res_block_forward.3} parent=19 // pred_region
        %p134 = scmp.lt.s32.totalorder %s10, 1
        %s135 = scalar_select %p134, %s10, 1
        %s136 = smul.addr %s135, 32
        %s137 = smul.addr %s136, 8
        %s138 = scalar_lea.vmem %s0, %s137
      $region24: #{res_block_forward.3} parent=19 // pred_fallthru
        _
    $region20: #{res_block_forward.3} parent=5 // pred_fallthru
      _
    %p139 = scmp.le.s32.totalorder 1, %s10
    %p140 = scmp.lt.s32.totalorder %s10, 3
    %p141 = pnand %p139, %p140
    %p142 = pneg %p141
    // Predicated region
    $region25: #{res_block_forward.3} parent=5 // pred_check
      _
    $region26: #{res_block_forward.3} parent=5 // pred_check_branch
      %144 = sbr.rel (%p141) target = $region28
    $region27: #{res_block_forward.3} parent=5 // pred_region
      %s145 = ssub.s32 %s10, 1
      %p146 = scmp.lt.s32.totalorder %s15, 1
      %s147 = scalar_select %p146, %s15, 1
      %s148 = smul.addr %s147, 32
      %s149 = smul.addr %s148, 8
      %s150 = scalar_lea.vmem %s0, %s149
      %p151 = pneg %p36
      %p152 = pneg %p33
      %p153 = pneg %p57
      %p154 = pneg %p54
      %p155 = pneg %p83
      %p156 = pneg %p80
      %p157 = scmp.lt.s32.totalorder %s15, 1
      %s158 = scalar_select %p157, %s15, 1
      %s159 = smul.addr %s158, 64
      %s160 = smul.addr %s159, 4
      %s161 = scalar_lea.vmem %s2, %s160
      %p162 = pneg %p109
      %p163 = pneg %p106
      %p164 = scmp.lt.s32.totalorder %s15, 1
      %s165 = scalar_select %p164, %s15, 1
      %s166 = smul.addr %s165, 2
      %s167 = smul.addr %s166, 2
      %s168 = scalar_lea.vmem %s3, %s167
      %p169 = scmp.lt.s32.totalorder %s15, 1
      %s170 = scalar_select %p169, %s15, 1
      %s171 = smul.addr %s170, 32
      %s172 = smul.addr %s171, 8
      %s173 = scalar_lea.vmem %s0, %s172
      %p174 = scmp.lt.s32.totalorder %s15, 1
      %s175 = scalar_select %p174, %s15, 1
      %s176 = smul.addr %s175, 64
      %s177 = smul.addr %s176, 4
      %s178 = scalar_lea.vmem %s2, %s177
      %p179 = scmp.lt.s32.totalorder %s15, 1
      %s180 = scalar_select %p179, %s15, 1
      %s181 = smul.addr %s180, 2
      %s182 = smul.addr %s181, 2
      %s183 = scalar_lea.vmem %s3, %s182
      %v185 = vld [vmem:[%s173] sm:$0xff]
      %v186 = vld [vmem:[%s173 + $0x8] sm:$0xff]
      %v187 = vld [vmem:[%s173 + $0x10] sm:$0xff]
      %v188 = vld [vmem:[%s173 + $0x18] sm:$0xff]
      %v189 = vld [vmem:[%s173 + $0x20] sm:$0xff]
      %v190 = vld [vmem:[%s173 + $0x28] sm:$0xff]
      %v191 = vld [vmem:[%s173 + $0x30] sm:$0xff]
      %v192 = vld [vmem:[%s173 + $0x38] sm:$0xff]
      %v193 = vld [vmem:[%s173 + $0x40] sm:$0xff]
      %v194 = vld [vmem:[%s173 + $0x48] sm:$0xff]
      %v195 = vld [vmem:[%s173 + $0x50] sm:$0xff]
      %v196 = vld [vmem:[%s173 + $0x58] sm:$0xff]
      %v197 = vld [vmem:[%s173 + $0x60] sm:$0xff]
      %v198 = vld [vmem:[%s173 + $0x68] sm:$0xff]
      %v199 = vld [vmem:[%s173 + $0x70] sm:$0xff]
      %v200 = vld [vmem:[%s173 + $0x78] sm:$0xff]
      %v201 = vld [vmem:[%s173 + $0x80] sm:$0xff]
      %v202 = vld [vmem:[%s173 + $0x88] sm:$0xff]
      %v203 = vld [vmem:[%s173 + $0x90] sm:$0xff]
      %v204 = vld [vmem:[%s173 + $0x98] sm:$0xff]
      %v205 = vld [vmem:[%s173 + $0xa0] sm:$0xff]
      %v206 = vld [vmem:[%s173 + $0xa8] sm:$0xff]
      %v207 = vld [vmem:[%s173 + $0xb0] sm:$0xff]
      %v208 = vld [vmem:[%s173 + $0xb8] sm:$0xff]
      %v209 = vld [vmem:[%s173 + $0xc0] sm:$0xff]
      %v210 = vld [vmem:[%s173 + $0xc8] sm:$0xff]
      %v211 = vld [vmem:[%s173 + $0xd0] sm:$0xff]
      %v212 = vld [vmem:[%s173 + $0xd8] sm:$0xff]
      %v213 = vld [vmem:[%s173 + $0xe0] sm:$0xff]
      %v214 = vld [vmem:[%s173 + $0xe8] sm:$0xff]
      %v215 = vld [vmem:[%s173 + $0xf0] sm:$0xff]
      %v216 = vld [vmem:[%s173 + $0xf8] sm:$0xff]
      %217 = vst [vmem:[#allocation2] sm:$0xf] 0
      %218 = vst [vmem:[#allocation2 + $0x4] sm:$0xf] 0
      %219 = vst [vmem:[#allocation2 + $0x8] sm:$0x1] 0
      %s220 = scalar_lea.vmem [#allocation2], 204
      %221 = vst [vmem:[%s220] sm:$0xf] 0
      %222 = vst [vmem:[%s220 + $0x4] sm:$0xf] 0
      %223 = vst [vmem:[%s220 + $0x8] sm:$0x1] 0
      %s224 = scalar_lea.vmem [#allocation2], 12
      %vm225 = vcmask 1040384
      %vm226 = vsmask.f32 256
      %vm227 = vmand %vm225, %vm226
      %v228 = vld [vmem:[%s224] sm:$0x1]
      %v229 = vsel %vm227, 0, %v228
      %230 = vst [vmem:[%s224] sm:$0x1] %v229
      %v231 = vld [vmem:[%s224 + $0xc] sm:$0x1]
      %v232 = vsel %vm227, 0, %v231
      %233 = vst [vmem:[%s224 + $0xc] sm:$0x1] %v232
      %v234 = vld [vmem:[%s224 + $0x18] sm:$0x1]
      %v235 = vsel %vm227, 0, %v234
      %236 = vst [vmem:[%s224 + $0x18] sm:$0x1] %v235
      %v237 = vld [vmem:[%s224 + $0x24] sm:$0x1]
      %v238 = vsel %vm227, 0, %v237
      %239 = vst [vmem:[%s224 + $0x24] sm:$0x1] %v238
      %v240 = vld [vmem:[%s224 + $0x30] sm:$0x1]
      %v241 = vsel %vm227, 0, %v240
      %242 = vst [vmem:[%s224 + $0x30] sm:$0x1] %v241
      %v243 = vld [vmem:[%s224 + $0x3c] sm:$0x1]
      %v244 = vsel %vm227, 0, %v243
      %245 = vst [vmem:[%s224 + $0x3c] sm:$0x1] %v244
      %v246 = vld [vmem:[%s224 + $0x48] sm:$0x1]
      %v247 = vsel %vm227, 0, %v246
      %248 = vst [vmem:[%s224 + $0x48] sm:$0x1] %v247
      %v249 = vld [vmem:[%s224 + $0x54] sm:$0x1]
      %v250 = vsel %vm227, 0, %v249
      %251 = vst [vmem:[%s224 + $0x54] sm:$0x1] %v250
      %v252 = vld [vmem:[%s224 + $0x60] sm:$0x1]
      %v253 = vsel %vm227, 0, %v252
      %254 = vst [vmem:[%s224 + $0x60] sm:$0x1] %v253
      %v255 = vld [vmem:[%s224 + $0x6c] sm:$0x1]
      %v256 = vsel %vm227, 0, %v255
      %257 = vst [vmem:[%s224 + $0x6c] sm:$0x1] %v256
      %v258 = vld [vmem:[%s224 + $0x78] sm:$0x1]
      %v259 = vsel %vm227, 0, %v258
      %260 = vst [vmem:[%s224 + $0x78] sm:$0x1] %v259
      %v261 = vld [vmem:[%s224 + $0x84] sm:$0x1]
      %v262 = vsel %vm227, 0, %v261
      %263 = vst [vmem:[%s224 + $0x84] sm:$0x1] %v262
      %v264 = vld [vmem:[%s224 + $0x90] sm:$0x1]
      %v265 = vsel %vm227, 0, %v264
      %266 = vst [vmem:[%s224 + $0x90] sm:$0x1] %v265
      %v267 = vld [vmem:[%s224 + $0x9c] sm:$0x1]
      %v268 = vsel %vm227, 0, %v267
      %269 = vst [vmem:[%s224 + $0x9c] sm:$0x1] %v268
      %v270 = vld [vmem:[%s224 + $0xa8] sm:$0x1]
      %v271 = vsel %vm227, 0, %v270
      %272 = vst [vmem:[%s224 + $0xa8] sm:$0x1] %v271
      %v273 = vld [vmem:[%s224 + $0xb4] sm:$0x1]
      %v274 = vsel %vm227, 0, %v273
      %275 = vst [vmem:[%s224 + $0xb4] sm:$0x1] %v274
      %vm276 = vsmask.f32 7938
      %vm277 = vmand %vm225, %vm276
      %v278 = vld [vmem:[%s224 + $0x8] sm:$0x1]
      %v279 = vsel %vm277, 0, %v278
      %280 = vst [vmem:[%s224 + $0x8] sm:$0x1] %v279
      %v281 = vld [vmem:[%s224 + $0x14] sm:$0x1]
      %v282 = vsel %vm277, 0, %v281
      %283 = vst [vmem:[%s224 + $0x14] sm:$0x1] %v282
      %v284 = vld [vmem:[%s224 + $0x20] sm:$0x1]
      %v285 = vsel %vm277, 0, %v284
      %286 = vst [vmem:[%s224 + $0x20] sm:$0x1] %v285
      %v287 = vld [vmem:[%s224 + $0x2c] sm:$0x1]
      %v288 = vsel %vm277, 0, %v287
      %289 = vst [vmem:[%s224 + $0x2c] sm:$0x1] %v288
      %v290 = vld [vmem:[%s224 + $0x38] sm:$0x1]
      %v291 = vsel %vm277, 0, %v290
      %292 = vst [vmem:[%s224 + $0x38] sm:$0x1] %v291
      %v293 = vld [vmem:[%s224 + $0x44] sm:$0x1]
      %v294 = vsel %vm277, 0, %v293
      %295 = vst [vmem:[%s224 + $0x44] sm:$0x1] %v294
      %v296 = vld [vmem:[%s224 + $0x50] sm:$0x1]
      %v297 = vsel %vm277, 0, %v296
      %298 = vst [vmem:[%s224 + $0x50] sm:$0x1] %v297
      %v299 = vld [vmem:[%s224 + $0x5c] sm:$0x1]
      %v300 = vsel %vm277, 0, %v299
      %301 = vst [vmem:[%s224 + $0x5c] sm:$0x1] %v300
      %v302 = vld [vmem:[%s224 + $0x68] sm:$0x1]
      %v303 = vsel %vm277, 0, %v302
      %304 = vst [vmem:[%s224 + $0x68] sm:$0x1] %v303
      %v305 = vld [vmem:[%s224 + $0x74] sm:$0x1]
      %v306 = vsel %vm277, 0, %v305
      %307 = vst [vmem:[%s224 + $0x74] sm:$0x1] %v306
      %v308 = vld [vmem:[%s224 + $0x80] sm:$0x1]
      %v309 = vsel %vm277, 0, %v308
      %310 = vst [vmem:[%s224 + $0x80] sm:$0x1] %v309
      %v311 = vld [vmem:[%s224 + $0x8c] sm:$0x1]
      %v312 = vsel %vm277, 0, %v311
      %313 = vst [vmem:[%s224 + $0x8c] sm:$0x1] %v312
      %v314 = vld [vmem:[%s224 + $0x98] sm:$0x1]
      %v315 = vsel %vm277, 0, %v314
      %316 = vst [vmem:[%s224 + $0x98] sm:$0x1] %v315
      %v317 = vld [vmem:[%s224 + $0xa4] sm:$0x1]
      %v318 = vsel %vm277, 0, %v317
      %319 = vst [vmem:[%s224 + $0xa4] sm:$0x1] %v318
      %v320 = vld [vmem:[%s224 + $0xb0] sm:$0x1]
      %v321 = vsel %vm277, 0, %v320
      %322 = vst [vmem:[%s224 + $0xb0] sm:$0x1] %v321
      %v323 = vld [vmem:[%s224 + $0xbc] sm:$0x1]
      %v324 = vsel %vm277, 0, %v323
      %325 = vst [vmem:[%s224 + $0xbc] sm:$0x1] %v324
      %v326 = vpack.c.bf16 %v185, %v185
      %v327 = vpack.c.bf16 %v186, %v186
      %v328 = vpack.c.bf16 %v187, %v187
      %v329 = vpack.c.bf16 %v188, %v188
      %v330 = vpack.c.bf16 %v189, %v189
      %v331 = vpack.c.bf16 %v190, %v190
      %v332 = vpack.c.bf16 %v191, %v191
      %v333 = vpack.c.bf16 %v192, %v192
      %v334 = vpack.c.bf16 %v193, %v193
      %v335 = vpack.c.bf16 %v194, %v194
      %v336 = vpack.c.bf16 %v195, %v195
      %v337 = vpack.c.bf16 %v196, %v196
      %v338 = vpack.c.bf16 %v197, %v197
      %v339 = vpack.c.bf16 %v198, %v198
      %v340 = vpack.c.bf16 %v199, %v199
      %v341 = vpack.c.bf16 %v200, %v200
      %v342 = vpack.c.bf16 %v201, %v201
      %v343 = vpack.c.bf16 %v202, %v202
      %v344 = vpack.c.bf16 %v203, %v203
      %v345 = vpack.c.bf16 %v204, %v204
      %v346 = vpack.c.bf16 %v205, %v205
      %v347 = vpack.c.bf16 %v206, %v206
      %v348 = vpack.c.bf16 %v207, %v207
      %v349 = vpack.c.bf16 %v208, %v208
      %v350 = vpack.c.bf16 %v209, %v209
      %v351 = vpack.c.bf16 %v210, %v210
      %v352 = vpack.c.bf16 %v211, %v211
      %v353 = vpack.c.bf16 %v212, %v212
      %v354 = vpack.c.bf16 %v213, %v213
      %v355 = vpack.c.bf16 %v214, %v214
      %v356 = vpack.c.bf16 %v215, %v215
      %v357 = vpack.c.bf16 %v216, %v216
      %vm358 = vsmask.f32 4368
      %vm359 = vmor %vm226, %vm358
      %v361 = vshrl.u32 %v326, 16
      %v363 = vrot.slane %v361, 7
      %v364 = vshll.u32 %v326, 16
      %v366 = vor.u32 %v363, %v364
      %v367 = vrot.slane %v363, 4
      %v369 = vshrl.u32 %v327, 16
      %v371 = vrot.slane %v369, 7
      %v372 = vshll.u32 %v327, 16
      %v374 = vor.u32 %v371, %v372
      %v375 = vsel %vm359, %v367, %v374
      %v376 = vrot.slane %v371, 4
      %v378 = vshrl.u32 %v328, 16
      %v380 = vrot.slane %v378, 7
      %v381 = vshll.u32 %v328, 16
      %v383 = vor.u32 %v380, %v381
      %v384 = vrot.slane %v380, 4
      %v386 = vshrl.u32 %v329, 16
      %v388 = vrot.slane %v386, 7
      %v389 = vshll.u32 %v329, 16
      %v391 = vor.u32 %v388, %v389
      %v392 = vsel %vm359, %v384, %v391
      %v393 = vrot.slane %v388, 4
      %v395 = vshrl.u32 %v330, 16
      %v397 = vrot.slane %v395, 7
      %v398 = vshll.u32 %v330, 16
      %v400 = vor.u32 %v397, %v398
      %v401 = vrot.slane %v397, 4
      %v403 = vshrl.u32 %v331, 16
      %v405 = vrot.slane %v403, 7
      %v406 = vshll.u32 %v331, 16
      %v408 = vor.u32 %v405, %v406
      %v409 = vsel %vm359, %v401, %v408
      %v410 = vrot.slane %v405, 4
      %v412 = vshrl.u32 %v332, 16
      %v414 = vrot.slane %v412, 7
      %v415 = vshll.u32 %v332, 16
      %v417 = vor.u32 %v414, %v415
      %v418 = vrot.slane %v414, 4
      %v420 = vshrl.u32 %v333, 16
      %v422 = vrot.slane %v420, 7
      %v423 = vshll.u32 %v333, 16
      %v425 = vor.u32 %v422, %v423
      %v426 = vsel %vm359, %v418, %v425
      %v427 = vrot.slane %v422, 4
      %v429 = vshrl.u32 %v334, 16
      %v431 = vrot.slane %v429, 7
      %v432 = vshll.u32 %v334, 16
      %v434 = vor.u32 %v431, %v432
      %v435 = vrot.slane %v431, 4
      %v437 = vshrl.u32 %v335, 16
      %v439 = vrot.slane %v437, 7
      %v440 = vshll.u32 %v335, 16
      %v442 = vor.u32 %v439, %v440
      %v443 = vsel %vm359, %v435, %v442
      %v444 = vrot.slane %v439, 4
      %v446 = vshrl.u32 %v336, 16
      %v448 = vrot.slane %v446, 7
      %v449 = vshll.u32 %v336, 16
      %v451 = vor.u32 %v448, %v449
      %v452 = vrot.slane %v448, 4
      %v454 = vshrl.u32 %v337, 16
      %v456 = vrot.slane %v454, 7
      %v457 = vshll.u32 %v337, 16
      %v459 = vor.u32 %v456, %v457
      %v460 = vsel %vm359, %v452, %v459
      %v461 = vrot.slane %v456, 4
      %v463 = vshrl.u32 %v338, 16
      %v465 = vrot.slane %v463, 7
      %v466 = vshll.u32 %v338, 16
      %v468 = vor.u32 %v465, %v466
      %v469 = vrot.slane %v465, 4
      %v471 = vshrl.u32 %v339, 16
      %v473 = vrot.slane %v471, 7
      %v474 = vshll.u32 %v339, 16
      %v476 = vor.u32 %v473, %v474
      %v477 = vsel %vm359, %v469, %v476
      %v478 = vrot.slane %v473, 4
      %v480 = vshrl.u32 %v340, 16
      %v482 = vrot.slane %v480, 7
      %v483 = vshll.u32 %v340, 16
      %v485 = vor.u32 %v482, %v483
      %v486 = vrot.slane %v482, 4
      %v488 = vshrl.u32 %v341, 16
      %v490 = vrot.slane %v488, 7
      %v491 = vshll.u32 %v341, 16
      %v493 = vor.u32 %v490, %v491
      %v494 = vsel %vm359, %v486, %v493
      %v495 = vrot.slane %v490, 4
      %v497 = vshrl.u32 %v342, 16
      %v499 = vrot.slane %v497, 7
      %v500 = vshll.u32 %v342, 16
      %v502 = vor.u32 %v499, %v500
      %v503 = vrot.slane %v499, 4
      %v505 = vshrl.u32 %v343, 16
      %v507 = vrot.slane %v505, 7
      %v508 = vshll.u32 %v343, 16
      %v510 = vor.u32 %v507, %v508
      %v511 = vsel %vm359, %v503, %v510
      %v512 = vrot.slane %v507, 4
      %v514 = vshrl.u32 %v344, 16
      %v516 = vrot.slane %v514, 7
      %v517 = vshll.u32 %v344, 16
      %v519 = vor.u32 %v516, %v517
      %v520 = vrot.slane %v516, 4
      %v522 = vshrl.u32 %v345, 16
      %v524 = vrot.slane %v522, 7
      %v525 = vshll.u32 %v345, 16
      %v527 = vor.u32 %v524, %v525
      %v528 = vsel %vm359, %v520, %v527
      %v529 = vrot.slane %v524, 4
      %v531 = vshrl.u32 %v346, 16
      %v533 = vrot.slane %v531, 7
      %v534 = vshll.u32 %v346, 16
      %v536 = vor.u32 %v533, %v534
      %v537 = vrot.slane %v533, 4
      %v539 = vshrl.u32 %v347, 16
      %v541 = vrot.slane %v539, 7
      %v542 = vshll.u32 %v347, 16
      %v544 = vor.u32 %v541, %v542
      %v545 = vsel %vm359, %v537, %v544
      %v546 = vrot.slane %v541, 4
      %v548 = vshrl.u32 %v348, 16
      %v550 = vrot.slane %v548, 7
      %v551 = vshll.u32 %v348, 16
      %v553 = vor.u32 %v550, %v551
      %v554 = vrot.slane %v550, 4
      %v556 = vshrl.u32 %v349, 16
      %v558 = vrot.slane %v556, 7
      %v559 = vshll.u32 %v349, 16
      %v561 = vor.u32 %v558, %v559
      %v562 = vsel %vm359, %v554, %v561
      %v563 = vrot.slane %v558, 4
      %v565 = vshrl.u32 %v350, 16
      %v567 = vrot.slane %v565, 7
      %v568 = vshll.u32 %v350, 16
      %v570 = vor.u32 %v567, %v568
      %v571 = vrot.slane %v567, 4
      %v573 = vshrl.u32 %v351, 16
      %v575 = vrot.slane %v573, 7
      %v576 = vshll.u32 %v351, 16
      %v578 = vor.u32 %v575, %v576
      %v579 = vsel %vm359, %v571, %v578
      %v580 = vrot.slane %v575, 4
      %v582 = vshrl.u32 %v352, 16
      %v584 = vrot.slane %v582, 7
      %v585 = vshll.u32 %v352, 16
      %v587 = vor.u32 %v584, %v585
      %v588 = vrot.slane %v584, 4
      %v590 = vshrl.u32 %v353, 16
      %v592 = vrot.slane %v590, 7
      %v593 = vshll.u32 %v353, 16
      %v595 = vor.u32 %v592, %v593
      %v596 = vsel %vm359, %v588, %v595
      %v597 = vrot.slane %v592, 4
      %v599 = vshrl.u32 %v354, 16
      %v601 = vrot.slane %v599, 7
      %v602 = vshll.u32 %v354, 16
      %v604 = vor.u32 %v601, %v602
      %v605 = vrot.slane %v601, 4
      %v607 = vshrl.u32 %v355, 16
      %v609 = vrot.slane %v607, 7
      %v610 = vshll.u32 %v355, 16
      %v612 = vor.u32 %v609, %v610
      %v613 = vsel %vm359, %v605, %v612
      %v614 = vrot.slane %v609, 4
      %v616 = vshrl.u32 %v356, 16
      %v618 = vrot.slane %v616, 7
      %v619 = vshll.u32 %v356, 16
      %v621 = vor.u32 %v618, %v619
      %v622 = vrot.slane %v618, 4
      %v624 = vshrl.u32 %v357, 16
      %v626 = vrot.slane %v624, 7
      %v627 = vshll.u32 %v357, 16
      %v629 = vor.u32 %v626, %v627
      %v630 = vsel %vm359, %v622, %v629
      %v631 = vrot.slane %v626, 4
      %vm680 = vcmask 1043456
      %vm681 = vmand %vm680, %vm276
      %v682 = vld [vmem:[%s224] sm:$0xf]
      %v683 = vsel %vm681, %v366, %v682
      %684 = vst [vmem:[%s224] sm:$0xf] %v683
      %685 = vst [vmem:[%s224 + $0x4] sm:$0xf] %v375
      %v686 = vld [vmem:[%s224 + $0x8] sm:$0x1]
      %v687 = vsel %vm227, %v376, %v686
      %688 = vst [vmem:[%s224 + $0x8] sm:$0x1] %v687
      %v689 = vld [vmem:[%s224 + $0xc] sm:$0xf]
      %v690 = vsel %vm681, %v383, %v689
      %691 = vst [vmem:[%s224 + $0xc] sm:$0xf] %v690
      %692 = vst [vmem:[%s224 + $0x10] sm:$0xf] %v392
      %v693 = vld [vmem:[%s224 + $0x14] sm:$0x1]
      %v694 = vsel %vm227, %v393, %v693
      %695 = vst [vmem:[%s224 + $0x14] sm:$0x1] %v694
      %v696 = vld [vmem:[%s224 + $0x18] sm:$0xf]
      %v697 = vsel %vm681, %v400, %v696
      %698 = vst [vmem:[%s224 + $0x18] sm:$0xf] %v697
      %699 = vst [vmem:[%s224 + $0x1c] sm:$0xf] %v409
      %v700 = vld [vmem:[%s224 + $0x20] sm:$0x1]
      %v701 = vsel %vm227, %v410, %v700
      %702 = vst [vmem:[%s224 + $0x20] sm:$0x1] %v701
      %v703 = vld [vmem:[%s224 + $0x24] sm:$0xf]
      %v704 = vsel %vm681, %v417, %v703
      %705 = vst [vmem:[%s224 + $0x24] sm:$0xf] %v704
      %706 = vst [vmem:[%s224 + $0x28] sm:$0xf] %v426
      %v707 = vld [vmem:[%s224 + $0x2c] sm:$0x1]
      %v708 = vsel %vm227, %v427, %v707
      %709 = vst [vmem:[%s224 + $0x2c] sm:$0x1] %v708
      %v710 = vld [vmem:[%s224 + $0x30] sm:$0xf]
      %v711 = vsel %vm681, %v434, %v710
      %712 = vst [vmem:[%s224 + $0x30] sm:$0xf] %v711
      %713 = vst [vmem:[%s224 + $0x34] sm:$0xf] %v443
      %v714 = vld [vmem:[%s224 + $0x38] sm:$0x1]
      %v715 = vsel %vm227, %v444, %v714
      %716 = vst [vmem:[%s224 + $0x38] sm:$0x1] %v715
      %v717 = vld [vmem:[%s224 + $0x3c] sm:$0xf]
      %v718 = vsel %vm681, %v451, %v717
      %719 = vst [vmem:[%s224 + $0x3c] sm:$0xf] %v718
      %720 = vst [vmem:[%s224 + $0x40] sm:$0xf] %v460
      %v721 = vld [vmem:[%s224 + $0x44] sm:$0x1]
      %v722 = vsel %vm227, %v461, %v721
      %723 = vst [vmem:[%s224 + $0x44] sm:$0x1] %v722
      %v724 = vld [vmem:[%s224 + $0x48] sm:$0xf]
      %v725 = vsel %vm681, %v468, %v724
      %726 = vst [vmem:[%s224 + $0x48] sm:$0xf] %v725
      %727 = vst [vmem:[%s224 + $0x4c] sm:$0xf] %v477
      %v728 = vld [vmem:[%s224 + $0x50] sm:$0x1]
      %v729 = vsel %vm227, %v478, %v728
      %730 = vst [vmem:[%s224 + $0x50] sm:$0x1] %v729
      %v731 = vld [vmem:[%s224 + $0x54] sm:$0xf]
      %v732 = vsel %vm681, %v485, %v731
      %733 = vst [vmem:[%s224 + $0x54] sm:$0xf] %v732
      %734 = vst [vmem:[%s224 + $0x58] sm:$0xf] %v494
      %v735 = vld [vmem:[%s224 + $0x5c] sm:$0x1]
      %v736 = vsel %vm227, %v495, %v735
      %737 = vst [vmem:[%s224 + $0x5c] sm:$0x1] %v736
      %v738 = vld [vmem:[%s224 + $0x60] sm:$0xf]
      %v739 = vsel %vm681, %v502, %v738
      %740 = vst [vmem:[%s224 + $0x60] sm:$0xf] %v739
      %741 = vst [vmem:[%s224 + $0x64] sm:$0xf] %v511
      %v742 = vld [vmem:[%s224 + $0x68] sm:$0x1]
      %v743 = vsel %vm227, %v512, %v742
      %744 = vst [vmem:[%s224 + $0x68] sm:$0x1] %v743
      %v745 = vld [vmem:[%s224 + $0x6c] sm:$0xf]
      %v746 = vsel %vm681, %v519, %v745
      %747 = vst [vmem:[%s224 + $0x6c] sm:$0xf] %v746
      %748 = vst [vmem:[%s224 + $0x70] sm:$0xf] %v528
      %v749 = vld [vmem:[%s224 + $0x74] sm:$0x1]
      %v750 = vsel %vm227, %v529, %v749
      %751 = vst [vmem:[%s224 + $0x74] sm:$0x1] %v750
      %v752 = vld [vmem:[%s224 + $0x78] sm:$0xf]
      %v753 = vsel %vm681, %v536, %v752
      %754 = vst [vmem:[%s224 + $0x78] sm:$0xf] %v753
      %755 = vst [vmem:[%s224 + $0x7c] sm:$0xf] %v545
      %v756 = vld [vmem:[%s224 + $0x80] sm:$0x1]
      %v757 = vsel %vm227, %v546, %v756
      %758 = vst [vmem:[%s224 + $0x80] sm:$0x1] %v757
      %v759 = vld [vmem:[%s224 + $0x84] sm:$0xf]
      %v760 = vsel %vm681, %v553, %v759
      %761 = vst [vmem:[%s224 + $0x84] sm:$0xf] %v760
      %762 = vst [vmem:[%s224 + $0x88] sm:$0xf] %v562
      %v763 = vld [vmem:[%s224 + $0x8c] sm:$0x1]
      %v764 = vsel %vm227, %v563, %v763
      %765 = vst [vmem:[%s224 + $0x8c] sm:$0x1] %v764
      %v766 = vld [vmem:[%s224 + $0x90] sm:$0xf]
      %v767 = vsel %vm681, %v570, %v766
      %768 = vst [vmem:[%s224 + $0x90] sm:$0xf] %v767
      %769 = vst [vmem:[%s224 + $0x94] sm:$0xf] %v579
      %v770 = vld [vmem:[%s224 + $0x98] sm:$0x1]
      %v771 = vsel %vm227, %v580, %v770
      %772 = vst [vmem:[%s224 + $0x98] sm:$0x1] %v771
      %v773 = vld [vmem:[%s224 + $0x9c] sm:$0xf]
      %v774 = vsel %vm681, %v587, %v773
      %775 = vst [vmem:[%s224 + $0x9c] sm:$0xf] %v774
      %776 = vst [vmem:[%s224 + $0xa0] sm:$0xf] %v596
      %v777 = vld [vmem:[%s224 + $0xa4] sm:$0x1]
      %v778 = vsel %vm227, %v597, %v777
      %779 = vst [vmem:[%s224 + $0xa4] sm:$0x1] %v778
      %v780 = vld [vmem:[%s224 + $0xa8] sm:$0xf]
      %v781 = vsel %vm681, %v604, %v780
      %782 = vst [vmem:[%s224 + $0xa8] sm:$0xf] %v781
      %783 = vst [vmem:[%s224 + $0xac] sm:$0xf] %v613
      %v784 = vld [vmem:[%s224 + $0xb0] sm:$0x1]
      %v785 = vsel %vm227, %v614, %v784
      %786 = vst [vmem:[%s224 + $0xb0] sm:$0x1] %v785
      %v787 = vld [vmem:[%s224 + $0xb4] sm:$0xf]
      %v788 = vsel %vm681, %v621, %v787
      %789 = vst [vmem:[%s224 + $0xb4] sm:$0xf] %v788
      %790 = vst [vmem:[%s224 + $0xb8] sm:$0xf] %v630
      %v791 = vld [vmem:[%s224 + $0xbc] sm:$0x1]
      %v792 = vsel %vm227, %v631, %v791
      %793 = vst [vmem:[%s224 + $0xbc] sm:$0x1] %v792
      %v794 = vld [vmem:[#allocation2] sm:$0xf]
      %v795 = vld [vmem:[#allocation2 + $0x4] sm:$0xf]
      %v796 = vld [vmem:[#allocation2 + $0xc] sm:$0xf]
      %v797 = vld [vmem:[#allocation2 + $0x10] sm:$0xf]
      %v798 = vld [vmem:[#allocation2 + $0x18] sm:$0xf]
      %v799 = vld [vmem:[#allocation2 + $0x1c] sm:$0xf]
      %v800 = vld [vmem:[#allocation2 + $0x24] sm:$0xf]
      %v801 = vld [vmem:[#allocation2 + $0x28] sm:$0xf]
      %v802 = vld [vmem:[#allocation2 + $0x30] sm:$0xf]
      %v803 = vld [vmem:[#allocation2 + $0x34] sm:$0xf]
      %v804 = vld [vmem:[#allocation2 + $0x3c] sm:$0xf]
      %v805 = vld [vmem:[#allocation2 + $0x40] sm:$0xf]
      %v806 = vld [vmem:[#allocation2 + $0x48] sm:$0xf]
      %v807 = vld [vmem:[#allocation2 + $0x4c] sm:$0xf]
      %v808 = vld [vmem:[#allocation2 + $0x54] sm:$0xf]
      %v809 = vld [vmem:[#allocation2 + $0x58] sm:$0xf]
      %v810 = vld [vmem:[#allocation2 + $0x60] sm:$0xf]
      %v811 = vld [vmem:[#allocation2 + $0x64] sm:$0xf]
      %v812 = vld [vmem:[#allocation2 + $0x6c] sm:$0xf]
      %v813 = vld [vmem:[#allocation2 + $0x70] sm:$0xf]
      %v814 = vld [vmem:[#allocation2 + $0x78] sm:$0xf]
      %v815 = vld [vmem:[#allocation2 + $0x7c] sm:$0xf]
      %v816 = vld [vmem:[#allocation2 + $0x84] sm:$0xf]
      %v817 = vld [vmem:[#allocation2 + $0x88] sm:$0xf]
      %v818 = vld [vmem:[#allocation2 + $0x90] sm:$0xf]
      %v819 = vld [vmem:[#allocation2 + $0x94] sm:$0xf]
      %v820 = vld [vmem:[#allocation2 + $0x9c] sm:$0xf]
      %v821 = vld [vmem:[#allocation2 + $0xa0] sm:$0xf]
      %v822 = vld [vmem:[#allocation2 + $0xa8] sm:$0xf]
      %v823 = vld [vmem:[#allocation2 + $0xac] sm:$0xf]
      %v824 = vld [vmem:[#allocation2 + $0xb4] sm:$0xf]
      %v825 = vld [vmem:[#allocation2 + $0xb8] sm:$0xf]
      %v826 = vld [vmem:[#allocation2 + $0x8] sm:$0x1]
      %v827 = vld [vmem:[#allocation2 + $0x14] sm:$0x1]
      %v828 = vld [vmem:[#allocation2 + $0x20] sm:$0x1]
      %v829 = vld [vmem:[#allocation2 + $0x2c] sm:$0x1]
      %v830 = vld [vmem:[#allocation2 + $0x38] sm:$0x1]
      %v831 = vld [vmem:[#allocation2 + $0x44] sm:$0x1]
      %v832 = vld [vmem:[#allocation2 + $0x50] sm:$0x1]
      %v833 = vld [vmem:[#allocation2 + $0x5c] sm:$0x1]
      %v834 = vld [vmem:[#allocation2 + $0x68] sm:$0x1]
      %v835 = vld [vmem:[#allocation2 + $0x74] sm:$0x1]
      %v836 = vld [vmem:[#allocation2 + $0x80] sm:$0x1]
      %v837 = vld [vmem:[#allocation2 + $0x8c] sm:$0x1]
      %v838 = vld [vmem:[#allocation2 + $0x98] sm:$0x1]
      %v839 = vld [vmem:[#allocation2 + $0xa4] sm:$0x1]
      %v840 = vld [vmem:[#allocation2 + $0xb0] sm:$0x1]
      %v841 = vld [vmem:[#allocation2 + $0xbc] sm:$0x1]
      %v842 = vld [vmem:[#allocation2] sm:$0xe]
      %v843 = vld [vmem:[#allocation2 + $0xc] sm:$0xe]
      %v844 = vld [vmem:[#allocation2 + $0x18] sm:$0xe]
      %v845 = vld [vmem:[#allocation2 + $0x24] sm:$0xe]
      %v846 = vld [vmem:[#allocation2 + $0x30] sm:$0xe]
      %v847 = vld [vmem:[#allocation2 + $0x3c] sm:$0xe]
      %v848 = vld [vmem:[#allocation2 + $0x48] sm:$0xe]
      %v849 = vld [vmem:[#allocation2 + $0x54] sm:$0xe]
      %v850 = vld [vmem:[#allocation2 + $0x60] sm:$0xe]
      %v851 = vld [vmem:[#allocation2 + $0x6c] sm:$0xe]
      %v852 = vld [vmem:[#allocation2 + $0x78] sm:$0xe]
      %v853 = vld [vmem:[#allocation2 + $0x84] sm:$0xe]
      %v854 = vld [vmem:[#allocation2 + $0x90] sm:$0xe]
      %v855 = vld [vmem:[#allocation2 + $0x9c] sm:$0xe]
      %v856 = vld [vmem:[#allocation2 + $0xa8] sm:$0xe]
      %v857 = vld [vmem:[#allocation2 + $0xb4] sm:$0xe]
      %v890 = vunpack.c.l.b16 %v794
      %v891 = vunpack.c.l.b16 %v795
      %v892 = vunpack.c.l.b16 %v796
      %v893 = vunpack.c.l.b16 %v797
      %v894 = vunpack.c.l.b16 %v798
      %v895 = vunpack.c.l.b16 %v799
      %v896 = vunpack.c.l.b16 %v800
      %v897 = vunpack.c.l.b16 %v801
      %v898 = vunpack.c.l.b16 %v802
      %v899 = vunpack.c.l.b16 %v803
      %v900 = vunpack.c.l.b16 %v804
      %v901 = vunpack.c.l.b16 %v805
      %v902 = vunpack.c.l.b16 %v806
      %v903 = vunpack.c.l.b16 %v807
      %v904 = vunpack.c.l.b16 %v808
      %v905 = vunpack.c.l.b16 %v809
      %v906 = vunpack.c.l.b16 %v810
      %v907 = vunpack.c.l.b16 %v811
      %v908 = vunpack.c.l.b16 %v812
      %v909 = vunpack.c.l.b16 %v813
      %v910 = vunpack.c.l.b16 %v814
      %v911 = vunpack.c.l.b16 %v815
      %v912 = vunpack.c.l.b16 %v816
      %v913 = vunpack.c.l.b16 %v817
      %v914 = vunpack.c.l.b16 %v818
      %v915 = vunpack.c.l.b16 %v819
      %v916 = vunpack.c.l.b16 %v820
      %v917 = vunpack.c.l.b16 %v821
      %v918 = vunpack.c.l.b16 %v822
      %v919 = vunpack.c.l.b16 %v823
      %v920 = vunpack.c.l.b16 %v824
      %v921 = vunpack.c.l.b16 %v825
      %v922 = vpack.c.b16 %v891, %v890
      %v923 = vpack.c.b16 %v893, %v892
      %v924 = vpack.c.b16 %v895, %v894
      %v925 = vpack.c.b16 %v897, %v896
      %v926 = vpack.c.b16 %v899, %v898
      %v927 = vpack.c.b16 %v901, %v900
      %v928 = vpack.c.b16 %v903, %v902
      %v929 = vpack.c.b16 %v905, %v904
      %v930 = vpack.c.b16 %v907, %v906
      %v931 = vpack.c.b16 %v909, %v908
      %v932 = vpack.c.b16 %v911, %v910
      %v933 = vpack.c.b16 %v913, %v912
      %v934 = vpack.c.b16 %v915, %v914
      %v935 = vpack.c.b16 %v917, %v916
      %v936 = vpack.c.b16 %v919, %v918
      %v937 = vpack.c.b16 %v921, %v920
      %v970 = vunpack.c.l.b16 %v826
      %v971 = vunpack.c.l.b16 %v827
      %v972 = vunpack.c.l.b16 %v828
      %v973 = vunpack.c.l.b16 %v829
      %v974 = vunpack.c.l.b16 %v830
      %v975 = vunpack.c.l.b16 %v831
      %v976 = vunpack.c.l.b16 %v832
      %v977 = vunpack.c.l.b16 %v833
      %v978 = vunpack.c.l.b16 %v834
      %v979 = vunpack.c.l.b16 %v835
      %v980 = vunpack.c.l.b16 %v836
      %v981 = vunpack.c.l.b16 %v837
      %v982 = vunpack.c.l.b16 %v838
      %v983 = vunpack.c.l.b16 %v839
      %v984 = vunpack.c.l.b16 %v840
      %v985 = vunpack.c.l.b16 %v841
      %v986 = vpack.c.b16 %v970, %v970
      %v987 = vpack.c.b16 %v971, %v971
      %v988 = vpack.c.b16 %v972, %v972
      %v989 = vpack.c.b16 %v973, %v973
      %v990 = vpack.c.b16 %v974, %v974
      %v991 = vpack.c.b16 %v975, %v975
      %v992 = vpack.c.b16 %v976, %v976
      %v993 = vpack.c.b16 %v977, %v977
      %v994 = vpack.c.b16 %v978, %v978
      %v995 = vpack.c.b16 %v979, %v979
      %v996 = vpack.c.b16 %v980, %v980
      %v997 = vpack.c.b16 %v981, %v981
      %v998 = vpack.c.b16 %v982, %v982
      %v999 = vpack.c.b16 %v983, %v983
      %v1000 = vpack.c.b16 %v984, %v984
      %v1001 = vpack.c.b16 %v985, %v985
      %vm1002 = vsmask.f32 7424
      %v1004 = vshrl.u32 %v922, 16
      %v1006 = vshll.u32 %v922, 16
      %v1008 = vrot.slane %v1006, 1
      %v1009 = vor.u32 %v1004, %v1008
      %v1011 = vshll.u32 %v986, 16
      %v1013 = vrot.slane %v1011, 1
      %v1014 = vsel %vm1002, %v1009, %v1013
      %v1016 = vshrl.u32 %v923, 16
      %v1018 = vshll.u32 %v923, 16
      %v1020 = vrot.slane %v1018, 1
      %v1021 = vor.u32 %v1016, %v1020
      %v1023 = vshll.u32 %v987, 16
      %v1025 = vrot.slane %v1023, 1
      %v1026 = vsel %vm1002, %v1021, %v1025
      %v1028 = vshrl.u32 %v924, 16
      %v1030 = vshll.u32 %v924, 16
      %v1032 = vrot.slane %v1030, 1
      %v1033 = vor.u32 %v1028, %v1032
      %v1035 = vshll.u32 %v988, 16
      %v1037 = vrot.slane %v1035, 1
      %v1038 = vsel %vm1002, %v1033, %v1037
      %v1040 = vshrl.u32 %v925, 16
      %v1042 = vshll.u32 %v925, 16
      %v1044 = vrot.slane %v1042, 1
      %v1045 = vor.u32 %v1040, %v1044
      %v1047 = vshll.u32 %v989, 16
      %v1049 = vrot.slane %v1047, 1
      %v1050 = vsel %vm1002, %v1045, %v1049
      %v1052 = vshrl.u32 %v926, 16
      %v1054 = vshll.u32 %v926, 16
      %v1056 = vrot.slane %v1054, 1
      %v1057 = vor.u32 %v1052, %v1056
      %v1059 = vshll.u32 %v990, 16
      %v1061 = vrot.slane %v1059, 1
      %v1062 = vsel %vm1002, %v1057, %v1061
      %v1064 = vshrl.u32 %v927, 16
      %v1066 = vshll.u32 %v927, 16
      %v1068 = vrot.slane %v1066, 1
      %v1069 = vor.u32 %v1064, %v1068
      %v1071 = vshll.u32 %v991, 16
      %v1073 = vrot.slane %v1071, 1
      %v1074 = vsel %vm1002, %v1069, %v1073
      %v1076 = vshrl.u32 %v928, 16
      %v1078 = vshll.u32 %v928, 16
      %v1080 = vrot.slane %v1078, 1
      %v1081 = vor.u32 %v1076, %v1080
      %v1083 = vshll.u32 %v992, 16
      %v1085 = vrot.slane %v1083, 1
      %v1086 = vsel %vm1002, %v1081, %v1085
      %v1088 = vshrl.u32 %v929, 16
      %v1090 = vshll.u32 %v929, 16
      %v1092 = vrot.slane %v1090, 1
      %v1093 = vor.u32 %v1088, %v1092
      %v1095 = vshll.u32 %v993, 16
      %v1097 = vrot.slane %v1095, 1
      %v1098 = vsel %vm1002, %v1093, %v1097
      %v1100 = vshrl.u32 %v930, 16
      %v1102 = vshll.u32 %v930, 16
      %v1104 = vrot.slane %v1102, 1
      %v1105 = vor.u32 %v1100, %v1104
      %v1107 = vshll.u32 %v994, 16
      %v1109 = vrot.slane %v1107, 1
      %v1110 = vsel %vm1002, %v1105, %v1109
      %v1112 = vshrl.u32 %v931, 16
      %v1114 = vshll.u32 %v931, 16
      %v1116 = vrot.slane %v1114, 1
      %v1117 = vor.u32 %v1112, %v1116
      %v1119 = vshll.u32 %v995, 16
      %v1121 = vrot.slane %v1119, 1
      %v1122 = vsel %vm1002, %v1117, %v1121
      %v1124 = vshrl.u32 %v932, 16
      %v1126 = vshll.u32 %v932, 16
      %v1128 = vrot.slane %v1126, 1
      %v1129 = vor.u32 %v1124, %v1128
      %v1131 = vshll.u32 %v996, 16
      %v1133 = vrot.slane %v1131, 1
      %v1134 = vsel %vm1002, %v1129, %v1133
      %v1136 = vshrl.u32 %v933, 16
      %v1138 = vshll.u32 %v933, 16
      %v1140 = vrot.slane %v1138, 1
      %v1141 = vor.u32 %v1136, %v1140
      %v1143 = vshll.u32 %v997, 16
      %v1145 = vrot.slane %v1143, 1
      %v1146 = vsel %vm1002, %v1141, %v1145
      %v1148 = vshrl.u32 %v934, 16
      %v1150 = vshll.u32 %v934, 16
      %v1152 = vrot.slane %v1150, 1
      %v1153 = vor.u32 %v1148, %v1152
      %v1155 = vshll.u32 %v998, 16
      %v1157 = vrot.slane %v1155, 1
      %v1158 = vsel %vm1002, %v1153, %v1157
      %v1160 = vshrl.u32 %v935, 16
      %v1162 = vshll.u32 %v935, 16
      %v1164 = vrot.slane %v1162, 1
      %v1165 = vor.u32 %v1160, %v1164
      %v1167 = vshll.u32 %v999, 16
      %v1169 = vrot.slane %v1167, 1
      %v1170 = vsel %vm1002, %v1165, %v1169
      %v1172 = vshrl.u32 %v936, 16
      %v1174 = vshll.u32 %v936, 16
      %v1176 = vrot.slane %v1174, 1
      %v1177 = vor.u32 %v1172, %v1176
      %v1179 = vshll.u32 %v1000, 16
      %v1181 = vrot.slane %v1179, 1
      %v1182 = vsel %vm1002, %v1177, %v1181
      %v1184 = vshrl.u32 %v937, 16
      %v1186 = vshll.u32 %v937, 16
      %v1188 = vrot.slane %v1186, 1
      %v1189 = vor.u32 %v1184, %v1188
      %v1191 = vshll.u32 %v1001, 16
      %v1193 = vrot.slane %v1191, 1
      %v1194 = vsel %vm1002, %v1189, %v1193
      %v1227 = vunpack.c.l.b16 %v842
      %v1228 = vunpack.c.l.b16 %v843
      %v1229 = vunpack.c.l.b16 %v844
      %v1230 = vunpack.c.l.b16 %v845
      %v1231 = vunpack.c.l.b16 %v846
      %v1232 = vunpack.c.l.b16 %v847
      %v1233 = vunpack.c.l.b16 %v848
      %v1234 = vunpack.c.l.b16 %v849
      %v1235 = vunpack.c.l.b16 %v850
      %v1236 = vunpack.c.l.b16 %v851
      %v1237 = vunpack.c.l.b16 %v852
      %v1238 = vunpack.c.l.b16 %v853
      %v1239 = vunpack.c.l.b16 %v854
      %v1240 = vunpack.c.l.b16 %v855
      %v1241 = vunpack.c.l.b16 %v856
      %v1242 = vunpack.c.l.b16 %v857
      %v1243 = vpack.c.b16 %v891, %v1227
      %v1244 = vpack.c.b16 %v893, %v1228
      %v1245 = vpack.c.b16 %v895, %v1229
      %v1246 = vpack.c.b16 %v897, %v1230
      %v1247 = vpack.c.b16 %v899, %v1231
      %v1248 = vpack.c.b16 %v901, %v1232
      %v1249 = vpack.c.b16 %v903, %v1233
      %v1250 = vpack.c.b16 %v905, %v1234
      %v1251 = vpack.c.b16 %v907, %v1235
      %v1252 = vpack.c.b16 %v909, %v1236
      %v1253 = vpack.c.b16 %v911, %v1237
      %v1254 = vpack.c.b16 %v913, %v1238
      %v1255 = vpack.c.b16 %v915, %v1239
      %v1256 = vpack.c.b16 %v917, %v1240
      %v1257 = vpack.c.b16 %v919, %v1241
      %v1258 = vpack.c.b16 %v921, %v1242
      %vm1259 = vcmask 1046528
      %v1260 = vrot.slane %v1243, 1
      %v1261 = vrot.slane %v986, 1
      %v1262 = vsel %vm1259, %v1260, %v1261
      %v1263 = vrot.slane %v1244, 1
      %v1264 = vrot.slane %v987, 1
      %v1265 = vsel %vm1259, %v1263, %v1264
      %v1266 = vrot.slane %v1245, 1
      %v1267 = vrot.slane %v988, 1
      %v1268 = vsel %vm1259, %v1266, %v1267
      %v1269 = vrot.slane %v1246, 1
      %v1270 = vrot.slane %v989, 1
      %v1271 = vsel %vm1259, %v1269, %v1270
      %v1272 = vrot.slane %v1247, 1
      %v1273 = vrot.slane %v990, 1
      %v1274 = vsel %vm1259, %v1272, %v1273
      %v1275 = vrot.slane %v1248, 1
      %v1276 = vrot.slane %v991, 1
      %v1277 = vsel %vm1259, %v1275, %v1276
      %v1278 = vrot.slane %v1249, 1
      %v1279 = vrot.slane %v992, 1
      %v1280 = vsel %vm1259, %v1278, %v1279
      %v1281 = vrot.slane %v1250, 1
      %v1282 = vrot.slane %v993, 1
      %v1283 = vsel %vm1259, %v1281, %v1282
      %v1284 = vrot.slane %v1251, 1
      %v1285 = vrot.slane %v994, 1
      %v1286 = vsel %vm1259, %v1284, %v1285
      %v1287 = vrot.slane %v1252, 1
      %v1288 = vrot.slane %v995, 1
      %v1289 = vsel %vm1259, %v1287, %v1288
      %v1290 = vrot.slane %v1253, 1
      %v1291 = vrot.slane %v996, 1
      %v1292 = vsel %vm1259, %v1290, %v1291
      %v1293 = vrot.slane %v1254, 1
      %v1294 = vrot.slane %v997, 1
      %v1295 = vsel %vm1259, %v1293, %v1294
      %v1296 = vrot.slane %v1255, 1
      %v1297 = vrot.slane %v998, 1
      %v1298 = vsel %vm1259, %v1296, %v1297
      %v1299 = vrot.slane %v1256, 1
      %v1300 = vrot.slane %v999, 1
      %v1301 = vsel %vm1259, %v1299, %v1300
      %v1302 = vrot.slane %v1257, 1
      %v1303 = vrot.slane %v1000, 1
      %v1304 = vsel %vm1259, %v1302, %v1303
      %v1305 = vrot.slane %v1258, 1
      %v1306 = vrot.slane %v1001, 1
      %v1307 = vsel %vm1259, %v1305, %v1306
      %v1324 = vld [vmem:[%s1] sm:$0xff]
      %v1325 = vld [vmem:[%s1 + $0x8] sm:$0xff]
      %v1326 = vld [vmem:[%s1 + $0x10] sm:$0xff]
      %v1327 = vld [vmem:[%s1 + $0x18] sm:$0xff]
      %v1328 = vld [vmem:[%s1 + $0x20] sm:$0xff]
      %v1329 = vld [vmem:[%s1 + $0x28] sm:$0xff]
      %v1330 = vld [vmem:[%s1 + $0x30] sm:$0xff]
      %v1331 = vld [vmem:[%s1 + $0x38] sm:$0xff]
      %v1332 = vld [vmem:[%s1 + $0x40] sm:$0xff]
      %v1333 = vld [vmem:[%s1 + $0x48] sm:$0xff]
      %v1334 = vld [vmem:[%s1 + $0x50] sm:$0xff]
      %v1335 = vld [vmem:[%s1 + $0x58] sm:$0xff]
      %v1336 = vld [vmem:[%s1 + $0x60] sm:$0xff]
      %v1337 = vld [vmem:[%s1 + $0x68] sm:$0xff]
      %v1338 = vld [vmem:[%s1 + $0x70] sm:$0xff]
      %v1339 = vld [vmem:[%s1 + $0x78] sm:$0xff]
      %v1340 = vld [vmem:[%s1 + $0x80] sm:$0xff]
      %v1341 = vld [vmem:[%s1 + $0x88] sm:$0xff]
      %v1342 = vld [vmem:[%s1 + $0x90] sm:$0xff]
      %v1343 = vld [vmem:[%s1 + $0x98] sm:$0xff]
      %v1344 = vld [vmem:[%s1 + $0xa0] sm:$0xff]
      %v1345 = vld [vmem:[%s1 + $0xa8] sm:$0xff]
      %v1346 = vld [vmem:[%s1 + $0xb0] sm:$0xff]
      %v1347 = vld [vmem:[%s1 + $0xb8] sm:$0xff]
      %v1348 = vld [vmem:[%s1 + $0xc0] sm:$0xff]
      %v1349 = vld [vmem:[%s1 + $0xc8] sm:$0xff]
      %v1350 = vld [vmem:[%s1 + $0xd0] sm:$0xff]
      %v1351 = vld [vmem:[%s1 + $0xd8] sm:$0xff]
      %v1352 = vld [vmem:[%s1 + $0xe0] sm:$0xff]
      %v1353 = vld [vmem:[%s1 + $0xe8] sm:$0xff]
      %v1354 = vld [vmem:[%s1 + $0xf0] sm:$0xff]
      %v1355 = vld [vmem:[%s1 + $0xf8] sm:$0xff]
      %v1356 = vld [vmem:[%s1 + $0x100] sm:$0xff]
      %v1357 = vld [vmem:[%s1 + $0x108] sm:$0xff]
      %v1358 = vld [vmem:[%s1 + $0x110] sm:$0xff]
      %v1359 = vld [vmem:[%s1 + $0x118] sm:$0xff]
      %v1360 = vld [vmem:[%s1 + $0x120] sm:$0xff]
      %v1361 = vld [vmem:[%s1 + $0x128] sm:$0xff]
      %v1362 = vld [vmem:[%s1 + $0x130] sm:$0xff]
      %v1363 = vld [vmem:[%s1 + $0x138] sm:$0xff]
      %v1364 = vld [vmem:[%s1 + $0x140] sm:$0xff]
      %v1365 = vld [vmem:[%s1 + $0x148] sm:$0xff]
      %v1366 = vld [vmem:[%s1 + $0x150] sm:$0xff]
      %v1367 = vld [vmem:[%s1 + $0x158] sm:$0xff]
      %v1368 = vld [vmem:[%s1 + $0x160] sm:$0xff]
      %v1369 = vld [vmem:[%s1 + $0x168] sm:$0xff]
      %v1370 = vld [vmem:[%s1 + $0x170] sm:$0xff]
      %v1371 = vld [vmem:[%s1 + $0x178] sm:$0xff]
      %v1420 = vunpack.c.l.b16 %v1324
      %v1421 = vunpack.c.h.b16 %v1324
      %v1422 = vunpack.c.l.b16 %v1325
      %v1423 = vunpack.c.h.b16 %v1325
      %v1424 = vunpack.c.l.b16 %v1326
      %v1425 = vunpack.c.h.b16 %v1326
      %v1426 = vunpack.c.l.b16 %v1327
      %v1427 = vunpack.c.h.b16 %v1327
      %v1428 = vunpack.c.l.b16 %v1328
      %v1429 = vunpack.c.h.b16 %v1328
      %v1430 = vunpack.c.l.b16 %v1329
      %v1431 = vunpack.c.h.b16 %v1329
      %v1432 = vunpack.c.l.b16 %v1330
      %v1433 = vunpack.c.h.b16 %v1330
      %v1434 = vunpack.c.l.b16 %v1331
      %v1435 = vunpack.c.h.b16 %v1331
      %v1436 = vunpack.c.l.b16 %v1332
      %v1437 = vunpack.c.h.b16 %v1332
      %v1438 = vunpack.c.l.b16 %v1333
      %v1439 = vunpack.c.h.b16 %v1333
      %v1440 = vunpack.c.l.b16 %v1334
      %v1441 = vunpack.c.h.b16 %v1334
      %v1442 = vunpack.c.l.b16 %v1335
      %v1443 = vunpack.c.h.b16 %v1335
      %v1444 = vunpack.c.l.b16 %v1336
      %v1445 = vunpack.c.h.b16 %v1336
      %v1446 = vunpack.c.l.b16 %v1337
      %v1447 = vunpack.c.h.b16 %v1337
      %v1448 = vunpack.c.l.b16 %v1338
      %v1449 = vunpack.c.h.b16 %v1338
      %v1450 = vunpack.c.l.b16 %v1339
      %v1451 = vunpack.c.h.b16 %v1339
      %v1452 = vunpack.c.l.b16 %v1340
      %v1453 = vunpack.c.h.b16 %v1340
      %v1454 = vunpack.c.l.b16 %v1341
      %v1455 = vunpack.c.h.b16 %v1341
      %v1456 = vunpack.c.l.b16 %v1342
      %v1457 = vunpack.c.h.b16 %v1342
      %v1458 = vunpack.c.l.b16 %v1343
      %v1459 = vunpack.c.h.b16 %v1343
      %v1460 = vunpack.c.l.b16 %v1344
      %v1461 = vunpack.c.h.b16 %v1344
      %v1462 = vunpack.c.l.b16 %v1345
      %v1463 = vunpack.c.h.b16 %v1345
      %v1464 = vunpack.c.l.b16 %v1346
      %v1465 = vunpack.c.h.b16 %v1346
      %v1466 = vunpack.c.l.b16 %v1347
      %v1467 = vunpack.c.h.b16 %v1347
      %v1468 = vunpack.c.l.b16 %v1348
      %v1469 = vunpack.c.h.b16 %v1348
      %v1470 = vunpack.c.l.b16 %v1349
      %v1471 = vunpack.c.h.b16 %v1349
      %v1472 = vunpack.c.l.b16 %v1350
      %v1473 = vunpack.c.h.b16 %v1350
      %v1474 = vunpack.c.l.b16 %v1351
      %v1475 = vunpack.c.h.b16 %v1351
      %v1476 = vunpack.c.l.b16 %v1352
      %v1477 = vunpack.c.h.b16 %v1352
      %v1478 = vunpack.c.l.b16 %v1353
      %v1479 = vunpack.c.h.b16 %v1353
      %v1480 = vunpack.c.l.b16 %v1354
      %v1481 = vunpack.c.h.b16 %v1354
      %v1482 = vunpack.c.l.b16 %v1355
      %v1483 = vunpack.c.h.b16 %v1355
      %v1484 = vunpack.c.l.b16 %v1356
      %v1485 = vunpack.c.h.b16 %v1356
      %v1486 = vunpack.c.l.b16 %v1357
      %v1487 = vunpack.c.h.b16 %v1357
      %v1488 = vunpack.c.l.b16 %v1358
      %v1489 = vunpack.c.h.b16 %v1358
      %v1490 = vunpack.c.l.b16 %v1359
      %v1491 = vunpack.c.h.b16 %v1359
      %v1492 = vunpack.c.l.b16 %v1360
      %v1493 = vunpack.c.h.b16 %v1360
      %v1494 = vunpack.c.l.b16 %v1361
      %v1495 = vunpack.c.h.b16 %v1361
      %v1496 = vunpack.c.l.b16 %v1362
      %v1497 = vunpack.c.h.b16 %v1362
      %v1498 = vunpack.c.l.b16 %v1363
      %v1499 = vunpack.c.h.b16 %v1363
      %v1500 = vunpack.c.l.b16 %v1364
      %v1501 = vunpack.c.h.b16 %v1364
      %v1502 = vunpack.c.l.b16 %v1365
      %v1503 = vunpack.c.h.b16 %v1365
      %v1504 = vunpack.c.l.b16 %v1366
      %v1505 = vunpack.c.h.b16 %v1366
      %v1506 = vunpack.c.l.b16 %v1367
      %v1507 = vunpack.c.h.b16 %v1367
      %v1508 = vunpack.c.l.b16 %v1368
      %v1509 = vunpack.c.h.b16 %v1368
      %v1510 = vunpack.c.l.b16 %v1369
      %v1511 = vunpack.c.h.b16 %v1369
      %v1512 = vunpack.c.l.b16 %v1370
      %v1513 = vunpack.c.h.b16 %v1370
      %v1514 = vunpack.c.l.b16 %v1371
      %v1515 = vunpack.c.h.b16 %v1371
      %v1516 = vpack.c.b16 %v1422, %v1420
      %v1517 = vpack.c.b16 %v1423, %v1421
      %v1518 = vpack.c.b16 %v1426, %v1424
      %v1519 = vpack.c.b16 %v1427, %v1425
      %v1520 = vpack.c.b16 %v1430, %v1428
      %v1521 = vpack.c.b16 %v1431, %v1429
      %v1522 = vpack.c.b16 %v1434, %v1432
      %v1523 = vpack.c.b16 %v1435, %v1433
      %v1524 = vpack.c.b16 %v1438, %v1436
      %v1525 = vpack.c.b16 %v1439, %v1437
      %v1526 = vpack.c.b16 %v1442, %v1440
      %v1527 = vpack.c.b16 %v1443, %v1441
      %v1528 = vpack.c.b16 %v1446, %v1444
      %v1529 = vpack.c.b16 %v1447, %v1445
      %v1530 = vpack.c.b16 %v1450, %v1448
      %v1531 = vpack.c.b16 %v1451, %v1449
      %v1532 = vpack.c.b16 %v1454, %v1452
      %v1533 = vpack.c.b16 %v1455, %v1453
      %v1534 = vpack.c.b16 %v1458, %v1456
      %v1535 = vpack.c.b16 %v1459, %v1457
      %v1536 = vpack.c.b16 %v1462, %v1460
      %v1537 = vpack.c.b16 %v1463, %v1461
      %v1538 = vpack.c.b16 %v1466, %v1464
      %v1539 = vpack.c.b16 %v1467, %v1465
      %v1540 = vpack.c.b16 %v1470, %v1468
      %v1541 = vpack.c.b16 %v1471, %v1469
      %v1542 = vpack.c.b16 %v1474, %v1472
      %v1543 = vpack.c.b16 %v1475, %v1473
      %v1544 = vpack.c.b16 %v1478, %v1476
      %v1545 = vpack.c.b16 %v1479, %v1477
      %v1546 = vpack.c.b16 %v1482, %v1480
      %v1547 = vpack.c.b16 %v1483, %v1481
      %v1548 = vpack.c.b16 %v1486, %v1484
      %v1549 = vpack.c.b16 %v1487, %v1485
      %v1550 = vpack.c.b16 %v1490, %v1488
      %v1551 = vpack.c.b16 %v1491, %v1489
      %v1552 = vpack.c.b16 %v1494, %v1492
      %v1553 = vpack.c.b16 %v1495, %v1493
      %v1554 = vpack.c.b16 %v1498, %v1496
      %v1555 = vpack.c.b16 %v1499, %v1497
      %v1556 = vpack.c.b16 %v1502, %v1500
      %v1557 = vpack.c.b16 %v1503, %v1501
      %v1558 = vpack.c.b16 %v1506, %v1504
      %v1559 = vpack.c.b16 %v1507, %v1505
      %v1560 = vpack.c.b16 %v1510, %v1508
      %v1561 = vpack.c.b16 %v1511, %v1509
      %v1562 = vpack.c.b16 %v1514, %v1512
      %v1563 = vpack.c.b16 %v1515, %v1513
      %1612 = vmatpush.bf16.msra.mxu0 %v1530
      %1613 = vmatpush.bf16.msra.mxu0 %v1528
      %1614 = vmatpush.bf16.msra.mxu0 %v1526
      %1615 = vmatpush.bf16.msra.mxu0 %v1524
      %1616 = vmatpush.bf16.msra.mxu0 %v1522
      %1617 = vmatpush.bf16.msra.mxu0 %v1520
      %1618 = vmatpush.bf16.msra.mxu0 %v1518
      %1619 = vmatpush.bf16.msra.mxu0 %v1516
      %1620 = vmatmul.bf16.gmra.mxu0 %v922
      %v1621 = vpop.f32.mrf.mxu0
      %v1622 = vadd.f32 0.0, %v1621
      %v1623 = vpop.f32.mrf.mxu0
      %v1624 = vadd.f32 0.0, %v1623
      %1625 = vmatmul.bf16.gmra.mxu0 %v923
      %v1626 = vpop.f32.mrf.mxu0
      %v1627 = vadd.f32 0.0, %v1626
      %v1628 = vpop.f32.mrf.mxu0
      %v1629 = vadd.f32 0.0, %v1628
      %1630 = vmatmul.bf16.gmra.mxu0 %v924
      %v1631 = vpop.f32.mrf.mxu0
      %v1632 = vadd.f32 0.0, %v1631
      %v1633 = vpop.f32.mrf.mxu0
      %v1634 = vadd.f32 0.0, %v1633
      %1635 = vmatmul.bf16.gmra.mxu0 %v925
      %v1636 = vpop.f32.mrf.mxu0
      %v1637 = vadd.f32 0.0, %v1636
      %v1638 = vpop.f32.mrf.mxu0
      %v1639 = vadd.f32 0.0, %v1638
      %1640 = vmatmul.bf16.gmra.mxu0 %v926
      %v1641 = vpop.f32.mrf.mxu0
      %v1642 = vadd.f32 0.0, %v1641
      %v1643 = vpop.f32.mrf.mxu0
      %v1644 = vadd.f32 0.0, %v1643
      %1645 = vmatmul.bf16.gmra.mxu0 %v927
      %v1646 = vpop.f32.mrf.mxu0
      %v1647 = vadd.f32 0.0, %v1646
      %v1648 = vpop.f32.mrf.mxu0
      %v1649 = vadd.f32 0.0, %v1648
      %1650 = vmatmul.bf16.gmra.mxu0 %v928
      %v1651 = vpop.f32.mrf.mxu0
      %v1652 = vadd.f32 0.0, %v1651
      %v1653 = vpop.f32.mrf.mxu0
      %v1654 = vadd.f32 0.0, %v1653
      %1655 = vmatmul.bf16.gmra.mxu0 %v929
      %v1656 = vpop.f32.mrf.mxu0
      %v1657 = vadd.f32 0.0, %v1656
      %v1658 = vpop.f32.mrf.mxu0
      %v1659 = vadd.f32 0.0, %v1658
      %1660 = vmatmul.bf16.gmra.mxu0 %v930
      %v1661 = vpop.f32.mrf.mxu0
      %v1662 = vadd.f32 0.0, %v1661
      %v1663 = vpop.f32.mrf.mxu0
      %v1664 = vadd.f32 0.0, %v1663
      %1665 = vmatmul.bf16.gmra.mxu0 %v931
      %v1666 = vpop.f32.mrf.mxu0
      %v1667 = vadd.f32 0.0, %v1666
      %v1668 = vpop.f32.mrf.mxu0
      %v1669 = vadd.f32 0.0, %v1668
      %1670 = vmatmul.bf16.gmra.mxu0 %v932
      %v1671 = vpop.f32.mrf.mxu0
      %v1672 = vadd.f32 0.0, %v1671
      %v1673 = vpop.f32.mrf.mxu0
      %v1674 = vadd.f32 0.0, %v1673
      %1675 = vmatmul.bf16.gmra.mxu0 %v933
      %v1676 = vpop.f32.mrf.mxu0
      %v1677 = vadd.f32 0.0, %v1676
      %v1678 = vpop.f32.mrf.mxu0
      %v1679 = vadd.f32 0.0, %v1678
      %1680 = vmatmul.bf16.gmra.mxu0 %v934
      %v1681 = vpop.f32.mrf.mxu0
      %v1682 = vadd.f32 0.0, %v1681
      %v1683 = vpop.f32.mrf.mxu0
      %v1684 = vadd.f32 0.0, %v1683
      %1685 = vmatmul.bf16.gmra.mxu0 %v935
      %v1686 = vpop.f32.mrf.mxu0
      %v1687 = vadd.f32 0.0, %v1686
      %v1688 = vpop.f32.mrf.mxu0
      %v1689 = vadd.f32 0.0, %v1688
      %1690 = vmatmul.bf16.gmra.mxu0 %v936
      %v1691 = vpop.f32.mrf.mxu0
      %v1692 = vadd.f32 0.0, %v1691
      %v1693 = vpop.f32.mrf.mxu0
      %v1694 = vadd.f32 0.0, %v1693
      %1695 = vmatmul.bf16.gmra.mxu0 %v937
      %v1696 = vpop.f32.mrf.mxu0
      %v1697 = vadd.f32 0.0, %v1696
      %v1698 = vpop.f32.mrf.mxu0
      %v1699 = vadd.f32 0.0, %v1698
      %1700 = vdwg.mxu0
      %1701 = vmatpush.bf16.msra.mxu0 %v1546
      %1702 = vmatpush.bf16.msra.mxu0 %v1544
      %1703 = vmatpush.bf16.msra.mxu0 %v1542
      %1704 = vmatpush.bf16.msra.mxu0 %v1540
      %1705 = vmatpush.bf16.msra.mxu0 %v1538
      %1706 = vmatpush.bf16.msra.mxu0 %v1536
      %1707 = vmatpush.bf16.msra.mxu0 %v1534
      %1708 = vmatpush.bf16.msra.mxu0 %v1532
      %1709 = vmatmul.bf16.gmra.mxu0 %v1014
      %v1710 = vpop.f32.mrf.mxu0
      %v1711 = vadd.f32 %v1622, %v1710
      %v1712 = vpop.f32.mrf.mxu0
      %v1713 = vadd.f32 %v1624, %v1712
      %1714 = vmatmul.bf16.gmra.mxu0 %v1026
      %v1715 = vpop.f32.mrf.mxu0
      %v1716 = vadd.f32 %v1627, %v1715
      %v1717 = vpop.f32.mrf.mxu0
      %v1718 = vadd.f32 %v1629, %v1717
      %1719 = vmatmul.bf16.gmra.mxu0 %v1038
      %v1720 = vpop.f32.mrf.mxu0
      %v1721 = vadd.f32 %v1632, %v1720
      %v1722 = vpop.f32.mrf.mxu0
      %v1723 = vadd.f32 %v1634, %v1722
      %1724 = vmatmul.bf16.gmra.mxu0 %v1050
      %v1725 = vpop.f32.mrf.mxu0
      %v1726 = vadd.f32 %v1637, %v1725
      %v1727 = vpop.f32.mrf.mxu0
      %v1728 = vadd.f32 %v1639, %v1727
      %1729 = vmatmul.bf16.gmra.mxu0 %v1062
      %v1730 = vpop.f32.mrf.mxu0
      %v1731 = vadd.f32 %v1642, %v1730
      %v1732 = vpop.f32.mrf.mxu0
      %v1733 = vadd.f32 %v1644, %v1732
      %1734 = vmatmul.bf16.gmra.mxu0 %v1074
      %v1735 = vpop.f32.mrf.mxu0
      %v1736 = vadd.f32 %v1647, %v1735
      %v1737 = vpop.f32.mrf.mxu0
      %v1738 = vadd.f32 %v1649, %v1737
      %1739 = vmatmul.bf16.gmra.mxu0 %v1086
      %v1740 = vpop.f32.mrf.mxu0
      %v1741 = vadd.f32 %v1652, %v1740
      %v1742 = vpop.f32.mrf.mxu0
      %v1743 = vadd.f32 %v1654, %v1742
      %1744 = vmatmul.bf16.gmra.mxu0 %v1098
      %v1745 = vpop.f32.mrf.mxu0
      %v1746 = vadd.f32 %v1657, %v1745
      %v1747 = vpop.f32.mrf.mxu0
      %v1748 = vadd.f32 %v1659, %v1747
      %1749 = vmatmul.bf16.gmra.mxu0 %v1110
      %v1750 = vpop.f32.mrf.mxu0
      %v1751 = vadd.f32 %v1662, %v1750
      %v1752 = vpop.f32.mrf.mxu0
      %v1753 = vadd.f32 %v1664, %v1752
      %1754 = vmatmul.bf16.gmra.mxu0 %v1122
      %v1755 = vpop.f32.mrf.mxu0
      %v1756 = vadd.f32 %v1667, %v1755
      %v1757 = vpop.f32.mrf.mxu0
      %v1758 = vadd.f32 %v1669, %v1757
      %1759 = vmatmul.bf16.gmra.mxu0 %v1134
      %v1760 = vpop.f32.mrf.mxu0
      %v1761 = vadd.f32 %v1672, %v1760
      %v1762 = vpop.f32.mrf.mxu0
      %v1763 = vadd.f32 %v1674, %v1762
      %1764 = vmatmul.bf16.gmra.mxu0 %v1146
      %v1765 = vpop.f32.mrf.mxu0
      %v1766 = vadd.f32 %v1677, %v1765
      %v1767 = vpop.f32.mrf.mxu0
      %v1768 = vadd.f32 %v1679, %v1767
      %1769 = vmatmul.bf16.gmra.mxu0 %v1158
      %v1770 = vpop.f32.mrf.mxu0
      %v1771 = vadd.f32 %v1682, %v1770
      %v1772 = vpop.f32.mrf.mxu0
      %v1773 = vadd.f32 %v1684, %v1772
      %1774 = vmatmul.bf16.gmra.mxu0 %v1170
      %v1775 = vpop.f32.mrf.mxu0
      %v1776 = vadd.f32 %v1687, %v1775
      %v1777 = vpop.f32.mrf.mxu0
      %v1778 = vadd.f32 %v1689, %v1777
      %1779 = vmatmul.bf16.gmra.mxu0 %v1182
      %v1780 = vpop.f32.mrf.mxu0
      %v1781 = vadd.f32 %v1692, %v1780
      %v1782 = vpop.f32.mrf.mxu0
      %v1783 = vadd.f32 %v1694, %v1782
      %1784 = vmatmul.bf16.gmra.mxu0 %v1194
      %v1785 = vpop.f32.mrf.mxu0
      %v1786 = vadd.f32 %v1697, %v1785
      %v1787 = vpop.f32.mrf.mxu0
      %v1788 = vadd.f32 %v1699, %v1787
      %1789 = vdwg.mxu0
      %1790 = vmatpush.bf16.msra.mxu0 %v1562
      %1791 = vmatpush.bf16.msra.mxu0 %v1560
      %1792 = vmatpush.bf16.msra.mxu0 %v1558
      %1793 = vmatpush.bf16.msra.mxu0 %v1556
      %1794 = vmatpush.bf16.msra.mxu0 %v1554
      %1795 = vmatpush.bf16.msra.mxu0 %v1552
      %1796 = vmatpush.bf16.msra.mxu0 %v1550
      %1797 = vmatpush.bf16.msra.mxu0 %v1548
      %1798 = vmatmul.bf16.gmra.mxu0 %v1262
      %v1799 = vpop.f32.mrf.mxu0
      %v1800 = vadd.f32 %v1711, %v1799
      %v1801 = vpop.f32.mrf.mxu0
      %v1802 = vadd.f32 %v1713, %v1801
      %1803 = vmatmul.bf16.gmra.mxu0 %v1265
      %v1804 = vpop.f32.mrf.mxu0
      %v1805 = vadd.f32 %v1716, %v1804
      %v1806 = vpop.f32.mrf.mxu0
      %v1807 = vadd.f32 %v1718, %v1806
      %1808 = vmatmul.bf16.gmra.mxu0 %v1268
      %v1809 = vpop.f32.mrf.mxu0
      %v1810 = vadd.f32 %v1721, %v1809
      %v1811 = vpop.f32.mrf.mxu0
      %v1812 = vadd.f32 %v1723, %v1811
      %1813 = vmatmul.bf16.gmra.mxu0 %v1271
      %v1814 = vpop.f32.mrf.mxu0
      %v1815 = vadd.f32 %v1726, %v1814
      %v1816 = vpop.f32.mrf.mxu0
      %v1817 = vadd.f32 %v1728, %v1816
      %1818 = vmatmul.bf16.gmra.mxu0 %v1274
      %v1819 = vpop.f32.mrf.mxu0
      %v1820 = vadd.f32 %v1731, %v1819
      %v1821 = vpop.f32.mrf.mxu0
      %v1822 = vadd.f32 %v1733, %v1821
      %1823 = vmatmul.bf16.gmra.mxu0 %v1277
      %v1824 = vpop.f32.mrf.mxu0
      %v1825 = vadd.f32 %v1736, %v1824
      %v1826 = vpop.f32.mrf.mxu0
      %v1827 = vadd.f32 %v1738, %v1826
      %1828 = vmatmul.bf16.gmra.mxu0 %v1280
      %v1829 = vpop.f32.mrf.mxu0
      %v1830 = vadd.f32 %v1741, %v1829
      %v1831 = vpop.f32.mrf.mxu0
      %v1832 = vadd.f32 %v1743, %v1831
      %1833 = vmatmul.bf16.gmra.mxu0 %v1283
      %v1834 = vpop.f32.mrf.mxu0
      %v1835 = vadd.f32 %v1746, %v1834
      %v1836 = vpop.f32.mrf.mxu0
      %v1837 = vadd.f32 %v1748, %v1836
      %1838 = vmatmul.bf16.gmra.mxu0 %v1286
      %v1839 = vpop.f32.mrf.mxu0
      %v1840 = vadd.f32 %v1751, %v1839
      %v1841 = vpop.f32.mrf.mxu0
      %v1842 = vadd.f32 %v1753, %v1841
      %1843 = vmatmul.bf16.gmra.mxu0 %v1289
      %v1844 = vpop.f32.mrf.mxu0
      %v1845 = vadd.f32 %v1756, %v1844
      %v1846 = vpop.f32.mrf.mxu0
      %v1847 = vadd.f32 %v1758, %v1846
      %1848 = vmatmul.bf16.gmra.mxu0 %v1292
      %v1849 = vpop.f32.mrf.mxu0
      %v1850 = vadd.f32 %v1761, %v1849
      %v1851 = vpop.f32.mrf.mxu0
      %v1852 = vadd.f32 %v1763, %v1851
      %1853 = vmatmul.bf16.gmra.mxu0 %v1295
      %v1854 = vpop.f32.mrf.mxu0
      %v1855 = vadd.f32 %v1766, %v1854
      %v1856 = vpop.f32.mrf.mxu0
      %v1857 = vadd.f32 %v1768, %v1856
      %1858 = vmatmul.bf16.gmra.mxu0 %v1298
      %v1859 = vpop.f32.mrf.mxu0
      %v1860 = vadd.f32 %v1771, %v1859
      %v1861 = vpop.f32.mrf.mxu0
      %v1862 = vadd.f32 %v1773, %v1861
      %1863 = vmatmul.bf16.gmra.mxu0 %v1301
      %v1864 = vpop.f32.mrf.mxu0
      %v1865 = vadd.f32 %v1776, %v1864
      %v1866 = vpop.f32.mrf.mxu0
      %v1867 = vadd.f32 %v1778, %v1866
      %1868 = vmatmul.bf16.gmra.mxu0 %v1304
      %v1869 = vpop.f32.mrf.mxu0
      %v1870 = vadd.f32 %v1781, %v1869
      %v1871 = vpop.f32.mrf.mxu0
      %v1872 = vadd.f32 %v1783, %v1871
      %1873 = vmatmul.bf16.gmra.mxu0 %v1307
      %v1874 = vpop.f32.mrf.mxu0
      %v1875 = vadd.f32 %v1786, %v1874
      %v1876 = vpop.f32.mrf.mxu0
      %v1877 = vadd.f32 %v1788, %v1876
      %1878 = vdwg.mxu0
      %1879 = vmatpush.bf16.msra.mxu0 %v1531
      %1880 = vmatpush.bf16.msra.mxu0 %v1529
      %1881 = vmatpush.bf16.msra.mxu0 %v1527
      %1882 = vmatpush.bf16.msra.mxu0 %v1525
      %1883 = vmatpush.bf16.msra.mxu0 %v1523
      %1884 = vmatpush.bf16.msra.mxu0 %v1521
      %1885 = vmatpush.bf16.msra.mxu0 %v1519
      %1886 = vmatpush.bf16.msra.mxu0 %v1517
      %1887 = vmatmul.bf16.gmra.mxu0 %v922
      %v1888 = vpop.f32.mrf.mxu0
      %v1889 = vadd.f32 0.0, %v1888
      %v1890 = vpop.f32.mrf.mxu0
      %v1891 = vadd.f32 0.0, %v1890
      %1892 = vmatmul.bf16.gmra.mxu0 %v923
      %v1893 = vpop.f32.mrf.mxu0
      %v1894 = vadd.f32 0.0, %v1893
      %v1895 = vpop.f32.mrf.mxu0
      %v1896 = vadd.f32 0.0, %v1895
      %1897 = vmatmul.bf16.gmra.mxu0 %v924
      %v1898 = vpop.f32.mrf.mxu0
      %v1899 = vadd.f32 0.0, %v1898
      %v1900 = vpop.f32.mrf.mxu0
      %v1901 = vadd.f32 0.0, %v1900
      %1902 = vmatmul.bf16.gmra.mxu0 %v925
      %v1903 = vpop.f32.mrf.mxu0
      %v1904 = vadd.f32 0.0, %v1903
      %v1905 = vpop.f32.mrf.mxu0
      %v1906 = vadd.f32 0.0, %v1905
      %1907 = vmatmul.bf16.gmra.mxu0 %v926
      %v1908 = vpop.f32.mrf.mxu0
      %v1909 = vadd.f32 0.0, %v1908
      %v1910 = vpop.f32.mrf.mxu0
      %v1911 = vadd.f32 0.0, %v1910
      %1912 = vmatmul.bf16.gmra.mxu0 %v927
      %v1913 = vpop.f32.mrf.mxu0
      %v1914 = vadd.f32 0.0, %v1913
      %v1915 = vpop.f32.mrf.mxu0
      %v1916 = vadd.f32 0.0, %v1915
      %1917 = vmatmul.bf16.gmra.mxu0 %v928
      %v1918 = vpop.f32.mrf.mxu0
      %v1919 = vadd.f32 0.0, %v1918
      %v1920 = vpop.f32.mrf.mxu0
      %v1921 = vadd.f32 0.0, %v1920
      %1922 = vmatmul.bf16.gmra.mxu0 %v929
      %v1923 = vpop.f32.mrf.mxu0
      %v1924 = vadd.f32 0.0, %v1923
      %v1925 = vpop.f32.mrf.mxu0
      %v1926 = vadd.f32 0.0, %v1925
      %1927 = vmatmul.bf16.gmra.mxu0 %v930
      %v1928 = vpop.f32.mrf.mxu0
      %v1929 = vadd.f32 0.0, %v1928
      %v1930 = vpop.f32.mrf.mxu0
      %v1931 = vadd.f32 0.0, %v1930
      %1932 = vmatmul.bf16.gmra.mxu0 %v931
      %v1933 = vpop.f32.mrf.mxu0
      %v1934 = vadd.f32 0.0, %v1933
      %v1935 = vpop.f32.mrf.mxu0
      %v1936 = vadd.f32 0.0, %v1935
      %1937 = vmatmul.bf16.gmra.mxu0 %v932
      %v1938 = vpop.f32.mrf.mxu0
      %v1939 = vadd.f32 0.0, %v1938
      %v1940 = vpop.f32.mrf.mxu0
      %v1941 = vadd.f32 0.0, %v1940
      %1942 = vmatmul.bf16.gmra.mxu0 %v933
      %v1943 = vpop.f32.mrf.mxu0
      %v1944 = vadd.f32 0.0, %v1943
      %v1945 = vpop.f32.mrf.mxu0
      %v1946 = vadd.f32 0.0, %v1945
      %1947 = vmatmul.bf16.gmra.mxu0 %v934
      %v1948 = vpop.f32.mrf.mxu0
      %v1949 = vadd.f32 0.0, %v1948
      %v1950 = vpop.f32.mrf.mxu0
      %v1951 = vadd.f32 0.0, %v1950
      %1952 = vmatmul.bf16.gmra.mxu0 %v935
      %v1953 = vpop.f32.mrf.mxu0
      %v1954 = vadd.f32 0.0, %v1953
      %v1955 = vpop.f32.mrf.mxu0
      %v1956 = vadd.f32 0.0, %v1955
      %1957 = vmatmul.bf16.gmra.mxu0 %v936
      %v1958 = vpop.f32.mrf.mxu0
      %v1959 = vadd.f32 0.0, %v1958
      %v1960 = vpop.f32.mrf.mxu0
      %v1961 = vadd.f32 0.0, %v1960
      %1962 = vmatmul.bf16.gmra.mxu0 %v937
      %v1963 = vpop.f32.mrf.mxu0
      %v1964 = vadd.f32 0.0, %v1963
      %v1965 = vpop.f32.mrf.mxu0
      %v1966 = vadd.f32 0.0, %v1965
      %1967 = vdwg.mxu0
      %1968 = vmatpush.bf16.msra.mxu0 %v1547
      %1969 = vmatpush.bf16.msra.mxu0 %v1545
      %1970 = vmatpush.bf16.msra.mxu0 %v1543
      %1971 = vmatpush.bf16.msra.mxu0 %v1541
      %1972 = vmatpush.bf16.msra.mxu0 %v1539
      %1973 = vmatpush.bf16.msra.mxu0 %v1537
      %1974 = vmatpush.bf16.msra.mxu0 %v1535
      %1975 = vmatpush.bf16.msra.mxu0 %v1533
      %1976 = vmatmul.bf16.gmra.mxu0 %v1014
      %v1977 = vpop.f32.mrf.mxu0
      %v1978 = vadd.f32 %v1889, %v1977
      %v1979 = vpop.f32.mrf.mxu0
      %v1980 = vadd.f32 %v1891, %v1979
      %1981 = vmatmul.bf16.gmra.mxu0 %v1026
      %v1982 = vpop.f32.mrf.mxu0
      %v1983 = vadd.f32 %v1894, %v1982
      %v1984 = vpop.f32.mrf.mxu0
      %v1985 = vadd.f32 %v1896, %v1984
      %1986 = vmatmul.bf16.gmra.mxu0 %v1038
      %v1987 = vpop.f32.mrf.mxu0
      %v1988 = vadd.f32 %v1899, %v1987
      %v1989 = vpop.f32.mrf.mxu0
      %v1990 = vadd.f32 %v1901, %v1989
      %1991 = vmatmul.bf16.gmra.mxu0 %v1050
      %v1992 = vpop.f32.mrf.mxu0
      %v1993 = vadd.f32 %v1904, %v1992
      %v1994 = vpop.f32.mrf.mxu0
      %v1995 = vadd.f32 %v1906, %v1994
      %1996 = vmatmul.bf16.gmra.mxu0 %v1062
      %v1997 = vpop.f32.mrf.mxu0
      %v1998 = vadd.f32 %v1909, %v1997
      %v1999 = vpop.f32.mrf.mxu0
      %v2000 = vadd.f32 %v1911, %v1999
      %2001 = vmatmul.bf16.gmra.mxu0 %v1074
      %v2002 = vpop.f32.mrf.mxu0
      %v2003 = vadd.f32 %v1914, %v2002
      %v2004 = vpop.f32.mrf.mxu0
      %v2005 = vadd.f32 %v1916, %v2004
      %2006 = vmatmul.bf16.gmra.mxu0 %v1086
      %v2007 = vpop.f32.mrf.mxu0
      %v2008 = vadd.f32 %v1919, %v2007
      %v2009 = vpop.f32.mrf.mxu0
      %v2010 = vadd.f32 %v1921, %v2009
      %2011 = vmatmul.bf16.gmra.mxu0 %v1098
      %v2012 = vpop.f32.mrf.mxu0
      %v2013 = vadd.f32 %v1924, %v2012
      %v2014 = vpop.f32.mrf.mxu0
      %v2015 = vadd.f32 %v1926, %v2014
      %2016 = vmatmul.bf16.gmra.mxu0 %v1110
      %v2017 = vpop.f32.mrf.mxu0
      %v2018 = vadd.f32 %v1929, %v2017
      %v2019 = vpop.f32.mrf.mxu0
      %v2020 = vadd.f32 %v1931, %v2019
      %2021 = vmatmul.bf16.gmra.mxu0 %v1122
      %v2022 = vpop.f32.mrf.mxu0
      %v2023 = vadd.f32 %v1934, %v2022
      %v2024 = vpop.f32.mrf.mxu0
      %v2025 = vadd.f32 %v1936, %v2024
      %2026 = vmatmul.bf16.gmra.mxu0 %v1134
      %v2027 = vpop.f32.mrf.mxu0
      %v2028 = vadd.f32 %v1939, %v2027
      %v2029 = vpop.f32.mrf.mxu0
      %v2030 = vadd.f32 %v1941, %v2029
      %2031 = vmatmul.bf16.gmra.mxu0 %v1146
      %v2032 = vpop.f32.mrf.mxu0
      %v2033 = vadd.f32 %v1944, %v2032
      %v2034 = vpop.f32.mrf.mxu0
      %v2035 = vadd.f32 %v1946, %v2034
      %2036 = vmatmul.bf16.gmra.mxu0 %v1158
      %v2037 = vpop.f32.mrf.mxu0
      %v2038 = vadd.f32 %v1949, %v2037
      %v2039 = vpop.f32.mrf.mxu0
      %v2040 = vadd.f32 %v1951, %v2039
      %2041 = vmatmul.bf16.gmra.mxu0 %v1170
      %v2042 = vpop.f32.mrf.mxu0
      %v2043 = vadd.f32 %v1954, %v2042
      %v2044 = vpop.f32.mrf.mxu0
      %v2045 = vadd.f32 %v1956, %v2044
      %2046 = vmatmul.bf16.gmra.mxu0 %v1182
      %v2047 = vpop.f32.mrf.mxu0
      %v2048 = vadd.f32 %v1959, %v2047
      %v2049 = vpop.f32.mrf.mxu0
      %v2050 = vadd.f32 %v1961, %v2049
      %2051 = vmatmul.bf16.gmra.mxu0 %v1194
      %v2052 = vpop.f32.mrf.mxu0
      %v2053 = vadd.f32 %v1964, %v2052
      %v2054 = vpop.f32.mrf.mxu0
      %v2055 = vadd.f32 %v1966, %v2054
      %2056 = vdwg.mxu0
      %2057 = vmatpush.bf16.msra.mxu0 %v1563
      %2058 = vmatpush.bf16.msra.mxu0 %v1561
      %2059 = vmatpush.bf16.msra.mxu0 %v1559
      %2060 = vmatpush.bf16.msra.mxu0 %v1557
      %2061 = vmatpush.bf16.msra.mxu0 %v1555
      %2062 = vmatpush.bf16.msra.mxu0 %v1553
      %2063 = vmatpush.bf16.msra.mxu0 %v1551
      %2064 = vmatpush.bf16.msra.mxu0 %v1549
      %2065 = vmatmul.bf16.gmra.mxu0 %v1262
      %v2066 = vpop.f32.mrf.mxu0
      %v2067 = vadd.f32 %v1978, %v2066
      %v2068 = vpop.f32.mrf.mxu0
      %v2069 = vadd.f32 %v1980, %v2068
      %2070 = vmatmul.bf16.gmra.mxu0 %v1265
      %v2071 = vpop.f32.mrf.mxu0
      %v2072 = vadd.f32 %v1983, %v2071
      %v2073 = vpop.f32.mrf.mxu0
      %v2074 = vadd.f32 %v1985, %v2073
      %2075 = vmatmul.bf16.gmra.mxu0 %v1268
      %v2076 = vpop.f32.mrf.mxu0
      %v2077 = vadd.f32 %v1988, %v2076
      %v2078 = vpop.f32.mrf.mxu0
      %v2079 = vadd.f32 %v1990, %v2078
      %2080 = vmatmul.bf16.gmra.mxu0 %v1271
      %v2081 = vpop.f32.mrf.mxu0
      %v2082 = vadd.f32 %v1993, %v2081
      %v2083 = vpop.f32.mrf.mxu0
      %v2084 = vadd.f32 %v1995, %v2083
      %2085 = vmatmul.bf16.gmra.mxu0 %v1274
      %v2086 = vpop.f32.mrf.mxu0
      %v2087 = vadd.f32 %v1998, %v2086
      %v2088 = vpop.f32.mrf.mxu0
      %v2089 = vadd.f32 %v2000, %v2088
      %2090 = vmatmul.bf16.gmra.mxu0 %v1277
      %v2091 = vpop.f32.mrf.mxu0
      %v2092 = vadd.f32 %v2003, %v2091
      %v2093 = vpop.f32.mrf.mxu0
      %v2094 = vadd.f32 %v2005, %v2093
      %2095 = vmatmul.bf16.gmra.mxu0 %v1280
      %v2096 = vpop.f32.mrf.mxu0
      %v2097 = vadd.f32 %v2008, %v2096
      %v2098 = vpop.f32.mrf.mxu0
      %v2099 = vadd.f32 %v2010, %v2098
      %2100 = vmatmul.bf16.gmra.mxu0 %v1283
      %v2101 = vpop.f32.mrf.mxu0
      %v2102 = vadd.f32 %v2013, %v2101
      %v2103 = vpop.f32.mrf.mxu0
      %v2104 = vadd.f32 %v2015, %v2103
      %2105 = vmatmul.bf16.gmra.mxu0 %v1286
      %v2106 = vpop.f32.mrf.mxu0
      %v2107 = vadd.f32 %v2018, %v2106
      %v2108 = vpop.f32.mrf.mxu0
      %v2109 = vadd.f32 %v2020, %v2108
      %2110 = vmatmul.bf16.gmra.mxu0 %v1289
      %v2111 = vpop.f32.mrf.mxu0
      %v2112 = vadd.f32 %v2023, %v2111
      %v2113 = vpop.f32.mrf.mxu0
      %v2114 = vadd.f32 %v2025, %v2113
      %2115 = vmatmul.bf16.gmra.mxu0 %v1292
      %v2116 = vpop.f32.mrf.mxu0
      %v2117 = vadd.f32 %v2028, %v2116
      %v2118 = vpop.f32.mrf.mxu0
      %v2119 = vadd.f32 %v2030, %v2118
      %2120 = vmatmul.bf16.gmra.mxu0 %v1295
      %v2121 = vpop.f32.mrf.mxu0
      %v2122 = vadd.f32 %v2033, %v2121
      %v2123 = vpop.f32.mrf.mxu0
      %v2124 = vadd.f32 %v2035, %v2123
      %2125 = vmatmul.bf16.gmra.mxu0 %v1298
      %v2126 = vpop.f32.mrf.mxu0
      %v2127 = vadd.f32 %v2038, %v2126
      %v2128 = vpop.f32.mrf.mxu0
      %v2129 = vadd.f32 %v2040, %v2128
      %2130 = vmatmul.bf16.gmra.mxu0 %v1301
      %v2131 = vpop.f32.mrf.mxu0
      %v2132 = vadd.f32 %v2043, %v2131
      %v2133 = vpop.f32.mrf.mxu0
      %v2134 = vadd.f32 %v2045, %v2133
      %2135 = vmatmul.bf16.gmra.mxu0 %v1304
      %v2136 = vpop.f32.mrf.mxu0
      %v2137 = vadd.f32 %v2048, %v2136
      %v2138 = vpop.f32.mrf.mxu0
      %v2139 = vadd.f32 %v2050, %v2138
      %2140 = vmatmul.bf16.gmra.mxu0 %v1307
      %v2141 = vpop.f32.mrf.mxu0
      %v2142 = vadd.f32 %v2053, %v2141
      %v2143 = vpop.f32.mrf.mxu0
      %v2144 = vadd.f32 %v2055, %v2143
      %2145 = vdwg.mxu0
      %2146 = vst [vmem:[#allocation3] sm:$0xff] %v1800
      %2147 = vst [vmem:[#allocation3 + $0x8] sm:$0xff] %v2067
      %2148 = vst [vmem:[#allocation3 + $0x10] sm:$0xff] %v1802
      %2149 = vst [vmem:[#allocation3 + $0x18] sm:$0xff] %v2069
      %2150 = vst [vmem:[#allocation3 + $0x20] sm:$0xff] %v1805
      %2151 = vst [vmem:[#allocation3 + $0x28] sm:$0xff] %v2072
      %2152 = vst [vmem:[#allocation3 + $0x30] sm:$0xff] %v1807
      %2153 = vst [vmem:[#allocation3 + $0x38] sm:$0xff] %v2074
      %2154 = vst [vmem:[#allocation3 + $0x40] sm:$0xff] %v1810
      %2155 = vst [vmem:[#allocation3 + $0x48] sm:$0xff] %v2077
      %2156 = vst [vmem:[#allocation3 + $0x50] sm:$0xff] %v1812
      %2157 = vst [vmem:[#allocation3 + $0x58] sm:$0xff] %v2079
      %2158 = vst [vmem:[#allocation3 + $0x60] sm:$0xff] %v1815
      %2159 = vst [vmem:[#allocation3 + $0x68] sm:$0xff] %v2082
      %2160 = vst [vmem:[#allocation3 + $0x70] sm:$0xff] %v1817
      %2161 = vst [vmem:[#allocation3 + $0x78] sm:$0xff] %v2084
      %2162 = vst [vmem:[#allocation3 + $0x80] sm:$0xff] %v1820
      %2163 = vst [vmem:[#allocation3 + $0x88] sm:$0xff] %v2087
      %2164 = vst [vmem:[#allocation3 + $0x90] sm:$0xff] %v1822
      %2165 = vst [vmem:[#allocation3 + $0x98] sm:$0xff] %v2089
      %2166 = vst [vmem:[#allocation3 + $0xa0] sm:$0xff] %v1825
      %2167 = vst [vmem:[#allocation3 + $0xa8] sm:$0xff] %v2092
      %2168 = vst [vmem:[#allocation3 + $0xb0] sm:$0xff] %v1827
      %2169 = vst [vmem:[#allocation3 + $0xb8] sm:$0xff] %v2094
      %2170 = vst [vmem:[#allocation3 + $0xc0] sm:$0xff] %v1830
      %2171 = vst [vmem:[#allocation3 + $0xc8] sm:$0xff] %v2097
      %2172 = vst [vmem:[#allocation3 + $0xd0] sm:$0xff] %v1832
      %2173 = vst [vmem:[#allocation3 + $0xd8] sm:$0xff] %v2099
      %2174 = vst [vmem:[#allocation3 + $0xe0] sm:$0xff] %v1835
      %2175 = vst [vmem:[#allocation3 + $0xe8] sm:$0xff] %v2102
      %2176 = vst [vmem:[#allocation3 + $0xf0] sm:$0xff] %v1837
      %2177 = vst [vmem:[#allocation3 + $0xf8] sm:$0xff] %v2104
      %2178 = vst [vmem:[#allocation3 + $0x100] sm:$0xff] %v1840
      %2179 = vst [vmem:[#allocation3 + $0x108] sm:$0xff] %v2107
      %2180 = vst [vmem:[#allocation3 + $0x110] sm:$0xff] %v1842
      %2181 = vst [vmem:[#allocation3 + $0x118] sm:$0xff] %v2109
      %2182 = vst [vmem:[#allocation3 + $0x120] sm:$0xff] %v1845
      %2183 = vst [vmem:[#allocation3 + $0x128] sm:$0xff] %v2112
      %2184 = vst [vmem:[#allocation3 + $0x130] sm:$0xff] %v1847
      %2185 = vst [vmem:[#allocation3 + $0x138] sm:$0xff] %v2114
      %2186 = vst [vmem:[#allocation3 + $0x140] sm:$0xff] %v1850
      %2187 = vst [vmem:[#allocation3 + $0x148] sm:$0xff] %v2117
      %2188 = vst [vmem:[#allocation3 + $0x150] sm:$0xff] %v1852
      %2189 = vst [vmem:[#allocation3 + $0x158] sm:$0xff] %v2119
      %2190 = vst [vmem:[#allocation3 + $0x160] sm:$0xff] %v1855
      %2191 = vst [vmem:[#allocation3 + $0x168] sm:$0xff] %v2122
      %2192 = vst [vmem:[#allocation3 + $0x170] sm:$0xff] %v1857
      %2193 = vst [vmem:[#allocation3 + $0x178] sm:$0xff] %v2124
      %2194 = vst [vmem:[#allocation3 + $0x180] sm:$0xff] %v1860
      %2195 = vst [vmem:[#allocation3 + $0x188] sm:$0xff] %v2127
      %2196 = vst [vmem:[#allocation3 + $0x190] sm:$0xff] %v1862
      %2197 = vst [vmem:[#allocation3 + $0x198] sm:$0xff] %v2129
      %2198 = vst [vmem:[#allocation3 + $0x1a0] sm:$0xff] %v1865
      %2199 = vst [vmem:[#allocation3 + $0x1a8] sm:$0xff] %v2132
      %2200 = vst [vmem:[#allocation3 + $0x1b0] sm:$0xff] %v1867
      %2201 = vst [vmem:[#allocation3 + $0x1b8] sm:$0xff] %v2134
      %2202 = vst [vmem:[#allocation3 + $0x1c0] sm:$0xff] %v1870
      %2203 = vst [vmem:[#allocation3 + $0x1c8] sm:$0xff] %v2137
      %2204 = vst [vmem:[#allocation3 + $0x1d0] sm:$0xff] %v1872
      %2205 = vst [vmem:[#allocation3 + $0x1d8] sm:$0xff] %v2139
      %2206 = vst [vmem:[#allocation3 + $0x1e0] sm:$0xff] %v1875
      %2207 = vst [vmem:[#allocation3 + $0x1e8] sm:$0xff] %v2142
      %2208 = vst [vmem:[#allocation3 + $0x1f0] sm:$0xff] %v1877
      %2209 = vst [vmem:[#allocation3 + $0x1f8] sm:$0xff] %v2144
      %v2210 = vld [vmem:[%s224] sm:$0xf]
      %v2211 = vld [vmem:[%s224 + $0x4] sm:$0xf]
      %v2212 = vld [vmem:[%s224 + $0xc] sm:$0xf]
      %v2213 = vld [vmem:[%s224 + $0x10] sm:$0xf]
      %v2214 = vld [vmem:[%s224 + $0x18] sm:$0xf]
      %v2215 = vld [vmem:[%s224 + $0x1c] sm:$0xf]
      %v2216 = vld [vmem:[%s224 + $0x24] sm:$0xf]
      %v2217 = vld [vmem:[%s224 + $0x28] sm:$0xf]
      %v2218 = vld [vmem:[%s224 + $0x30] sm:$0xf]
      %v2219 = vld [vmem:[%s224 + $0x34] sm:$0xf]
      %v2220 = vld [vmem:[%s224 + $0x3c] sm:$0xf]
      %v2221 = vld [vmem:[%s224 + $0x40] sm:$0xf]
      %v2222 = vld [vmem:[%s224 + $0x48] sm:$0xf]
      %v2223 = vld [vmem:[%s224 + $0x4c] sm:$0xf]
      %v2224 = vld [vmem:[%s224 + $0x54] sm:$0xf]
      %v2225 = vld [vmem:[%s224 + $0x58] sm:$0xf]
      %v2226 = vld [vmem:[%s224 + $0x60] sm:$0xf]
      %v2227 = vld [vmem:[%s224 + $0x64] sm:$0xf]
      %v2228 = vld [vmem:[%s224 + $0x6c] sm:$0xf]
      %v2229 = vld [vmem:[%s224 + $0x70] sm:$0xf]
      %v2230 = vld [vmem:[%s224 + $0x78] sm:$0xf]
      %v2231 = vld [vmem:[%s224 + $0x7c] sm:$0xf]
      %v2232 = vld [vmem:[%s224 + $0x84] sm:$0xf]
      %v2233 = vld [vmem:[%s224 + $0x88] sm:$0xf]
      %v2234 = vld [vmem:[%s224 + $0x90] sm:$0xf]
      %v2235 = vld [vmem:[%s224 + $0x94] sm:$0xf]
      %v2236 = vld [vmem:[%s224 + $0x9c] sm:$0xf]
      %v2237 = vld [vmem:[%s224 + $0xa0] sm:$0xf]
      %v2238 = vld [vmem:[%s224 + $0xa8] sm:$0xf]
      %v2239 = vld [vmem:[%s224 + $0xac] sm:$0xf]
      %v2240 = vld [vmem:[%s224 + $0xb4] sm:$0xf]
      %v2241 = vld [vmem:[%s224 + $0xb8] sm:$0xf]
      %v2242 = vld [vmem:[%s224 + $0x8] sm:$0x1]
      %v2243 = vld [vmem:[%s224 + $0x14] sm:$0x1]
      %v2244 = vld [vmem:[%s224 + $0x20] sm:$0x1]
      %v2245 = vld [vmem:[%s224 + $0x2c] sm:$0x1]
      %v2246 = vld [vmem:[%s224 + $0x38] sm:$0x1]
      %v2247 = vld [vmem:[%s224 + $0x44] sm:$0x1]
      %v2248 = vld [vmem:[%s224 + $0x50] sm:$0x1]
      %v2249 = vld [vmem:[%s224 + $0x5c] sm:$0x1]
      %v2250 = vld [vmem:[%s224 + $0x68] sm:$0x1]
      %v2251 = vld [vmem:[%s224 + $0x74] sm:$0x1]
      %v2252 = vld [vmem:[%s224 + $0x80] sm:$0x1]
      %v2253 = vld [vmem:[%s224 + $0x8c] sm:$0x1]
      %v2254 = vld [vmem:[%s224 + $0x98] sm:$0x1]
      %v2255 = vld [vmem:[%s224 + $0xa4] sm:$0x1]
      %v2256 = vld [vmem:[%s224 + $0xb0] sm:$0x1]
      %v2257 = vld [vmem:[%s224 + $0xbc] sm:$0x1]
      %v2258 = vld [vmem:[%s224] sm:$0xe]
      %v2259 = vld [vmem:[%s224 + $0xc] sm:$0xe]
      %v2260 = vld [vmem:[%s224 + $0x18] sm:$0xe]
      %v2261 = vld [vmem:[%s224 + $0x24] sm:$0xe]
      %v2262 = vld [vmem:[%s224 + $0x30] sm:$0xe]
      %v2263 = vld [vmem:[%s224 + $0x3c] sm:$0xe]
      %v2264 = vld [vmem:[%s224 + $0x48] sm:$0xe]
      %v2265 = vld [vmem:[%s224 + $0x54] sm:$0xe]
      %v2266 = vld [vmem:[%s224 + $0x60] sm:$0xe]
      %v2267 = vld [vmem:[%s224 + $0x6c] sm:$0xe]
      %v2268 = vld [vmem:[%s224 + $0x78] sm:$0xe]
      %v2269 = vld [vmem:[%s224 + $0x84] sm:$0xe]
      %v2270 = vld [vmem:[%s224 + $0x90] sm:$0xe]
      %v2271 = vld [vmem:[%s224 + $0x9c] sm:$0xe]
      %v2272 = vld [vmem:[%s224 + $0xa8] sm:$0xe]
      %v2273 = vld [vmem:[%s224 + $0xb4] sm:$0xe]
      %v2306 = vunpack.c.l.b16 %v2210
      %v2307 = vunpack.c.l.b16 %v2211
      %v2308 = vunpack.c.l.b16 %v2212
      %v2309 = vunpack.c.l.b16 %v2213
      %v2310 = vunpack.c.l.b16 %v2214
      %v2311 = vunpack.c.l.b16 %v2215
      %v2312 = vunpack.c.l.b16 %v2216
      %v2313 = vunpack.c.l.b16 %v2217
      %v2314 = vunpack.c.l.b16 %v2218
      %v2315 = vunpack.c.l.b16 %v2219
      %v2316 = vunpack.c.l.b16 %v2220
      %v2317 = vunpack.c.l.b16 %v2221
      %v2318 = vunpack.c.l.b16 %v2222
      %v2319 = vunpack.c.l.b16 %v2223
      %v2320 = vunpack.c.l.b16 %v2224
      %v2321 = vunpack.c.l.b16 %v2225
      %v2322 = vunpack.c.l.b16 %v2226
      %v2323 = vunpack.c.l.b16 %v2227
      %v2324 = vunpack.c.l.b16 %v2228
      %v2325 = vunpack.c.l.b16 %v2229
      %v2326 = vunpack.c.l.b16 %v2230
      %v2327 = vunpack.c.l.b16 %v2231
      %v2328 = vunpack.c.l.b16 %v2232
      %v2329 = vunpack.c.l.b16 %v2233
      %v2330 = vunpack.c.l.b16 %v2234
      %v2331 = vunpack.c.l.b16 %v2235
      %v2332 = vunpack.c.l.b16 %v2236
      %v2333 = vunpack.c.l.b16 %v2237
      %v2334 = vunpack.c.l.b16 %v2238
      %v2335 = vunpack.c.l.b16 %v2239
      %v2336 = vunpack.c.l.b16 %v2240
      %v2337 = vunpack.c.l.b16 %v2241
      %v2338 = vpack.c.b16 %v2307, %v2306
      %v2339 = vpack.c.b16 %v2309, %v2308
      %v2340 = vpack.c.b16 %v2311, %v2310
      %v2341 = vpack.c.b16 %v2313, %v2312
      %v2342 = vpack.c.b16 %v2315, %v2314
      %v2343 = vpack.c.b16 %v2317, %v2316
      %v2344 = vpack.c.b16 %v2319, %v2318
      %v2345 = vpack.c.b16 %v2321, %v2320
      %v2346 = vpack.c.b16 %v2323, %v2322
      %v2347 = vpack.c.b16 %v2325, %v2324
      %v2348 = vpack.c.b16 %v2327, %v2326
      %v2349 = vpack.c.b16 %v2329, %v2328
      %v2350 = vpack.c.b16 %v2331, %v2330
      %v2351 = vpack.c.b16 %v2333, %v2332
      %v2352 = vpack.c.b16 %v2335, %v2334
      %v2353 = vpack.c.b16 %v2337, %v2336
      %v2386 = vunpack.c.l.b16 %v2242
      %v2387 = vunpack.c.l.b16 %v2243
      %v2388 = vunpack.c.l.b16 %v2244
      %v2389 = vunpack.c.l.b16 %v2245
      %v2390 = vunpack.c.l.b16 %v2246
      %v2391 = vunpack.c.l.b16 %v2247
      %v2392 = vunpack.c.l.b16 %v2248
      %v2393 = vunpack.c.l.b16 %v2249
      %v2394 = vunpack.c.l.b16 %v2250
      %v2395 = vunpack.c.l.b16 %v2251
      %v2396 = vunpack.c.l.b16 %v2252
      %v2397 = vunpack.c.l.b16 %v2253
      %v2398 = vunpack.c.l.b16 %v2254
      %v2399 = vunpack.c.l.b16 %v2255
      %v2400 = vunpack.c.l.b16 %v2256
      %v2401 = vunpack.c.l.b16 %v2257
      %v2402 = vpack.c.b16 %v2386, %v2386
      %v2403 = vpack.c.b16 %v2387, %v2387
      %v2404 = vpack.c.b16 %v2388, %v2388
      %v2405 = vpack.c.b16 %v2389, %v2389
      %v2406 = vpack.c.b16 %v2390, %v2390
      %v2407 = vpack.c.b16 %v2391, %v2391
      %v2408 = vpack.c.b16 %v2392, %v2392
      %v2409 = vpack.c.b16 %v2393, %v2393
      %v2410 = vpack.c.b16 %v2394, %v2394
      %v2411 = vpack.c.b16 %v2395, %v2395
      %v2412 = vpack.c.b16 %v2396, %v2396
      %v2413 = vpack.c.b16 %v2397, %v2397
      %v2414 = vpack.c.b16 %v2398, %v2398
      %v2415 = vpack.c.b16 %v2399, %v2399
      %v2416 = vpack.c.b16 %v2400, %v2400
      %v2417 = vpack.c.b16 %v2401, %v2401
      %v2419 = vshrl.u32 %v2338, 16
      %v2421 = vshll.u32 %v2338, 16
      %v2423 = vrot.slane %v2421, 1
      %v2424 = vor.u32 %v2419, %v2423
      %v2426 = vshll.u32 %v2402, 16
      %v2428 = vrot.slane %v2426, 1
      %v2429 = vsel %vm1002, %v2424, %v2428
      %v2431 = vshrl.u32 %v2339, 16
      %v2433 = vshll.u32 %v2339, 16
      %v2435 = vrot.slane %v2433, 1
      %v2436 = vor.u32 %v2431, %v2435
      %v2438 = vshll.u32 %v2403, 16
      %v2440 = vrot.slane %v2438, 1
      %v2441 = vsel %vm1002, %v2436, %v2440
      %v2443 = vshrl.u32 %v2340, 16
      %v2445 = vshll.u32 %v2340, 16
      %v2447 = vrot.slane %v2445, 1
      %v2448 = vor.u32 %v2443, %v2447
      %v2450 = vshll.u32 %v2404, 16
      %v2452 = vrot.slane %v2450, 1
      %v2453 = vsel %vm1002, %v2448, %v2452
      %v2455 = vshrl.u32 %v2341, 16
      %v2457 = vshll.u32 %v2341, 16
      %v2459 = vrot.slane %v2457, 1
      %v2460 = vor.u32 %v2455, %v2459
      %v2462 = vshll.u32 %v2405, 16
      %v2464 = vrot.slane %v2462, 1
      %v2465 = vsel %vm1002, %v2460, %v2464
      %v2467 = vshrl.u32 %v2342, 16
      %v2469 = vshll.u32 %v2342, 16
      %v2471 = vrot.slane %v2469, 1
      %v2472 = vor.u32 %v2467, %v2471
      %v2474 = vshll.u32 %v2406, 16
      %v2476 = vrot.slane %v2474, 1
      %v2477 = vsel %vm1002, %v2472, %v2476
      %v2479 = vshrl.u32 %v2343, 16
      %v2481 = vshll.u32 %v2343, 16
      %v2483 = vrot.slane %v2481, 1
      %v2484 = vor.u32 %v2479, %v2483
      %v2486 = vshll.u32 %v2407, 16
      %v2488 = vrot.slane %v2486, 1
      %v2489 = vsel %vm1002, %v2484, %v2488
      %v2491 = vshrl.u32 %v2344, 16
      %v2493 = vshll.u32 %v2344, 16
      %v2495 = vrot.slane %v2493, 1
      %v2496 = vor.u32 %v2491, %v2495
      %v2498 = vshll.u32 %v2408, 16
      %v2500 = vrot.slane %v2498, 1
      %v2501 = vsel %vm1002, %v2496, %v2500
      %v2503 = vshrl.u32 %v2345, 16
      %v2505 = vshll.u32 %v2345, 16
      %v2507 = vrot.slane %v2505, 1
      %v2508 = vor.u32 %v2503, %v2507
      %v2510 = vshll.u32 %v2409, 16
      %v2512 = vrot.slane %v2510, 1
      %v2513 = vsel %vm1002, %v2508, %v2512
      %v2515 = vshrl.u32 %v2346, 16
      %v2517 = vshll.u32 %v2346, 16
      %v2519 = vrot.slane %v2517, 1
      %v2520 = vor.u32 %v2515, %v2519
      %v2522 = vshll.u32 %v2410, 16
      %v2524 = vrot.slane %v2522, 1
      %v2525 = vsel %vm1002, %v2520, %v2524
      %v2527 = vshrl.u32 %v2347, 16
      %v2529 = vshll.u32 %v2347, 16
      %v2531 = vrot.slane %v2529, 1
      %v2532 = vor.u32 %v2527, %v2531
      %v2534 = vshll.u32 %v2411, 16
      %v2536 = vrot.slane %v2534, 1
      %v2537 = vsel %vm1002, %v2532, %v2536
      %v2539 = vshrl.u32 %v2348, 16
      %v2541 = vshll.u32 %v2348, 16
      %v2543 = vrot.slane %v2541, 1
      %v2544 = vor.u32 %v2539, %v2543
      %v2546 = vshll.u32 %v2412, 16
      %v2548 = vrot.slane %v2546, 1
      %v2549 = vsel %vm1002, %v2544, %v2548
      %v2551 = vshrl.u32 %v2349, 16
      %v2553 = vshll.u32 %v2349, 16
      %v2555 = vrot.slane %v2553, 1
      %v2556 = vor.u32 %v2551, %v2555
      %v2558 = vshll.u32 %v2413, 16
      %v2560 = vrot.slane %v2558, 1
      %v2561 = vsel %vm1002, %v2556, %v2560
      %v2563 = vshrl.u32 %v2350, 16
      %v2565 = vshll.u32 %v2350, 16
      %v2567 = vrot.slane %v2565, 1
      %v2568 = vor.u32 %v2563, %v2567
      %v2570 = vshll.u32 %v2414, 16
      %v2572 = vrot.slane %v2570, 1
      %v2573 = vsel %vm1002, %v2568, %v2572
      %v2575 = vshrl.u32 %v2351, 16
      %v2577 = vshll.u32 %v2351, 16
      %v2579 = vrot.slane %v2577, 1
      %v2580 = vor.u32 %v2575, %v2579
      %v2582 = vshll.u32 %v2415, 16
      %v2584 = vrot.slane %v2582, 1
      %v2585 = vsel %vm1002, %v2580, %v2584
      %v2587 = vshrl.u32 %v2352, 16
      %v2589 = vshll.u32 %v2352, 16
      %v2591 = vrot.slane %v2589, 1
      %v2592 = vor.u32 %v2587, %v2591
      %v2594 = vshll.u32 %v2416, 16
      %v2596 = vrot.slane %v2594, 1
      %v2597 = vsel %vm1002, %v2592, %v2596
      %v2599 = vshrl.u32 %v2353, 16
      %v2601 = vshll.u32 %v2353, 16
      %v2603 = vrot.slane %v2601, 1
      %v2604 = vor.u32 %v2599, %v2603
      %v2606 = vshll.u32 %v2417, 16
      %v2608 = vrot.slane %v2606, 1
      %v2609 = vsel %vm1002, %v2604, %v2608
      %v2642 = vunpack.c.l.b16 %v2258
      %v2643 = vunpack.c.l.b16 %v2259
      %v2644 = vunpack.c.l.b16 %v2260
      %v2645 = vunpack.c.l.b16 %v2261
      %v2646 = vunpack.c.l.b16 %v2262
      %v2647 = vunpack.c.l.b16 %v2263
      %v2648 = vunpack.c.l.b16 %v2264
      %v2649 = vunpack.c.l.b16 %v2265
      %v2650 = vunpack.c.l.b16 %v2266
      %v2651 = vunpack.c.l.b16 %v2267
      %v2652 = vunpack.c.l.b16 %v2268
      %v2653 = vunpack.c.l.b16 %v2269
      %v2654 = vunpack.c.l.b16 %v2270
      %v2655 = vunpack.c.l.b16 %v2271
      %v2656 = vunpack.c.l.b16 %v2272
      %v2657 = vunpack.c.l.b16 %v2273
      %v2658 = vpack.c.b16 %v2307, %v2642
      %v2659 = vpack.c.b16 %v2309, %v2643
      %v2660 = vpack.c.b16 %v2311, %v2644
      %v2661 = vpack.c.b16 %v2313, %v2645
      %v2662 = vpack.c.b16 %v2315, %v2646
      %v2663 = vpack.c.b16 %v2317, %v2647
      %v2664 = vpack.c.b16 %v2319, %v2648
      %v2665 = vpack.c.b16 %v2321, %v2649
      %v2666 = vpack.c.b16 %v2323, %v2650
      %v2667 = vpack.c.b16 %v2325, %v2651
      %v2668 = vpack.c.b16 %v2327, %v2652
      %v2669 = vpack.c.b16 %v2329, %v2653
      %v2670 = vpack.c.b16 %v2331, %v2654
      %v2671 = vpack.c.b16 %v2333, %v2655
      %v2672 = vpack.c.b16 %v2335, %v2656
      %v2673 = vpack.c.b16 %v2337, %v2657
      %v2674 = vrot.slane %v2658, 1
      %v2675 = vrot.slane %v2402, 1
      %v2676 = vsel %vm1259, %v2674, %v2675
      %v2677 = vrot.slane %v2659, 1
      %v2678 = vrot.slane %v2403, 1
      %v2679 = vsel %vm1259, %v2677, %v2678
      %v2680 = vrot.slane %v2660, 1
      %v2681 = vrot.slane %v2404, 1
      %v2682 = vsel %vm1259, %v2680, %v2681
      %v2683 = vrot.slane %v2661, 1
      %v2684 = vrot.slane %v2405, 1
      %v2685 = vsel %vm1259, %v2683, %v2684
      %v2686 = vrot.slane %v2662, 1
      %v2687 = vrot.slane %v2406, 1
      %v2688 = vsel %vm1259, %v2686, %v2687
      %v2689 = vrot.slane %v2663, 1
      %v2690 = vrot.slane %v2407, 1
      %v2691 = vsel %vm1259, %v2689, %v2690
      %v2692 = vrot.slane %v2664, 1
      %v2693 = vrot.slane %v2408, 1
      %v2694 = vsel %vm1259, %v2692, %v2693
      %v2695 = vrot.slane %v2665, 1
      %v2696 = vrot.slane %v2409, 1
      %v2697 = vsel %vm1259, %v2695, %v2696
      %v2698 = vrot.slane %v2666, 1
      %v2699 = vrot.slane %v2410, 1
      %v2700 = vsel %vm1259, %v2698, %v2699
      %v2701 = vrot.slane %v2667, 1
      %v2702 = vrot.slane %v2411, 1
      %v2703 = vsel %vm1259, %v2701, %v2702
      %v2704 = vrot.slane %v2668, 1
      %v2705 = vrot.slane %v2412, 1
      %v2706 = vsel %vm1259, %v2704, %v2705
      %v2707 = vrot.slane %v2669, 1
      %v2708 = vrot.slane %v2413, 1
      %v2709 = vsel %vm1259, %v2707, %v2708
      %v2710 = vrot.slane %v2670, 1
      %v2711 = vrot.slane %v2414, 1
      %v2712 = vsel %vm1259, %v2710, %v2711
      %v2713 = vrot.slane %v2671, 1
      %v2714 = vrot.slane %v2415, 1
      %v2715 = vsel %vm1259, %v2713, %v2714
      %v2716 = vrot.slane %v2672, 1
      %v2717 = vrot.slane %v2416, 1
      %v2718 = vsel %vm1259, %v2716, %v2717
      %v2719 = vrot.slane %v2673, 1
      %v2720 = vrot.slane %v2417, 1
      %v2721 = vsel %vm1259, %v2719, %v2720
      %s2738 = scalar_lea.vmem %s1, 384
      %v2739 = vld [vmem:[%s2738] sm:$0xff]
      %v2740 = vld [vmem:[%s2738 + $0x8] sm:$0xff]
      %v2741 = vld [vmem:[%s2738 + $0x10] sm:$0xff]
      %v2742 = vld [vmem:[%s2738 + $0x18] sm:$0xff]
      %v2743 = vld [vmem:[%s2738 + $0x20] sm:$0xff]
      %v2744 = vld [vmem:[%s2738 + $0x28] sm:$0xff]
      %v2745 = vld [vmem:[%s2738 + $0x30] sm:$0xff]
      %v2746 = vld [vmem:[%s2738 + $0x38] sm:$0xff]
      %v2747 = vld [vmem:[%s2738 + $0x40] sm:$0xff]
      %v2748 = vld [vmem:[%s2738 + $0x48] sm:$0xff]
      %v2749 = vld [vmem:[%s2738 + $0x50] sm:$0xff]
      %v2750 = vld [vmem:[%s2738 + $0x58] sm:$0xff]
      %v2751 = vld [vmem:[%s2738 + $0x60] sm:$0xff]
      %v2752 = vld [vmem:[%s2738 + $0x68] sm:$0xff]
      %v2753 = vld [vmem:[%s2738 + $0x70] sm:$0xff]
      %v2754 = vld [vmem:[%s2738 + $0x78] sm:$0xff]
      %v2755 = vld [vmem:[%s2738 + $0x80] sm:$0xff]
      %v2756 = vld [vmem:[%s2738 + $0x88] sm:$0xff]
      %v2757 = vld [vmem:[%s2738 + $0x90] sm:$0xff]
      %v2758 = vld [vmem:[%s2738 + $0x98] sm:$0xff]
      %v2759 = vld [vmem:[%s2738 + $0xa0] sm:$0xff]
      %v2760 = vld [vmem:[%s2738 + $0xa8] sm:$0xff]
      %v2761 = vld [vmem:[%s2738 + $0xb0] sm:$0xff]
      %v2762 = vld [vmem:[%s2738 + $0xb8] sm:$0xff]
      %v2763 = vld [vmem:[%s2738 + $0xc0] sm:$0xff]
      %v2764 = vld [vmem:[%s2738 + $0xc8] sm:$0xff]
      %v2765 = vld [vmem:[%s2738 + $0xd0] sm:$0xff]
      %v2766 = vld [vmem:[%s2738 + $0xd8] sm:$0xff]
      %v2767 = vld [vmem:[%s2738 + $0xe0] sm:$0xff]
      %v2768 = vld [vmem:[%s2738 + $0xe8] sm:$0xff]
      %v2769 = vld [vmem:[%s2738 + $0xf0] sm:$0xff]
      %v2770 = vld [vmem:[%s2738 + $0xf8] sm:$0xff]
      %v2771 = vld [vmem:[%s2738 + $0x100] sm:$0xff]
      %v2772 = vld [vmem:[%s2738 + $0x108] sm:$0xff]
      %v2773 = vld [vmem:[%s2738 + $0x110] sm:$0xff]
      %v2774 = vld [vmem:[%s2738 + $0x118] sm:$0xff]
      %v2775 = vld [vmem:[%s2738 + $0x120] sm:$0xff]
      %v2776 = vld [vmem:[%s2738 + $0x128] sm:$0xff]
      %v2777 = vld [vmem:[%s2738 + $0x130] sm:$0xff]
      %v2778 = vld [vmem:[%s2738 + $0x138] sm:$0xff]
      %v2779 = vld [vmem:[%s2738 + $0x140] sm:$0xff]
      %v2780 = vld [vmem:[%s2738 + $0x148] sm:$0xff]
      %v2781 = vld [vmem:[%s2738 + $0x150] sm:$0xff]
      %v2782 = vld [vmem:[%s2738 + $0x158] sm:$0xff]
      %v2783 = vld [vmem:[%s2738 + $0x160] sm:$0xff]
      %v2784 = vld [vmem:[%s2738 + $0x168] sm:$0xff]
      %v2785 = vld [vmem:[%s2738 + $0x170] sm:$0xff]
      %v2786 = vld [vmem:[%s2738 + $0x178] sm:$0xff]
      %v2835 = vunpack.c.l.b16 %v2739
      %v2836 = vunpack.c.h.b16 %v2739
      %v2837 = vunpack.c.l.b16 %v2740
      %v2838 = vunpack.c.h.b16 %v2740
      %v2839 = vunpack.c.l.b16 %v2741
      %v2840 = vunpack.c.h.b16 %v2741
      %v2841 = vunpack.c.l.b16 %v2742
      %v2842 = vunpack.c.h.b16 %v2742
      %v2843 = vunpack.c.l.b16 %v2743
      %v2844 = vunpack.c.h.b16 %v2743
      %v2845 = vunpack.c.l.b16 %v2744
      %v2846 = vunpack.c.h.b16 %v2744
      %v2847 = vunpack.c.l.b16 %v2745
      %v2848 = vunpack.c.h.b16 %v2745
      %v2849 = vunpack.c.l.b16 %v2746
      %v2850 = vunpack.c.h.b16 %v2746
      %v2851 = vunpack.c.l.b16 %v2747
      %v2852 = vunpack.c.h.b16 %v2747
      %v2853 = vunpack.c.l.b16 %v2748
      %v2854 = vunpack.c.h.b16 %v2748
      %v2855 = vunpack.c.l.b16 %v2749
      %v2856 = vunpack.c.h.b16 %v2749
      %v2857 = vunpack.c.l.b16 %v2750
      %v2858 = vunpack.c.h.b16 %v2750
      %v2859 = vunpack.c.l.b16 %v2751
      %v2860 = vunpack.c.h.b16 %v2751
      %v2861 = vunpack.c.l.b16 %v2752
      %v2862 = vunpack.c.h.b16 %v2752
      %v2863 = vunpack.c.l.b16 %v2753
      %v2864 = vunpack.c.h.b16 %v2753
      %v2865 = vunpack.c.l.b16 %v2754
      %v2866 = vunpack.c.h.b16 %v2754
      %v2867 = vunpack.c.l.b16 %v2755
      %v2868 = vunpack.c.h.b16 %v2755
      %v2869 = vunpack.c.l.b16 %v2756
      %v2870 = vunpack.c.h.b16 %v2756
      %v2871 = vunpack.c.l.b16 %v2757
      %v2872 = vunpack.c.h.b16 %v2757
      %v2873 = vunpack.c.l.b16 %v2758
      %v2874 = vunpack.c.h.b16 %v2758
      %v2875 = vunpack.c.l.b16 %v2759
      %v2876 = vunpack.c.h.b16 %v2759
      %v2877 = vunpack.c.l.b16 %v2760
      %v2878 = vunpack.c.h.b16 %v2760
      %v2879 = vunpack.c.l.b16 %v2761
      %v2880 = vunpack.c.h.b16 %v2761
      %v2881 = vunpack.c.l.b16 %v2762
      %v2882 = vunpack.c.h.b16 %v2762
      %v2883 = vunpack.c.l.b16 %v2763
      %v2884 = vunpack.c.h.b16 %v2763
      %v2885 = vunpack.c.l.b16 %v2764
      %v2886 = vunpack.c.h.b16 %v2764
      %v2887 = vunpack.c.l.b16 %v2765
      %v2888 = vunpack.c.h.b16 %v2765
      %v2889 = vunpack.c.l.b16 %v2766
      %v2890 = vunpack.c.h.b16 %v2766
      %v2891 = vunpack.c.l.b16 %v2767
      %v2892 = vunpack.c.h.b16 %v2767
      %v2893 = vunpack.c.l.b16 %v2768
      %v2894 = vunpack.c.h.b16 %v2768
      %v2895 = vunpack.c.l.b16 %v2769
      %v2896 = vunpack.c.h.b16 %v2769
      %v2897 = vunpack.c.l.b16 %v2770
      %v2898 = vunpack.c.h.b16 %v2770
      %v2899 = vunpack.c.l.b16 %v2771
      %v2900 = vunpack.c.h.b16 %v2771
      %v2901 = vunpack.c.l.b16 %v2772
      %v2902 = vunpack.c.h.b16 %v2772
      %v2903 = vunpack.c.l.b16 %v2773
      %v2904 = vunpack.c.h.b16 %v2773
      %v2905 = vunpack.c.l.b16 %v2774
      %v2906 = vunpack.c.h.b16 %v2774
      %v2907 = vunpack.c.l.b16 %v2775
      %v2908 = vunpack.c.h.b16 %v2775
      %v2909 = vunpack.c.l.b16 %v2776
      %v2910 = vunpack.c.h.b16 %v2776
      %v2911 = vunpack.c.l.b16 %v2777
      %v2912 = vunpack.c.h.b16 %v2777
      %v2913 = vunpack.c.l.b16 %v2778
      %v2914 = vunpack.c.h.b16 %v2778
      %v2915 = vunpack.c.l.b16 %v2779
      %v2916 = vunpack.c.h.b16 %v2779
      %v2917 = vunpack.c.l.b16 %v2780
      %v2918 = vunpack.c.h.b16 %v2780
      %v2919 = vunpack.c.l.b16 %v2781
      %v2920 = vunpack.c.h.b16 %v2781
      %v2921 = vunpack.c.l.b16 %v2782
      %v2922 = vunpack.c.h.b16 %v2782
      %v2923 = vunpack.c.l.b16 %v2783
      %v2924 = vunpack.c.h.b16 %v2783
      %v2925 = vunpack.c.l.b16 %v2784
      %v2926 = vunpack.c.h.b16 %v2784
      %v2927 = vunpack.c.l.b16 %v2785
      %v2928 = vunpack.c.h.b16 %v2785
      %v2929 = vunpack.c.l.b16 %v2786
      %v2930 = vunpack.c.h.b16 %v2786
      %v2931 = vpack.c.b16 %v2837, %v2835
      %v2932 = vpack.c.b16 %v2838, %v2836
      %v2933 = vpack.c.b16 %v2841, %v2839
      %v2934 = vpack.c.b16 %v2842, %v2840
      %v2935 = vpack.c.b16 %v2845, %v2843
      %v2936 = vpack.c.b16 %v2846, %v2844
      %v2937 = vpack.c.b16 %v2849, %v2847
      %v2938 = vpack.c.b16 %v2850, %v2848
      %v2939 = vpack.c.b16 %v2853, %v2851
      %v2940 = vpack.c.b16 %v2854, %v2852
      %v2941 = vpack.c.b16 %v2857, %v2855
      %v2942 = vpack.c.b16 %v2858, %v2856
      %v2943 = vpack.c.b16 %v2861, %v2859
      %v2944 = vpack.c.b16 %v2862, %v2860
      %v2945 = vpack.c.b16 %v2865, %v2863
      %v2946 = vpack.c.b16 %v2866, %v2864
      %v2947 = vpack.c.b16 %v2869, %v2867
      %v2948 = vpack.c.b16 %v2870, %v2868
      %v2949 = vpack.c.b16 %v2873, %v2871
      %v2950 = vpack.c.b16 %v2874, %v2872
      %v2951 = vpack.c.b16 %v2877, %v2875
      %v2952 = vpack.c.b16 %v2878, %v2876
      %v2953 = vpack.c.b16 %v2881, %v2879
      %v2954 = vpack.c.b16 %v2882, %v2880
      %v2955 = vpack.c.b16 %v2885, %v2883
      %v2956 = vpack.c.b16 %v2886, %v2884
      %v2957 = vpack.c.b16 %v2889, %v2887
      %v2958 = vpack.c.b16 %v2890, %v2888
      %v2959 = vpack.c.b16 %v2893, %v2891
      %v2960 = vpack.c.b16 %v2894, %v2892
      %v2961 = vpack.c.b16 %v2897, %v2895
      %v2962 = vpack.c.b16 %v2898, %v2896
      %v2963 = vpack.c.b16 %v2901, %v2899
      %v2964 = vpack.c.b16 %v2902, %v2900
      %v2965 = vpack.c.b16 %v2905, %v2903
      %v2966 = vpack.c.b16 %v2906, %v2904
      %v2967 = vpack.c.b16 %v2909, %v2907
      %v2968 = vpack.c.b16 %v2910, %v2908
      %v2969 = vpack.c.b16 %v2913, %v2911
      %v2970 = vpack.c.b16 %v2914, %v2912
      %v2971 = vpack.c.b16 %v2917, %v2915
      %v2972 = vpack.c.b16 %v2918, %v2916
      %v2973 = vpack.c.b16 %v2921, %v2919
      %v2974 = vpack.c.b16 %v2922, %v2920
      %v2975 = vpack.c.b16 %v2925, %v2923
      %v2976 = vpack.c.b16 %v2926, %v2924
      %v2977 = vpack.c.b16 %v2929, %v2927
      %v2978 = vpack.c.b16 %v2930, %v2928
      %3027 = vmatpush.bf16.msra.mxu0 %v2945
      %3028 = vmatpush.bf16.msra.mxu0 %v2943
      %3029 = vmatpush.bf16.msra.mxu0 %v2941
      %3030 = vmatpush.bf16.msra.mxu0 %v2939
      %3031 = vmatpush.bf16.msra.mxu0 %v2937
      %3032 = vmatpush.bf16.msra.mxu0 %v2935
      %3033 = vmatpush.bf16.msra.mxu0 %v2933
      %3034 = vmatpush.bf16.msra.mxu0 %v2931
      %3035 = vmatmul.bf16.gmra.mxu0 %v2338
      %v3036 = vpop.f32.mrf.mxu0
      %v3037 = vadd.f32 0.0, %v3036
      %v3038 = vpop.f32.mrf.mxu0
      %v3039 = vadd.f32 0.0, %v3038
      %3040 = vmatmul.bf16.gmra.mxu0 %v2339
      %v3041 = vpop.f32.mrf.mxu0
      %v3042 = vadd.f32 0.0, %v3041
      %v3043 = vpop.f32.mrf.mxu0
      %v3044 = vadd.f32 0.0, %v3043
      %3045 = vmatmul.bf16.gmra.mxu0 %v2340
      %v3046 = vpop.f32.mrf.mxu0
      %v3047 = vadd.f32 0.0, %v3046
      %v3048 = vpop.f32.mrf.mxu0
      %v3049 = vadd.f32 0.0, %v3048
      %3050 = vmatmul.bf16.gmra.mxu0 %v2341
      %v3051 = vpop.f32.mrf.mxu0
      %v3052 = vadd.f32 0.0, %v3051
      %v3053 = vpop.f32.mrf.mxu0
      %v3054 = vadd.f32 0.0, %v3053
      %3055 = vmatmul.bf16.gmra.mxu0 %v2342
      %v3056 = vpop.f32.mrf.mxu0
      %v3057 = vadd.f32 0.0, %v3056
      %v3058 = vpop.f32.mrf.mxu0
      %v3059 = vadd.f32 0.0, %v3058
      %3060 = vmatmul.bf16.gmra.mxu0 %v2343
      %v3061 = vpop.f32.mrf.mxu0
      %v3062 = vadd.f32 0.0, %v3061
      %v3063 = vpop.f32.mrf.mxu0
      %v3064 = vadd.f32 0.0, %v3063
      %3065 = vmatmul.bf16.gmra.mxu0 %v2344
      %v3066 = vpop.f32.mrf.mxu0
      %v3067 = vadd.f32 0.0, %v3066
      %v3068 = vpop.f32.mrf.mxu0
      %v3069 = vadd.f32 0.0, %v3068
      %3070 = vmatmul.bf16.gmra.mxu0 %v2345
      %v3071 = vpop.f32.mrf.mxu0
      %v3072 = vadd.f32 0.0, %v3071
      %v3073 = vpop.f32.mrf.mxu0
      %v3074 = vadd.f32 0.0, %v3073
      %3075 = vmatmul.bf16.gmra.mxu0 %v2346
      %v3076 = vpop.f32.mrf.mxu0
      %v3077 = vadd.f32 0.0, %v3076
      %v3078 = vpop.f32.mrf.mxu0
      %v3079 = vadd.f32 0.0, %v3078
      %3080 = vmatmul.bf16.gmra.mxu0 %v2347
      %v3081 = vpop.f32.mrf.mxu0
      %v3082 = vadd.f32 0.0, %v3081
      %v3083 = vpop.f32.mrf.mxu0
      %v3084 = vadd.f32 0.0, %v3083
      %3085 = vmatmul.bf16.gmra.mxu0 %v2348
      %v3086 = vpop.f32.mrf.mxu0
      %v3087 = vadd.f32 0.0, %v3086
      %v3088 = vpop.f32.mrf.mxu0
      %v3089 = vadd.f32 0.0, %v3088
      %3090 = vmatmul.bf16.gmra.mxu0 %v2349
      %v3091 = vpop.f32.mrf.mxu0
      %v3092 = vadd.f32 0.0, %v3091
      %v3093 = vpop.f32.mrf.mxu0
      %v3094 = vadd.f32 0.0, %v3093
      %3095 = vmatmul.bf16.gmra.mxu0 %v2350
      %v3096 = vpop.f32.mrf.mxu0
      %v3097 = vadd.f32 0.0, %v3096
      %v3098 = vpop.f32.mrf.mxu0
      %v3099 = vadd.f32 0.0, %v3098
      %3100 = vmatmul.bf16.gmra.mxu0 %v2351
      %v3101 = vpop.f32.mrf.mxu0
      %v3102 = vadd.f32 0.0, %v3101
      %v3103 = vpop.f32.mrf.mxu0
      %v3104 = vadd.f32 0.0, %v3103
      %3105 = vmatmul.bf16.gmra.mxu0 %v2352
      %v3106 = vpop.f32.mrf.mxu0
      %v3107 = vadd.f32 0.0, %v3106
      %v3108 = vpop.f32.mrf.mxu0
      %v3109 = vadd.f32 0.0, %v3108
      %3110 = vmatmul.bf16.gmra.mxu0 %v2353
      %v3111 = vpop.f32.mrf.mxu0
      %v3112 = vadd.f32 0.0, %v3111
      %v3113 = vpop.f32.mrf.mxu0
      %v3114 = vadd.f32 0.0, %v3113
      %3115 = vdwg.mxu0
      %3116 = vmatpush.bf16.msra.mxu0 %v2961
      %3117 = vmatpush.bf16.msra.mxu0 %v2959
      %3118 = vmatpush.bf16.msra.mxu0 %v2957
      %3119 = vmatpush.bf16.msra.mxu0 %v2955
      %3120 = vmatpush.bf16.msra.mxu0 %v2953
      %3121 = vmatpush.bf16.msra.mxu0 %v2951
      %3122 = vmatpush.bf16.msra.mxu0 %v2949
      %3123 = vmatpush.bf16.msra.mxu0 %v2947
      %3124 = vmatmul.bf16.gmra.mxu0 %v2429
      %v3125 = vpop.f32.mrf.mxu0
      %v3126 = vadd.f32 %v3037, %v3125
      %v3127 = vpop.f32.mrf.mxu0
      %v3128 = vadd.f32 %v3039, %v3127
      %3129 = vmatmul.bf16.gmra.mxu0 %v2441
      %v3130 = vpop.f32.mrf.mxu0
      %v3131 = vadd.f32 %v3042, %v3130
      %v3132 = vpop.f32.mrf.mxu0
      %v3133 = vadd.f32 %v3044, %v3132
      %3134 = vmatmul.bf16.gmra.mxu0 %v2453
      %v3135 = vpop.f32.mrf.mxu0
      %v3136 = vadd.f32 %v3047, %v3135
      %v3137 = vpop.f32.mrf.mxu0
      %v3138 = vadd.f32 %v3049, %v3137
      %3139 = vmatmul.bf16.gmra.mxu0 %v2465
      %v3140 = vpop.f32.mrf.mxu0
      %v3141 = vadd.f32 %v3052, %v3140
      %v3142 = vpop.f32.mrf.mxu0
      %v3143 = vadd.f32 %v3054, %v3142
      %3144 = vmatmul.bf16.gmra.mxu0 %v2477
      %v3145 = vpop.f32.mrf.mxu0
      %v3146 = vadd.f32 %v3057, %v3145
      %v3147 = vpop.f32.mrf.mxu0
      %v3148 = vadd.f32 %v3059, %v3147
      %3149 = vmatmul.bf16.gmra.mxu0 %v2489
      %v3150 = vpop.f32.mrf.mxu0
      %v3151 = vadd.f32 %v3062, %v3150
      %v3152 = vpop.f32.mrf.mxu0
      %v3153 = vadd.f32 %v3064, %v3152
      %3154 = vmatmul.bf16.gmra.mxu0 %v2501
      %v3155 = vpop.f32.mrf.mxu0
      %v3156 = vadd.f32 %v3067, %v3155
      %v3157 = vpop.f32.mrf.mxu0
      %v3158 = vadd.f32 %v3069, %v3157
      %3159 = vmatmul.bf16.gmra.mxu0 %v2513
      %v3160 = vpop.f32.mrf.mxu0
      %v3161 = vadd.f32 %v3072, %v3160
      %v3162 = vpop.f32.mrf.mxu0
      %v3163 = vadd.f32 %v3074, %v3162
      %3164 = vmatmul.bf16.gmra.mxu0 %v2525
      %v3165 = vpop.f32.mrf.mxu0
      %v3166 = vadd.f32 %v3077, %v3165
      %v3167 = vpop.f32.mrf.mxu0
      %v3168 = vadd.f32 %v3079, %v3167
      %3169 = vmatmul.bf16.gmra.mxu0 %v2537
      %v3170 = vpop.f32.mrf.mxu0
      %v3171 = vadd.f32 %v3082, %v3170
      %v3172 = vpop.f32.mrf.mxu0
      %v3173 = vadd.f32 %v3084, %v3172
      %3174 = vmatmul.bf16.gmra.mxu0 %v2549
      %v3175 = vpop.f32.mrf.mxu0
      %v3176 = vadd.f32 %v3087, %v3175
      %v3177 = vpop.f32.mrf.mxu0
      %v3178 = vadd.f32 %v3089, %v3177
      %3179 = vmatmul.bf16.gmra.mxu0 %v2561
      %v3180 = vpop.f32.mrf.mxu0
      %v3181 = vadd.f32 %v3092, %v3180
      %v3182 = vpop.f32.mrf.mxu0
      %v3183 = vadd.f32 %v3094, %v3182
      %3184 = vmatmul.bf16.gmra.mxu0 %v2573
      %v3185 = vpop.f32.mrf.mxu0
      %v3186 = vadd.f32 %v3097, %v3185
      %v3187 = vpop.f32.mrf.mxu0
      %v3188 = vadd.f32 %v3099, %v3187
      %3189 = vmatmul.bf16.gmra.mxu0 %v2585
      %v3190 = vpop.f32.mrf.mxu0
      %v3191 = vadd.f32 %v3102, %v3190
      %v3192 = vpop.f32.mrf.mxu0
      %v3193 = vadd.f32 %v3104, %v3192
      %3194 = vmatmul.bf16.gmra.mxu0 %v2597
      %v3195 = vpop.f32.mrf.mxu0
      %v3196 = vadd.f32 %v3107, %v3195
      %v3197 = vpop.f32.mrf.mxu0
      %v3198 = vadd.f32 %v3109, %v3197
      %3199 = vmatmul.bf16.gmra.mxu0 %v2609
      %v3200 = vpop.f32.mrf.mxu0
      %v3201 = vadd.f32 %v3112, %v3200
      %v3202 = vpop.f32.mrf.mxu0
      %v3203 = vadd.f32 %v3114, %v3202
      %3204 = vdwg.mxu0
      %3205 = vmatpush.bf16.msra.mxu0 %v2977
      %3206 = vmatpush.bf16.msra.mxu0 %v2975
      %3207 = vmatpush.bf16.msra.mxu0 %v2973
      %3208 = vmatpush.bf16.msra.mxu0 %v2971
      %3209 = vmatpush.bf16.msra.mxu0 %v2969
      %3210 = vmatpush.bf16.msra.mxu0 %v2967
      %3211 = vmatpush.bf16.msra.mxu0 %v2965
      %3212 = vmatpush.bf16.msra.mxu0 %v2963
      %3213 = vmatmul.bf16.gmra.mxu0 %v2676
      %v3214 = vpop.f32.mrf.mxu0
      %v3215 = vadd.f32 %v3126, %v3214
      %v3216 = vpop.f32.mrf.mxu0
      %v3217 = vadd.f32 %v3128, %v3216
      %3218 = vmatmul.bf16.gmra.mxu0 %v2679
      %v3219 = vpop.f32.mrf.mxu0
      %v3220 = vadd.f32 %v3131, %v3219
      %v3221 = vpop.f32.mrf.mxu0
      %v3222 = vadd.f32 %v3133, %v3221
      %3223 = vmatmul.bf16.gmra.mxu0 %v2682
      %v3224 = vpop.f32.mrf.mxu0
      %v3225 = vadd.f32 %v3136, %v3224
      %v3226 = vpop.f32.mrf.mxu0
      %v3227 = vadd.f32 %v3138, %v3226
      %3228 = vmatmul.bf16.gmra.mxu0 %v2685
      %v3229 = vpop.f32.mrf.mxu0
      %v3230 = vadd.f32 %v3141, %v3229
      %v3231 = vpop.f32.mrf.mxu0
      %v3232 = vadd.f32 %v3143, %v3231
      %3233 = vmatmul.bf16.gmra.mxu0 %v2688
      %v3234 = vpop.f32.mrf.mxu0
      %v3235 = vadd.f32 %v3146, %v3234
      %v3236 = vpop.f32.mrf.mxu0
      %v3237 = vadd.f32 %v3148, %v3236
      %3238 = vmatmul.bf16.gmra.mxu0 %v2691
      %v3239 = vpop.f32.mrf.mxu0
      %v3240 = vadd.f32 %v3151, %v3239
      %v3241 = vpop.f32.mrf.mxu0
      %v3242 = vadd.f32 %v3153, %v3241
      %3243 = vmatmul.bf16.gmra.mxu0 %v2694
      %v3244 = vpop.f32.mrf.mxu0
      %v3245 = vadd.f32 %v3156, %v3244
      %v3246 = vpop.f32.mrf.mxu0
      %v3247 = vadd.f32 %v3158, %v3246
      %3248 = vmatmul.bf16.gmra.mxu0 %v2697
      %v3249 = vpop.f32.mrf.mxu0
      %v3250 = vadd.f32 %v3161, %v3249
      %v3251 = vpop.f32.mrf.mxu0
      %v3252 = vadd.f32 %v3163, %v3251
      %3253 = vmatmul.bf16.gmra.mxu0 %v2700
      %v3254 = vpop.f32.mrf.mxu0
      %v3255 = vadd.f32 %v3166, %v3254
      %v3256 = vpop.f32.mrf.mxu0
      %v3257 = vadd.f32 %v3168, %v3256
      %3258 = vmatmul.bf16.gmra.mxu0 %v2703
      %v3259 = vpop.f32.mrf.mxu0
      %v3260 = vadd.f32 %v3171, %v3259
      %v3261 = vpop.f32.mrf.mxu0
      %v3262 = vadd.f32 %v3173, %v3261
      %3263 = vmatmul.bf16.gmra.mxu0 %v2706
      %v3264 = vpop.f32.mrf.mxu0
      %v3265 = vadd.f32 %v3176, %v3264
      %v3266 = vpop.f32.mrf.mxu0
      %v3267 = vadd.f32 %v3178, %v3266
      %3268 = vmatmul.bf16.gmra.mxu0 %v2709
      %v3269 = vpop.f32.mrf.mxu0
      %v3270 = vadd.f32 %v3181, %v3269
      %v3271 = vpop.f32.mrf.mxu0
      %v3272 = vadd.f32 %v3183, %v3271
      %3273 = vmatmul.bf16.gmra.mxu0 %v2712
      %v3274 = vpop.f32.mrf.mxu0
      %v3275 = vadd.f32 %v3186, %v3274
      %v3276 = vpop.f32.mrf.mxu0
      %v3277 = vadd.f32 %v3188, %v3276
      %3278 = vmatmul.bf16.gmra.mxu0 %v2715
      %v3279 = vpop.f32.mrf.mxu0
      %v3280 = vadd.f32 %v3191, %v3279
      %v3281 = vpop.f32.mrf.mxu0
      %v3282 = vadd.f32 %v3193, %v3281
      %3283 = vmatmul.bf16.gmra.mxu0 %v2718
      %v3284 = vpop.f32.mrf.mxu0
      %v3285 = vadd.f32 %v3196, %v3284
      %v3286 = vpop.f32.mrf.mxu0
      %v3287 = vadd.f32 %v3198, %v3286
      %3288 = vmatmul.bf16.gmra.mxu0 %v2721
      %v3289 = vpop.f32.mrf.mxu0
      %v3290 = vadd.f32 %v3201, %v3289
      %v3291 = vpop.f32.mrf.mxu0
      %v3292 = vadd.f32 %v3203, %v3291
      %3293 = vdwg.mxu0
      %3294 = vmatpush.bf16.msra.mxu0 %v2946
      %3295 = vmatpush.bf16.msra.mxu0 %v2944
      %3296 = vmatpush.bf16.msra.mxu0 %v2942
      %3297 = vmatpush.bf16.msra.mxu0 %v2940
      %3298 = vmatpush.bf16.msra.mxu0 %v2938
      %3299 = vmatpush.bf16.msra.mxu0 %v2936
      %3300 = vmatpush.bf16.msra.mxu0 %v2934
      %3301 = vmatpush.bf16.msra.mxu0 %v2932
      %3302 = vmatmul.bf16.gmra.mxu0 %v2338
      %v3303 = vpop.f32.mrf.mxu0
      %v3304 = vadd.f32 0.0, %v3303
      %v3305 = vpop.f32.mrf.mxu0
      %v3306 = vadd.f32 0.0, %v3305
      %3307 = vmatmul.bf16.gmra.mxu0 %v2339
      %v3308 = vpop.f32.mrf.mxu0
      %v3309 = vadd.f32 0.0, %v3308
      %v3310 = vpop.f32.mrf.mxu0
      %v3311 = vadd.f32 0.0, %v3310
      %3312 = vmatmul.bf16.gmra.mxu0 %v2340
      %v3313 = vpop.f32.mrf.mxu0
      %v3314 = vadd.f32 0.0, %v3313
      %v3315 = vpop.f32.mrf.mxu0
      %v3316 = vadd.f32 0.0, %v3315
      %3317 = vmatmul.bf16.gmra.mxu0 %v2341
      %v3318 = vpop.f32.mrf.mxu0
      %v3319 = vadd.f32 0.0, %v3318
      %v3320 = vpop.f32.mrf.mxu0
      %v3321 = vadd.f32 0.0, %v3320
      %3322 = vmatmul.bf16.gmra.mxu0 %v2342
      %v3323 = vpop.f32.mrf.mxu0
      %v3324 = vadd.f32 0.0, %v3323
      %v3325 = vpop.f32.mrf.mxu0
      %v3326 = vadd.f32 0.0, %v3325
      %3327 = vmatmul.bf16.gmra.mxu0 %v2343
      %v3328 = vpop.f32.mrf.mxu0
      %v3329 = vadd.f32 0.0, %v3328
      %v3330 = vpop.f32.mrf.mxu0
      %v3331 = vadd.f32 0.0, %v3330
      %3332 = vmatmul.bf16.gmra.mxu0 %v2344
      %v3333 = vpop.f32.mrf.mxu0
      %v3334 = vadd.f32 0.0, %v3333
      %v3335 = vpop.f32.mrf.mxu0
      %v3336 = vadd.f32 0.0, %v3335
      %3337 = vmatmul.bf16.gmra.mxu0 %v2345
      %v3338 = vpop.f32.mrf.mxu0
      %v3339 = vadd.f32 0.0, %v3338
      %v3340 = vpop.f32.mrf.mxu0
      %v3341 = vadd.f32 0.0, %v3340
      %3342 = vmatmul.bf16.gmra.mxu0 %v2346
      %v3343 = vpop.f32.mrf.mxu0
      %v3344 = vadd.f32 0.0, %v3343
      %v3345 = vpop.f32.mrf.mxu0
      %v3346 = vadd.f32 0.0, %v3345
      %3347 = vmatmul.bf16.gmra.mxu0 %v2347
      %v3348 = vpop.f32.mrf.mxu0
      %v3349 = vadd.f32 0.0, %v3348
      %v3350 = vpop.f32.mrf.mxu0
      %v3351 = vadd.f32 0.0, %v3350
      %3352 = vmatmul.bf16.gmra.mxu0 %v2348
      %v3353 = vpop.f32.mrf.mxu0
      %v3354 = vadd.f32 0.0, %v3353
      %v3355 = vpop.f32.mrf.mxu0
      %v3356 = vadd.f32 0.0, %v3355
      %3357 = vmatmul.bf16.gmra.mxu0 %v2349
      %v3358 = vpop.f32.mrf.mxu0
      %v3359 = vadd.f32 0.0, %v3358
      %v3360 = vpop.f32.mrf.mxu0
      %v3361 = vadd.f32 0.0, %v3360
      %3362 = vmatmul.bf16.gmra.mxu0 %v2350
      %v3363 = vpop.f32.mrf.mxu0
      %v3364 = vadd.f32 0.0, %v3363
      %v3365 = vpop.f32.mrf.mxu0
      %v3366 = vadd.f32 0.0, %v3365
      %3367 = vmatmul.bf16.gmra.mxu0 %v2351
      %v3368 = vpop.f32.mrf.mxu0
      %v3369 = vadd.f32 0.0, %v3368
      %v3370 = vpop.f32.mrf.mxu0
      %v3371 = vadd.f32 0.0, %v3370
      %3372 = vmatmul.bf16.gmra.mxu0 %v2352
      %v3373 = vpop.f32.mrf.mxu0
      %v3374 = vadd.f32 0.0, %v3373
      %v3375 = vpop.f32.mrf.mxu0
      %v3376 = vadd.f32 0.0, %v3375
      %3377 = vmatmul.bf16.gmra.mxu0 %v2353
      %v3378 = vpop.f32.mrf.mxu0
      %v3379 = vadd.f32 0.0, %v3378
      %v3380 = vpop.f32.mrf.mxu0
      %v3381 = vadd.f32 0.0, %v3380
      %3382 = vdwg.mxu0
      %3383 = vmatpush.bf16.msra.mxu0 %v2962
      %3384 = vmatpush.bf16.msra.mxu0 %v2960
      %3385 = vmatpush.bf16.msra.mxu0 %v2958
      %3386 = vmatpush.bf16.msra.mxu0 %v2956
      %3387 = vmatpush.bf16.msra.mxu0 %v2954
      %3388 = vmatpush.bf16.msra.mxu0 %v2952
      %3389 = vmatpush.bf16.msra.mxu0 %v2950
      %3390 = vmatpush.bf16.msra.mxu0 %v2948
      %3391 = vmatmul.bf16.gmra.mxu0 %v2429
      %v3392 = vpop.f32.mrf.mxu0
      %v3393 = vadd.f32 %v3304, %v3392
      %v3394 = vpop.f32.mrf.mxu0
      %v3395 = vadd.f32 %v3306, %v3394
      %3396 = vmatmul.bf16.gmra.mxu0 %v2441
      %v3397 = vpop.f32.mrf.mxu0
      %v3398 = vadd.f32 %v3309, %v3397
      %v3399 = vpop.f32.mrf.mxu0
      %v3400 = vadd.f32 %v3311, %v3399
      %3401 = vmatmul.bf16.gmra.mxu0 %v2453
      %v3402 = vpop.f32.mrf.mxu0
      %v3403 = vadd.f32 %v3314, %v3402
      %v3404 = vpop.f32.mrf.mxu0
      %v3405 = vadd.f32 %v3316, %v3404
      %3406 = vmatmul.bf16.gmra.mxu0 %v2465
      %v3407 = vpop.f32.mrf.mxu0
      %v3408 = vadd.f32 %v3319, %v3407
      %v3409 = vpop.f32.mrf.mxu0
      %v3410 = vadd.f32 %v3321, %v3409
      %3411 = vmatmul.bf16.gmra.mxu0 %v2477
      %v3412 = vpop.f32.mrf.mxu0
      %v3413 = vadd.f32 %v3324, %v3412
      %v3414 = vpop.f32.mrf.mxu0
      %v3415 = vadd.f32 %v3326, %v3414
      %3416 = vmatmul.bf16.gmra.mxu0 %v2489
      %v3417 = vpop.f32.mrf.mxu0
      %v3418 = vadd.f32 %v3329, %v3417
      %v3419 = vpop.f32.mrf.mxu0
      %v3420 = vadd.f32 %v3331, %v3419
      %3421 = vmatmul.bf16.gmra.mxu0 %v2501
      %v3422 = vpop.f32.mrf.mxu0
      %v3423 = vadd.f32 %v3334, %v3422
      %v3424 = vpop.f32.mrf.mxu0
      %v3425 = vadd.f32 %v3336, %v3424
      %3426 = vmatmul.bf16.gmra.mxu0 %v2513
      %v3427 = vpop.f32.mrf.mxu0
      %v3428 = vadd.f32 %v3339, %v3427
      %v3429 = vpop.f32.mrf.mxu0
      %v3430 = vadd.f32 %v3341, %v3429
      %3431 = vmatmul.bf16.gmra.mxu0 %v2525
      %v3432 = vpop.f32.mrf.mxu0
      %v3433 = vadd.f32 %v3344, %v3432
      %v3434 = vpop.f32.mrf.mxu0
      %v3435 = vadd.f32 %v3346, %v3434
      %3436 = vmatmul.bf16.gmra.mxu0 %v2537
      %v3437 = vpop.f32.mrf.mxu0
      %v3438 = vadd.f32 %v3349, %v3437
      %v3439 = vpop.f32.mrf.mxu0
      %v3440 = vadd.f32 %v3351, %v3439
      %3441 = vmatmul.bf16.gmra.mxu0 %v2549
      %v3442 = vpop.f32.mrf.mxu0
      %v3443 = vadd.f32 %v3354, %v3442
      %v3444 = vpop.f32.mrf.mxu0
      %v3445 = vadd.f32 %v3356, %v3444
      %3446 = vmatmul.bf16.gmra.mxu0 %v2561
      %v3447 = vpop.f32.mrf.mxu0
      %v3448 = vadd.f32 %v3359, %v3447
      %v3449 = vpop.f32.mrf.mxu0
      %v3450 = vadd.f32 %v3361, %v3449
      %3451 = vmatmul.bf16.gmra.mxu0 %v2573
      %v3452 = vpop.f32.mrf.mxu0
      %v3453 = vadd.f32 %v3364, %v3452
      %v3454 = vpop.f32.mrf.mxu0
      %v3455 = vadd.f32 %v3366, %v3454
      %3456 = vmatmul.bf16.gmra.mxu0 %v2585
      %v3457 = vpop.f32.mrf.mxu0
      %v3458 = vadd.f32 %v3369, %v3457
      %v3459 = vpop.f32.mrf.mxu0
      %v3460 = vadd.f32 %v3371, %v3459
      %3461 = vmatmul.bf16.gmra.mxu0 %v2597
      %v3462 = vpop.f32.mrf.mxu0
      %v3463 = vadd.f32 %v3374, %v3462
      %v3464 = vpop.f32.mrf.mxu0
      %v3465 = vadd.f32 %v3376, %v3464
      %3466 = vmatmul.bf16.gmra.mxu0 %v2609
      %v3467 = vpop.f32.mrf.mxu0
      %v3468 = vadd.f32 %v3379, %v3467
      %v3469 = vpop.f32.mrf.mxu0
      %v3470 = vadd.f32 %v3381, %v3469
      %3471 = vdwg.mxu0
      %3472 = vmatpush.bf16.msra.mxu0 %v2978
      %3473 = vmatpush.bf16.msra.mxu0 %v2976
      %3474 = vmatpush.bf16.msra.mxu0 %v2974
      %3475 = vmatpush.bf16.msra.mxu0 %v2972
      %3476 = vmatpush.bf16.msra.mxu0 %v2970
      %3477 = vmatpush.bf16.msra.mxu0 %v2968
      %3478 = vmatpush.bf16.msra.mxu0 %v2966
      %3479 = vmatpush.bf16.msra.mxu0 %v2964
      %3480 = vmatmul.bf16.gmra.mxu0 %v2676
      %v3481 = vpop.f32.mrf.mxu0
      %v3482 = vadd.f32 %v3393, %v3481
      %v3483 = vpop.f32.mrf.mxu0
      %v3484 = vadd.f32 %v3395, %v3483
      %3485 = vmatmul.bf16.gmra.mxu0 %v2679
      %v3486 = vpop.f32.mrf.mxu0
      %v3487 = vadd.f32 %v3398, %v3486
      %v3488 = vpop.f32.mrf.mxu0
      %v3489 = vadd.f32 %v3400, %v3488
      %3490 = vmatmul.bf16.gmra.mxu0 %v2682
      %v3491 = vpop.f32.mrf.mxu0
      %v3492 = vadd.f32 %v3403, %v3491
      %v3493 = vpop.f32.mrf.mxu0
      %v3494 = vadd.f32 %v3405, %v3493
      %3495 = vmatmul.bf16.gmra.mxu0 %v2685
      %v3496 = vpop.f32.mrf.mxu0
      %v3497 = vadd.f32 %v3408, %v3496
      %v3498 = vpop.f32.mrf.mxu0
      %v3499 = vadd.f32 %v3410, %v3498
      %3500 = vmatmul.bf16.gmra.mxu0 %v2688
      %v3501 = vpop.f32.mrf.mxu0
      %v3502 = vadd.f32 %v3413, %v3501
      %v3503 = vpop.f32.mrf.mxu0
      %v3504 = vadd.f32 %v3415, %v3503
      %3505 = vmatmul.bf16.gmra.mxu0 %v2691
      %v3506 = vpop.f32.mrf.mxu0
      %v3507 = vadd.f32 %v3418, %v3506
      %v3508 = vpop.f32.mrf.mxu0
      %v3509 = vadd.f32 %v3420, %v3508
      %3510 = vmatmul.bf16.gmra.mxu0 %v2694
      %v3511 = vpop.f32.mrf.mxu0
      %v3512 = vadd.f32 %v3423, %v3511
      %v3513 = vpop.f32.mrf.mxu0
      %v3514 = vadd.f32 %v3425, %v3513
      %3515 = vmatmul.bf16.gmra.mxu0 %v2697
      %v3516 = vpop.f32.mrf.mxu0
      %v3517 = vadd.f32 %v3428, %v3516
      %v3518 = vpop.f32.mrf.mxu0
      %v3519 = vadd.f32 %v3430, %v3518
      %3520 = vmatmul.bf16.gmra.mxu0 %v2700
      %v3521 = vpop.f32.mrf.mxu0
      %v3522 = vadd.f32 %v3433, %v3521
      %v3523 = vpop.f32.mrf.mxu0
      %v3524 = vadd.f32 %v3435, %v3523
      %3525 = vmatmul.bf16.gmra.mxu0 %v2703
      %v3526 = vpop.f32.mrf.mxu0
      %v3527 = vadd.f32 %v3438, %v3526
      %v3528 = vpop.f32.mrf.mxu0
      %v3529 = vadd.f32 %v3440, %v3528
      %3530 = vmatmul.bf16.gmra.mxu0 %v2706
      %v3531 = vpop.f32.mrf.mxu0
      %v3532 = vadd.f32 %v3443, %v3531
      %v3533 = vpop.f32.mrf.mxu0
      %v3534 = vadd.f32 %v3445, %v3533
      %3535 = vmatmul.bf16.gmra.mxu0 %v2709
      %v3536 = vpop.f32.mrf.mxu0
      %v3537 = vadd.f32 %v3448, %v3536
      %v3538 = vpop.f32.mrf.mxu0
      %v3539 = vadd.f32 %v3450, %v3538
      %3540 = vmatmul.bf16.gmra.mxu0 %v2712
      %v3541 = vpop.f32.mrf.mxu0
      %v3542 = vadd.f32 %v3453, %v3541
      %v3543 = vpop.f32.mrf.mxu0
      %v3544 = vadd.f32 %v3455, %v3543
      %3545 = vmatmul.bf16.gmra.mxu0 %v2715
      %v3546 = vpop.f32.mrf.mxu0
      %v3547 = vadd.f32 %v3458, %v3546
      %v3548 = vpop.f32.mrf.mxu0
      %v3549 = vadd.f32 %v3460, %v3548
      %3550 = vmatmul.bf16.gmra.mxu0 %v2718
      %v3551 = vpop.f32.mrf.mxu0
      %v3552 = vadd.f32 %v3463, %v3551
      %v3553 = vpop.f32.mrf.mxu0
      %v3554 = vadd.f32 %v3465, %v3553
      %3555 = vmatmul.bf16.gmra.mxu0 %v2721
      %v3556 = vpop.f32.mrf.mxu0
      %v3557 = vadd.f32 %v3468, %v3556
      %v3558 = vpop.f32.mrf.mxu0
      %v3559 = vadd.f32 %v3470, %v3558
      %3560 = vdwg.mxu0
      %v3561 = vld [vmem:[#allocation3] sm:$0xff]
      %v3562 = vld [vmem:[#allocation3 + $0x8] sm:$0xff]
      %v3563 = vld [vmem:[#allocation3 + $0x10] sm:$0xff]
      %v3564 = vld [vmem:[#allocation3 + $0x18] sm:$0xff]
      %v3565 = vld [vmem:[#allocation3 + $0x20] sm:$0xff]
      %v3566 = vld [vmem:[#allocation3 + $0x28] sm:$0xff]
      %v3567 = vld [vmem:[#allocation3 + $0x30] sm:$0xff]
      %v3568 = vld [vmem:[#allocation3 + $0x38] sm:$0xff]
      %v3569 = vld [vmem:[#allocation3 + $0x40] sm:$0xff]
      %v3570 = vld [vmem:[#allocation3 + $0x48] sm:$0xff]
      %v3571 = vld [vmem:[#allocation3 + $0x50] sm:$0xff]
      %v3572 = vld [vmem:[#allocation3 + $0x58] sm:$0xff]
      %v3573 = vld [vmem:[#allocation3 + $0x60] sm:$0xff]
      %v3574 = vld [vmem:[#allocation3 + $0x68] sm:$0xff]
      %v3575 = vld [vmem:[#allocation3 + $0x70] sm:$0xff]
      %v3576 = vld [vmem:[#allocation3 + $0x78] sm:$0xff]
      %v3577 = vld [vmem:[#allocation3 + $0x80] sm:$0xff]
      %v3578 = vld [vmem:[#allocation3 + $0x88] sm:$0xff]
      %v3579 = vld [vmem:[#allocation3 + $0x90] sm:$0xff]
      %v3580 = vld [vmem:[#allocation3 + $0x98] sm:$0xff]
      %v3581 = vld [vmem:[#allocation3 + $0xa0] sm:$0xff]
      %v3582 = vld [vmem:[#allocation3 + $0xa8] sm:$0xff]
      %v3583 = vld [vmem:[#allocation3 + $0xb0] sm:$0xff]
      %v3584 = vld [vmem:[#allocation3 + $0xb8] sm:$0xff]
      %v3585 = vld [vmem:[#allocation3 + $0xc0] sm:$0xff]
      %v3586 = vld [vmem:[#allocation3 + $0xc8] sm:$0xff]
      %v3587 = vld [vmem:[#allocation3 + $0xd0] sm:$0xff]
      %v3588 = vld [vmem:[#allocation3 + $0xd8] sm:$0xff]
      %v3589 = vld [vmem:[#allocation3 + $0xe0] sm:$0xff]
      %v3590 = vld [vmem:[#allocation3 + $0xe8] sm:$0xff]
      %v3591 = vld [vmem:[#allocation3 + $0xf0] sm:$0xff]
      %v3592 = vld [vmem:[#allocation3 + $0xf8] sm:$0xff]
      %v3593 = vld [vmem:[#allocation3 + $0x100] sm:$0xff]
      %v3594 = vld [vmem:[#allocation3 + $0x108] sm:$0xff]
      %v3595 = vld [vmem:[#allocation3 + $0x110] sm:$0xff]
      %v3596 = vld [vmem:[#allocation3 + $0x118] sm:$0xff]
      %v3597 = vld [vmem:[#allocation3 + $0x120] sm:$0xff]
      %v3598 = vld [vmem:[#allocation3 + $0x128] sm:$0xff]
      %v3599 = vld [vmem:[#allocation3 + $0x130] sm:$0xff]
      %v3600 = vld [vmem:[#allocation3 + $0x138] sm:$0xff]
      %v3601 = vld [vmem:[#allocation3 + $0x140] sm:$0xff]
      %v3602 = vld [vmem:[#allocation3 + $0x148] sm:$0xff]
      %v3603 = vld [vmem:[#allocation3 + $0x150] sm:$0xff]
      %v3604 = vld [vmem:[#allocation3 + $0x158] sm:$0xff]
      %v3605 = vld [vmem:[#allocation3 + $0x160] sm:$0xff]
      %v3606 = vld [vmem:[#allocation3 + $0x168] sm:$0xff]
      %v3607 = vld [vmem:[#allocation3 + $0x170] sm:$0xff]
      %v3608 = vld [vmem:[#allocation3 + $0x178] sm:$0xff]
      %v3609 = vld [vmem:[#allocation3 + $0x180] sm:$0xff]
      %v3610 = vld [vmem:[#allocation3 + $0x188] sm:$0xff]
      %v3611 = vld [vmem:[#allocation3 + $0x190] sm:$0xff]
      %v3612 = vld [vmem:[#allocation3 + $0x198] sm:$0xff]
      %v3613 = vld [vmem:[#allocation3 + $0x1a0] sm:$0xff]
      %v3614 = vld [vmem:[#allocation3 + $0x1a8] sm:$0xff]
      %v3615 = vld [vmem:[#allocation3 + $0x1b0] sm:$0xff]
      %v3616 = vld [vmem:[#allocation3 + $0x1b8] sm:$0xff]
      %v3617 = vld [vmem:[#allocation3 + $0x1c0] sm:$0xff]
      %v3618 = vld [vmem:[#allocation3 + $0x1c8] sm:$0xff]
      %v3619 = vld [vmem:[#allocation3 + $0x1d0] sm:$0xff]
      %v3620 = vld [vmem:[#allocation3 + $0x1d8] sm:$0xff]
      %v3621 = vld [vmem:[#allocation3 + $0x1e0] sm:$0xff]
      %v3622 = vld [vmem:[#allocation3 + $0x1e8] sm:$0xff]
      %v3623 = vld [vmem:[#allocation3 + $0x1f0] sm:$0xff]
      %v3624 = vld [vmem:[#allocation3 + $0x1f8] sm:$0xff]
      %v3625 = vadd.f32 %v3561, %v3215
      %v3626 = vadd.f32 %v3562, %v3482
      %v3627 = vadd.f32 %v3563, %v3217
      %v3628 = vadd.f32 %v3564, %v3484
      %v3629 = vadd.f32 %v3565, %v3220
      %v3630 = vadd.f32 %v3566, %v3487
      %v3631 = vadd.f32 %v3567, %v3222
      %v3632 = vadd.f32 %v3568, %v3489
      %v3633 = vadd.f32 %v3569, %v3225
      %v3634 = vadd.f32 %v3570, %v3492
      %v3635 = vadd.f32 %v3571, %v3227
      %v3636 = vadd.f32 %v3572, %v3494
      %v3637 = vadd.f32 %v3573, %v3230
      %v3638 = vadd.f32 %v3574, %v3497
      %v3639 = vadd.f32 %v3575, %v3232
      %v3640 = vadd.f32 %v3576, %v3499
      %v3641 = vadd.f32 %v3577, %v3235
      %v3642 = vadd.f32 %v3578, %v3502
      %v3643 = vadd.f32 %v3579, %v3237
      %v3644 = vadd.f32 %v3580, %v3504
      %v3645 = vadd.f32 %v3581, %v3240
      %v3646 = vadd.f32 %v3582, %v3507
      %v3647 = vadd.f32 %v3583, %v3242
      %v3648 = vadd.f32 %v3584, %v3509
      %v3649 = vadd.f32 %v3585, %v3245
      %v3650 = vadd.f32 %v3586, %v3512
      %v3651 = vadd.f32 %v3587, %v3247
      %v3652 = vadd.f32 %v3588, %v3514
      %v3653 = vadd.f32 %v3589, %v3250
      %v3654 = vadd.f32 %v3590, %v3517
      %v3655 = vadd.f32 %v3591, %v3252
      %v3656 = vadd.f32 %v3592, %v3519
      %v3657 = vadd.f32 %v3593, %v3255
      %v3658 = vadd.f32 %v3594, %v3522
      %v3659 = vadd.f32 %v3595, %v3257
      %v3660 = vadd.f32 %v3596, %v3524
      %v3661 = vadd.f32 %v3597, %v3260
      %v3662 = vadd.f32 %v3598, %v3527
      %v3663 = vadd.f32 %v3599, %v3262
      %v3664 = vadd.f32 %v3600, %v3529
      %v3665 = vadd.f32 %v3601, %v3265
      %v3666 = vadd.f32 %v3602, %v3532
      %v3667 = vadd.f32 %v3603, %v3267
      %v3668 = vadd.f32 %v3604, %v3534
      %v3669 = vadd.f32 %v3605, %v3270
      %v3670 = vadd.f32 %v3606, %v3537
      %v3671 = vadd.f32 %v3607, %v3272
      %v3672 = vadd.f32 %v3608, %v3539
      %v3673 = vadd.f32 %v3609, %v3275
      %v3674 = vadd.f32 %v3610, %v3542
      %v3675 = vadd.f32 %v3611, %v3277
      %v3676 = vadd.f32 %v3612, %v3544
      %v3677 = vadd.f32 %v3613, %v3280
      %v3678 = vadd.f32 %v3614, %v3547
      %v3679 = vadd.f32 %v3615, %v3282
      %v3680 = vadd.f32 %v3616, %v3549
      %v3681 = vadd.f32 %v3617, %v3285
      %v3682 = vadd.f32 %v3618, %v3552
      %v3683 = vadd.f32 %v3619, %v3287
      %v3684 = vadd.f32 %v3620, %v3554
      %v3685 = vadd.f32 %v3621, %v3290
      %v3686 = vadd.f32 %v3622, %v3557
      %v3687 = vadd.f32 %v3623, %v3292
      %v3688 = vadd.f32 %v3624, %v3559
      %3689 = vst [vmem:[#allocation3] sm:$0xff] %v3625
      %3690 = vst [vmem:[#allocation3 + $0x8] sm:$0xff] %v3626
      %3691 = vst [vmem:[#allocation3 + $0x10] sm:$0xff] %v3627
      %3692 = vst [vmem:[#allocation3 + $0x18] sm:$0xff] %v3628
      %3693 = vst [vmem:[#allocation3 + $0x20] sm:$0xff] %v3629
      %3694 = vst [vmem:[#allocation3 + $0x28] sm:$0xff] %v3630
      %3695 = vst [vmem:[#allocation3 + $0x30] sm:$0xff] %v3631
      %3696 = vst [vmem:[#allocation3 + $0x38] sm:$0xff] %v3632
      %3697 = vst [vmem:[#allocation3 + $0x40] sm:$0xff] %v3633
      %3698 = vst [vmem:[#allocation3 + $0x48] sm:$0xff] %v3634
      %3699 = vst [vmem:[#allocation3 + $0x50] sm:$0xff] %v3635
      %3700 = vst [vmem:[#allocation3 + $0x58] sm:$0xff] %v3636
      %3701 = vst [vmem:[#allocation3 + $0x60] sm:$0xff] %v3637
      %3702 = vst [vmem:[#allocation3 + $0x68] sm:$0xff] %v3638
      %3703 = vst [vmem:[#allocation3 + $0x70] sm:$0xff] %v3639
      %3704 = vst [vmem:[#allocation3 + $0x78] sm:$0xff] %v3640
      %3705 = vst [vmem:[#allocation3 + $0x80] sm:$0xff] %v3641
      %3706 = vst [vmem:[#allocation3 + $0x88] sm:$0xff] %v3642
      %3707 = vst [vmem:[#allocation3 + $0x90] sm:$0xff] %v3643
      %3708 = vst [vmem:[#allocation3 + $0x98] sm:$0xff] %v3644
      %3709 = vst [vmem:[#allocation3 + $0xa0] sm:$0xff] %v3645
      %3710 = vst [vmem:[#allocation3 + $0xa8] sm:$0xff] %v3646
      %3711 = vst [vmem:[#allocation3 + $0xb0] sm:$0xff] %v3647
      %3712 = vst [vmem:[#allocation3 + $0xb8] sm:$0xff] %v3648
      %3713 = vst [vmem:[#allocation3 + $0xc0] sm:$0xff] %v3649
      %3714 = vst [vmem:[#allocation3 + $0xc8] sm:$0xff] %v3650
      %3715 = vst [vmem:[#allocation3 + $0xd0] sm:$0xff] %v3651
      %3716 = vst [vmem:[#allocation3 + $0xd8] sm:$0xff] %v3652
      %3717 = vst [vmem:[#allocation3 + $0xe0] sm:$0xff] %v3653
      %3718 = vst [vmem:[#allocation3 + $0xe8] sm:$0xff] %v3654
      %3719 = vst [vmem:[#allocation3 + $0xf0] sm:$0xff] %v3655
      %3720 = vst [vmem:[#allocation3 + $0xf8] sm:$0xff] %v3656
      %3721 = vst [vmem:[#allocation3 + $0x100] sm:$0xff] %v3657
      %3722 = vst [vmem:[#allocation3 + $0x108] sm:$0xff] %v3658
      %3723 = vst [vmem:[#allocation3 + $0x110] sm:$0xff] %v3659
      %3724 = vst [vmem:[#allocation3 + $0x118] sm:$0xff] %v3660
      %3725 = vst [vmem:[#allocation3 + $0x120] sm:$0xff] %v3661
      %3726 = vst [vmem:[#allocation3 + $0x128] sm:$0xff] %v3662
      %3727 = vst [vmem:[#allocation3 + $0x130] sm:$0xff] %v3663
      %3728 = vst [vmem:[#allocation3 + $0x138] sm:$0xff] %v3664
      %3729 = vst [vmem:[#allocation3 + $0x140] sm:$0xff] %v3665
      %3730 = vst [vmem:[#allocation3 + $0x148] sm:$0xff] %v3666
      %3731 = vst [vmem:[#allocation3 + $0x150] sm:$0xff] %v3667
      %3732 = vst [vmem:[#allocation3 + $0x158] sm:$0xff] %v3668
      %3733 = vst [vmem:[#allocation3 + $0x160] sm:$0xff] %v3669
      %3734 = vst [vmem:[#allocation3 + $0x168] sm:$0xff] %v3670
      %3735 = vst [vmem:[#allocation3 + $0x170] sm:$0xff] %v3671
      %3736 = vst [vmem:[#allocation3 + $0x178] sm:$0xff] %v3672
      %3737 = vst [vmem:[#allocation3 + $0x180] sm:$0xff] %v3673
      %3738 = vst [vmem:[#allocation3 + $0x188] sm:$0xff] %v3674
      %3739 = vst [vmem:[#allocation3 + $0x190] sm:$0xff] %v3675
      %3740 = vst [vmem:[#allocation3 + $0x198] sm:$0xff] %v3676
      %3741 = vst [vmem:[#allocation3 + $0x1a0] sm:$0xff] %v3677
      %3742 = vst [vmem:[#allocation3 + $0x1a8] sm:$0xff] %v3678
      %3743 = vst [vmem:[#allocation3 + $0x1b0] sm:$0xff] %v3679
      %3744 = vst [vmem:[#allocation3 + $0x1b8] sm:$0xff] %v3680
      %3745 = vst [vmem:[#allocation3 + $0x1c0] sm:$0xff] %v3681
      %3746 = vst [vmem:[#allocation3 + $0x1c8] sm:$0xff] %v3682
      %3747 = vst [vmem:[#allocation3 + $0x1d0] sm:$0xff] %v3683
      %3748 = vst [vmem:[#allocation3 + $0x1d8] sm:$0xff] %v3684
      %3749 = vst [vmem:[#allocation3 + $0x1e0] sm:$0xff] %v3685
      %3750 = vst [vmem:[#allocation3 + $0x1e8] sm:$0xff] %v3686
      %3751 = vst [vmem:[#allocation3 + $0x1f0] sm:$0xff] %v3687
      %3752 = vst [vmem:[#allocation3 + $0x1f8] sm:$0xff] %v3688
      %s3753 = scalar_lea.vmem [#allocation2], 24
      %v3754 = vld [vmem:[%s3753] sm:$0xf]
      %v3755 = vld [vmem:[%s3753 + $0x4] sm:$0xf]
      %v3756 = vld [vmem:[%s3753 + $0xc] sm:$0xf]
      %v3757 = vld [vmem:[%s3753 + $0x10] sm:$0xf]
      %v3758 = vld [vmem:[%s3753 + $0x18] sm:$0xf]
      %v3759 = vld [vmem:[%s3753 + $0x1c] sm:$0xf]
      %v3760 = vld [vmem:[%s3753 + $0x24] sm:$0xf]
      %v3761 = vld [vmem:[%s3753 + $0x28] sm:$0xf]
      %v3762 = vld [vmem:[%s3753 + $0x30] sm:$0xf]
      %v3763 = vld [vmem:[%s3753 + $0x34] sm:$0xf]
      %v3764 = vld [vmem:[%s3753 + $0x3c] sm:$0xf]
      %v3765 = vld [vmem:[%s3753 + $0x40] sm:$0xf]
      %v3766 = vld [vmem:[%s3753 + $0x48] sm:$0xf]
      %v3767 = vld [vmem:[%s3753 + $0x4c] sm:$0xf]
      %v3768 = vld [vmem:[%s3753 + $0x54] sm:$0xf]
      %v3769 = vld [vmem:[%s3753 + $0x58] sm:$0xf]
      %v3770 = vld [vmem:[%s3753 + $0x60] sm:$0xf]
      %v3771 = vld [vmem:[%s3753 + $0x64] sm:$0xf]
      %v3772 = vld [vmem:[%s3753 + $0x6c] sm:$0xf]
      %v3773 = vld [vmem:[%s3753 + $0x70] sm:$0xf]
      %v3774 = vld [vmem:[%s3753 + $0x78] sm:$0xf]
      %v3775 = vld [vmem:[%s3753 + $0x7c] sm:$0xf]
      %v3776 = vld [vmem:[%s3753 + $0x84] sm:$0xf]
      %v3777 = vld [vmem:[%s3753 + $0x88] sm:$0xf]
      %v3778 = vld [vmem:[%s3753 + $0x90] sm:$0xf]
      %v3779 = vld [vmem:[%s3753 + $0x94] sm:$0xf]
      %v3780 = vld [vmem:[%s3753 + $0x9c] sm:$0xf]
      %v3781 = vld [vmem:[%s3753 + $0xa0] sm:$0xf]
      %v3782 = vld [vmem:[%s3753 + $0xa8] sm:$0xf]
      %v3783 = vld [vmem:[%s3753 + $0xac] sm:$0xf]
      %v3784 = vld [vmem:[%s3753 + $0xb4] sm:$0xf]
      %v3785 = vld [vmem:[%s3753 + $0xb8] sm:$0xf]
      %v3786 = vld [vmem:[%s3753 + $0x8] sm:$0x1]
      %v3787 = vld [vmem:[%s3753 + $0x14] sm:$0x1]
      %v3788 = vld [vmem:[%s3753 + $0x20] sm:$0x1]
      %v3789 = vld [vmem:[%s3753 + $0x2c] sm:$0x1]
      %v3790 = vld [vmem:[%s3753 + $0x38] sm:$0x1]
      %v3791 = vld [vmem:[%s3753 + $0x44] sm:$0x1]
      %v3792 = vld [vmem:[%s3753 + $0x50] sm:$0x1]
      %v3793 = vld [vmem:[%s3753 + $0x5c] sm:$0x1]
      %v3794 = vld [vmem:[%s3753 + $0x68] sm:$0x1]
      %v3795 = vld [vmem:[%s3753 + $0x74] sm:$0x1]
      %v3796 = vld [vmem:[%s3753 + $0x80] sm:$0x1]
      %v3797 = vld [vmem:[%s3753 + $0x8c] sm:$0x1]
      %v3798 = vld [vmem:[%s3753 + $0x98] sm:$0x1]
      %v3799 = vld [vmem:[%s3753 + $0xa4] sm:$0x1]
      %v3800 = vld [vmem:[%s3753 + $0xb0] sm:$0x1]
      %v3801 = vld [vmem:[%s3753 + $0xbc] sm:$0x1]
      %v3802 = vld [vmem:[%s3753] sm:$0xe]
      %v3803 = vld [vmem:[%s3753 + $0xc] sm:$0xe]
      %v3804 = vld [vmem:[%s3753 + $0x18] sm:$0xe]
      %v3805 = vld [vmem:[%s3753 + $0x24] sm:$0xe]
      %v3806 = vld [vmem:[%s3753 + $0x30] sm:$0xe]
      %v3807 = vld [vmem:[%s3753 + $0x3c] sm:$0xe]
      %v3808 = vld [vmem:[%s3753 + $0x48] sm:$0xe]
      %v3809 = vld [vmem:[%s3753 + $0x54] sm:$0xe]
      %v3810 = vld [vmem:[%s3753 + $0x60] sm:$0xe]
      %v3811 = vld [vmem:[%s3753 + $0x6c] sm:$0xe]
      %v3812 = vld [vmem:[%s3753 + $0x78] sm:$0xe]
      %v3813 = vld [vmem:[%s3753 + $0x84] sm:$0xe]
      %v3814 = vld [vmem:[%s3753 + $0x90] sm:$0xe]
      %v3815 = vld [vmem:[%s3753 + $0x9c] sm:$0xe]
      %v3816 = vld [vmem:[%s3753 + $0xa8] sm:$0xe]
      %v3817 = vld [vmem:[%s3753 + $0xb4] sm:$0xe]
      %v3850 = vunpack.c.l.b16 %v3754
      %v3851 = vunpack.c.l.b16 %v3755
      %v3852 = vunpack.c.l.b16 %v3756
      %v3853 = vunpack.c.l.b16 %v3757
      %v3854 = vunpack.c.l.b16 %v3758
      %v3855 = vunpack.c.l.b16 %v3759
      %v3856 = vunpack.c.l.b16 %v3760
      %v3857 = vunpack.c.l.b16 %v3761
      %v3858 = vunpack.c.l.b16 %v3762
      %v3859 = vunpack.c.l.b16 %v3763
      %v3860 = vunpack.c.l.b16 %v3764
      %v3861 = vunpack.c.l.b16 %v3765
      %v3862 = vunpack.c.l.b16 %v3766
      %v3863 = vunpack.c.l.b16 %v3767
      %v3864 = vunpack.c.l.b16 %v3768
      %v3865 = vunpack.c.l.b16 %v3769
      %v3866 = vunpack.c.l.b16 %v3770
      %v3867 = vunpack.c.l.b16 %v3771
      %v3868 = vunpack.c.l.b16 %v3772
      %v3869 = vunpack.c.l.b16 %v3773
      %v3870 = vunpack.c.l.b16 %v3774
      %v3871 = vunpack.c.l.b16 %v3775
      %v3872 = vunpack.c.l.b16 %v3776
      %v3873 = vunpack.c.l.b16 %v3777
      %v3874 = vunpack.c.l.b16 %v3778
      %v3875 = vunpack.c.l.b16 %v3779
      %v3876 = vunpack.c.l.b16 %v3780
      %v3877 = vunpack.c.l.b16 %v3781
      %v3878 = vunpack.c.l.b16 %v3782
      %v3879 = vunpack.c.l.b16 %v3783
      %v3880 = vunpack.c.l.b16 %v3784
      %v3881 = vunpack.c.l.b16 %v3785
      %v3882 = vpack.c.b16 %v3851, %v3850
      %v3883 = vpack.c.b16 %v3853, %v3852
      %v3884 = vpack.c.b16 %v3855, %v3854
      %v3885 = vpack.c.b16 %v3857, %v3856
      %v3886 = vpack.c.b16 %v3859, %v3858
      %v3887 = vpack.c.b16 %v3861, %v3860
      %v3888 = vpack.c.b16 %v3863, %v3862
      %v3889 = vpack.c.b16 %v3865, %v3864
      %v3890 = vpack.c.b16 %v3867, %v3866
      %v3891 = vpack.c.b16 %v3869, %v3868
      %v3892 = vpack.c.b16 %v3871, %v3870
      %v3893 = vpack.c.b16 %v3873, %v3872
      %v3894 = vpack.c.b16 %v3875, %v3874
      %v3895 = vpack.c.b16 %v3877, %v3876
      %v3896 = vpack.c.b16 %v3879, %v3878
      %v3897 = vpack.c.b16 %v3881, %v3880
      %v3930 = vunpack.c.l.b16 %v3786
      %v3931 = vunpack.c.l.b16 %v3787
      %v3932 = vunpack.c.l.b16 %v3788
      %v3933 = vunpack.c.l.b16 %v3789
      %v3934 = vunpack.c.l.b16 %v3790
      %v3935 = vunpack.c.l.b16 %v3791
      %v3936 = vunpack.c.l.b16 %v3792
      %v3937 = vunpack.c.l.b16 %v3793
      %v3938 = vunpack.c.l.b16 %v3794
      %v3939 = vunpack.c.l.b16 %v3795
      %v3940 = vunpack.c.l.b16 %v3796
      %v3941 = vunpack.c.l.b16 %v3797
      %v3942 = vunpack.c.l.b16 %v3798
      %v3943 = vunpack.c.l.b16 %v3799
      %v3944 = vunpack.c.l.b16 %v3800
      %v3945 = vunpack.c.l.b16 %v3801
      %v3946 = vpack.c.b16 %v3930, %v3930
      %v3947 = vpack.c.b16 %v3931, %v3931
      %v3948 = vpack.c.b16 %v3932, %v3932
      %v3949 = vpack.c.b16 %v3933, %v3933
      %v3950 = vpack.c.b16 %v3934, %v3934
      %v3951 = vpack.c.b16 %v3935, %v3935
      %v3952 = vpack.c.b16 %v3936, %v3936
      %v3953 = vpack.c.b16 %v3937, %v3937
      %v3954 = vpack.c.b16 %v3938, %v3938
      %v3955 = vpack.c.b16 %v3939, %v3939
      %v3956 = vpack.c.b16 %v3940, %v3940
      %v3957 = vpack.c.b16 %v3941, %v3941
      %v3958 = vpack.c.b16 %v3942, %v3942
      %v3959 = vpack.c.b16 %v3943, %v3943
      %v3960 = vpack.c.b16 %v3944, %v3944
      %v3961 = vpack.c.b16 %v3945, %v3945
      %v3963 = vshrl.u32 %v3882, 16
      %v3965 = vshll.u32 %v3882, 16
      %v3967 = vrot.slane %v3965, 1
      %v3968 = vor.u32 %v3963, %v3967
      %v3970 = vshll.u32 %v3946, 16
      %v3972 = vrot.slane %v3970, 1
      %v3973 = vsel %vm1002, %v3968, %v3972
      %v3975 = vshrl.u32 %v3883, 16
      %v3977 = vshll.u32 %v3883, 16
      %v3979 = vrot.slane %v3977, 1
      %v3980 = vor.u32 %v3975, %v3979
      %v3982 = vshll.u32 %v3947, 16
      %v3984 = vrot.slane %v3982, 1
      %v3985 = vsel %vm1002, %v3980, %v3984
      %v3987 = vshrl.u32 %v3884, 16
      %v3989 = vshll.u32 %v3884, 16
      %v3991 = vrot.slane %v3989, 1
      %v3992 = vor.u32 %v3987, %v3991
      %v3994 = vshll.u32 %v3948, 16
      %v3996 = vrot.slane %v3994, 1
      %v3997 = vsel %vm1002, %v3992, %v3996
      %v3999 = vshrl.u32 %v3885, 16
      %v4001 = vshll.u32 %v3885, 16
      %v4003 = vrot.slane %v4001, 1
      %v4004 = vor.u32 %v3999, %v4003
      %v4006 = vshll.u32 %v3949, 16
      %v4008 = vrot.slane %v4006, 1
      %v4009 = vsel %vm1002, %v4004, %v4008
      %v4011 = vshrl.u32 %v3886, 16
      %v4013 = vshll.u32 %v3886, 16
      %v4015 = vrot.slane %v4013, 1
      %v4016 = vor.u32 %v4011, %v4015
      %v4018 = vshll.u32 %v3950, 16
      %v4020 = vrot.slane %v4018, 1
      %v4021 = vsel %vm1002, %v4016, %v4020
      %v4023 = vshrl.u32 %v3887, 16
      %v4025 = vshll.u32 %v3887, 16
      %v4027 = vrot.slane %v4025, 1
      %v4028 = vor.u32 %v4023, %v4027
      %v4030 = vshll.u32 %v3951, 16
      %v4032 = vrot.slane %v4030, 1
      %v4033 = vsel %vm1002, %v4028, %v4032
      %v4035 = vshrl.u32 %v3888, 16
      %v4037 = vshll.u32 %v3888, 16
      %v4039 = vrot.slane %v4037, 1
      %v4040 = vor.u32 %v4035, %v4039
      %v4042 = vshll.u32 %v3952, 16
      %v4044 = vrot.slane %v4042, 1
      %v4045 = vsel %vm1002, %v4040, %v4044
      %v4047 = vshrl.u32 %v3889, 16
      %v4049 = vshll.u32 %v3889, 16
      %v4051 = vrot.slane %v4049, 1
      %v4052 = vor.u32 %v4047, %v4051
      %v4054 = vshll.u32 %v3953, 16
      %v4056 = vrot.slane %v4054, 1
      %v4057 = vsel %vm1002, %v4052, %v4056
      %v4059 = vshrl.u32 %v3890, 16
      %v4061 = vshll.u32 %v3890, 16
      %v4063 = vrot.slane %v4061, 1
      %v4064 = vor.u32 %v4059, %v4063
      %v4066 = vshll.u32 %v3954, 16
      %v4068 = vrot.slane %v4066, 1
      %v4069 = vsel %vm1002, %v4064, %v4068
      %v4071 = vshrl.u32 %v3891, 16
      %v4073 = vshll.u32 %v3891, 16
      %v4075 = vrot.slane %v4073, 1
      %v4076 = vor.u32 %v4071, %v4075
      %v4078 = vshll.u32 %v3955, 16
      %v4080 = vrot.slane %v4078, 1
      %v4081 = vsel %vm1002, %v4076, %v4080
      %v4083 = vshrl.u32 %v3892, 16
      %v4085 = vshll.u32 %v3892, 16
      %v4087 = vrot.slane %v4085, 1
      %v4088 = vor.u32 %v4083, %v4087
      %v4090 = vshll.u32 %v3956, 16
      %v4092 = vrot.slane %v4090, 1
      %v4093 = vsel %vm1002, %v4088, %v4092
      %v4095 = vshrl.u32 %v3893, 16
      %v4097 = vshll.u32 %v3893, 16
      %v4099 = vrot.slane %v4097, 1
      %v4100 = vor.u32 %v4095, %v4099
      %v4102 = vshll.u32 %v3957, 16
      %v4104 = vrot.slane %v4102, 1
      %v4105 = vsel %vm1002, %v4100, %v4104
      %v4107 = vshrl.u32 %v3894, 16
      %v4109 = vshll.u32 %v3894, 16
      %v4111 = vrot.slane %v4109, 1
      %v4112 = vor.u32 %v4107, %v4111
      %v4114 = vshll.u32 %v3958, 16
      %v4116 = vrot.slane %v4114, 1
      %v4117 = vsel %vm1002, %v4112, %v4116
      %v4119 = vshrl.u32 %v3895, 16
      %v4121 = vshll.u32 %v3895, 16
      %v4123 = vrot.slane %v4121, 1
      %v4124 = vor.u32 %v4119, %v4123
      %v4126 = vshll.u32 %v3959, 16
      %v4128 = vrot.slane %v4126, 1
      %v4129 = vsel %vm1002, %v4124, %v4128
      %v4131 = vshrl.u32 %v3896, 16
      %v4133 = vshll.u32 %v3896, 16
      %v4135 = vrot.slane %v4133, 1
      %v4136 = vor.u32 %v4131, %v4135
      %v4138 = vshll.u32 %v3960, 16
      %v4140 = vrot.slane %v4138, 1
      %v4141 = vsel %vm1002, %v4136, %v4140
      %v4143 = vshrl.u32 %v3897, 16
      %v4145 = vshll.u32 %v3897, 16
      %v4147 = vrot.slane %v4145, 1
      %v4148 = vor.u32 %v4143, %v4147
      %v4150 = vshll.u32 %v3961, 16
      %v4152 = vrot.slane %v4150, 1
      %v4153 = vsel %vm1002, %v4148, %v4152
      %v4186 = vunpack.c.l.b16 %v3802
      %v4187 = vunpack.c.l.b16 %v3803
      %v4188 = vunpack.c.l.b16 %v3804
      %v4189 = vunpack.c.l.b16 %v3805
      %v4190 = vunpack.c.l.b16 %v3806
      %v4191 = vunpack.c.l.b16 %v3807
      %v4192 = vunpack.c.l.b16 %v3808
      %v4193 = vunpack.c.l.b16 %v3809
      %v4194 = vunpack.c.l.b16 %v3810
      %v4195 = vunpack.c.l.b16 %v3811
      %v4196 = vunpack.c.l.b16 %v3812
      %v4197 = vunpack.c.l.b16 %v3813
      %v4198 = vunpack.c.l.b16 %v3814
      %v4199 = vunpack.c.l.b16 %v3815
      %v4200 = vunpack.c.l.b16 %v3816
      %v4201 = vunpack.c.l.b16 %v3817
      %v4202 = vpack.c.b16 %v3851, %v4186
      %v4203 = vpack.c.b16 %v3853, %v4187
      %v4204 = vpack.c.b16 %v3855, %v4188
      %v4205 = vpack.c.b16 %v3857, %v4189
      %v4206 = vpack.c.b16 %v3859, %v4190
      %v4207 = vpack.c.b16 %v3861, %v4191
      %v4208 = vpack.c.b16 %v3863, %v4192
      %v4209 = vpack.c.b16 %v3865, %v4193
      %v4210 = vpack.c.b16 %v3867, %v4194
      %v4211 = vpack.c.b16 %v3869, %v4195
      %v4212 = vpack.c.b16 %v3871, %v4196
      %v4213 = vpack.c.b16 %v3873, %v4197
      %v4214 = vpack.c.b16 %v3875, %v4198
      %v4215 = vpack.c.b16 %v3877, %v4199
      %v4216 = vpack.c.b16 %v3879, %v4200
      %v4217 = vpack.c.b16 %v3881, %v4201
      %v4218 = vrot.slane %v4202, 1
      %v4219 = vrot.slane %v3946, 1
      %v4220 = vsel %vm1259, %v4218, %v4219
      %v4221 = vrot.slane %v4203, 1
      %v4222 = vrot.slane %v3947, 1
      %v4223 = vsel %vm1259, %v4221, %v4222
      %v4224 = vrot.slane %v4204, 1
      %v4225 = vrot.slane %v3948, 1
      %v4226 = vsel %vm1259, %v4224, %v4225
      %v4227 = vrot.slane %v4205, 1
      %v4228 = vrot.slane %v3949, 1
      %v4229 = vsel %vm1259, %v4227, %v4228
      %v4230 = vrot.slane %v4206, 1
      %v4231 = vrot.slane %v3950, 1
      %v4232 = vsel %vm1259, %v4230, %v4231
      %v4233 = vrot.slane %v4207, 1
      %v4234 = vrot.slane %v3951, 1
      %v4235 = vsel %vm1259, %v4233, %v4234
      %v4236 = vrot.slane %v4208, 1
      %v4237 = vrot.slane %v3952, 1
      %v4238 = vsel %vm1259, %v4236, %v4237
      %v4239 = vrot.slane %v4209, 1
      %v4240 = vrot.slane %v3953, 1
      %v4241 = vsel %vm1259, %v4239, %v4240
      %v4242 = vrot.slane %v4210, 1
      %v4243 = vrot.slane %v3954, 1
      %v4244 = vsel %vm1259, %v4242, %v4243
      %v4245 = vrot.slane %v4211, 1
      %v4246 = vrot.slane %v3955, 1
      %v4247 = vsel %vm1259, %v4245, %v4246
      %v4248 = vrot.slane %v4212, 1
      %v4249 = vrot.slane %v3956, 1
      %v4250 = vsel %vm1259, %v4248, %v4249
      %v4251 = vrot.slane %v4213, 1
      %v4252 = vrot.slane %v3957, 1
      %v4253 = vsel %vm1259, %v4251, %v4252
      %v4254 = vrot.slane %v4214, 1
      %v4255 = vrot.slane %v3958, 1
      %v4256 = vsel %vm1259, %v4254, %v4255
      %v4257 = vrot.slane %v4215, 1
      %v4258 = vrot.slane %v3959, 1
      %v4259 = vsel %vm1259, %v4257, %v4258
      %v4260 = vrot.slane %v4216, 1
      %v4261 = vrot.slane %v3960, 1
      %v4262 = vsel %vm1259, %v4260, %v4261
      %v4263 = vrot.slane %v4217, 1
      %v4264 = vrot.slane %v3961, 1
      %v4265 = vsel %vm1259, %v4263, %v4264
      %s4282 = scalar_lea.vmem %s1, 768
      %v4283 = vld [vmem:[%s4282] sm:$0xff]
      %v4284 = vld [vmem:[%s4282 + $0x8] sm:$0xff]
      %v4285 = vld [vmem:[%s4282 + $0x10] sm:$0xff]
      %v4286 = vld [vmem:[%s4282 + $0x18] sm:$0xff]
      %v4287 = vld [vmem:[%s4282 + $0x20] sm:$0xff]
      %v4288 = vld [vmem:[%s4282 + $0x28] sm:$0xff]
      %v4289 = vld [vmem:[%s4282 + $0x30] sm:$0xff]
      %v4290 = vld [vmem:[%s4282 + $0x38] sm:$0xff]
      %v4291 = vld [vmem:[%s4282 + $0x40] sm:$0xff]
      %v4292 = vld [vmem:[%s4282 + $0x48] sm:$0xff]
      %v4293 = vld [vmem:[%s4282 + $0x50] sm:$0xff]
      %v4294 = vld [vmem:[%s4282 + $0x58] sm:$0xff]
      %v4295 = vld [vmem:[%s4282 + $0x60] sm:$0xff]
      %v4296 = vld [vmem:[%s4282 + $0x68] sm:$0xff]
      %v4297 = vld [vmem:[%s4282 + $0x70] sm:$0xff]
      %v4298 = vld [vmem:[%s4282 + $0x78] sm:$0xff]
      %v4299 = vld [vmem:[%s4282 + $0x80] sm:$0xff]
      %v4300 = vld [vmem:[%s4282 + $0x88] sm:$0xff]
      %v4301 = vld [vmem:[%s4282 + $0x90] sm:$0xff]
      %v4302 = vld [vmem:[%s4282 + $0x98] sm:$0xff]
      %v4303 = vld [vmem:[%s4282 + $0xa0] sm:$0xff]
      %v4304 = vld [vmem:[%s4282 + $0xa8] sm:$0xff]
      %v4305 = vld [vmem:[%s4282 + $0xb0] sm:$0xff]
      %v4306 = vld [vmem:[%s4282 + $0xb8] sm:$0xff]
      %v4307 = vld [vmem:[%s4282 + $0xc0] sm:$0xff]
      %v4308 = vld [vmem:[%s4282 + $0xc8] sm:$0xff]
      %v4309 = vld [vmem:[%s4282 + $0xd0] sm:$0xff]
      %v4310 = vld [vmem:[%s4282 + $0xd8] sm:$0xff]
      %v4311 = vld [vmem:[%s4282 + $0xe0] sm:$0xff]
      %v4312 = vld [vmem:[%s4282 + $0xe8] sm:$0xff]
      %v4313 = vld [vmem:[%s4282 + $0xf0] sm:$0xff]
      %v4314 = vld [vmem:[%s4282 + $0xf8] sm:$0xff]
      %v4315 = vld [vmem:[%s4282 + $0x100] sm:$0xff]
      %v4316 = vld [vmem:[%s4282 + $0x108] sm:$0xff]
      %v4317 = vld [vmem:[%s4282 + $0x110] sm:$0xff]
      %v4318 = vld [vmem:[%s4282 + $0x118] sm:$0xff]
      %v4319 = vld [vmem:[%s4282 + $0x120] sm:$0xff]
      %v4320 = vld [vmem:[%s4282 + $0x128] sm:$0xff]
      %v4321 = vld [vmem:[%s4282 + $0x130] sm:$0xff]
      %v4322 = vld [vmem:[%s4282 + $0x138] sm:$0xff]
      %v4323 = vld [vmem:[%s4282 + $0x140] sm:$0xff]
      %v4324 = vld [vmem:[%s4282 + $0x148] sm:$0xff]
      %v4325 = vld [vmem:[%s4282 + $0x150] sm:$0xff]
      %v4326 = vld [vmem:[%s4282 + $0x158] sm:$0xff]
      %v4327 = vld [vmem:[%s4282 + $0x160] sm:$0xff]
      %v4328 = vld [vmem:[%s4282 + $0x168] sm:$0xff]
      %v4329 = vld [vmem:[%s4282 + $0x170] sm:$0xff]
      %v4330 = vld [vmem:[%s4282 + $0x178] sm:$0xff]
      %v4379 = vunpack.c.l.b16 %v4283
      %v4380 = vunpack.c.h.b16 %v4283
      %v4381 = vunpack.c.l.b16 %v4284
      %v4382 = vunpack.c.h.b16 %v4284
      %v4383 = vunpack.c.l.b16 %v4285
      %v4384 = vunpack.c.h.b16 %v4285
      %v4385 = vunpack.c.l.b16 %v4286
      %v4386 = vunpack.c.h.b16 %v4286
      %v4387 = vunpack.c.l.b16 %v4287
      %v4388 = vunpack.c.h.b16 %v4287
      %v4389 = vunpack.c.l.b16 %v4288
      %v4390 = vunpack.c.h.b16 %v4288
      %v4391 = vunpack.c.l.b16 %v4289
      %v4392 = vunpack.c.h.b16 %v4289
      %v4393 = vunpack.c.l.b16 %v4290
      %v4394 = vunpack.c.h.b16 %v4290
      %v4395 = vunpack.c.l.b16 %v4291
      %v4396 = vunpack.c.h.b16 %v4291
      %v4397 = vunpack.c.l.b16 %v4292
      %v4398 = vunpack.c.h.b16 %v4292
      %v4399 = vunpack.c.l.b16 %v4293
      %v4400 = vunpack.c.h.b16 %v4293
      %v4401 = vunpack.c.l.b16 %v4294
      %v4402 = vunpack.c.h.b16 %v4294
      %v4403 = vunpack.c.l.b16 %v4295
      %v4404 = vunpack.c.h.b16 %v4295
      %v4405 = vunpack.c.l.b16 %v4296
      %v4406 = vunpack.c.h.b16 %v4296
      %v4407 = vunpack.c.l.b16 %v4297
      %v4408 = vunpack.c.h.b16 %v4297
      %v4409 = vunpack.c.l.b16 %v4298
      %v4410 = vunpack.c.h.b16 %v4298
      %v4411 = vunpack.c.l.b16 %v4299
      %v4412 = vunpack.c.h.b16 %v4299
      %v4413 = vunpack.c.l.b16 %v4300
      %v4414 = vunpack.c.h.b16 %v4300
      %v4415 = vunpack.c.l.b16 %v4301
      %v4416 = vunpack.c.h.b16 %v4301
      %v4417 = vunpack.c.l.b16 %v4302
      %v4418 = vunpack.c.h.b16 %v4302
      %v4419 = vunpack.c.l.b16 %v4303
      %v4420 = vunpack.c.h.b16 %v4303
      %v4421 = vunpack.c.l.b16 %v4304
      %v4422 = vunpack.c.h.b16 %v4304
      %v4423 = vunpack.c.l.b16 %v4305
      %v4424 = vunpack.c.h.b16 %v4305
      %v4425 = vunpack.c.l.b16 %v4306
      %v4426 = vunpack.c.h.b16 %v4306
      %v4427 = vunpack.c.l.b16 %v4307
      %v4428 = vunpack.c.h.b16 %v4307
      %v4429 = vunpack.c.l.b16 %v4308
      %v4430 = vunpack.c.h.b16 %v4308
      %v4431 = vunpack.c.l.b16 %v4309
      %v4432 = vunpack.c.h.b16 %v4309
      %v4433 = vunpack.c.l.b16 %v4310
      %v4434 = vunpack.c.h.b16 %v4310
      %v4435 = vunpack.c.l.b16 %v4311
      %v4436 = vunpack.c.h.b16 %v4311
      %v4437 = vunpack.c.l.b16 %v4312
      %v4438 = vunpack.c.h.b16 %v4312
      %v4439 = vunpack.c.l.b16 %v4313
      %v4440 = vunpack.c.h.b16 %v4313
      %v4441 = vunpack.c.l.b16 %v4314
      %v4442 = vunpack.c.h.b16 %v4314
      %v4443 = vunpack.c.l.b16 %v4315
      %v4444 = vunpack.c.h.b16 %v4315
      %v4445 = vunpack.c.l.b16 %v4316
      %v4446 = vunpack.c.h.b16 %v4316
      %v4447 = vunpack.c.l.b16 %v4317
      %v4448 = vunpack.c.h.b16 %v4317
      %v4449 = vunpack.c.l.b16 %v4318
      %v4450 = vunpack.c.h.b16 %v4318
      %v4451 = vunpack.c.l.b16 %v4319
      %v4452 = vunpack.c.h.b16 %v4319
      %v4453 = vunpack.c.l.b16 %v4320
      %v4454 = vunpack.c.h.b16 %v4320
      %v4455 = vunpack.c.l.b16 %v4321
      %v4456 = vunpack.c.h.b16 %v4321
      %v4457 = vunpack.c.l.b16 %v4322
      %v4458 = vunpack.c.h.b16 %v4322
      %v4459 = vunpack.c.l.b16 %v4323
      %v4460 = vunpack.c.h.b16 %v4323
      %v4461 = vunpack.c.l.b16 %v4324
      %v4462 = vunpack.c.h.b16 %v4324
      %v4463 = vunpack.c.l.b16 %v4325
      %v4464 = vunpack.c.h.b16 %v4325
      %v4465 = vunpack.c.l.b16 %v4326
      %v4466 = vunpack.c.h.b16 %v4326
      %v4467 = vunpack.c.l.b16 %v4327
      %v4468 = vunpack.c.h.b16 %v4327
      %v4469 = vunpack.c.l.b16 %v4328
      %v4470 = vunpack.c.h.b16 %v4328
      %v4471 = vunpack.c.l.b16 %v4329
      %v4472 = vunpack.c.h.b16 %v4329
      %v4473 = vunpack.c.l.b16 %v4330
      %v4474 = vunpack.c.h.b16 %v4330
      %v4475 = vpack.c.b16 %v4381, %v4379
      %v4476 = vpack.c.b16 %v4382, %v4380
      %v4477 = vpack.c.b16 %v4385, %v4383
      %v4478 = vpack.c.b16 %v4386, %v4384
      %v4479 = vpack.c.b16 %v4389, %v4387
      %v4480 = vpack.c.b16 %v4390, %v4388
      %v4481 = vpack.c.b16 %v4393, %v4391
      %v4482 = vpack.c.b16 %v4394, %v4392
      %v4483 = vpack.c.b16 %v4397, %v4395
      %v4484 = vpack.c.b16 %v4398, %v4396
      %v4485 = vpack.c.b16 %v4401, %v4399
      %v4486 = vpack.c.b16 %v4402, %v4400
      %v4487 = vpack.c.b16 %v4405, %v4403
      %v4488 = vpack.c.b16 %v4406, %v4404
      %v4489 = vpack.c.b16 %v4409, %v4407
      %v4490 = vpack.c.b16 %v4410, %v4408
      %v4491 = vpack.c.b16 %v4413, %v4411
      %v4492 = vpack.c.b16 %v4414, %v4412
      %v4493 = vpack.c.b16 %v4417, %v4415
      %v4494 = vpack.c.b16 %v4418, %v4416
      %v4495 = vpack.c.b16 %v4421, %v4419
      %v4496 = vpack.c.b16 %v4422, %v4420
      %v4497 = vpack.c.b16 %v4425, %v4423
      %v4498 = vpack.c.b16 %v4426, %v4424
      %v4499 = vpack.c.b16 %v4429, %v4427
      %v4500 = vpack.c.b16 %v4430, %v4428
      %v4501 = vpack.c.b16 %v4433, %v4431
      %v4502 = vpack.c.b16 %v4434, %v4432
      %v4503 = vpack.c.b16 %v4437, %v4435
      %v4504 = vpack.c.b16 %v4438, %v4436
      %v4505 = vpack.c.b16 %v4441, %v4439
      %v4506 = vpack.c.b16 %v4442, %v4440
      %v4507 = vpack.c.b16 %v4445, %v4443
      %v4508 = vpack.c.b16 %v4446, %v4444
      %v4509 = vpack.c.b16 %v4449, %v4447
      %v4510 = vpack.c.b16 %v4450, %v4448
      %v4511 = vpack.c.b16 %v4453, %v4451
      %v4512 = vpack.c.b16 %v4454, %v4452
      %v4513 = vpack.c.b16 %v4457, %v4455
      %v4514 = vpack.c.b16 %v4458, %v4456
      %v4515 = vpack.c.b16 %v4461, %v4459
      %v4516 = vpack.c.b16 %v4462, %v4460
      %v4517 = vpack.c.b16 %v4465, %v4463
      %v4518 = vpack.c.b16 %v4466, %v4464
      %v4519 = vpack.c.b16 %v4469, %v4467
      %v4520 = vpack.c.b16 %v4470, %v4468
      %v4521 = vpack.c.b16 %v4473, %v4471
      %v4522 = vpack.c.b16 %v4474, %v4472
      %4571 = vmatpush.bf16.msra.mxu0 %v4489
      %4572 = vmatpush.bf16.msra.mxu0 %v4487
      %4573 = vmatpush.bf16.msra.mxu0 %v4485
      %4574 = vmatpush.bf16.msra.mxu0 %v4483
      %4575 = vmatpush.bf16.msra.mxu0 %v4481
      %4576 = vmatpush.bf16.msra.mxu0 %v4479
      %4577 = vmatpush.bf16.msra.mxu0 %v4477
      %4578 = vmatpush.bf16.msra.mxu0 %v4475
      %4579 = vmatmul.bf16.gmra.mxu0 %v3882
      %v4580 = vpop.f32.mrf.mxu0
      %v4581 = vadd.f32 0.0, %v4580
      %v4582 = vpop.f32.mrf.mxu0
      %v4583 = vadd.f32 0.0, %v4582
      %4584 = vmatmul.bf16.gmra.mxu0 %v3883
      %v4585 = vpop.f32.mrf.mxu0
      %v4586 = vadd.f32 0.0, %v4585
      %v4587 = vpop.f32.mrf.mxu0
      %v4588 = vadd.f32 0.0, %v4587
      %4589 = vmatmul.bf16.gmra.mxu0 %v3884
      %v4590 = vpop.f32.mrf.mxu0
      %v4591 = vadd.f32 0.0, %v4590
      %v4592 = vpop.f32.mrf.mxu0
      %v4593 = vadd.f32 0.0, %v4592
      %4594 = vmatmul.bf16.gmra.mxu0 %v3885
      %v4595 = vpop.f32.mrf.mxu0
      %v4596 = vadd.f32 0.0, %v4595
      %v4597 = vpop.f32.mrf.mxu0
      %v4598 = vadd.f32 0.0, %v4597
      %4599 = vmatmul.bf16.gmra.mxu0 %v3886
      %v4600 = vpop.f32.mrf.mxu0
      %v4601 = vadd.f32 0.0, %v4600
      %v4602 = vpop.f32.mrf.mxu0
      %v4603 = vadd.f32 0.0, %v4602
      %4604 = vmatmul.bf16.gmra.mxu0 %v3887
      %v4605 = vpop.f32.mrf.mxu0
      %v4606 = vadd.f32 0.0, %v4605
      %v4607 = vpop.f32.mrf.mxu0
      %v4608 = vadd.f32 0.0, %v4607
      %4609 = vmatmul.bf16.gmra.mxu0 %v3888
      %v4610 = vpop.f32.mrf.mxu0
      %v4611 = vadd.f32 0.0, %v4610
      %v4612 = vpop.f32.mrf.mxu0
      %v4613 = vadd.f32 0.0, %v4612
      %4614 = vmatmul.bf16.gmra.mxu0 %v3889
      %v4615 = vpop.f32.mrf.mxu0
      %v4616 = vadd.f32 0.0, %v4615
      %v4617 = vpop.f32.mrf.mxu0
      %v4618 = vadd.f32 0.0, %v4617
      %4619 = vmatmul.bf16.gmra.mxu0 %v3890
      %v4620 = vpop.f32.mrf.mxu0
      %v4621 = vadd.f32 0.0, %v4620
      %v4622 = vpop.f32.mrf.mxu0
      %v4623 = vadd.f32 0.0, %v4622
      %4624 = vmatmul.bf16.gmra.mxu0 %v3891
      %v4625 = vpop.f32.mrf.mxu0
      %v4626 = vadd.f32 0.0, %v4625
      %v4627 = vpop.f32.mrf.mxu0
      %v4628 = vadd.f32 0.0, %v4627
      %4629 = vmatmul.bf16.gmra.mxu0 %v3892
      %v4630 = vpop.f32.mrf.mxu0
      %v4631 = vadd.f32 0.0, %v4630
      %v4632 = vpop.f32.mrf.mxu0
      %v4633 = vadd.f32 0.0, %v4632
      %4634 = vmatmul.bf16.gmra.mxu0 %v3893
      %v4635 = vpop.f32.mrf.mxu0
      %v4636 = vadd.f32 0.0, %v4635
      %v4637 = vpop.f32.mrf.mxu0
      %v4638 = vadd.f32 0.0, %v4637
      %4639 = vmatmul.bf16.gmra.mxu0 %v3894
      %v4640 = vpop.f32.mrf.mxu0
      %v4641 = vadd.f32 0.0, %v4640
      %v4642 = vpop.f32.mrf.mxu0
      %v4643 = vadd.f32 0.0, %v4642
      %4644 = vmatmul.bf16.gmra.mxu0 %v3895
      %v4645 = vpop.f32.mrf.mxu0
      %v4646 = vadd.f32 0.0, %v4645
      %v4647 = vpop.f32.mrf.mxu0
      %v4648 = vadd.f32 0.0, %v4647
      %4649 = vmatmul.bf16.gmra.mxu0 %v3896
      %v4650 = vpop.f32.mrf.mxu0
      %v4651 = vadd.f32 0.0, %v4650
      %v4652 = vpop.f32.mrf.mxu0
      %v4653 = vadd.f32 0.0, %v4652
      %4654 = vmatmul.bf16.gmra.mxu0 %v3897
      %v4655 = vpop.f32.mrf.mxu0
      %v4656 = vadd.f32 0.0, %v4655
      %v4657 = vpop.f32.mrf.mxu0
      %v4658 = vadd.f32 0.0, %v4657
      %4659 = vdwg.mxu0
      %4660 = vmatpush.bf16.msra.mxu0 %v4505
      %4661 = vmatpush.bf16.msra.mxu0 %v4503
      %4662 = vmatpush.bf16.msra.mxu0 %v4501
      %4663 = vmatpush.bf16.msra.mxu0 %v4499
      %4664 = vmatpush.bf16.msra.mxu0 %v4497
      %4665 = vmatpush.bf16.msra.mxu0 %v4495
      %4666 = vmatpush.bf16.msra.mxu0 %v4493
      %4667 = vmatpush.bf16.msra.mxu0 %v4491
      %4668 = vmatmul.bf16.gmra.mxu0 %v3973
      %v4669 = vpop.f32.mrf.mxu0
      %v4670 = vadd.f32 %v4581, %v4669
      %v4671 = vpop.f32.mrf.mxu0
      %v4672 = vadd.f32 %v4583, %v4671
      %4673 = vmatmul.bf16.gmra.mxu0 %v3985
      %v4674 = vpop.f32.mrf.mxu0
      %v4675 = vadd.f32 %v4586, %v4674
      %v4676 = vpop.f32.mrf.mxu0
      %v4677 = vadd.f32 %v4588, %v4676
      %4678 = vmatmul.bf16.gmra.mxu0 %v3997
      %v4679 = vpop.f32.mrf.mxu0
      %v4680 = vadd.f32 %v4591, %v4679
      %v4681 = vpop.f32.mrf.mxu0
      %v4682 = vadd.f32 %v4593, %v4681
      %4683 = vmatmul.bf16.gmra.mxu0 %v4009
      %v4684 = vpop.f32.mrf.mxu0
      %v4685 = vadd.f32 %v4596, %v4684
      %v4686 = vpop.f32.mrf.mxu0
      %v4687 = vadd.f32 %v4598, %v4686
      %4688 = vmatmul.bf16.gmra.mxu0 %v4021
      %v4689 = vpop.f32.mrf.mxu0
      %v4690 = vadd.f32 %v4601, %v4689
      %v4691 = vpop.f32.mrf.mxu0
      %v4692 = vadd.f32 %v4603, %v4691
      %4693 = vmatmul.bf16.gmra.mxu0 %v4033
      %v4694 = vpop.f32.mrf.mxu0
      %v4695 = vadd.f32 %v4606, %v4694
      %v4696 = vpop.f32.mrf.mxu0
      %v4697 = vadd.f32 %v4608, %v4696
      %4698 = vmatmul.bf16.gmra.mxu0 %v4045
      %v4699 = vpop.f32.mrf.mxu0
      %v4700 = vadd.f32 %v4611, %v4699
      %v4701 = vpop.f32.mrf.mxu0
      %v4702 = vadd.f32 %v4613, %v4701
      %4703 = vmatmul.bf16.gmra.mxu0 %v4057
      %v4704 = vpop.f32.mrf.mxu0
      %v4705 = vadd.f32 %v4616, %v4704
      %v4706 = vpop.f32.mrf.mxu0
      %v4707 = vadd.f32 %v4618, %v4706
      %4708 = vmatmul.bf16.gmra.mxu0 %v4069
      %v4709 = vpop.f32.mrf.mxu0
      %v4710 = vadd.f32 %v4621, %v4709
      %v4711 = vpop.f32.mrf.mxu0
      %v4712 = vadd.f32 %v4623, %v4711
      %4713 = vmatmul.bf16.gmra.mxu0 %v4081
      %v4714 = vpop.f32.mrf.mxu0
      %v4715 = vadd.f32 %v4626, %v4714
      %v4716 = vpop.f32.mrf.mxu0
      %v4717 = vadd.f32 %v4628, %v4716
      %4718 = vmatmul.bf16.gmra.mxu0 %v4093
      %v4719 = vpop.f32.mrf.mxu0
      %v4720 = vadd.f32 %v4631, %v4719
      %v4721 = vpop.f32.mrf.mxu0
      %v4722 = vadd.f32 %v4633, %v4721
      %4723 = vmatmul.bf16.gmra.mxu0 %v4105
      %v4724 = vpop.f32.mrf.mxu0
      %v4725 = vadd.f32 %v4636, %v4724
      %v4726 = vpop.f32.mrf.mxu0
      %v4727 = vadd.f32 %v4638, %v4726
      %4728 = vmatmul.bf16.gmra.mxu0 %v4117
      %v4729 = vpop.f32.mrf.mxu0
      %v4730 = vadd.f32 %v4641, %v4729
      %v4731 = vpop.f32.mrf.mxu0
      %v4732 = vadd.f32 %v4643, %v4731
      %4733 = vmatmul.bf16.gmra.mxu0 %v4129
      %v4734 = vpop.f32.mrf.mxu0
      %v4735 = vadd.f32 %v4646, %v4734
      %v4736 = vpop.f32.mrf.mxu0
      %v4737 = vadd.f32 %v4648, %v4736
      %4738 = vmatmul.bf16.gmra.mxu0 %v4141
      %v4739 = vpop.f32.mrf.mxu0
      %v4740 = vadd.f32 %v4651, %v4739
      %v4741 = vpop.f32.mrf.mxu0
      %v4742 = vadd.f32 %v4653, %v4741
      %4743 = vmatmul.bf16.gmra.mxu0 %v4153
      %v4744 = vpop.f32.mrf.mxu0
      %v4745 = vadd.f32 %v4656, %v4744
      %v4746 = vpop.f32.mrf.mxu0
      %v4747 = vadd.f32 %v4658, %v4746
      %4748 = vdwg.mxu0
      %4749 = vmatpush.bf16.msra.mxu0 %v4521
      %4750 = vmatpush.bf16.msra.mxu0 %v4519
      %4751 = vmatpush.bf16.msra.mxu0 %v4517
      %4752 = vmatpush.bf16.msra.mxu0 %v4515
      %4753 = vmatpush.bf16.msra.mxu0 %v4513
      %4754 = vmatpush.bf16.msra.mxu0 %v4511
      %4755 = vmatpush.bf16.msra.mxu0 %v4509
      %4756 = vmatpush.bf16.msra.mxu0 %v4507
      %4757 = vmatmul.bf16.gmra.mxu0 %v4220
      %v4758 = vpop.f32.mrf.mxu0
      %v4759 = vadd.f32 %v4670, %v4758
      %v4760 = vpop.f32.mrf.mxu0
      %v4761 = vadd.f32 %v4672, %v4760
      %4762 = vmatmul.bf16.gmra.mxu0 %v4223
      %v4763 = vpop.f32.mrf.mxu0
      %v4764 = vadd.f32 %v4675, %v4763
      %v4765 = vpop.f32.mrf.mxu0
      %v4766 = vadd.f32 %v4677, %v4765
      %4767 = vmatmul.bf16.gmra.mxu0 %v4226
      %v4768 = vpop.f32.mrf.mxu0
      %v4769 = vadd.f32 %v4680, %v4768
      %v4770 = vpop.f32.mrf.mxu0
      %v4771 = vadd.f32 %v4682, %v4770
      %4772 = vmatmul.bf16.gmra.mxu0 %v4229
      %v4773 = vpop.f32.mrf.mxu0
      %v4774 = vadd.f32 %v4685, %v4773
      %v4775 = vpop.f32.mrf.mxu0
      %v4776 = vadd.f32 %v4687, %v4775
      %4777 = vmatmul.bf16.gmra.mxu0 %v4232
      %v4778 = vpop.f32.mrf.mxu0
      %v4779 = vadd.f32 %v4690, %v4778
      %v4780 = vpop.f32.mrf.mxu0
      %v4781 = vadd.f32 %v4692, %v4780
      %4782 = vmatmul.bf16.gmra.mxu0 %v4235
      %v4783 = vpop.f32.mrf.mxu0
      %v4784 = vadd.f32 %v4695, %v4783
      %v4785 = vpop.f32.mrf.mxu0
      %v4786 = vadd.f32 %v4697, %v4785
      %4787 = vmatmul.bf16.gmra.mxu0 %v4238
      %v4788 = vpop.f32.mrf.mxu0
      %v4789 = vadd.f32 %v4700, %v4788
      %v4790 = vpop.f32.mrf.mxu0
      %v4791 = vadd.f32 %v4702, %v4790
      %4792 = vmatmul.bf16.gmra.mxu0 %v4241
      %v4793 = vpop.f32.mrf.mxu0
      %v4794 = vadd.f32 %v4705, %v4793
      %v4795 = vpop.f32.mrf.mxu0
      %v4796 = vadd.f32 %v4707, %v4795
      %4797 = vmatmul.bf16.gmra.mxu0 %v4244
      %v4798 = vpop.f32.mrf.mxu0
      %v4799 = vadd.f32 %v4710, %v4798
      %v4800 = vpop.f32.mrf.mxu0
      %v4801 = vadd.f32 %v4712, %v4800
      %4802 = vmatmul.bf16.gmra.mxu0 %v4247
      %v4803 = vpop.f32.mrf.mxu0
      %v4804 = vadd.f32 %v4715, %v4803
      %v4805 = vpop.f32.mrf.mxu0
      %v4806 = vadd.f32 %v4717, %v4805
      %4807 = vmatmul.bf16.gmra.mxu0 %v4250
      %v4808 = vpop.f32.mrf.mxu0
      %v4809 = vadd.f32 %v4720, %v4808
      %v4810 = vpop.f32.mrf.mxu0
      %v4811 = vadd.f32 %v4722, %v4810
      %4812 = vmatmul.bf16.gmra.mxu0 %v4253
      %v4813 = vpop.f32.mrf.mxu0
      %v4814 = vadd.f32 %v4725, %v4813
      %v4815 = vpop.f32.mrf.mxu0
      %v4816 = vadd.f32 %v4727, %v4815
      %4817 = vmatmul.bf16.gmra.mxu0 %v4256
      %v4818 = vpop.f32.mrf.mxu0
      %v4819 = vadd.f32 %v4730, %v4818
      %v4820 = vpop.f32.mrf.mxu0
      %v4821 = vadd.f32 %v4732, %v4820
      %4822 = vmatmul.bf16.gmra.mxu0 %v4259
      %v4823 = vpop.f32.mrf.mxu0
      %v4824 = vadd.f32 %v4735, %v4823
      %v4825 = vpop.f32.mrf.mxu0
      %v4826 = vadd.f32 %v4737, %v4825
      %4827 = vmatmul.bf16.gmra.mxu0 %v4262
      %v4828 = vpop.f32.mrf.mxu0
      %v4829 = vadd.f32 %v4740, %v4828
      %v4830 = vpop.f32.mrf.mxu0
      %v4831 = vadd.f32 %v4742, %v4830
      %4832 = vmatmul.bf16.gmra.mxu0 %v4265
      %v4833 = vpop.f32.mrf.mxu0
      %v4834 = vadd.f32 %v4745, %v4833
      %v4835 = vpop.f32.mrf.mxu0
      %v4836 = vadd.f32 %v4747, %v4835
      %4837 = vdwg.mxu0
      %4838 = vmatpush.bf16.msra.mxu0 %v4490
      %4839 = vmatpush.bf16.msra.mxu0 %v4488
      %4840 = vmatpush.bf16.msra.mxu0 %v4486
      %4841 = vmatpush.bf16.msra.mxu0 %v4484
      %4842 = vmatpush.bf16.msra.mxu0 %v4482
      %4843 = vmatpush.bf16.msra.mxu0 %v4480
      %4844 = vmatpush.bf16.msra.mxu0 %v4478
      %4845 = vmatpush.bf16.msra.mxu0 %v4476
      %4846 = vmatmul.bf16.gmra.mxu0 %v3882
      %v4847 = vpop.f32.mrf.mxu0
      %v4848 = vadd.f32 0.0, %v4847
      %v4849 = vpop.f32.mrf.mxu0
      %v4850 = vadd.f32 0.0, %v4849
      %4851 = vmatmul.bf16.gmra.mxu0 %v3883
      %v4852 = vpop.f32.mrf.mxu0
      %v4853 = vadd.f32 0.0, %v4852
      %v4854 = vpop.f32.mrf.mxu0
      %v4855 = vadd.f32 0.0, %v4854
      %4856 = vmatmul.bf16.gmra.mxu0 %v3884
      %v4857 = vpop.f32.mrf.mxu0
      %v4858 = vadd.f32 0.0, %v4857
      %v4859 = vpop.f32.mrf.mxu0
      %v4860 = vadd.f32 0.0, %v4859
      %4861 = vmatmul.bf16.gmra.mxu0 %v3885
      %v4862 = vpop.f32.mrf.mxu0
      %v4863 = vadd.f32 0.0, %v4862
      %v4864 = vpop.f32.mrf.mxu0
      %v4865 = vadd.f32 0.0, %v4864
      %4866 = vmatmul.bf16.gmra.mxu0 %v3886
      %v4867 = vpop.f32.mrf.mxu0
      %v4868 = vadd.f32 0.0, %v4867
      %v4869 = vpop.f32.mrf.mxu0
      %v4870 = vadd.f32 0.0, %v4869
      %4871 = vmatmul.bf16.gmra.mxu0 %v3887
      %v4872 = vpop.f32.mrf.mxu0
      %v4873 = vadd.f32 0.0, %v4872
      %v4874 = vpop.f32.mrf.mxu0
      %v4875 = vadd.f32 0.0, %v4874
      %4876 = vmatmul.bf16.gmra.mxu0 %v3888
      %v4877 = vpop.f32.mrf.mxu0
      %v4878 = vadd.f32 0.0, %v4877
      %v4879 = vpop.f32.mrf.mxu0
      %v4880 = vadd.f32 0.0, %v4879
      %4881 = vmatmul.bf16.gmra.mxu0 %v3889
      %v4882 = vpop.f32.mrf.mxu0
      %v4883 = vadd.f32 0.0, %v4882
      %v4884 = vpop.f32.mrf.mxu0
      %v4885 = vadd.f32 0.0, %v4884
      %4886 = vmatmul.bf16.gmra.mxu0 %v3890
      %v4887 = vpop.f32.mrf.mxu0
      %v4888 = vadd.f32 0.0, %v4887
      %v4889 = vpop.f32.mrf.mxu0
      %v4890 = vadd.f32 0.0, %v4889
      %4891 = vmatmul.bf16.gmra.mxu0 %v3891
      %v4892 = vpop.f32.mrf.mxu0
      %v4893 = vadd.f32 0.0, %v4892
      %v4894 = vpop.f32.mrf.mxu0
      %v4895 = vadd.f32 0.0, %v4894
      %4896 = vmatmul.bf16.gmra.mxu0 %v3892
      %v4897 = vpop.f32.mrf.mxu0
      %v4898 = vadd.f32 0.0, %v4897
      %v4899 = vpop.f32.mrf.mxu0
      %v4900 = vadd.f32 0.0, %v4899
      %4901 = vmatmul.bf16.gmra.mxu0 %v3893
      %v4902 = vpop.f32.mrf.mxu0
      %v4903 = vadd.f32 0.0, %v4902
      %v4904 = vpop.f32.mrf.mxu0
      %v4905 = vadd.f32 0.0, %v4904
      %4906 = vmatmul.bf16.gmra.mxu0 %v3894
      %v4907 = vpop.f32.mrf.mxu0
      %v4908 = vadd.f32 0.0, %v4907
      %v4909 = vpop.f32.mrf.mxu0
      %v4910 = vadd.f32 0.0, %v4909
      %4911 = vmatmul.bf16.gmra.mxu0 %v3895
      %v4912 = vpop.f32.mrf.mxu0
      %v4913 = vadd.f32 0.0, %v4912
      %v4914 = vpop.f32.mrf.mxu0
      %v4915 = vadd.f32 0.0, %v4914
      %4916 = vmatmul.bf16.gmra.mxu0 %v3896
      %v4917 = vpop.f32.mrf.mxu0
      %v4918 = vadd.f32 0.0, %v4917
      %v4919 = vpop.f32.mrf.mxu0
      %v4920 = vadd.f32 0.0, %v4919
      %4921 = vmatmul.bf16.gmra.mxu0 %v3897
      %v4922 = vpop.f32.mrf.mxu0
      %v4923 = vadd.f32 0.0, %v4922
      %v4924 = vpop.f32.mrf.mxu0
      %v4925 = vadd.f32 0.0, %v4924
      %4926 = vdwg.mxu0
      %4927 = vmatpush.bf16.msra.mxu0 %v4506
      %4928 = vmatpush.bf16.msra.mxu0 %v4504
      %4929 = vmatpush.bf16.msra.mxu0 %v4502
      %4930 = vmatpush.bf16.msra.mxu0 %v4500
      %4931 = vmatpush.bf16.msra.mxu0 %v4498
      %4932 = vmatpush.bf16.msra.mxu0 %v4496
      %4933 = vmatpush.bf16.msra.mxu0 %v4494
      %4934 = vmatpush.bf16.msra.mxu0 %v4492
      %4935 = vmatmul.bf16.gmra.mxu0 %v3973
      %v4936 = vpop.f32.mrf.mxu0
      %v4937 = vadd.f32 %v4848, %v4936
      %v4938 = vpop.f32.mrf.mxu0
      %v4939 = vadd.f32 %v4850, %v4938
      %4940 = vmatmul.bf16.gmra.mxu0 %v3985
      %v4941 = vpop.f32.mrf.mxu0
      %v4942 = vadd.f32 %v4853, %v4941
      %v4943 = vpop.f32.mrf.mxu0
      %v4944 = vadd.f32 %v4855, %v4943
      %4945 = vmatmul.bf16.gmra.mxu0 %v3997
      %v4946 = vpop.f32.mrf.mxu0
      %v4947 = vadd.f32 %v4858, %v4946
      %v4948 = vpop.f32.mrf.mxu0
      %v4949 = vadd.f32 %v4860, %v4948
      %4950 = vmatmul.bf16.gmra.mxu0 %v4009
      %v4951 = vpop.f32.mrf.mxu0
      %v4952 = vadd.f32 %v4863, %v4951
      %v4953 = vpop.f32.mrf.mxu0
      %v4954 = vadd.f32 %v4865, %v4953
      %4955 = vmatmul.bf16.gmra.mxu0 %v4021
      %v4956 = vpop.f32.mrf.mxu0
      %v4957 = vadd.f32 %v4868, %v4956
      %v4958 = vpop.f32.mrf.mxu0
      %v4959 = vadd.f32 %v4870, %v4958
      %4960 = vmatmul.bf16.gmra.mxu0 %v4033
      %v4961 = vpop.f32.mrf.mxu0
      %v4962 = vadd.f32 %v4873, %v4961
      %v4963 = vpop.f32.mrf.mxu0
      %v4964 = vadd.f32 %v4875, %v4963
      %4965 = vmatmul.bf16.gmra.mxu0 %v4045
      %v4966 = vpop.f32.mrf.mxu0
      %v4967 = vadd.f32 %v4878, %v4966
      %v4968 = vpop.f32.mrf.mxu0
      %v4969 = vadd.f32 %v4880, %v4968
      %4970 = vmatmul.bf16.gmra.mxu0 %v4057
      %v4971 = vpop.f32.mrf.mxu0
      %v4972 = vadd.f32 %v4883, %v4971
      %v4973 = vpop.f32.mrf.mxu0
      %v4974 = vadd.f32 %v4885, %v4973
      %4975 = vmatmul.bf16.gmra.mxu0 %v4069
      %v4976 = vpop.f32.mrf.mxu0
      %v4977 = vadd.f32 %v4888, %v4976
      %v4978 = vpop.f32.mrf.mxu0
      %v4979 = vadd.f32 %v4890, %v4978
      %4980 = vmatmul.bf16.gmra.mxu0 %v4081
      %v4981 = vpop.f32.mrf.mxu0
      %v4982 = vadd.f32 %v4893, %v4981
      %v4983 = vpop.f32.mrf.mxu0
      %v4984 = vadd.f32 %v4895, %v4983
      %4985 = vmatmul.bf16.gmra.mxu0 %v4093
      %v4986 = vpop.f32.mrf.mxu0
      %v4987 = vadd.f32 %v4898, %v4986
      %v4988 = vpop.f32.mrf.mxu0
      %v4989 = vadd.f32 %v4900, %v4988
      %4990 = vmatmul.bf16.gmra.mxu0 %v4105
      %v4991 = vpop.f32.mrf.mxu0
      %v4992 = vadd.f32 %v4903, %v4991
      %v4993 = vpop.f32.mrf.mxu0
      %v4994 = vadd.f32 %v4905, %v4993
      %4995 = vmatmul.bf16.gmra.mxu0 %v4117
      %v4996 = vpop.f32.mrf.mxu0
      %v4997 = vadd.f32 %v4908, %v4996
      %v4998 = vpop.f32.mrf.mxu0
      %v4999 = vadd.f32 %v4910, %v4998
      %5000 = vmatmul.bf16.gmra.mxu0 %v4129
      %v5001 = vpop.f32.mrf.mxu0
      %v5002 = vadd.f32 %v4913, %v5001
      %v5003 = vpop.f32.mrf.mxu0
      %v5004 = vadd.f32 %v4915, %v5003
      %5005 = vmatmul.bf16.gmra.mxu0 %v4141
      %v5006 = vpop.f32.mrf.mxu0
      %v5007 = vadd.f32 %v4918, %v5006
      %v5008 = vpop.f32.mrf.mxu0
      %v5009 = vadd.f32 %v4920, %v5008
      %5010 = vmatmul.bf16.gmra.mxu0 %v4153
      %v5011 = vpop.f32.mrf.mxu0
      %v5012 = vadd.f32 %v4923, %v5011
      %v5013 = vpop.f32.mrf.mxu0
      %v5014 = vadd.f32 %v4925, %v5013
      %5015 = vdwg.mxu0
      %5016 = vmatpush.bf16.msra.mxu0 %v4522
      %5017 = vmatpush.bf16.msra.mxu0 %v4520
      %5018 = vmatpush.bf16.msra.mxu0 %v4518
      %5019 = vmatpush.bf16.msra.mxu0 %v4516
      %5020 = vmatpush.bf16.msra.mxu0 %v4514
      %5021 = vmatpush.bf16.msra.mxu0 %v4512
      %5022 = vmatpush.bf16.msra.mxu0 %v4510
      %5023 = vmatpush.bf16.msra.mxu0 %v4508
      %5024 = vmatmul.bf16.gmra.mxu0 %v4220
      %v5025 = vpop.f32.mrf.mxu0
      %v5026 = vadd.f32 %v4937, %v5025
      %v5027 = vpop.f32.mrf.mxu0
      %v5028 = vadd.f32 %v4939, %v5027
      %5029 = vmatmul.bf16.gmra.mxu0 %v4223
      %v5030 = vpop.f32.mrf.mxu0
      %v5031 = vadd.f32 %v4942, %v5030
      %v5032 = vpop.f32.mrf.mxu0
      %v5033 = vadd.f32 %v4944, %v5032
      %5034 = vmatmul.bf16.gmra.mxu0 %v4226
      %v5035 = vpop.f32.mrf.mxu0
      %v5036 = vadd.f32 %v4947, %v5035
      %v5037 = vpop.f32.mrf.mxu0
      %v5038 = vadd.f32 %v4949, %v5037
      %5039 = vmatmul.bf16.gmra.mxu0 %v4229
      %v5040 = vpop.f32.mrf.mxu0
      %v5041 = vadd.f32 %v4952, %v5040
      %v5042 = vpop.f32.mrf.mxu0
      %v5043 = vadd.f32 %v4954, %v5042
      %5044 = vmatmul.bf16.gmra.mxu0 %v4232
      %v5045 = vpop.f32.mrf.mxu0
      %v5046 = vadd.f32 %v4957, %v5045
      %v5047 = vpop.f32.mrf.mxu0
      %v5048 = vadd.f32 %v4959, %v5047
      %5049 = vmatmul.bf16.gmra.mxu0 %v4235
      %v5050 = vpop.f32.mrf.mxu0
      %v5051 = vadd.f32 %v4962, %v5050
      %v5052 = vpop.f32.mrf.mxu0
      %v5053 = vadd.f32 %v4964, %v5052
      %5054 = vmatmul.bf16.gmra.mxu0 %v4238
      %v5055 = vpop.f32.mrf.mxu0
      %v5056 = vadd.f32 %v4967, %v5055
      %v5057 = vpop.f32.mrf.mxu0
      %v5058 = vadd.f32 %v4969, %v5057
      %5059 = vmatmul.bf16.gmra.mxu0 %v4241
      %v5060 = vpop.f32.mrf.mxu0
      %v5061 = vadd.f32 %v4972, %v5060
      %v5062 = vpop.f32.mrf.mxu0
      %v5063 = vadd.f32 %v4974, %v5062
      %5064 = vmatmul.bf16.gmra.mxu0 %v4244
      %v5065 = vpop.f32.mrf.mxu0
      %v5066 = vadd.f32 %v4977, %v5065
      %v5067 = vpop.f32.mrf.mxu0
      %v5068 = vadd.f32 %v4979, %v5067
      %5069 = vmatmul.bf16.gmra.mxu0 %v4247
      %v5070 = vpop.f32.mrf.mxu0
      %v5071 = vadd.f32 %v4982, %v5070
      %v5072 = vpop.f32.mrf.mxu0
      %v5073 = vadd.f32 %v4984, %v5072
      %5074 = vmatmul.bf16.gmra.mxu0 %v4250
      %v5075 = vpop.f32.mrf.mxu0
      %v5076 = vadd.f32 %v4987, %v5075
      %v5077 = vpop.f32.mrf.mxu0
      %v5078 = vadd.f32 %v4989, %v5077
      %5079 = vmatmul.bf16.gmra.mxu0 %v4253
      %v5080 = vpop.f32.mrf.mxu0
      %v5081 = vadd.f32 %v4992, %v5080
      %v5082 = vpop.f32.mrf.mxu0
      %v5083 = vadd.f32 %v4994, %v5082
      %5084 = vmatmul.bf16.gmra.mxu0 %v4256
      %v5085 = vpop.f32.mrf.mxu0
      %v5086 = vadd.f32 %v4997, %v5085
      %v5087 = vpop.f32.mrf.mxu0
      %v5088 = vadd.f32 %v4999, %v5087
      %5089 = vmatmul.bf16.gmra.mxu0 %v4259
      %v5090 = vpop.f32.mrf.mxu0
      %v5091 = vadd.f32 %v5002, %v5090
      %v5092 = vpop.f32.mrf.mxu0
      %v5093 = vadd.f32 %v5004, %v5092
      %5094 = vmatmul.bf16.gmra.mxu0 %v4262
      %v5095 = vpop.f32.mrf.mxu0
      %v5096 = vadd.f32 %v5007, %v5095
      %v5097 = vpop.f32.mrf.mxu0
      %v5098 = vadd.f32 %v5009, %v5097
      %5099 = vmatmul.bf16.gmra.mxu0 %v4265
      %v5100 = vpop.f32.mrf.mxu0
      %v5101 = vadd.f32 %v5012, %v5100
      %v5102 = vpop.f32.mrf.mxu0
      %v5103 = vadd.f32 %v5014, %v5102
      %5104 = vdwg.mxu0
      %v5105 = vld [vmem:[#allocation3] sm:$0xff]
      %v5106 = vld [vmem:[#allocation3 + $0x8] sm:$0xff]
      %v5107 = vld [vmem:[#allocation3 + $0x10] sm:$0xff]
      %v5108 = vld [vmem:[#allocation3 + $0x18] sm:$0xff]
      %v5109 = vld [vmem:[#allocation3 + $0x20] sm:$0xff]
      %v5110 = vld [vmem:[#allocation3 + $0x28] sm:$0xff]
      %v5111 = vld [vmem:[#allocation3 + $0x30] sm:$0xff]
      %v5112 = vld [vmem:[#allocation3 + $0x38] sm:$0xff]
      %v5113 = vld [vmem:[#allocation3 + $0x40] sm:$0xff]
      %v5114 = vld [vmem:[#allocation3 + $0x48] sm:$0xff]
      %v5115 = vld [vmem:[#allocation3 + $0x50] sm:$0xff]
      %v5116 = vld [vmem:[#allocation3 + $0x58] sm:$0xff]
      %v5117 = vld [vmem:[#allocation3 + $0x60] sm:$0xff]
      %v5118 = vld [vmem:[#allocation3 + $0x68] sm:$0xff]
      %v5119 = vld [vmem:[#allocation3 + $0x70] sm:$0xff]
      %v5120 = vld [vmem:[#allocation3 + $0x78] sm:$0xff]
      %v5121 = vld [vmem:[#allocation3 + $0x80] sm:$0xff]
      %v5122 = vld [vmem:[#allocation3 + $0x88] sm:$0xff]
      %v5123 = vld [vmem:[#allocation3 + $0x90] sm:$0xff]
      %v5124 = vld [vmem:[#allocation3 + $0x98] sm:$0xff]
      %v5125 = vld [vmem:[#allocation3 + $0xa0] sm:$0xff]
      %v5126 = vld [vmem:[#allocation3 + $0xa8] sm:$0xff]
      %v5127 = vld [vmem:[#allocation3 + $0xb0] sm:$0xff]
      %v5128 = vld [vmem:[#allocation3 + $0xb8] sm:$0xff]
      %v5129 = vld [vmem:[#allocation3 + $0xc0] sm:$0xff]
      %v5130 = vld [vmem:[#allocation3 + $0xc8] sm:$0xff]
      %v5131 = vld [vmem:[#allocation3 + $0xd0] sm:$0xff]
      %v5132 = vld [vmem:[#allocation3 + $0xd8] sm:$0xff]
      %v5133 = vld [vmem:[#allocation3 + $0xe0] sm:$0xff]
      %v5134 = vld [vmem:[#allocation3 + $0xe8] sm:$0xff]
      %v5135 = vld [vmem:[#allocation3 + $0xf0] sm:$0xff]
      %v5136 = vld [vmem:[#allocation3 + $0xf8] sm:$0xff]
      %v5137 = vld [vmem:[#allocation3 + $0x100] sm:$0xff]
      %v5138 = vld [vmem:[#allocation3 + $0x108] sm:$0xff]
      %v5139 = vld [vmem:[#allocation3 + $0x110] sm:$0xff]
      %v5140 = vld [vmem:[#allocation3 + $0x118] sm:$0xff]
      %v5141 = vld [vmem:[#allocation3 + $0x120] sm:$0xff]
      %v5142 = vld [vmem:[#allocation3 + $0x128] sm:$0xff]
      %v5143 = vld [vmem:[#allocation3 + $0x130] sm:$0xff]
      %v5144 = vld [vmem:[#allocation3 + $0x138] sm:$0xff]
      %v5145 = vld [vmem:[#allocation3 + $0x140] sm:$0xff]
      %v5146 = vld [vmem:[#allocation3 + $0x148] sm:$0xff]
      %v5147 = vld [vmem:[#allocation3 + $0x150] sm:$0xff]
      %v5148 = vld [vmem:[#allocation3 + $0x158] sm:$0xff]
      %v5149 = vld [vmem:[#allocation3 + $0x160] sm:$0xff]
      %v5150 = vld [vmem:[#allocation3 + $0x168] sm:$0xff]
      %v5151 = vld [vmem:[#allocation3 + $0x170] sm:$0xff]
      %v5152 = vld [vmem:[#allocation3 + $0x178] sm:$0xff]
      %v5153 = vld [vmem:[#allocation3 + $0x180] sm:$0xff]
      %v5154 = vld [vmem:[#allocation3 + $0x188] sm:$0xff]
      %v5155 = vld [vmem:[#allocation3 + $0x190] sm:$0xff]
      %v5156 = vld [vmem:[#allocation3 + $0x198] sm:$0xff]
      %v5157 = vld [vmem:[#allocation3 + $0x1a0] sm:$0xff]
      %v5158 = vld [vmem:[#allocation3 + $0x1a8] sm:$0xff]
      %v5159 = vld [vmem:[#allocation3 + $0x1b0] sm:$0xff]
      %v5160 = vld [vmem:[#allocation3 + $0x1b8] sm:$0xff]
      %v5161 = vld [vmem:[#allocation3 + $0x1c0] sm:$0xff]
      %v5162 = vld [vmem:[#allocation3 + $0x1c8] sm:$0xff]
      %v5163 = vld [vmem:[#allocation3 + $0x1d0] sm:$0xff]
      %v5164 = vld [vmem:[#allocation3 + $0x1d8] sm:$0xff]
      %v5165 = vld [vmem:[#allocation3 + $0x1e0] sm:$0xff]
      %v5166 = vld [vmem:[#allocation3 + $0x1e8] sm:$0xff]
      %v5167 = vld [vmem:[#allocation3 + $0x1f0] sm:$0xff]
      %v5168 = vld [vmem:[#allocation3 + $0x1f8] sm:$0xff]
      %v5169 = vadd.f32 %v5105, %v4759
      %v5170 = vadd.f32 %v5106, %v5026
      %v5171 = vadd.f32 %v5107, %v4761
      %v5172 = vadd.f32 %v5108, %v5028
      %v5173 = vadd.f32 %v5109, %v4764
      %v5174 = vadd.f32 %v5110, %v5031
      %v5175 = vadd.f32 %v5111, %v4766
      %v5176 = vadd.f32 %v5112, %v5033
      %v5177 = vadd.f32 %v5113, %v4769
      %v5178 = vadd.f32 %v5114, %v5036
      %v5179 = vadd.f32 %v5115, %v4771
      %v5180 = vadd.f32 %v5116, %v5038
      %v5181 = vadd.f32 %v5117, %v4774
      %v5182 = vadd.f32 %v5118, %v5041
      %v5183 = vadd.f32 %v5119, %v4776
      %v5184 = vadd.f32 %v5120, %v5043
      %v5185 = vadd.f32 %v5121, %v4779
      %v5186 = vadd.f32 %v5122, %v5046
      %v5187 = vadd.f32 %v5123, %v4781
      %v5188 = vadd.f32 %v5124, %v5048
      %v5189 = vadd.f32 %v5125, %v4784
      %v5190 = vadd.f32 %v5126, %v5051
      %v5191 = vadd.f32 %v5127, %v4786
      %v5192 = vadd.f32 %v5128, %v5053
      %v5193 = vadd.f32 %v5129, %v4789
      %v5194 = vadd.f32 %v5130, %v5056
      %v5195 = vadd.f32 %v5131, %v4791
      %v5196 = vadd.f32 %v5132, %v5058
      %v5197 = vadd.f32 %v5133, %v4794
      %v5198 = vadd.f32 %v5134, %v5061
      %v5199 = vadd.f32 %v5135, %v4796
      %v5200 = vadd.f32 %v5136, %v5063
      %v5201 = vadd.f32 %v5137, %v4799
      %v5202 = vadd.f32 %v5138, %v5066
      %v5203 = vadd.f32 %v5139, %v4801
      %v5204 = vadd.f32 %v5140, %v5068
      %v5205 = vadd.f32 %v5141, %v4804
      %v5206 = vadd.f32 %v5142, %v5071
      %v5207 = vadd.f32 %v5143, %v4806
      %v5208 = vadd.f32 %v5144, %v5073
      %v5209 = vadd.f32 %v5145, %v4809
      %v5210 = vadd.f32 %v5146, %v5076
      %v5211 = vadd.f32 %v5147, %v4811
      %v5212 = vadd.f32 %v5148, %v5078
      %v5213 = vadd.f32 %v5149, %v4814
      %v5214 = vadd.f32 %v5150, %v5081
      %v5215 = vadd.f32 %v5151, %v4816
      %v5216 = vadd.f32 %v5152, %v5083
      %v5217 = vadd.f32 %v5153, %v4819
      %v5218 = vadd.f32 %v5154, %v5086
      %v5219 = vadd.f32 %v5155, %v4821
      %v5220 = vadd.f32 %v5156, %v5088
      %v5221 = vadd.f32 %v5157, %v4824
      %v5222 = vadd.f32 %v5158, %v5091
      %v5223 = vadd.f32 %v5159, %v4826
      %v5224 = vadd.f32 %v5160, %v5093
      %v5225 = vadd.f32 %v5161, %v4829
      %v5226 = vadd.f32 %v5162, %v5096
      %v5227 = vadd.f32 %v5163, %v4831
      %v5228 = vadd.f32 %v5164, %v5098
      %v5229 = vadd.f32 %v5165, %v4834
      %v5230 = vadd.f32 %v5166, %v5101
      %v5231 = vadd.f32 %v5167, %v4836
      %v5232 = vadd.f32 %v5168, %v5103
      %5233 = vst [vmem:[#allocation3] sm:$0xff] %v5169
      %5234 = vst [vmem:[#allocation3 + $0x8] sm:$0xff] %v5170
      %5235 = vst [vmem:[#allocation3 + $0x10] sm:$0xff] %v5171
      %5236 = vst [vmem:[#allocation3 + $0x18] sm:$0xff] %v5172
      %5237 = vst [vmem:[#allocation3 + $0x20] sm:$0xff] %v5173
      %5238 = vst [vmem:[#allocation3 + $0x28] sm:$0xff] %v5174
      %5239 = vst [vmem:[#allocation3 + $0x30] sm:$0xff] %v5175
      %5240 = vst [vmem:[#allocation3 + $0x38] sm:$0xff] %v5176
      %5241 = vst [vmem:[#allocation3 + $0x40] sm:$0xff] %v5177
      %5242 = vst [vmem:[#allocation3 + $0x48] sm:$0xff] %v5178
      %5243 = vst [vmem:[#allocation3 + $0x50] sm:$0xff] %v5179
      %5244 = vst [vmem:[#allocation3 + $0x58] sm:$0xff] %v5180
      %5245 = vst [vmem:[#allocation3 + $0x60] sm:$0xff] %v5181
      %5246 = vst [vmem:[#allocation3 + $0x68] sm:$0xff] %v5182
      %5247 = vst [vmem:[#allocation3 + $0x70] sm:$0xff] %v5183
      %5248 = vst [vmem:[#allocation3 + $0x78] sm:$0xff] %v5184
      %5249 = vst [vmem:[#allocation3 + $0x80] sm:$0xff] %v5185
      %5250 = vst [vmem:[#allocation3 + $0x88] sm:$0xff] %v5186
      %5251 = vst [vmem:[#allocation3 + $0x90] sm:$0xff] %v5187
      %5252 = vst [vmem:[#allocation3 + $0x98] sm:$0xff] %v5188
      %5253 = vst [vmem:[#allocation3 + $0xa0] sm:$0xff] %v5189
      %5254 = vst [vmem:[#allocation3 + $0xa8] sm:$0xff] %v5190
      %5255 = vst [vmem:[#allocation3 + $0xb0] sm:$0xff] %v5191
      %5256 = vst [vmem:[#allocation3 + $0xb8] sm:$0xff] %v5192
      %5257 = vst [vmem:[#allocation3 + $0xc0] sm:$0xff] %v5193
      %5258 = vst [vmem:[#allocation3 + $0xc8] sm:$0xff] %v5194
      %5259 = vst [vmem:[#allocation3 + $0xd0] sm:$0xff] %v5195
      %5260 = vst [vmem:[#allocation3 + $0xd8] sm:$0xff] %v5196
      %5261 = vst [vmem:[#allocation3 + $0xe0] sm:$0xff] %v5197
      %5262 = vst [vmem:[#allocation3 + $0xe8] sm:$0xff] %v5198
      %5263 = vst [vmem:[#allocation3 + $0xf0] sm:$0xff] %v5199
      %5264 = vst [vmem:[#allocation3 + $0xf8] sm:$0xff] %v5200
      %5265 = vst [vmem:[#allocation3 + $0x100] sm:$0xff] %v5201
      %5266 = vst [vmem:[#allocation3 + $0x108] sm:$0xff] %v5202
      %5267 = vst [vmem:[#allocation3 + $0x110] sm:$0xff] %v5203
      %5268 = vst [vmem:[#allocation3 + $0x118] sm:$0xff] %v5204
      %5269 = vst [vmem:[#allocation3 + $0x120] sm:$0xff] %v5205
      %5270 = vst [vmem:[#allocation3 + $0x128] sm:$0xff] %v5206
      %5271 = vst [vmem:[#allocation3 + $0x130] sm:$0xff] %v5207
      %5272 = vst [vmem:[#allocation3 + $0x138] sm:$0xff] %v5208
      %5273 = vst [vmem:[#allocation3 + $0x140] sm:$0xff] %v5209
      %5274 = vst [vmem:[#allocation3 + $0x148] sm:$0xff] %v5210
      %5275 = vst [vmem:[#allocation3 + $0x150] sm:$0xff] %v5211
      %5276 = vst [vmem:[#allocation3 + $0x158] sm:$0xff] %v5212
      %5277 = vst [vmem:[#allocation3 + $0x160] sm:$0xff] %v5213
      %5278 = vst [vmem:[#allocation3 + $0x168] sm:$0xff] %v5214
      %5279 = vst [vmem:[#allocation3 + $0x170] sm:$0xff] %v5215
      %5280 = vst [vmem:[#allocation3 + $0x178] sm:$0xff] %v5216
      %5281 = vst [vmem:[#allocation3 + $0x180] sm:$0xff] %v5217
      %5282 = vst [vmem:[#allocation3 + $0x188] sm:$0xff] %v5218
      %5283 = vst [vmem:[#allocation3 + $0x190] sm:$0xff] %v5219
      %5284 = vst [vmem:[#allocation3 + $0x198] sm:$0xff] %v5220
      %5285 = vst [vmem:[#allocation3 + $0x1a0] sm:$0xff] %v5221
      %5286 = vst [vmem:[#allocation3 + $0x1a8] sm:$0xff] %v5222
      %5287 = vst [vmem:[#allocation3 + $0x1b0] sm:$0xff] %v5223
      %5288 = vst [vmem:[#allocation3 + $0x1b8] sm:$0xff] %v5224
      %5289 = vst [vmem:[#allocation3 + $0x1c0] sm:$0xff] %v5225
      %5290 = vst [vmem:[#allocation3 + $0x1c8] sm:$0xff] %v5226
      %5291 = vst [vmem:[#allocation3 + $0x1d0] sm:$0xff] %v5227
      %5292 = vst [vmem:[#allocation3 + $0x1d8] sm:$0xff] %v5228
      %5293 = vst [vmem:[#allocation3 + $0x1e0] sm:$0xff] %v5229
      %5294 = vst [vmem:[#allocation3 + $0x1e8] sm:$0xff] %v5230
      %5295 = vst [vmem:[#allocation3 + $0x1f0] sm:$0xff] %v5231
      %5296 = vst [vmem:[#allocation3 + $0x1f8] sm:$0xff] %v5232
      %v5297 = vld [vmem:[#allocation3] sm:$0xff]
      %v5298 = vld [vmem:[#allocation3 + $0x8] sm:$0xff]
      %v5299 = vld [vmem:[#allocation3 + $0x10] sm:$0xff]
      %v5300 = vld [vmem:[#allocation3 + $0x18] sm:$0xff]
      %v5301 = vld [vmem:[#allocation3 + $0x20] sm:$0xff]
      %v5302 = vld [vmem:[#allocation3 + $0x28] sm:$0xff]
      %v5303 = vld [vmem:[#allocation3 + $0x30] sm:$0xff]
      %v5304 = vld [vmem:[#allocation3 + $0x38] sm:$0xff]
      %v5305 = vld [vmem:[#allocation3 + $0x40] sm:$0xff]
      %v5306 = vld [vmem:[#allocation3 + $0x48] sm:$0xff]
      %v5307 = vld [vmem:[#allocation3 + $0x50] sm:$0xff]
      %v5308 = vld [vmem:[#allocation3 + $0x58] sm:$0xff]
      %v5309 = vld [vmem:[#allocation3 + $0x60] sm:$0xff]
      %v5310 = vld [vmem:[#allocation3 + $0x68] sm:$0xff]
      %v5311 = vld [vmem:[#allocation3 + $0x70] sm:$0xff]
      %v5312 = vld [vmem:[#allocation3 + $0x78] sm:$0xff]
      %v5313 = vld [vmem:[#allocation3 + $0x80] sm:$0xff]
      %v5314 = vld [vmem:[#allocation3 + $0x88] sm:$0xff]
      %v5315 = vld [vmem:[#allocation3 + $0x90] sm:$0xff]
      %v5316 = vld [vmem:[#allocation3 + $0x98] sm:$0xff]
      %v5317 = vld [vmem:[#allocation3 + $0xa0] sm:$0xff]
      %v5318 = vld [vmem:[#allocation3 + $0xa8] sm:$0xff]
      %v5319 = vld [vmem:[#allocation3 + $0xb0] sm:$0xff]
      %v5320 = vld [vmem:[#allocation3 + $0xb8] sm:$0xff]
      %v5321 = vld [vmem:[#allocation3 + $0xc0] sm:$0xff]
      %v5322 = vld [vmem:[#allocation3 + $0xc8] sm:$0xff]
      %v5323 = vld [vmem:[#allocation3 + $0xd0] sm:$0xff]
      %v5324 = vld [vmem:[#allocation3 + $0xd8] sm:$0xff]
      %v5325 = vld [vmem:[#allocation3 + $0xe0] sm:$0xff]
      %v5326 = vld [vmem:[#allocation3 + $0xe8] sm:$0xff]
      %v5327 = vld [vmem:[#allocation3 + $0xf0] sm:$0xff]
      %v5328 = vld [vmem:[#allocation3 + $0xf8] sm:$0xff]
      %v5329 = vld [vmem:[#allocation3 + $0x100] sm:$0xff]
      %v5330 = vld [vmem:[#allocation3 + $0x108] sm:$0xff]
      %v5331 = vld [vmem:[#allocation3 + $0x110] sm:$0xff]
      %v5332 = vld [vmem:[#allocation3 + $0x118] sm:$0xff]
      %v5333 = vld [vmem:[#allocation3 + $0x120] sm:$0xff]
      %v5334 = vld [vmem:[#allocation3 + $0x128] sm:$0xff]
      %v5335 = vld [vmem:[#allocation3 + $0x130] sm:$0xff]
      %v5336 = vld [vmem:[#allocation3 + $0x138] sm:$0xff]
      %v5337 = vld [vmem:[#allocation3 + $0x140] sm:$0xff]
      %v5338 = vld [vmem:[#allocation3 + $0x148] sm:$0xff]
      %v5339 = vld [vmem:[#allocation3 + $0x150] sm:$0xff]
      %v5340 = vld [vmem:[#allocation3 + $0x158] sm:$0xff]
      %v5341 = vld [vmem:[#allocation3 + $0x160] sm:$0xff]
      %v5342 = vld [vmem:[#allocation3 + $0x168] sm:$0xff]
      %v5343 = vld [vmem:[#allocation3 + $0x170] sm:$0xff]
      %v5344 = vld [vmem:[#allocation3 + $0x178] sm:$0xff]
      %v5345 = vld [vmem:[#allocation3 + $0x180] sm:$0xff]
      %v5346 = vld [vmem:[#allocation3 + $0x188] sm:$0xff]
      %v5347 = vld [vmem:[#allocation3 + $0x190] sm:$0xff]
      %v5348 = vld [vmem:[#allocation3 + $0x198] sm:$0xff]
      %v5349 = vld [vmem:[#allocation3 + $0x1a0] sm:$0xff]
      %v5350 = vld [vmem:[#allocation3 + $0x1a8] sm:$0xff]
      %v5351 = vld [vmem:[#allocation3 + $0x1b0] sm:$0xff]
      %v5352 = vld [vmem:[#allocation3 + $0x1b8] sm:$0xff]
      %v5353 = vld [vmem:[#allocation3 + $0x1c0] sm:$0xff]
      %v5354 = vld [vmem:[#allocation3 + $0x1c8] sm:$0xff]
      %v5355 = vld [vmem:[#allocation3 + $0x1d0] sm:$0xff]
      %v5356 = vld [vmem:[#allocation3 + $0x1d8] sm:$0xff]
      %v5357 = vld [vmem:[#allocation3 + $0x1e0] sm:$0xff]
      %v5358 = vld [vmem:[#allocation3 + $0x1e8] sm:$0xff]
      %v5359 = vld [vmem:[#allocation3 + $0x1f0] sm:$0xff]
      %v5360 = vld [vmem:[#allocation3 + $0x1f8] sm:$0xff]
      %v5361 = vpack.c.bf16 %v5298, %v5297
      %v5362 = vpack.c.bf16 %v5300, %v5299
      %v5363 = vpack.c.bf16 %v5302, %v5301
      %v5364 = vpack.c.bf16 %v5304, %v5303
      %v5365 = vpack.c.bf16 %v5306, %v5305
      %v5366 = vpack.c.bf16 %v5308, %v5307
      %v5367 = vpack.c.bf16 %v5310, %v5309
      %v5368 = vpack.c.bf16 %v5312, %v5311
      %v5369 = vpack.c.bf16 %v5314, %v5313
      %v5370 = vpack.c.bf16 %v5316, %v5315
      %v5371 = vpack.c.bf16 %v5318, %v5317
      %v5372 = vpack.c.bf16 %v5320, %v5319
      %v5373 = vpack.c.bf16 %v5322, %v5321
      %v5374 = vpack.c.bf16 %v5324, %v5323
      %v5375 = vpack.c.bf16 %v5326, %v5325
      %v5376 = vpack.c.bf16 %v5328, %v5327
      %v5377 = vpack.c.bf16 %v5330, %v5329
      %v5378 = vpack.c.bf16 %v5332, %v5331
      %v5379 = vpack.c.bf16 %v5334, %v5333
      %v5380 = vpack.c.bf16 %v5336, %v5335
      %v5381 = vpack.c.bf16 %v5338, %v5337
      %v5382 = vpack.c.bf16 %v5340, %v5339
      %v5383 = vpack.c.bf16 %v5342, %v5341
      %v5384 = vpack.c.bf16 %v5344, %v5343
      %v5385 = vpack.c.bf16 %v5346, %v5345
      %v5386 = vpack.c.bf16 %v5348, %v5347
      %v5387 = vpack.c.bf16 %v5350, %v5349
      %v5388 = vpack.c.bf16 %v5352, %v5351
      %v5389 = vpack.c.bf16 %v5354, %v5353
      %v5390 = vpack.c.bf16 %v5356, %v5355
      %v5391 = vpack.c.bf16 %v5358, %v5357
      %v5392 = vpack.c.bf16 %v5360, %v5359
      %5393 = vst [vmem:[%s178] sm:$0xff] %v5361
      %5394 = vst [vmem:[%s178 + $0x8] sm:$0xff] %v5362
      %5395 = vst [vmem:[%s178 + $0x10] sm:$0xff] %v5363
      %5396 = vst [vmem:[%s178 + $0x18] sm:$0xff] %v5364
      %5397 = vst [vmem:[%s178 + $0x20] sm:$0xff] %v5365
      %5398 = vst [vmem:[%s178 + $0x28] sm:$0xff] %v5366
      %5399 = vst [vmem:[%s178 + $0x30] sm:$0xff] %v5367
      %5400 = vst [vmem:[%s178 + $0x38] sm:$0xff] %v5368
      %5401 = vst [vmem:[%s178 + $0x40] sm:$0xff] %v5369
      %5402 = vst [vmem:[%s178 + $0x48] sm:$0xff] %v5370
      %5403 = vst [vmem:[%s178 + $0x50] sm:$0xff] %v5371
      %5404 = vst [vmem:[%s178 + $0x58] sm:$0xff] %v5372
      %5405 = vst [vmem:[%s178 + $0x60] sm:$0xff] %v5373
      %5406 = vst [vmem:[%s178 + $0x68] sm:$0xff] %v5374
      %5407 = vst [vmem:[%s178 + $0x70] sm:$0xff] %v5375
      %5408 = vst [vmem:[%s178 + $0x78] sm:$0xff] %v5376
      %5409 = vst [vmem:[%s178 + $0x80] sm:$0xff] %v5377
      %5410 = vst [vmem:[%s178 + $0x88] sm:$0xff] %v5378
      %5411 = vst [vmem:[%s178 + $0x90] sm:$0xff] %v5379
      %5412 = vst [vmem:[%s178 + $0x98] sm:$0xff] %v5380
      %5413 = vst [vmem:[%s178 + $0xa0] sm:$0xff] %v5381
      %5414 = vst [vmem:[%s178 + $0xa8] sm:$0xff] %v5382
      %5415 = vst [vmem:[%s178 + $0xb0] sm:$0xff] %v5383
      %5416 = vst [vmem:[%s178 + $0xb8] sm:$0xff] %v5384
      %5417 = vst [vmem:[%s178 + $0xc0] sm:$0xff] %v5385
      %5418 = vst [vmem:[%s178 + $0xc8] sm:$0xff] %v5386
      %5419 = vst [vmem:[%s178 + $0xd0] sm:$0xff] %v5387
      %5420 = vst [vmem:[%s178 + $0xd8] sm:$0xff] %v5388
      %5421 = vst [vmem:[%s178 + $0xe0] sm:$0xff] %v5389
      %5422 = vst [vmem:[%s178 + $0xe8] sm:$0xff] %v5390
      %5423 = vst [vmem:[%s178 + $0xf0] sm:$0xff] %v5391
      %5424 = vst [vmem:[%s178 + $0xf8] sm:$0xff] %v5392
      %v5425 = vadd.f32 %v5297, %v5299
      %v5426 = vadd.f32 %v5425, %v5301
      %v5427 = vadd.f32 %v5426, %v5303
      %v5428 = vadd.f32 %v5427, %v5305
      %v5429 = vadd.f32 %v5428, %v5307
      %v5430 = vadd.f32 %v5429, %v5309
      %v5431 = vadd.f32 %v5430, %v5311
      %v5432 = vadd.f32 %v5431, %v5313
      %v5433 = vadd.f32 %v5432, %v5315
      %v5434 = vadd.f32 %v5433, %v5317
      %v5435 = vadd.f32 %v5434, %v5319
      %v5436 = vadd.f32 %v5435, %v5321
      %v5437 = vadd.f32 %v5436, %v5323
      %v5438 = vadd.f32 %v5437, %v5325
      %v5439 = vadd.f32 %v5438, %v5327
      %v5440 = vadd.f32 %v5439, %v5329
      %v5441 = vadd.f32 %v5440, %v5331
      %v5442 = vadd.f32 %v5441, %v5333
      %v5443 = vadd.f32 %v5442, %v5335
      %v5444 = vadd.f32 %v5443, %v5337
      %v5445 = vadd.f32 %v5444, %v5339
      %v5446 = vadd.f32 %v5445, %v5341
      %v5447 = vadd.f32 %v5446, %v5343
      %v5448 = vadd.f32 %v5447, %v5345
      %v5449 = vadd.f32 %v5448, %v5347
      %v5450 = vadd.f32 %v5449, %v5349
      %v5451 = vadd.f32 %v5450, %v5351
      %v5452 = vadd.f32 %v5451, %v5353
      %v5453 = vadd.f32 %v5452, %v5355
      %v5454 = vadd.f32 %v5453, %v5357
      %v5455 = vadd.f32 %v5454, %v5359
      %v5456 = vrot.slane %v5455, 4
      %v5457 = vadd.f32 %v5455, %v5456
      %v5458 = vrot.slane %v5457, 2
      %v5459 = vadd.f32 %v5457, %v5458
      %v5460 = vrot.slane %v5459, 1
      %v5461 = vadd.f32 %v5459, %v5460
      %v5462 = vadd.f32 %v5298, %v5300
      %v5463 = vadd.f32 %v5462, %v5302
      %v5464 = vadd.f32 %v5463, %v5304
      %v5465 = vadd.f32 %v5464, %v5306
      %v5466 = vadd.f32 %v5465, %v5308
      %v5467 = vadd.f32 %v5466, %v5310
      %v5468 = vadd.f32 %v5467, %v5312
      %v5469 = vadd.f32 %v5468, %v5314
      %v5470 = vadd.f32 %v5469, %v5316
      %v5471 = vadd.f32 %v5470, %v5318
      %v5472 = vadd.f32 %v5471, %v5320
      %v5473 = vadd.f32 %v5472, %v5322
      %v5474 = vadd.f32 %v5473, %v5324
      %v5475 = vadd.f32 %v5474, %v5326
      %v5476 = vadd.f32 %v5475, %v5328
      %v5477 = vadd.f32 %v5476, %v5330
      %v5478 = vadd.f32 %v5477, %v5332
      %v5479 = vadd.f32 %v5478, %v5334
      %v5480 = vadd.f32 %v5479, %v5336
      %v5481 = vadd.f32 %v5480, %v5338
      %v5482 = vadd.f32 %v5481, %v5340
      %v5483 = vadd.f32 %v5482, %v5342
      %v5484 = vadd.f32 %v5483, %v5344
      %v5485 = vadd.f32 %v5484, %v5346
      %v5486 = vadd.f32 %v5485, %v5348
      %v5487 = vadd.f32 %v5486, %v5350
      %v5488 = vadd.f32 %v5487, %v5352
      %v5489 = vadd.f32 %v5488, %v5354
      %v5490 = vadd.f32 %v5489, %v5356
      %v5491 = vadd.f32 %v5490, %v5358
      %v5492 = vadd.f32 %v5491, %v5360
      %v5493 = vrot.slane %v5492, 4
      %v5494 = vadd.f32 %v5492, %v5493
      %v5495 = vrot.slane %v5494, 2
      %v5496 = vadd.f32 %v5494, %v5495
      %v5497 = vrot.slane %v5496, 1
      %v5498 = vadd.f32 %v5496, %v5497
      %v5499 = vmul.f32 %v5297, %v5297
      %v5500 = vmul.f32 %v5298, %v5298
      %v5501 = vmul.f32 %v5299, %v5299
      %v5502 = vmul.f32 %v5300, %v5300
      %v5503 = vmul.f32 %v5301, %v5301
      %v5504 = vmul.f32 %v5302, %v5302
      %v5505 = vmul.f32 %v5303, %v5303
      %v5506 = vmul.f32 %v5304, %v5304
      %v5507 = vmul.f32 %v5305, %v5305
      %v5508 = vmul.f32 %v5306, %v5306
      %v5509 = vmul.f32 %v5307, %v5307
      %v5510 = vmul.f32 %v5308, %v5308
      %v5511 = vmul.f32 %v5309, %v5309
      %v5512 = vmul.f32 %v5310, %v5310
      %v5513 = vmul.f32 %v5311, %v5311
      %v5514 = vmul.f32 %v5312, %v5312
      %v5515 = vmul.f32 %v5313, %v5313
      %v5516 = vmul.f32 %v5314, %v5314
      %v5517 = vmul.f32 %v5315, %v5315
      %v5518 = vmul.f32 %v5316, %v5316
      %v5519 = vmul.f32 %v5317, %v5317
      %v5520 = vmul.f32 %v5318, %v5318
      %v5521 = vmul.f32 %v5319, %v5319
      %v5522 = vmul.f32 %v5320, %v5320
      %v5523 = vmul.f32 %v5321, %v5321
      %v5524 = vmul.f32 %v5322, %v5322
      %v5525 = vmul.f32 %v5323, %v5323
      %v5526 = vmul.f32 %v5324, %v5324
      %v5527 = vmul.f32 %v5325, %v5325
      %v5528 = vmul.f32 %v5326, %v5326
      %v5529 = vmul.f32 %v5327, %v5327
      %v5530 = vmul.f32 %v5328, %v5328
      %v5531 = vmul.f32 %v5329, %v5329
      %v5532 = vmul.f32 %v5330, %v5330
      %v5533 = vmul.f32 %v5331, %v5331
      %v5534 = vmul.f32 %v5332, %v5332
      %v5535 = vmul.f32 %v5333, %v5333
      %v5536 = vmul.f32 %v5334, %v5334
      %v5537 = vmul.f32 %v5335, %v5335
      %v5538 = vmul.f32 %v5336, %v5336
      %v5539 = vmul.f32 %v5337, %v5337
      %v5540 = vmul.f32 %v5338, %v5338
      %v5541 = vmul.f32 %v5339, %v5339
      %v5542 = vmul.f32 %v5340, %v5340
      %v5543 = vmul.f32 %v5341, %v5341
      %v5544 = vmul.f32 %v5342, %v5342
      %v5545 = vmul.f32 %v5343, %v5343
      %v5546 = vmul.f32 %v5344, %v5344
      %v5547 = vmul.f32 %v5345, %v5345
      %v5548 = vmul.f32 %v5346, %v5346
      %v5549 = vmul.f32 %v5347, %v5347
      %v5550 = vmul.f32 %v5348, %v5348
      %v5551 = vmul.f32 %v5349, %v5349
      %v5552 = vmul.f32 %v5350, %v5350
      %v5553 = vmul.f32 %v5351, %v5351
      %v5554 = vmul.f32 %v5352, %v5352
      %v5555 = vmul.f32 %v5353, %v5353
      %v5556 = vmul.f32 %v5354, %v5354
      %v5557 = vmul.f32 %v5355, %v5355
      %v5558 = vmul.f32 %v5356, %v5356
      %v5559 = vmul.f32 %v5357, %v5357
      %v5560 = vmul.f32 %v5358, %v5358
      %v5561 = vmul.f32 %v5359, %v5359
      %v5562 = vmul.f32 %v5360, %v5360
      %v5563 = vadd.f32 %v5499, %v5501
      %v5564 = vadd.f32 %v5563, %v5503
      %v5565 = vadd.f32 %v5564, %v5505
      %v5566 = vadd.f32 %v5565, %v5507
      %v5567 = vadd.f32 %v5566, %v5509
      %v5568 = vadd.f32 %v5567, %v5511
      %v5569 = vadd.f32 %v5568, %v5513
      %v5570 = vadd.f32 %v5569, %v5515
      %v5571 = vadd.f32 %v5570, %v5517
      %v5572 = vadd.f32 %v5571, %v5519
      %v5573 = vadd.f32 %v5572, %v5521
      %v5574 = vadd.f32 %v5573, %v5523
      %v5575 = vadd.f32 %v5574, %v5525
      %v5576 = vadd.f32 %v5575, %v5527
      %v5577 = vadd.f32 %v5576, %v5529
      %v5578 = vadd.f32 %v5577, %v5531
      %v5579 = vadd.f32 %v5578, %v5533
      %v5580 = vadd.f32 %v5579, %v5535
      %v5581 = vadd.f32 %v5580, %v5537
      %v5582 = vadd.f32 %v5581, %v5539
      %v5583 = vadd.f32 %v5582, %v5541
      %v5584 = vadd.f32 %v5583, %v5543
      %v5585 = vadd.f32 %v5584, %v5545
      %v5586 = vadd.f32 %v5585, %v5547
      %v5587 = vadd.f32 %v5586, %v5549
      %v5588 = vadd.f32 %v5587, %v5551
      %v5589 = vadd.f32 %v5588, %v5553
      %v5590 = vadd.f32 %v5589, %v5555
      %v5591 = vadd.f32 %v5590, %v5557
      %v5592 = vadd.f32 %v5591, %v5559
      %v5593 = vadd.f32 %v5592, %v5561
      %v5594 = vrot.slane %v5593, 4
      %v5595 = vadd.f32 %v5593, %v5594
      %v5596 = vrot.slane %v5595, 2
      %v5597 = vadd.f32 %v5595, %v5596
      %v5598 = vrot.slane %v5597, 1
      %v5599 = vadd.f32 %v5597, %v5598
      %v5600 = vadd.f32 %v5500, %v5502
      %v5601 = vadd.f32 %v5600, %v5504
      %v5602 = vadd.f32 %v5601, %v5506
      %v5603 = vadd.f32 %v5602, %v5508
      %v5604 = vadd.f32 %v5603, %v5510
      %v5605 = vadd.f32 %v5604, %v5512
      %v5606 = vadd.f32 %v5605, %v5514
      %v5607 = vadd.f32 %v5606, %v5516
      %v5608 = vadd.f32 %v5607, %v5518
      %v5609 = vadd.f32 %v5608, %v5520
      %v5610 = vadd.f32 %v5609, %v5522
      %v5611 = vadd.f32 %v5610, %v5524
      %v5612 = vadd.f32 %v5611, %v5526
      %v5613 = vadd.f32 %v5612, %v5528
      %v5614 = vadd.f32 %v5613, %v5530
      %v5615 = vadd.f32 %v5614, %v5532
      %v5616 = vadd.f32 %v5615, %v5534
      %v5617 = vadd.f32 %v5616, %v5536
      %v5618 = vadd.f32 %v5617, %v5538
      %v5619 = vadd.f32 %v5618, %v5540
      %v5620 = vadd.f32 %v5619, %v5542
      %v5621 = vadd.f32 %v5620, %v5544
      %v5622 = vadd.f32 %v5621, %v5546
      %v5623 = vadd.f32 %v5622, %v5548
      %v5624 = vadd.f32 %v5623, %v5550
      %v5625 = vadd.f32 %v5624, %v5552
      %v5626 = vadd.f32 %v5625, %v5554
      %v5627 = vadd.f32 %v5626, %v5556
      %v5628 = vadd.f32 %v5627, %v5558
      %v5629 = vadd.f32 %v5628, %v5560
      %v5630 = vadd.f32 %v5629, %v5562
      %v5631 = vrot.slane %v5630, 4
      %v5632 = vadd.f32 %v5630, %v5631
      %v5633 = vrot.slane %v5632, 2
      %v5634 = vadd.f32 %v5632, %v5633
      %v5635 = vrot.slane %v5634, 1
      %v5636 = vadd.f32 %v5634, %v5635
      %vm5637 = vcmask 1040384
      %v5638 = vsel %vm5637, %v5461, %v5599
      %v5639 = vsel %vm5637, %v5498, %v5636
      %v5642 = vrot.slane %v5639, 6
      %vm5643 = vcmask 1041408
      %v5644 = vsel %vm5643, %v5638, %v5642
      %5646 = vst [vmem:[%s183] sm:$0xf] %v5644
      %p5647 = scmp.lt.s32.totalorder %s15, 1
      %s5648 = scalar_select %p5647, %s15, 1
      %s5649 = smul.addr %s5648, 64
      %s5650 = smul.addr %s5649, 4
      %s5651 = scalar_lea.vmem %s2, %s5650
      %p5652 = scmp.lt.s32.totalorder %s15, 1
      %s5653 = scalar_select %p5652, %s15, 1
      %s5654 = smul.addr %s5653, 2
      %s5655 = smul.addr %s5654, 2
      %s5656 = scalar_lea.vmem %s3, %s5655
      // Predicated region
      $region29: #{res_block_forward.3} parent=27 // pred_check
        %p5657 = pneg %p80
      $region30: #{res_block_forward.3} parent=27 // pred_check_branch
        %5659 = sbr.rel (%p5657) target = $region32
      $region31: #{res_block_forward.3} parent=27 // pred_region
        _
      $region32: #{res_block_forward.3} parent=27 // pred_fallthru
        _
      // Predicated region
      $region33: #{res_block_forward.3} parent=27 // pred_check
        %p5660 = pneg %p106
      $region34: #{res_block_forward.3} parent=27 // pred_check_branch
        %5662 = sbr.rel (%p5660) target = $region36
      $region35: #{res_block_forward.3} parent=27 // pred_region
        _
      $region36: #{res_block_forward.3} parent=27 // pred_fallthru
        _
    $region28: #{res_block_forward.3} parent=5 // pred_fallthru
      _
    %p5663 = scmp.le.s32.totalorder 2, %s10
    // Predicated region
    $region37: #{res_block_forward.3} parent=5 // pred_check
      %p5664 = pneg %p5663
    $region38: #{res_block_forward.3} parent=5 // pred_check_branch
      %5666 = sbr.rel (%p5664) target = $region40
    $region39: #{res_block_forward.3} parent=5 // pred_region
      %s5667 = ssub.s32 %s10, 2
      // Predicated region
      $region41: #{res_block_forward.3} parent=39 // pred_check
        %p5668 = pneg %p86
      $region42: #{res_block_forward.3} parent=39 // pred_check_branch
        %5670 = sbr.rel (%p5668) target = $region44
      $region43: #{res_block_forward.3} parent=39 // pred_region
        %p5671 = scmp.lt.s32.totalorder %s16, 1
        %s5672 = scalar_select %p5671, %s16, 1
        %s5673 = smul.addr %s5672, 64
        %s5674 = smul.addr %s5673, 4
        %s5675 = scalar_lea.vmem %s2, %s5674
      $region44: #{res_block_forward.3} parent=39 // pred_fallthru
        _
      // Predicated region
      $region45: #{res_block_forward.3} parent=39 // pred_check
        %p5676 = pneg %p112
      $region46: #{res_block_forward.3} parent=39 // pred_check_branch
        %5678 = sbr.rel (%p5676) target = $region48
      $region47: #{res_block_forward.3} parent=39 // pred_region
        %p5679 = scmp.lt.s32.totalorder %s16, 1
        %s5680 = scalar_select %p5679, %s16, 1
        %s5681 = smul.addr %s5680, 2
        %s5682 = smul.addr %s5681, 2
        %s5683 = scalar_lea.vmem %s3, %s5682
      $region48: #{res_block_forward.3} parent=39 // pred_fallthru
        _
    $region40: #{res_block_forward.3} parent=5 // pred_fallthru
      _
  $region6: #{res_block_forward.3} parent=0 // loop_footer
    %s14 = sadd.s32 1, %s10
  $region7: #{res_block_forward.3} parent=0 // loop_footer_branch
    %9 = sbr.rel target = $region3
  $region8: #{res_block_forward.3} parent=0 // loop_exit
    _

// kernel: res_block_forward.4
$region0: #{res_block_forward.4}
  #allocation0 [shape = 'u32[]', space=smem, size = 0x4, offset = 0x4, fixed_abs, tag = 'smem constant byte address 0x4 - core index']
  #allocation1 [shape = 'u32[72,128]{1,0:T(1,128)}', space=vmem, size = 0x9000, scoped, tag = 'internal scratch']
  #allocation2 [shape = 'bf16[18,18,128]{2,1,0:T(8,128)(2,1)}', space=vmem, size = 0x1b000, scoped, tag = 'scratch operand']
  #allocation3 [shape = 'f32[256,128]{1,0:T(8,128)}', space=vmem, size = 0x20000, scoped, tag = 'scratch operand']
  %s0 = inlined_call_operand.vmem [shape: bf16[2,256,256], index: 0, kind: input, shape index: {}]
  %s1 = inlined_call_operand.vmem [shape: f32[1,256], index: 1, kind: input, shape index: {}]
  %s2 = inlined_call_operand.vmem [shape: f32[1,256], index: 2, kind: input, shape index: {}]
  %s3 = inlined_call_operand.vmem [shape: bf16[3,384,128], index: 3, kind: input, shape index: {}]
  %s4 = inlined_call_operand.vmem [shape: bf16[2,256,128], index: 4, kind: output, shape index: {0}]
  %s5 = inlined_call_operand.vmem [shape: f32[2,2,128], index: 5, kind: output, shape index: {1}]
  %6 = xla_tuple %s4, %s5
  %s7 = sld [smem:[#allocation0]]
  $region57: #{res_block_forward.4} parent=0
    _
  %s9 = ssub.s32 1, %s7
  %s10 = scalar_select 0, %s9, %s7
  loop: start=0, step=1, limit=4
  $region2: #{res_block_forward.4} parent=0 // loop_pre_header
    _
  $region3: #{res_block_forward.4} parent=0 // loop_header
    %s12 = sphi 0, %s16
    %p13 = scmp.ge.s32.totalorder %s12, 4
    %s22 = sphi 0, %s24
    %s25 = sphi 0, %s22
    %s26 = sphi 0, %s25
    %s42 = sphi 0, %s26
    %s46 = sphi 0, %s46
    %s48 = sphi 0, %s46
    %s49 = sphi 0, %s48
    %s63 = sphi 0, %s49
    %s67 = sphi 0, %s67
    %s69 = sphi 0, %s67
    %s70 = sphi 0, %s69
    %s84 = sphi 0, %s70
    %s88 = sphi 0, %s88
    %s90 = sphi 0, %s88
    %s91 = sphi 0, %s90
    %s105 = sphi 0, %s91
    %s111 = sphi 0, %s113
    %s114 = sphi 0, %s111
    %s115 = sphi 0, %s114
    %s131 = sphi 0, %s115
    %s137 = sphi 0, %s139
    %s140 = sphi 0, %s137
    %s141 = sphi 0, %s140
    %s157 = sphi 0, %s141
  $region4: #{res_block_forward.4} parent=0 // loop_header_branch
    %15 = sbr.rel (%p13) target = $region8
  $region5: #{res_block_forward.4} parent=0 // loop_body
    %s17 = ssub.s32 %s12, 1
    %s18 = ssub.s32 %s12, 2
    %s19 = sadd.s32 %s12, 1
    %s20 = ssub.s32 %s12, %s19
    %p21 = scmp.eq.s32.totalorder %s20, 0
    %s23 = sadd.s32 %s22, 1
    %s24 = scalar_select %p21, %s22, %s23
    %p27 = pneg %p21
    %p28 = scmp.eq.s32.totalorder %s12, 1
    %p29 = por %p27, %p28
    %p30 = scmp.ne.s32.totalorder %s22, %s25
    %p31 = scmp.eq.s32.totalorder %s12, 0
    %p32 = por %p30, %p31
    %p33 = scmp.ne.s32.totalorder %s22, %s25
    %p34 = scmp.eq.s32.totalorder %s17, 1
    %p35 = por %p33, %p34
    %p36 = scmp.ne.s32.totalorder %s25, %s26
    %p37 = scmp.eq.s32.totalorder %s17, 0
    %p38 = por %p36, %p37
    %p39 = scmp.ne.s32.totalorder %s25, %s26
    %p40 = scmp.eq.s32.totalorder %s18, 1
    %p41 = por %p39, %p40
    %p43 = scmp.ne.s32.totalorder %s26, %s42
    %p44 = scmp.eq.s32.totalorder %s18, 0
    %p45 = por %p43, %p44
    %s47 = sadd.s32 %s46, 1
    %p50 = scmp.eq.s32.totalorder %s12, 1
    %p51 = scmp.ne.s32.totalorder %s46, %s48
    %p52 = scmp.eq.s32.totalorder %s12, 0
    %p53 = por %p51, %p52
    %p54 = scmp.ne.s32.totalorder %s46, %s48
    %p55 = scmp.eq.s32.totalorder %s17, 1
    %p56 = por %p54, %p55
    %p57 = scmp.ne.s32.totalorder %s48, %s49
    %p58 = scmp.eq.s32.totalorder %s17, 0
    %p59 = por %p57, %p58
    %p60 = scmp.ne.s32.totalorder %s48, %s49
    %p61 = scmp.eq.s32.totalorder %s18, 1
    %p62 = por %p60, %p61
    %p64 = scmp.ne.s32.totalorder %s49, %s63
    %p65 = scmp.eq.s32.totalorder %s18, 0
    %p66 = por %p64, %p65
    %s68 = sadd.s32 %s67, 1
    %p71 = scmp.eq.s32.totalorder %s12, 1
    %p72 = scmp.ne.s32.totalorder %s67, %s69
    %p73 = scmp.eq.s32.totalorder %s12, 0
    %p74 = por %p72, %p73
    %p75 = scmp.ne.s32.totalorder %s67, %s69
    %p76 = scmp.eq.s32.totalorder %s17, 1
    %p77 = por %p75, %p76
    %p78 = scmp.ne.s32.totalorder %s69, %s70
    %p79 = scmp.eq.s32.totalorder %s17, 0
    %p80 = por %p78, %p79
    %p81 = scmp.ne.s32.totalorder %s69, %s70
    %p82 = scmp.eq.s32.totalorder %s18, 1
    %p83 = por %p81, %p82
    %p85 = scmp.ne.s32.totalorder %s70, %s84
    %p86 = scmp.eq.s32.totalorder %s18, 0
    %p87 = por %p85, %p86
    %s89 = sadd.s32 %s88, 1
    %p92 = scmp.eq.s32.totalorder %s12, 1
    %p93 = scmp.ne.s32.totalorder %s88, %s90
    %p94 = scmp.eq.s32.totalorder %s12, 0
    %p95 = por %p93, %p94
    %p96 = scmp.ne.s32.totalorder %s88, %s90
    %p97 = scmp.eq.s32.totalorder %s17, 1
    %p98 = por %p96, %p97
    %p99 = scmp.ne.s32.totalorder %s90, %s91
    %p100 = scmp.eq.s32.totalorder %s17, 0
    %p101 = por %p99, %p100
    %p102 = scmp.ne.s32.totalorder %s90, %s91
    %p103 = scmp.eq.s32.totalorder %s18, 1
    %p104 = por %p102, %p103
    %p106 = scmp.ne.s32.totalorder %s91, %s105
    %p107 = scmp.eq.s32.totalorder %s18, 0
    %p108 = por %p106, %p107
    %s109 = ssub.s32 %s12, %s19
    %p110 = scmp.eq.s32.totalorder %s109, 0
    %s112 = sadd.s32 %s111, 1
    %s113 = scalar_select %p110, %s111, %s112
    %p116 = pneg %p110
    %p117 = scmp.eq.s32.totalorder %s12, 1
    %p118 = por %p116, %p117
    %p119 = scmp.ne.s32.totalorder %s111, %s114
    %p120 = scmp.eq.s32.totalorder %s12, 0
    %p121 = por %p119, %p120
    %p122 = scmp.ne.s32.totalorder %s111, %s114
    %p123 = scmp.eq.s32.totalorder %s17, 1
    %p124 = por %p122, %p123
    %p125 = scmp.ne.s32.totalorder %s114, %s115
    %p126 = scmp.eq.s32.totalorder %s17, 0
    %p127 = por %p125, %p126
    %p128 = scmp.ne.s32.totalorder %s114, %s115
    %p129 = scmp.eq.s32.totalorder %s18, 1
    %p130 = por %p128, %p129
    %p132 = scmp.ne.s32.totalorder %s115, %s131
    %p133 = scmp.eq.s32.totalorder %s18, 0
    %p134 = por %p132, %p133
    %s135 = ssub.s32 %s12, %s19
    %p136 = scmp.eq.s32.totalorder %s135, 0
    %s138 = sadd.s32 %s137, 1
    %s139 = scalar_select %p136, %s137, %s138
    %p142 = pneg %p136
    %p143 = scmp.eq.s32.totalorder %s12, 1
    %p144 = por %p142, %p143
    %p145 = scmp.ne.s32.totalorder %s137, %s140
    %p146 = scmp.eq.s32.totalorder %s12, 0
    %p147 = por %p145, %p146
    %p148 = scmp.ne.s32.totalorder %s137, %s140
    %p149 = scmp.eq.s32.totalorder %s17, 1
    %p150 = por %p148, %p149
    %p151 = scmp.ne.s32.totalorder %s140, %s141
    %p152 = scmp.eq.s32.totalorder %s17, 0
    %p153 = por %p151, %p152
    %p154 = scmp.ne.s32.totalorder %s140, %s141
    %p155 = scmp.eq.s32.totalorder %s18, 1
    %p156 = por %p154, %p155
    %p158 = scmp.ne.s32.totalorder %s141, %s157
    %p159 = scmp.eq.s32.totalorder %s18, 0
    %p160 = por %p158, %p159
    %p161 = scmp.le.s32.totalorder 1, %s12
    %p162 = scmp.lt.s32.totalorder %s12, 3
    %p163 = pnand %p161, %p162
    %p164 = pneg %p163
    // Predicated region
    $region9: #{res_block_forward.4} parent=5 // pred_check
      _
    $region10: #{res_block_forward.4} parent=5 // pred_check_branch
      %166 = sbr.rel (%p163) target = $region12
    $region11: #{res_block_forward.4} parent=5 // pred_region
      %s167 = ssub.s32 %s12, 1
      // Predicated region
      $region13: #{res_block_forward.4} parent=11 // pred_check
        %p168 = pneg %p59
      $region14: #{res_block_forward.4} parent=11 // pred_check_branch
        %170 = sbr.rel (%p168) target = $region16
      $region15: #{res_block_forward.4} parent=11 // pred_region
        _
      $region16: #{res_block_forward.4} parent=11 // pred_fallthru
        _
      // Predicated region
      $region17: #{res_block_forward.4} parent=11 // pred_check
        %p171 = pneg %p80
      $region18: #{res_block_forward.4} parent=11 // pred_check_branch
        %173 = sbr.rel (%p171) target = $region20
      $region19: #{res_block_forward.4} parent=11 // pred_region
        _
      $region20: #{res_block_forward.4} parent=11 // pred_fallthru
        _
      // Predicated region
      $region21: #{res_block_forward.4} parent=11 // pred_check
        %p174 = pneg %p101
      $region22: #{res_block_forward.4} parent=11 // pred_check_branch
        %176 = sbr.rel (%p174) target = $region24
      $region23: #{res_block_forward.4} parent=11 // pred_region
        _
      $region24: #{res_block_forward.4} parent=11 // pred_fallthru
        _
    $region12: #{res_block_forward.4} parent=5 // pred_fallthru
      _
    %p177 = scmp.lt.s32.totalorder %s12, 2
    // Predicated region
    $region25: #{res_block_forward.4} parent=5 // pred_check
      %p178 = pneg %p177
    $region26: #{res_block_forward.4} parent=5 // pred_check_branch
      %180 = sbr.rel (%p178) target = $region28
    $region27: #{res_block_forward.4} parent=5 // pred_region
      // Predicated region
      $region29: #{res_block_forward.4} parent=27 // pred_check
        %p181 = pneg %p32
      $region30: #{res_block_forward.4} parent=27 // pred_check_branch
        %183 = sbr.rel (%p181) target = $region32
      $region31: #{res_block_forward.4} parent=27 // pred_region
        %p184 = scmp.lt.s32.totalorder %s12, 1
        %s185 = scalar_select %p184, %s12, 1
        %s186 = smul.addr %s185, 64
        %s187 = smul.addr %s186, 4
        %s188 = scalar_lea.vmem %s0, %s187
      $region32: #{res_block_forward.4} parent=27 // pred_fallthru
        _
    $region28: #{res_block_forward.4} parent=5 // pred_fallthru
      _
    %p189 = scmp.le.s32.totalorder 1, %s12
    %p190 = scmp.lt.s32.totalorder %s12, 3
    %p191 = pnand %p189, %p190
    %p192 = pneg %p191
    // Predicated region
    $region33: #{res_block_forward.4} parent=5 // pred_check
      _
    $region34: #{res_block_forward.4} parent=5 // pred_check_branch
      %194 = sbr.rel (%p191) target = $region36
    $region35: #{res_block_forward.4} parent=5 // pred_region
      %s195 = ssub.s32 %s12, 1
      %p196 = scmp.lt.s32.totalorder %s17, 1
      %s197 = scalar_select %p196, %s17, 1
      %s198 = smul.addr %s197, 64
      %s199 = smul.addr %s198, 4
      %s200 = scalar_lea.vmem %s0, %s199
      %p201 = pneg %p38
      %p202 = pneg %p35
      %p203 = pneg %p59
      %p204 = pneg %p56
      %p205 = pneg %p80
      %p206 = pneg %p77
      %p207 = pneg %p101
      %p208 = pneg %p98
      %p209 = pneg %p127
      %p210 = pneg %p124
      %p211 = scmp.lt.s32.totalorder %s17, 1
      %s212 = scalar_select %p211, %s17, 1
      %s213 = smul.addr %s212, 32
      %s214 = smul.addr %s213, 4
      %s215 = scalar_lea.vmem %s4, %s214
      %p216 = pneg %p153
      %p217 = pneg %p150
      %p218 = scmp.lt.s32.totalorder %s17, 1
      %s219 = scalar_select %p218, %s17, 1
      %s220 = smul.addr %s219, 2
      %s221 = scalar_lea.vmem %s5, %s220
      %p222 = scmp.lt.s32.totalorder %s17, 1
      %s223 = scalar_select %p222, %s17, 1
      %s224 = smul.addr %s223, 64
      %s225 = smul.addr %s224, 4
      %s226 = scalar_lea.vmem %s0, %s225
      %p227 = scmp.lt.s32.totalorder %s17, 1
      %s228 = scalar_select %p227, %s17, 1
      %s229 = smul.addr %s228, 32
      %s230 = smul.addr %s229, 4
      %s231 = scalar_lea.vmem %s4, %s230
      %p232 = scmp.lt.s32.totalorder %s17, 1
      %s233 = scalar_select %p232, %s17, 1
      %s234 = smul.addr %s233, 2
      %s235 = scalar_lea.vmem %s5, %s234
      %v237 = vld [vmem:[%s226] sm:$0xff]
      %v238 = vld [vmem:[%s226 + $0x8] sm:$0xff]
      %v239 = vld [vmem:[%s226 + $0x10] sm:$0xff]
      %v240 = vld [vmem:[%s226 + $0x18] sm:$0xff]
      %v241 = vld [vmem:[%s226 + $0x20] sm:$0xff]
      %v242 = vld [vmem:[%s226 + $0x28] sm:$0xff]
      %v243 = vld [vmem:[%s226 + $0x30] sm:$0xff]
      %v244 = vld [vmem:[%s226 + $0x38] sm:$0xff]
      %v245 = vld [vmem:[%s226 + $0x40] sm:$0xff]
      %v246 = vld [vmem:[%s226 + $0x48] sm:$0xff]
      %v247 = vld [vmem:[%s226 + $0x50] sm:$0xff]
      %v248 = vld [vmem:[%s226 + $0x58] sm:$0xff]
      %v249 = vld [vmem:[%s226 + $0x60] sm:$0xff]
      %v250 = vld [vmem:[%s226 + $0x68] sm:$0xff]
      %v251 = vld [vmem:[%s226 + $0x70] sm:$0xff]
      %v252 = vld [vmem:[%s226 + $0x78] sm:$0xff]
      %v253 = vld [vmem:[%s226 + $0x80] sm:$0xff]
      %v254 = vld [vmem:[%s226 + $0x88] sm:$0xff]
      %v255 = vld [vmem:[%s226 + $0x90] sm:$0xff]
      %v256 = vld [vmem:[%s226 + $0x98] sm:$0xff]
      %v257 = vld [vmem:[%s226 + $0xa0] sm:$0xff]
      %v258 = vld [vmem:[%s226 + $0xa8] sm:$0xff]
      %v259 = vld [vmem:[%s226 + $0xb0] sm:$0xff]
      %v260 = vld [vmem:[%s226 + $0xb8] sm:$0xff]
      %v261 = vld [vmem:[%s226 + $0xc0] sm:$0xff]
      %v262 = vld [vmem:[%s226 + $0xc8] sm:$0xff]
      %v263 = vld [vmem:[%s226 + $0xd0] sm:$0xff]
      %v264 = vld [vmem:[%s226 + $0xd8] sm:$0xff]
      %v265 = vld [vmem:[%s226 + $0xe0] sm:$0xff]
      %v266 = vld [vmem:[%s226 + $0xe8] sm:$0xff]
      %v267 = vld [vmem:[%s226 + $0xf0] sm:$0xff]
      %v268 = vld [vmem:[%s226 + $0xf8] sm:$0xff]
      %v269 = vunpack.c.l.bf16 %v237
      %v270 = vunpack.c.h.bf16 %v237
      %v271 = vunpack.c.l.bf16 %v238
      %v272 = vunpack.c.h.bf16 %v238
      %v273 = vunpack.c.l.bf16 %v239
      %v274 = vunpack.c.h.bf16 %v239
      %v275 = vunpack.c.l.bf16 %v240
      %v276 = vunpack.c.h.bf16 %v240
      %v277 = vunpack.c.l.bf16 %v241
      %v278 = vunpack.c.h.bf16 %v241
      %v279 = vunpack.c.l.bf16 %v242
      %v280 = vunpack.c.h.bf16 %v242
      %v281 = vunpack.c.l.bf16 %v243
      %v282 = vunpack.c.h.bf16 %v243
      %v283 = vunpack.c.l.bf16 %v244
      %v284 = vunpack.c.h.bf16 %v244
      %v285 = vunpack.c.l.bf16 %v245
      %v286 = vunpack.c.h.bf16 %v245
      %v287 = vunpack.c.l.bf16 %v246
      %v288 = vunpack.c.h.bf16 %v246
      %v289 = vunpack.c.l.bf16 %v247
      %v290 = vunpack.c.h.bf16 %v247
      %v291 = vunpack.c.l.bf16 %v248
      %v292 = vunpack.c.h.bf16 %v248
      %v293 = vunpack.c.l.bf16 %v249
      %v294 = vunpack.c.h.bf16 %v249
      %v295 = vunpack.c.l.bf16 %v250
      %v296 = vunpack.c.h.bf16 %v250
      %v297 = vunpack.c.l.bf16 %v251
      %v298 = vunpack.c.h.bf16 %v251
      %v299 = vunpack.c.l.bf16 %v252
      %v300 = vunpack.c.h.bf16 %v252
      %v301 = vunpack.c.l.bf16 %v253
      %v302 = vunpack.c.h.bf16 %v253
      %v303 = vunpack.c.l.bf16 %v254
      %v304 = vunpack.c.h.bf16 %v254
      %v305 = vunpack.c.l.bf16 %v255
      %v306 = vunpack.c.h.bf16 %v255
      %v307 = vunpack.c.l.bf16 %v256
      %v308 = vunpack.c.h.bf16 %v256
      %v309 = vunpack.c.l.bf16 %v257
      %v310 = vunpack.c.h.bf16 %v257
      %v311 = vunpack.c.l.bf16 %v258
      %v312 = vunpack.c.h.bf16 %v258
      %v313 = vunpack.c.l.bf16 %v259
      %v314 = vunpack.c.h.bf16 %v259
      %v315 = vunpack.c.l.bf16 %v260
      %v316 = vunpack.c.h.bf16 %v260
      %v317 = vunpack.c.l.bf16 %v261
      %v318 = vunpack.c.h.bf16 %v261
      %v319 = vunpack.c.l.bf16 %v262
      %v320 = vunpack.c.h.bf16 %v262
      %v321 = vunpack.c.l.bf16 %v263
      %v322 = vunpack.c.h.bf16 %v263
      %v323 = vunpack.c.l.bf16 %v264
      %v324 = vunpack.c.h.bf16 %v264
      %v325 = vunpack.c.l.bf16 %v265
      %v326 = vunpack.c.h.bf16 %v265
      %v327 = vunpack.c.l.bf16 %v266
      %v328 = vunpack.c.h.bf16 %v266
      %v329 = vunpack.c.l.bf16 %v267
      %v330 = vunpack.c.h.bf16 %v267
      %v331 = vunpack.c.l.bf16 %v268
      %v332 = vunpack.c.h.bf16 %v268
      %v333 = vld [vmem:[%s1] sm:$0x3]
      %v335 = vperm.slane %v333, 0
      %v336 = vperm.slane %v333, 1
      %v339 = vmul.f32 %v269, %v335
      %v340 = vmul.f32 %v270, %v336
      %v341 = vmul.f32 %v271, %v335
      %v342 = vmul.f32 %v272, %v336
      %v343 = vmul.f32 %v273, %v335
      %v344 = vmul.f32 %v274, %v336
      %v345 = vmul.f32 %v275, %v335
      %v346 = vmul.f32 %v276, %v336
      %v347 = vmul.f32 %v277, %v335
      %v348 = vmul.f32 %v278, %v336
      %v349 = vmul.f32 %v279, %v335
      %v350 = vmul.f32 %v280, %v336
      %v351 = vmul.f32 %v281, %v335
      %v352 = vmul.f32 %v282, %v336
      %v353 = vmul.f32 %v283, %v335
      %v354 = vmul.f32 %v284, %v336
      %v355 = vmul.f32 %v285, %v335
      %v356 = vmul.f32 %v286, %v336
      %v357 = vmul.f32 %v287, %v335
      %v358 = vmul.f32 %v288, %v336
      %v359 = vmul.f32 %v289, %v335
      %v360 = vmul.f32 %v290, %v336
      %v361 = vmul.f32 %v291, %v335
      %v362 = vmul.f32 %v292, %v336
      %v363 = vmul.f32 %v293, %v335
      %v364 = vmul.f32 %v294, %v336
      %v365 = vmul.f32 %v295, %v335
      %v366 = vmul.f32 %v296, %v336
      %v367 = vmul.f32 %v297, %v335
      %v368 = vmul.f32 %v298, %v336
      %v369 = vmul.f32 %v299, %v335
      %v370 = vmul.f32 %v300, %v336
      %v371 = vmul.f32 %v301, %v335
      %v372 = vmul.f32 %v302, %v336
      %v373 = vmul.f32 %v303, %v335
      %v374 = vmul.f32 %v304, %v336
      %v375 = vmul.f32 %v305, %v335
      %v376 = vmul.f32 %v306, %v336
      %v377 = vmul.f32 %v307, %v335
      %v378 = vmul.f32 %v308, %v336
      %v379 = vmul.f32 %v309, %v335
      %v380 = vmul.f32 %v310, %v336
      %v381 = vmul.f32 %v311, %v335
      %v382 = vmul.f32 %v312, %v336
      %v383 = vmul.f32 %v313, %v335
      %v384 = vmul.f32 %v314, %v336
      %v385 = vmul.f32 %v315, %v335
      %v386 = vmul.f32 %v316, %v336
      %v387 = vmul.f32 %v317, %v335
      %v388 = vmul.f32 %v318, %v336
      %v389 = vmul.f32 %v319, %v335
      %v390 = vmul.f32 %v320, %v336
      %v391 = vmul.f32 %v321, %v335
      %v392 = vmul.f32 %v322, %v336
      %v393 = vmul.f32 %v323, %v335
      %v394 = vmul.f32 %v324, %v336
      %v395 = vmul.f32 %v325, %v335
      %v396 = vmul.f32 %v326, %v336
      %v397 = vmul.f32 %v327, %v335
      %v398 = vmul.f32 %v328, %v336
      %v399 = vmul.f32 %v329, %v335
      %v400 = vmul.f32 %v330, %v336
      %v401 = vmul.f32 %v331, %v335
      %v402 = vmul.f32 %v332, %v336
      %v403 = vld [vmem:[%s2] sm:$0x3]
      %v405 = vperm.slane %v403, 0
      %v406 = vperm.slane %v403, 1
      %v409 = vadd.f32 %v339, %v405
      %v410 = vadd.f32 %v340, %v406
      %v411 = vadd.f32 %v341, %v405
      %v412 = vadd.f32 %v342, %v406
      %v413 = vadd.f32 %v343, %v405
      %v414 = vadd.f32 %v344, %v406
      %v415 = vadd.f32 %v345, %v405
      %v416 = vadd.f32 %v346, %v406
      %v417 = vadd.f32 %v347, %v405
      %v418 = vadd.f32 %v348, %v406
      %v419 = vadd.f32 %v349, %v405
      %v420 = vadd.f32 %v350, %v406
      %v421 = vadd.f32 %v351, %v405
      %v422 = vadd.f32 %v352, %v406
      %v423 = vadd.f32 %v353, %v405
      %v424 = vadd.f32 %v354, %v406
      %v425 = vadd.f32 %v355, %v405
      %v426 = vadd.f32 %v356, %v406
      %v427 = vadd.f32 %v357, %v405
      %v428 = vadd.f32 %v358, %v406
      %v429 = vadd.f32 %v359, %v405
      %v430 = vadd.f32 %v360, %v406
      %v431 = vadd.f32 %v361, %v405
      %v432 = vadd.f32 %v362, %v406
      %v433 = vadd.f32 %v363, %v405
      %v434 = vadd.f32 %v364, %v406
      %v435 = vadd.f32 %v365, %v405
      %v436 = vadd.f32 %v366, %v406
      %v437 = vadd.f32 %v367, %v405
      %v438 = vadd.f32 %v368, %v406
      %v439 = vadd.f32 %v369, %v405
      %v440 = vadd.f32 %v370, %v406
      %v441 = vadd.f32 %v371, %v405
      %v442 = vadd.f32 %v372, %v406
      %v443 = vadd.f32 %v373, %v405
      %v444 = vadd.f32 %v374, %v406
      %v445 = vadd.f32 %v375, %v405
      %v446 = vadd.f32 %v376, %v406
      %v447 = vadd.f32 %v377, %v405
      %v448 = vadd.f32 %v378, %v406
      %v449 = vadd.f32 %v379, %v405
      %v450 = vadd.f32 %v380, %v406
      %v451 = vadd.f32 %v381, %v405
      %v452 = vadd.f32 %v382, %v406
      %v453 = vadd.f32 %v383, %v405
      %v454 = vadd.f32 %v384, %v406
      %v455 = vadd.f32 %v385, %v405
      %v456 = vadd.f32 %v386, %v406
      %v457 = vadd.f32 %v387, %v405
      %v458 = vadd.f32 %v388, %v406
      %v459 = vadd.f32 %v389, %v405
      %v460 = vadd.f32 %v390, %v406
      %v461 = vadd.f32 %v391, %v405
      %v462 = vadd.f32 %v392, %v406
      %v463 = vadd.f32 %v393, %v405
      %v464 = vadd.f32 %v394, %v406
      %v465 = vadd.f32 %v395, %v405
      %v466 = vadd.f32 %v396, %v406
      %v467 = vadd.f32 %v397, %v405
      %v468 = vadd.f32 %v398, %v406
      %v469 = vadd.f32 %v399, %v405
      %v470 = vadd.f32 %v400, %v406
      %v471 = vadd.f32 %v401, %v405
      %v472 = vadd.f32 %v402, %v406
      %v473 = vxor.u32 %v410, 2147483648
      %v474 = vxor.u32 %v412, 2147483648
      %v475 = vxor.u32 %v414, 2147483648
      %v476 = vxor.u32 %v416, 2147483648
      %v477 = vxor.u32 %v418, 2147483648
      %v478 = vxor.u32 %v420, 2147483648
      %v479 = vxor.u32 %v422, 2147483648
      %v480 = vxor.u32 %v424, 2147483648
      %v481 = vxor.u32 %v426, 2147483648
      %v482 = vxor.u32 %v428, 2147483648
      %v483 = vxor.u32 %v430, 2147483648
      %v484 = vxor.u32 %v432, 2147483648
      %v485 = vxor.u32 %v434, 2147483648
      %v486 = vxor.u32 %v436, 2147483648
      %v487 = vxor.u32 %v438, 2147483648
      %v488 = vxor.u32 %v440, 2147483648
      %v489 = vxor.u32 %v442, 2147483648
      %v490 = vxor.u32 %v444, 2147483648
      %v491 = vxor.u32 %v446, 2147483648
      %v492 = vxor.u32 %v448, 2147483648
      %v493 = vxor.u32 %v450, 2147483648
      %v494 = vxor.u32 %v452, 2147483648
      %v495 = vxor.u32 %v454, 2147483648
      %v496 = vxor.u32 %v456, 2147483648
      %v497 = vxor.u32 %v458, 2147483648
      %v498 = vxor.u32 %v460, 2147483648
      %v499 = vxor.u32 %v462, 2147483648
      %v500 = vxor.u32 %v464, 2147483648
      %v501 = vxor.u32 %v466, 2147483648
      %v502 = vxor.u32 %v468, 2147483648
      %v503 = vxor.u32 %v470, 2147483648
      %v504 = vxor.u32 %v472, 2147483648
      %v505 = vmul.f32 %v473, 1.442695
      %v506 = vpow.pop %v505
      %v507 = vmul.f32 %v474, 1.442695
      %v508 = vpow.pop %v507
      %v509 = vmul.f32 %v475, 1.442695
      %v510 = vpow.pop %v509
      %v511 = vmul.f32 %v476, 1.442695
      %v512 = vpow.pop %v511
      %v513 = vmul.f32 %v477, 1.442695
      %v514 = vpow.pop %v513
      %v515 = vmul.f32 %v478, 1.442695
      %v516 = vpow.pop %v515
      %v517 = vmul.f32 %v479, 1.442695
      %v518 = vpow.pop %v517
      %v519 = vmul.f32 %v480, 1.442695
      %v520 = vpow.pop %v519
      %v521 = vmul.f32 %v481, 1.442695
      %v522 = vpow.pop %v521
      %v523 = vmul.f32 %v482, 1.442695
      %v524 = vpow.pop %v523
      %v525 = vmul.f32 %v483, 1.442695
      %v526 = vpow.pop %v525
      %v527 = vmul.f32 %v484, 1.442695
      %v528 = vpow.pop %v527
      %v529 = vmul.f32 %v485, 1.442695
      %v530 = vpow.pop %v529
      %v531 = vmul.f32 %v486, 1.442695
      %v532 = vpow.pop %v531
      %v533 = vmul.f32 %v487, 1.442695
      %v534 = vpow.pop %v533
      %v535 = vmul.f32 %v488, 1.442695
      %v536 = vpow.pop %v535
      %v537 = vmul.f32 %v489, 1.442695
      %v538 = vpow.pop %v537
      %v539 = vmul.f32 %v490, 1.442695
      %v540 = vpow.pop %v539
      %v541 = vmul.f32 %v491, 1.442695
      %v542 = vpow.pop %v541
      %v543 = vmul.f32 %v492, 1.442695
      %v544 = vpow.pop %v543
      %v545 = vmul.f32 %v493, 1.442695
      %v546 = vpow.pop %v545
      %v547 = vmul.f32 %v494, 1.442695
      %v548 = vpow.pop %v547
      %v549 = vmul.f32 %v495, 1.442695
      %v550 = vpow.pop %v549
      %v551 = vmul.f32 %v496, 1.442695
      %v552 = vpow.pop %v551
      %v553 = vmul.f32 %v497, 1.442695
      %v554 = vpow.pop %v553
      %v555 = vmul.f32 %v498, 1.442695
      %v556 = vpow.pop %v555
      %v557 = vmul.f32 %v499, 1.442695
      %v558 = vpow.pop %v557
      %v559 = vmul.f32 %v500, 1.442695
      %v560 = vpow.pop %v559
      %v561 = vmul.f32 %v501, 1.442695
      %v562 = vpow.pop %v561
      %v563 = vmul.f32 %v502, 1.442695
      %v564 = vpow.pop %v563
      %v565 = vmul.f32 %v503, 1.442695
      %v566 = vpow.pop %v565
      %v567 = vmul.f32 %v504, 1.442695
      %v568 = vpow.pop %v567
      %v569 = vadd.f32 %v506, 1.0
      %v570 = vadd.f32 %v508, 1.0
      %v571 = vadd.f32 %v510, 1.0
      %v572 = vadd.f32 %v512, 1.0
      %v573 = vadd.f32 %v514, 1.0
      %v574 = vadd.f32 %v516, 1.0
      %v575 = vadd.f32 %v518, 1.0
      %v576 = vadd.f32 %v520, 1.0
      %v577 = vadd.f32 %v522, 1.0
      %v578 = vadd.f32 %v524, 1.0
      %v579 = vadd.f32 %v526, 1.0
      %v580 = vadd.f32 %v528, 1.0
      %v581 = vadd.f32 %v530, 1.0
      %v582 = vadd.f32 %v532, 1.0
      %v583 = vadd.f32 %v534, 1.0
      %v584 = vadd.f32 %v536, 1.0
      %v585 = vadd.f32 %v538, 1.0
      %v586 = vadd.f32 %v540, 1.0
      %v587 = vadd.f32 %v542, 1.0
      %v588 = vadd.f32 %v544, 1.0
      %v589 = vadd.f32 %v546, 1.0
      %v590 = vadd.f32 %v548, 1.0
      %v591 = vadd.f32 %v550, 1.0
      %v592 = vadd.f32 %v552, 1.0
      %v593 = vadd.f32 %v554, 1.0
      %v594 = vadd.f32 %v556, 1.0
      %v595 = vadd.f32 %v558, 1.0
      %v596 = vadd.f32 %v560, 1.0
      %v597 = vadd.f32 %v562, 1.0
      %v598 = vadd.f32 %v564, 1.0
      %v599 = vadd.f32 %v566, 1.0
      %v600 = vadd.f32 %v568, 1.0
      %v601 = vrcp.pop %v569
      %v602 = vmul.f32 %v569, %v601
      %v603 = vsub.f32 1.0, %v602
      %v604 = vmul.f32 %v601, %v603
      %v605 = vadd.f32 %v601, %v604
      %vm606 = vweird.f32 %v569
      %vm607 = vweird.f32 %v601
      %vm608 = vmor %vm606, %vm607
      %v609 = vsel %vm608, %v601, %v605
      %v610 = vand.u32 2147483647, %v569
      %vm611 = vcmp.eq.f32.partialorder %v610, 8.507059e+37
      %v612 = vand.u32 %v569, 2147483648
      %v613 = vor.u32 1.1754944e-38, %v612
      %v614 = vsel %vm611, %v613, %v609
      %v615 = vmul.f32 1.0, %v614
      %v616 = vrcp.pop %v570
      %v617 = vmul.f32 %v570, %v616
      %v618 = vsub.f32 1.0, %v617
      %v619 = vmul.f32 %v616, %v618
      %v620 = vadd.f32 %v616, %v619
      %vm621 = vweird.f32 %v570
      %vm622 = vweird.f32 %v616
      %vm623 = vmor %vm621, %vm622
      %v624 = vsel %vm623, %v616, %v620
      %v625 = vand.u32 2147483647, %v570
      %vm626 = vcmp.eq.f32.partialorder %v625, 8.507059e+37
      %v627 = vand.u32 %v570, 2147483648
      %v628 = vor.u32 1.1754944e-38, %v627
      %v629 = vsel %vm626, %v628, %v624
      %v630 = vmul.f32 1.0, %v629
      %v631 = vrcp.pop %v571
      %v632 = vmul.f32 %v571, %v631
      %v633 = vsub.f32 1.0, %v632
      %v634 = vmul.f32 %v631, %v633
      %v635 = vadd.f32 %v631, %v634
      %vm636 = vweird.f32 %v571
      %vm637 = vweird.f32 %v631
      %vm638 = vmor %vm636, %vm637
      %v639 = vsel %vm638, %v631, %v635
      %v640 = vand.u32 2147483647, %v571
      %vm641 = vcmp.eq.f32.partialorder %v640, 8.507059e+37
      %v642 = vand.u32 %v571, 2147483648
      %v643 = vor.u32 1.1754944e-38, %v642
      %v644 = vsel %vm641, %v643, %v639
      %v645 = vmul.f32 1.0, %v644
      %v646 = vrcp.pop %v572
      %v647 = vmul.f32 %v572, %v646
      %v648 = vsub.f32 1.0, %v647
      %v649 = vmul.f32 %v646, %v648
      %v650 = vadd.f32 %v646, %v649
      %vm651 = vweird.f32 %v572
      %vm652 = vweird.f32 %v646
      %vm653 = vmor %vm651, %vm652
      %v654 = vsel %vm653, %v646, %v650
      %v655 = vand.u32 2147483647, %v572
      %vm656 = vcmp.eq.f32.partialorder %v655, 8.507059e+37
      %v657 = vand.u32 %v572, 2147483648
      %v658 = vor.u32 1.1754944e-38, %v657
      %v659 = vsel %vm656, %v658, %v654
      %v660 = vmul.f32 1.0, %v659
      %v661 = vrcp.pop %v573
      %v662 = vmul.f32 %v573, %v661
      %v663 = vsub.f32 1.0, %v662
      %v664 = vmul.f32 %v661, %v663
      %v665 = vadd.f32 %v661, %v664
      %vm666 = vweird.f32 %v573
      %vm667 = vweird.f32 %v661
      %vm668 = vmor %vm666, %vm667
      %v669 = vsel %vm668, %v661, %v665
      %v670 = vand.u32 2147483647, %v573
      %vm671 = vcmp.eq.f32.partialorder %v670, 8.507059e+37
      %v672 = vand.u32 %v573, 2147483648
      %v673 = vor.u32 1.1754944e-38, %v672
      %v674 = vsel %vm671, %v673, %v669
      %v675 = vmul.f32 1.0, %v674
      %v676 = vrcp.pop %v574
      %v677 = vmul.f32 %v574, %v676
      %v678 = vsub.f32 1.0, %v677
      %v679 = vmul.f32 %v676, %v678
      %v680 = vadd.f32 %v676, %v679
      %vm681 = vweird.f32 %v574
      %vm682 = vweird.f32 %v676
      %vm683 = vmor %vm681, %vm682
      %v684 = vsel %vm683, %v676, %v680
      %v685 = vand.u32 2147483647, %v574
      %vm686 = vcmp.eq.f32.partialorder %v685, 8.507059e+37
      %v687 = vand.u32 %v574, 2147483648
      %v688 = vor.u32 1.1754944e-38, %v687
      %v689 = vsel %vm686, %v688, %v684
      %v690 = vmul.f32 1.0, %v689
      %v691 = vrcp.pop %v575
      %v692 = vmul.f32 %v575, %v691
      %v693 = vsub.f32 1.0, %v692
      %v694 = vmul.f32 %v691, %v693
      %v695 = vadd.f32 %v691, %v694
      %vm696 = vweird.f32 %v575
      %vm697 = vweird.f32 %v691
      %vm698 = vmor %vm696, %vm697
      %v699 = vsel %vm698, %v691, %v695
      %v700 = vand.u32 2147483647, %v575
      %vm701 = vcmp.eq.f32.partialorder %v700, 8.507059e+37
      %v702 = vand.u32 %v575, 2147483648
      %v703 = vor.u32 1.1754944e-38, %v702
      %v704 = vsel %vm701, %v703, %v699
      %v705 = vmul.f32 1.0, %v704
      %v706 = vrcp.pop %v576
      %v707 = vmul.f32 %v576, %v706
      %v708 = vsub.f32 1.0, %v707
      %v709 = vmul.f32 %v706, %v708
      %v710 = vadd.f32 %v706, %v709
      %vm711 = vweird.f32 %v576
      %vm712 = vweird.f32 %v706
      %vm713 = vmor %vm711, %vm712
      %v714 = vsel %vm713, %v706, %v710
      %v715 = vand.u32 2147483647, %v576
      %vm716 = vcmp.eq.f32.partialorder %v715, 8.507059e+37
      %v717 = vand.u32 %v576, 2147483648
      %v718 = vor.u32 1.1754944e-38, %v717
      %v719 = vsel %vm716, %v718, %v714
      %v720 = vmul.f32 1.0, %v719
      %v721 = vrcp.pop %v577
      %v722 = vmul.f32 %v577, %v721
      %v723 = vsub.f32 1.0, %v722
      %v724 = vmul.f32 %v721, %v723
      %v725 = vadd.f32 %v721, %v724
      %vm726 = vweird.f32 %v577
      %vm727 = vweird.f32 %v721
      %vm728 = vmor %vm726, %vm727
      %v729 = vsel %vm728, %v721, %v725
      %v730 = vand.u32 2147483647, %v577
      %vm731 = vcmp.eq.f32.partialorder %v730, 8.507059e+37
      %v732 = vand.u32 %v577, 2147483648
      %v733 = vor.u32 1.1754944e-38, %v732
      %v734 = vsel %vm731, %v733, %v729
      %v735 = vmul.f32 1.0, %v734
      %v736 = vrcp.pop %v578
      %v737 = vmul.f32 %v578, %v736
      %v738 = vsub.f32 1.0, %v737
      %v739 = vmul.f32 %v736, %v738
      %v740 = vadd.f32 %v736, %v739
      %vm741 = vweird.f32 %v578
      %vm742 = vweird.f32 %v736
      %vm743 = vmor %vm741, %vm742
      %v744 = vsel %vm743, %v736, %v740
      %v745 = vand.u32 2147483647, %v578
      %vm746 = vcmp.eq.f32.partialorder %v745, 8.507059e+37
      %v747 = vand.u32 %v578, 2147483648
      %v748 = vor.u32 1.1754944e-38, %v747
      %v749 = vsel %vm746, %v748, %v744
      %v750 = vmul.f32 1.0, %v749
      %v751 = vrcp.pop %v579
      %v752 = vmul.f32 %v579, %v751
      %v753 = vsub.f32 1.0, %v752
      %v754 = vmul.f32 %v751, %v753
      %v755 = vadd.f32 %v751, %v754
      %vm756 = vweird.f32 %v579
      %vm757 = vweird.f32 %v751
      %vm758 = vmor %vm756, %vm757
      %v759 = vsel %vm758, %v751, %v755
      %v760 = vand.u32 2147483647, %v579
      %vm761 = vcmp.eq.f32.partialorder %v760, 8.507059e+37
      %v762 = vand.u32 %v579, 2147483648
      %v763 = vor.u32 1.1754944e-38, %v762
      %v764 = vsel %vm761, %v763, %v759
      %v765 = vmul.f32 1.0, %v764
      %v766 = vrcp.pop %v580
      %v767 = vmul.f32 %v580, %v766
      %v768 = vsub.f32 1.0, %v767
      %v769 = vmul.f32 %v766, %v768
      %v770 = vadd.f32 %v766, %v769
      %vm771 = vweird.f32 %v580
      %vm772 = vweird.f32 %v766
      %vm773 = vmor %vm771, %vm772
      %v774 = vsel %vm773, %v766, %v770
      %v775 = vand.u32 2147483647, %v580
      %vm776 = vcmp.eq.f32.partialorder %v775, 8.507059e+37
      %v777 = vand.u32 %v580, 2147483648
      %v778 = vor.u32 1.1754944e-38, %v777
      %v779 = vsel %vm776, %v778, %v774
      %v780 = vmul.f32 1.0, %v779
      %v781 = vrcp.pop %v581
      %v782 = vmul.f32 %v581, %v781
      %v783 = vsub.f32 1.0, %v782
      %v784 = vmul.f32 %v781, %v783
      %v785 = vadd.f32 %v781, %v784
      %vm786 = vweird.f32 %v581
      %vm787 = vweird.f32 %v781
      %vm788 = vmor %vm786, %vm787
      %v789 = vsel %vm788, %v781, %v785
      %v790 = vand.u32 2147483647, %v581
      %vm791 = vcmp.eq.f32.partialorder %v790, 8.507059e+37
      %v792 = vand.u32 %v581, 2147483648
      %v793 = vor.u32 1.1754944e-38, %v792
      %v794 = vsel %vm791, %v793, %v789
      %v795 = vmul.f32 1.0, %v794
      %v796 = vrcp.pop %v582
      %v797 = vmul.f32 %v582, %v796
      %v798 = vsub.f32 1.0, %v797
      %v799 = vmul.f32 %v796, %v798
      %v800 = vadd.f32 %v796, %v799
      %vm801 = vweird.f32 %v582
      %vm802 = vweird.f32 %v796
      %vm803 = vmor %vm801, %vm802
      %v804 = vsel %vm803, %v796, %v800
      %v805 = vand.u32 2147483647, %v582
      %vm806 = vcmp.eq.f32.partialorder %v805, 8.507059e+37
      %v807 = vand.u32 %v582, 2147483648
      %v808 = vor.u32 1.1754944e-38, %v807
      %v809 = vsel %vm806, %v808, %v804
      %v810 = vmul.f32 1.0, %v809
      %v811 = vrcp.pop %v583
      %v812 = vmul.f32 %v583, %v811
      %v813 = vsub.f32 1.0, %v812
      %v814 = vmul.f32 %v811, %v813
      %v815 = vadd.f32 %v811, %v814
      %vm816 = vweird.f32 %v583
      %vm817 = vweird.f32 %v811
      %vm818 = vmor %vm816, %vm817
      %v819 = vsel %vm818, %v811, %v815
      %v820 = vand.u32 2147483647, %v583
      %vm821 = vcmp.eq.f32.partialorder %v820, 8.507059e+37
      %v822 = vand.u32 %v583, 2147483648
      %v823 = vor.u32 1.1754944e-38, %v822
      %v824 = vsel %vm821, %v823, %v819
      %v825 = vmul.f32 1.0, %v824
      %v826 = vrcp.pop %v584
      %v827 = vmul.f32 %v584, %v826
      %v828 = vsub.f32 1.0, %v827
      %v829 = vmul.f32 %v826, %v828
      %v830 = vadd.f32 %v826, %v829
      %vm831 = vweird.f32 %v584
      %vm832 = vweird.f32 %v826
      %vm833 = vmor %vm831, %vm832
      %v834 = vsel %vm833, %v826, %v830
      %v835 = vand.u32 2147483647, %v584
      %vm836 = vcmp.eq.f32.partialorder %v835, 8.507059e+37
      %v837 = vand.u32 %v584, 2147483648
      %v838 = vor.u32 1.1754944e-38, %v837
      %v839 = vsel %vm836, %v838, %v834
      %v840 = vmul.f32 1.0, %v839
      %v841 = vrcp.pop %v585
      %v842 = vmul.f32 %v585, %v841
      %v843 = vsub.f32 1.0, %v842
      %v844 = vmul.f32 %v841, %v843
      %v845 = vadd.f32 %v841, %v844
      %vm846 = vweird.f32 %v585
      %vm847 = vweird.f32 %v841
      %vm848 = vmor %vm846, %vm847
      %v849 = vsel %vm848, %v841, %v845
      %v850 = vand.u32 2147483647, %v585
      %vm851 = vcmp.eq.f32.partialorder %v850, 8.507059e+37
      %v852 = vand.u32 %v585, 2147483648
      %v853 = vor.u32 1.1754944e-38, %v852
      %v854 = vsel %vm851, %v853, %v849
      %v855 = vmul.f32 1.0, %v854
      %v856 = vrcp.pop %v586
      %v857 = vmul.f32 %v586, %v856
      %v858 = vsub.f32 1.0, %v857
      %v859 = vmul.f32 %v856, %v858
      %v860 = vadd.f32 %v856, %v859
      %vm861 = vweird.f32 %v586
      %vm862 = vweird.f32 %v856
      %vm863 = vmor %vm861, %vm862
      %v864 = vsel %vm863, %v856, %v860
      %v865 = vand.u32 2147483647, %v586
      %vm866 = vcmp.eq.f32.partialorder %v865, 8.507059e+37
      %v867 = vand.u32 %v586, 2147483648
      %v868 = vor.u32 1.1754944e-38, %v867
      %v869 = vsel %vm866, %v868, %v864
      %v870 = vmul.f32 1.0, %v869
      %v871 = vrcp.pop %v587
      %v872 = vmul.f32 %v587, %v871
      %v873 = vsub.f32 1.0, %v872
      %v874 = vmul.f32 %v871, %v873
      %v875 = vadd.f32 %v871, %v874
      %vm876 = vweird.f32 %v587
      %vm877 = vweird.f32 %v871
      %vm878 = vmor %vm876, %vm877
      %v879 = vsel %vm878, %v871, %v875
      %v880 = vand.u32 2147483647, %v587
      %vm881 = vcmp.eq.f32.partialorder %v880, 8.507059e+37
      %v882 = vand.u32 %v587, 2147483648
      %v883 = vor.u32 1.1754944e-38, %v882
      %v884 = vsel %vm881, %v883, %v879
      %v885 = vmul.f32 1.0, %v884
      %v886 = vrcp.pop %v588
      %v887 = vmul.f32 %v588, %v886
      %v888 = vsub.f32 1.0, %v887
      %v889 = vmul.f32 %v886, %v888
      %v890 = vadd.f32 %v886, %v889
      %vm891 = vweird.f32 %v588
      %vm892 = vweird.f32 %v886
      %vm893 = vmor %vm891, %vm892
      %v894 = vsel %vm893, %v886, %v890
      %v895 = vand.u32 2147483647, %v588
      %vm896 = vcmp.eq.f32.partialorder %v895, 8.507059e+37
      %v897 = vand.u32 %v588, 2147483648
      %v898 = vor.u32 1.1754944e-38, %v897
      %v899 = vsel %vm896, %v898, %v894
      %v900 = vmul.f32 1.0, %v899
      %v901 = vrcp.pop %v589
      %v902 = vmul.f32 %v589, %v901
      %v903 = vsub.f32 1.0, %v902
      %v904 = vmul.f32 %v901, %v903
      %v905 = vadd.f32 %v901, %v904
      %vm906 = vweird.f32 %v589
      %vm907 = vweird.f32 %v901
      %vm908 = vmor %vm906, %vm907
      %v909 = vsel %vm908, %v901, %v905
      %v910 = vand.u32 2147483647, %v589
      %vm911 = vcmp.eq.f32.partialorder %v910, 8.507059e+37
      %v912 = vand.u32 %v589, 2147483648
      %v913 = vor.u32 1.1754944e-38, %v912
      %v914 = vsel %vm911, %v913, %v909
      %v915 = vmul.f32 1.0, %v914
      %v916 = vrcp.pop %v590
      %v917 = vmul.f32 %v590, %v916
      %v918 = vsub.f32 1.0, %v917
      %v919 = vmul.f32 %v916, %v918
      %v920 = vadd.f32 %v916, %v919
      %vm921 = vweird.f32 %v590
      %vm922 = vweird.f32 %v916
      %vm923 = vmor %vm921, %vm922
      %v924 = vsel %vm923, %v916, %v920
      %v925 = vand.u32 2147483647, %v590
      %vm926 = vcmp.eq.f32.partialorder %v925, 8.507059e+37
      %v927 = vand.u32 %v590, 2147483648
      %v928 = vor.u32 1.1754944e-38, %v927
      %v929 = vsel %vm926, %v928, %v924
      %v930 = vmul.f32 1.0, %v929
      %v931 = vrcp.pop %v591
      %v932 = vmul.f32 %v591, %v931
      %v933 = vsub.f32 1.0, %v932
      %v934 = vmul.f32 %v931, %v933
      %v935 = vadd.f32 %v931, %v934
      %vm936 = vweird.f32 %v591
      %vm937 = vweird.f32 %v931
      %vm938 = vmor %vm936, %vm937
      %v939 = vsel %vm938, %v931, %v935
      %v940 = vand.u32 2147483647, %v591
      %vm941 = vcmp.eq.f32.partialorder %v940, 8.507059e+37
      %v942 = vand.u32 %v591, 2147483648
      %v943 = vor.u32 1.1754944e-38, %v942
      %v944 = vsel %vm941, %v943, %v939
      %v945 = vmul.f32 1.0, %v944
      %v946 = vrcp.pop %v592
      %v947 = vmul.f32 %v592, %v946
      %v948 = vsub.f32 1.0, %v947
      %v949 = vmul.f32 %v946, %v948
      %v950 = vadd.f32 %v946, %v949
      %vm951 = vweird.f32 %v592
      %vm952 = vweird.f32 %v946
      %vm953 = vmor %vm951, %vm952
      %v954 = vsel %vm953, %v946, %v950
      %v955 = vand.u32 2147483647, %v592
      %vm956 = vcmp.eq.f32.partialorder %v955, 8.507059e+37
      %v957 = vand.u32 %v592, 2147483648
      %v958 = vor.u32 1.1754944e-38, %v957
      %v959 = vsel %vm956, %v958, %v954
      %v960 = vmul.f32 1.0, %v959
      %v961 = vrcp.pop %v593
      %v962 = vmul.f32 %v593, %v961
      %v963 = vsub.f32 1.0, %v962
      %v964 = vmul.f32 %v961, %v963
      %v965 = vadd.f32 %v961, %v964
      %vm966 = vweird.f32 %v593
      %vm967 = vweird.f32 %v961
      %vm968 = vmor %vm966, %vm967
      %v969 = vsel %vm968, %v961, %v965
      %v970 = vand.u32 2147483647, %v593
      %vm971 = vcmp.eq.f32.partialorder %v970, 8.507059e+37
      %v972 = vand.u32 %v593, 2147483648
      %v973 = vor.u32 1.1754944e-38, %v972
      %v974 = vsel %vm971, %v973, %v969
      %v975 = vmul.f32 1.0, %v974
      %v976 = vrcp.pop %v594
      %v977 = vmul.f32 %v594, %v976
      %v978 = vsub.f32 1.0, %v977
      %v979 = vmul.f32 %v976, %v978
      %v980 = vadd.f32 %v976, %v979
      %vm981 = vweird.f32 %v594
      %vm982 = vweird.f32 %v976
      %vm983 = vmor %vm981, %vm982
      %v984 = vsel %vm983, %v976, %v980
      %v985 = vand.u32 2147483647, %v594
      %vm986 = vcmp.eq.f32.partialorder %v985, 8.507059e+37
      %v987 = vand.u32 %v594, 2147483648
      %v988 = vor.u32 1.1754944e-38, %v987
      %v989 = vsel %vm986, %v988, %v984
      %v990 = vmul.f32 1.0, %v989
      %v991 = vrcp.pop %v595
      %v992 = vmul.f32 %v595, %v991
      %v993 = vsub.f32 1.0, %v992
      %v994 = vmul.f32 %v991, %v993
      %v995 = vadd.f32 %v991, %v994
      %vm996 = vweird.f32 %v595
      %vm997 = vweird.f32 %v991
      %vm998 = vmor %vm996, %vm997
      %v999 = vsel %vm998, %v991, %v995
      %v1000 = vand.u32 2147483647, %v595
      %vm1001 = vcmp.eq.f32.partialorder %v1000, 8.507059e+37
      %v1002 = vand.u32 %v595, 2147483648
      %v1003 = vor.u32 1.1754944e-38, %v1002
      %v1004 = vsel %vm1001, %v1003, %v999
      %v1005 = vmul.f32 1.0, %v1004
      %v1006 = vrcp.pop %v596
      %v1007 = vmul.f32 %v596, %v1006
      %v1008 = vsub.f32 1.0, %v1007
      %v1009 = vmul.f32 %v1006, %v1008
      %v1010 = vadd.f32 %v1006, %v1009
      %vm1011 = vweird.f32 %v596
      %vm1012 = vweird.f32 %v1006
      %vm1013 = vmor %vm1011, %vm1012
      %v1014 = vsel %vm1013, %v1006, %v1010
      %v1015 = vand.u32 2147483647, %v596
      %vm1016 = vcmp.eq.f32.partialorder %v1015, 8.507059e+37
      %v1017 = vand.u32 %v596, 2147483648
      %v1018 = vor.u32 1.1754944e-38, %v1017
      %v1019 = vsel %vm1016, %v1018, %v1014
      %v1020 = vmul.f32 1.0, %v1019
      %v1021 = vrcp.pop %v597
      %v1022 = vmul.f32 %v597, %v1021
      %v1023 = vsub.f32 1.0, %v1022
      %v1024 = vmul.f32 %v1021, %v1023
      %v1025 = vadd.f32 %v1021, %v1024
      %vm1026 = vweird.f32 %v597
      %vm1027 = vweird.f32 %v1021
      %vm1028 = vmor %vm1026, %vm1027
      %v1029 = vsel %vm1028, %v1021, %v1025
      %v1030 = vand.u32 2147483647, %v597
      %vm1031 = vcmp.eq.f32.partialorder %v1030, 8.507059e+37
      %v1032 = vand.u32 %v597, 2147483648
      %v1033 = vor.u32 1.1754944e-38, %v1032
      %v1034 = vsel %vm1031, %v1033, %v1029
      %v1035 = vmul.f32 1.0, %v1034
      %v1036 = vrcp.pop %v598
      %v1037 = vmul.f32 %v598, %v1036
      %v1038 = vsub.f32 1.0, %v1037
      %v1039 = vmul.f32 %v1036, %v1038
      %v1040 = vadd.f32 %v1036, %v1039
      %vm1041 = vweird.f32 %v598
      %vm1042 = vweird.f32 %v1036
      %vm1043 = vmor %vm1041, %vm1042
      %v1044 = vsel %vm1043, %v1036, %v1040
      %v1045 = vand.u32 2147483647, %v598
      %vm1046 = vcmp.eq.f32.partialorder %v1045, 8.507059e+37
      %v1047 = vand.u32 %v598, 2147483648
      %v1048 = vor.u32 1.1754944e-38, %v1047
      %v1049 = vsel %vm1046, %v1048, %v1044
      %v1050 = vmul.f32 1.0, %v1049
      %v1051 = vrcp.pop %v599
      %v1052 = vmul.f32 %v599, %v1051
      %v1053 = vsub.f32 1.0, %v1052
      %v1054 = vmul.f32 %v1051, %v1053
      %v1055 = vadd.f32 %v1051, %v1054
      %vm1056 = vweird.f32 %v599
      %vm1057 = vweird.f32 %v1051
      %vm1058 = vmor %vm1056, %vm1057
      %v1059 = vsel %vm1058, %v1051, %v1055
      %v1060 = vand.u32 2147483647, %v599
      %vm1061 = vcmp.eq.f32.partialorder %v1060, 8.507059e+37
      %v1062 = vand.u32 %v599, 2147483648
      %v1063 = vor.u32 1.1754944e-38, %v1062
      %v1064 = vsel %vm1061, %v1063, %v1059
      %v1065 = vmul.f32 1.0, %v1064
      %v1066 = vrcp.pop %v600
      %v1067 = vmul.f32 %v600, %v1066
      %v1068 = vsub.f32 1.0, %v1067
      %v1069 = vmul.f32 %v1066, %v1068
      %v1070 = vadd.f32 %v1066, %v1069
      %vm1071 = vweird.f32 %v600
      %vm1072 = vweird.f32 %v1066
      %vm1073 = vmor %vm1071, %vm1072
      %v1074 = vsel %vm1073, %v1066, %v1070
      %v1075 = vand.u32 2147483647, %v600
      %vm1076 = vcmp.eq.f32.partialorder %v1075, 8.507059e+37
      %v1077 = vand.u32 %v600, 2147483648
      %v1078 = vor.u32 1.1754944e-38, %v1077
      %v1079 = vsel %vm1076, %v1078, %v1074
      %v1080 = vmul.f32 1.0, %v1079
      %v1081 = vmul.f32 %v409, %v615
      %v1082 = vmul.f32 %v411, %v630
      %v1083 = vmul.f32 %v413, %v645
      %v1084 = vmul.f32 %v415, %v660
      %v1085 = vmul.f32 %v417, %v675
      %v1086 = vmul.f32 %v419, %v690
      %v1087 = vmul.f32 %v421, %v705
      %v1088 = vmul.f32 %v423, %v720
      %v1089 = vmul.f32 %v425, %v735
      %v1090 = vmul.f32 %v427, %v750
      %v1091 = vmul.f32 %v429, %v765
      %v1092 = vmul.f32 %v431, %v780
      %v1093 = vmul.f32 %v433, %v795
      %v1094 = vmul.f32 %v435, %v810
      %v1095 = vmul.f32 %v437, %v825
      %v1096 = vmul.f32 %v439, %v840
      %v1097 = vmul.f32 %v441, %v855
      %v1098 = vmul.f32 %v443, %v870
      %v1099 = vmul.f32 %v445, %v885
      %v1100 = vmul.f32 %v447, %v900
      %v1101 = vmul.f32 %v449, %v915
      %v1102 = vmul.f32 %v451, %v930
      %v1103 = vmul.f32 %v453, %v945
      %v1104 = vmul.f32 %v455, %v960
      %v1105 = vmul.f32 %v457, %v975
      %v1106 = vmul.f32 %v459, %v990
      %v1107 = vmul.f32 %v461, %v1005
      %v1108 = vmul.f32 %v463, %v1020
      %v1109 = vmul.f32 %v465, %v1035
      %v1110 = vmul.f32 %v467, %v1050
      %v1111 = vmul.f32 %v469, %v1065
      %v1112 = vmul.f32 %v471, %v1080
      %1113 = vst [vmem:[#allocation2] sm:$0xf] 0
      %1114 = vst [vmem:[#allocation2 + $0x4] sm:$0xf] 0
      %1115 = vst [vmem:[#allocation2 + $0x8] sm:$0x1] 0
      %s1116 = scalar_lea.vmem [#allocation2], 204
      %1117 = vst [vmem:[%s1116] sm:$0xf] 0
      %1118 = vst [vmem:[%s1116 + $0x4] sm:$0xf] 0
      %1119 = vst [vmem:[%s1116 + $0x8] sm:$0x1] 0
      %s1120 = scalar_lea.vmem [#allocation2], 12
      %vm1121 = vcmask 1040384
      %vm1122 = vsmask.f32 256
      %vm1123 = vmand %vm1121, %vm1122
      %v1124 = vld [vmem:[%s1120] sm:$0x1]
      %v1125 = vsel %vm1123, 0, %v1124
      %1126 = vst [vmem:[%s1120] sm:$0x1] %v1125
      %v1127 = vld [vmem:[%s1120 + $0xc] sm:$0x1]
      %v1128 = vsel %vm1123, 0, %v1127
      %1129 = vst [vmem:[%s1120 + $0xc] sm:$0x1] %v1128
      %v1130 = vld [vmem:[%s1120 + $0x18] sm:$0x1]
      %v1131 = vsel %vm1123, 0, %v1130
      %1132 = vst [vmem:[%s1120 + $0x18] sm:$0x1] %v1131
      %v1133 = vld [vmem:[%s1120 + $0x24] sm:$0x1]
      %v1134 = vsel %vm1123, 0, %v1133
      %1135 = vst [vmem:[%s1120 + $0x24] sm:$0x1] %v1134
      %v1136 = vld [vmem:[%s1120 + $0x30] sm:$0x1]
      %v1137 = vsel %vm1123, 0, %v1136
      %1138 = vst [vmem:[%s1120 + $0x30] sm:$0x1] %v1137
      %v1139 = vld [vmem:[%s1120 + $0x3c] sm:$0x1]
      %v1140 = vsel %vm1123, 0, %v1139
      %1141 = vst [vmem:[%s1120 + $0x3c] sm:$0x1] %v1140
      %v1142 = vld [vmem:[%s1120 + $0x48] sm:$0x1]
      %v1143 = vsel %vm1123, 0, %v1142
      %1144 = vst [vmem:[%s1120 + $0x48] sm:$0x1] %v1143
      %v1145 = vld [vmem:[%s1120 + $0x54] sm:$0x1]
      %v1146 = vsel %vm1123, 0, %v1145
      %1147 = vst [vmem:[%s1120 + $0x54] sm:$0x1] %v1146
      %v1148 = vld [vmem:[%s1120 + $0x60] sm:$0x1]
      %v1149 = vsel %vm1123, 0, %v1148
      %1150 = vst [vmem:[%s1120 + $0x60] sm:$0x1] %v1149
      %v1151 = vld [vmem:[%s1120 + $0x6c] sm:$0x1]
      %v1152 = vsel %vm1123, 0, %v1151
      %1153 = vst [vmem:[%s1120 + $0x6c] sm:$0x1] %v1152
      %v1154 = vld [vmem:[%s1120 + $0x78] sm:$0x1]
      %v1155 = vsel %vm1123, 0, %v1154
      %1156 = vst [vmem:[%s1120 + $0x78] sm:$0x1] %v1155
      %v1157 = vld [vmem:[%s1120 + $0x84] sm:$0x1]
      %v1158 = vsel %vm1123, 0, %v1157
      %1159 = vst [vmem:[%s1120 + $0x84] sm:$0x1] %v1158
      %v1160 = vld [vmem:[%s1120 + $0x90] sm:$0x1]
      %v1161 = vsel %vm1123, 0, %v1160
      %1162 = vst [vmem:[%s1120 + $0x90] sm:$0x1] %v1161
      %v1163 = vld [vmem:[%s1120 + $0x9c] sm:$0x1]
      %v1164 = vsel %vm1123, 0, %v1163
      %1165 = vst [vmem:[%s1120 + $0x9c] sm:$0x1] %v1164
      %v1166 = vld [vmem:[%s1120 + $0xa8] sm:$0x1]
      %v1167 = vsel %vm1123, 0, %v1166
      %1168 = vst [vmem:[%s1120 + $0xa8] sm:$0x1] %v1167
      %v1169 = vld [vmem:[%s1120 + $0xb4] sm:$0x1]
      %v1170 = vsel %vm1123, 0, %v1169
      %1171 = vst [vmem:[%s1120 + $0xb4] sm:$0x1] %v1170
      %vm1172 = vsmask.f32 7938
      %vm1173 = vmand %vm1121, %vm1172
      %v1174 = vld [vmem:[%s1120 + $0x8] sm:$0x1]
      %v1175 = vsel %vm1173, 0, %v1174
      %1176 = vst [vmem:[%s1120 + $0x8] sm:$0x1] %v1175
      %v1177 = vld [vmem:[%s1120 + $0x14] sm:$0x1]
      %v1178 = vsel %vm1173, 0, %v1177
      %1179 = vst [vmem:[%s1120 + $0x14] sm:$0x1] %v1178
      %v1180 = vld [vmem:[%s1120 + $0x20] sm:$0x1]
      %v1181 = vsel %vm1173, 0, %v1180
      %1182 = vst [vmem:[%s1120 + $0x20] sm:$0x1] %v1181
      %v1183 = vld [vmem:[%s1120 + $0x2c] sm:$0x1]
      %v1184 = vsel %vm1173, 0, %v1183
      %1185 = vst [vmem:[%s1120 + $0x2c] sm:$0x1] %v1184
      %v1186 = vld [vmem:[%s1120 + $0x38] sm:$0x1]
      %v1187 = vsel %vm1173, 0, %v1186
      %1188 = vst [vmem:[%s1120 + $0x38] sm:$0x1] %v1187
      %v1189 = vld [vmem:[%s1120 + $0x44] sm:$0x1]
      %v1190 = vsel %vm1173, 0, %v1189
      %1191 = vst [vmem:[%s1120 + $0x44] sm:$0x1] %v1190
      %v1192 = vld [vmem:[%s1120 + $0x50] sm:$0x1]
      %v1193 = vsel %vm1173, 0, %v1192
      %1194 = vst [vmem:[%s1120 + $0x50] sm:$0x1] %v1193
      %v1195 = vld [vmem:[%s1120 + $0x5c] sm:$0x1]
      %v1196 = vsel %vm1173, 0, %v1195
      %1197 = vst [vmem:[%s1120 + $0x5c] sm:$0x1] %v1196
      %v1198 = vld [vmem:[%s1120 + $0x68] sm:$0x1]
      %v1199 = vsel %vm1173, 0, %v1198
      %1200 = vst [vmem:[%s1120 + $0x68] sm:$0x1] %v1199
      %v1201 = vld [vmem:[%s1120 + $0x74] sm:$0x1]
      %v1202 = vsel %vm1173, 0, %v1201
      %1203 = vst [vmem:[%s1120 + $0x74] sm:$0x1] %v1202
      %v1204 = vld [vmem:[%s1120 + $0x80] sm:$0x1]
      %v1205 = vsel %vm1173, 0, %v1204
      %1206 = vst [vmem:[%s1120 + $0x80] sm:$0x1] %v1205
      %v1207 = vld [vmem:[%s1120 + $0x8c] sm:$0x1]
      %v1208 = vsel %vm1173, 0, %v1207
      %1209 = vst [vmem:[%s1120 + $0x8c] sm:$0x1] %v1208
      %v1210 = vld [vmem:[%s1120 + $0x98] sm:$0x1]
      %v1211 = vsel %vm1173, 0, %v1210
      %1212 = vst [vmem:[%s1120 + $0x98] sm:$0x1] %v1211
      %v1213 = vld [vmem:[%s1120 + $0xa4] sm:$0x1]
      %v1214 = vsel %vm1173, 0, %v1213
      %1215 = vst [vmem:[%s1120 + $0xa4] sm:$0x1] %v1214
      %v1216 = vld [vmem:[%s1120 + $0xb0] sm:$0x1]
      %v1217 = vsel %vm1173, 0, %v1216
      %1218 = vst [vmem:[%s1120 + $0xb0] sm:$0x1] %v1217
      %v1219 = vld [vmem:[%s1120 + $0xbc] sm:$0x1]
      %v1220 = vsel %vm1173, 0, %v1219
      %1221 = vst [vmem:[%s1120 + $0xbc] sm:$0x1] %v1220
      %v1222 = vpack.c.bf16 %v1081, %v1081
      %v1223 = vpack.c.bf16 %v1082, %v1082
      %v1224 = vpack.c.bf16 %v1083, %v1083
      %v1225 = vpack.c.bf16 %v1084, %v1084
      %v1226 = vpack.c.bf16 %v1085, %v1085
      %v1227 = vpack.c.bf16 %v1086, %v1086
      %v1228 = vpack.c.bf16 %v1087, %v1087
      %v1229 = vpack.c.bf16 %v1088, %v1088
      %v1230 = vpack.c.bf16 %v1089, %v1089
      %v1231 = vpack.c.bf16 %v1090, %v1090
      %v1232 = vpack.c.bf16 %v1091, %v1091
      %v1233 = vpack.c.bf16 %v1092, %v1092
      %v1234 = vpack.c.bf16 %v1093, %v1093
      %v1235 = vpack.c.bf16 %v1094, %v1094
      %v1236 = vpack.c.bf16 %v1095, %v1095
      %v1237 = vpack.c.bf16 %v1096, %v1096
      %v1238 = vpack.c.bf16 %v1097, %v1097
      %v1239 = vpack.c.bf16 %v1098, %v1098
      %v1240 = vpack.c.bf16 %v1099, %v1099
      %v1241 = vpack.c.bf16 %v1100, %v1100
      %v1242 = vpack.c.bf16 %v1101, %v1101
      %v1243 = vpack.c.bf16 %v1102, %v1102
      %v1244 = vpack.c.bf16 %v1103, %v1103
      %v1245 = vpack.c.bf16 %v1104, %v1104
      %v1246 = vpack.c.bf16 %v1105, %v1105
      %v1247 = vpack.c.bf16 %v1106, %v1106
      %v1248 = vpack.c.bf16 %v1107, %v1107
      %v1249 = vpack.c.bf16 %v1108, %v1108
      %v1250 = vpack.c.bf16 %v1109, %v1109
      %v1251 = vpack.c.bf16 %v1110, %v1110
      %v1252 = vpack.c.bf16 %v1111, %v1111
      %v1253 = vpack.c.bf16 %v1112, %v1112
      %vm1254 = vsmask.f32 4368
      %vm1255 = vmor %vm1122, %vm1254
      %v1257 = vshrl.u32 %v1222, 16
      %v1259 = vrot.slane %v1257, 7
      %v1260 = vshll.u32 %v1222, 16
      %v1262 = vor.u32 %v1259, %v1260
      %v1263 = vrot.slane %v1259, 4
      %v1265 = vshrl.u32 %v1223, 16
      %v1267 = vrot.slane %v1265, 7
      %v1268 = vshll.u32 %v1223, 16
      %v1270 = vor.u32 %v1267, %v1268
      %v1271 = vsel %vm1255, %v1263, %v1270
      %v1272 = vrot.slane %v1267, 4
      %v1274 = vshrl.u32 %v1224, 16
      %v1276 = vrot.slane %v1274, 7
      %v1277 = vshll.u32 %v1224, 16
      %v1279 = vor.u32 %v1276, %v1277
      %v1280 = vrot.slane %v1276, 4
      %v1282 = vshrl.u32 %v1225, 16
      %v1284 = vrot.slane %v1282, 7
      %v1285 = vshll.u32 %v1225, 16
      %v1287 = vor.u32 %v1284, %v1285
      %v1288 = vsel %vm1255, %v1280, %v1287
      %v1289 = vrot.slane %v1284, 4
      %v1291 = vshrl.u32 %v1226, 16
      %v1293 = vrot.slane %v1291, 7
      %v1294 = vshll.u32 %v1226, 16
      %v1296 = vor.u32 %v1293, %v1294
      %v1297 = vrot.slane %v1293, 4
      %v1299 = vshrl.u32 %v1227, 16
      %v1301 = vrot.slane %v1299, 7
      %v1302 = vshll.u32 %v1227, 16
      %v1304 = vor.u32 %v1301, %v1302
      %v1305 = vsel %vm1255, %v1297, %v1304
      %v1306 = vrot.slane %v1301, 4
      %v1308 = vshrl.u32 %v1228, 16
      %v1310 = vrot.slane %v1308, 7
      %v1311 = vshll.u32 %v1228, 16
      %v1313 = vor.u32 %v1310, %v1311
      %v1314 = vrot.slane %v1310, 4
      %v1316 = vshrl.u32 %v1229, 16
      %v1318 = vrot.slane %v1316, 7
      %v1319 = vshll.u32 %v1229, 16
      %v1321 = vor.u32 %v1318, %v1319
      %v1322 = vsel %vm1255, %v1314, %v1321
      %v1323 = vrot.slane %v1318, 4
      %v1325 = vshrl.u32 %v1230, 16
      %v1327 = vrot.slane %v1325, 7
      %v1328 = vshll.u32 %v1230, 16
      %v1330 = vor.u32 %v1327, %v1328
      %v1331 = vrot.slane %v1327, 4
      %v1333 = vshrl.u32 %v1231, 16
      %v1335 = vrot.slane %v1333, 7
      %v1336 = vshll.u32 %v1231, 16
      %v1338 = vor.u32 %v1335, %v1336
      %v1339 = vsel %vm1255, %v1331, %v1338
      %v1340 = vrot.slane %v1335, 4
      %v1342 = vshrl.u32 %v1232, 16
      %v1344 = vrot.slane %v1342, 7
      %v1345 = vshll.u32 %v1232, 16
      %v1347 = vor.u32 %v1344, %v1345
      %v1348 = vrot.slane %v1344, 4
      %v1350 = vshrl.u32 %v1233, 16
      %v1352 = vrot.slane %v1350, 7
      %v1353 = vshll.u32 %v1233, 16
      %v1355 = vor.u32 %v1352, %v1353
      %v1356 = vsel %vm1255, %v1348, %v1355
      %v1357 = vrot.slane %v1352, 4
      %v1359 = vshrl.u32 %v1234, 16
      %v1361 = vrot.slane %v1359, 7
      %v1362 = vshll.u32 %v1234, 16
      %v1364 = vor.u32 %v1361, %v1362
      %v1365 = vrot.slane %v1361, 4
      %v1367 = vshrl.u32 %v1235, 16
      %v1369 = vrot.slane %v1367, 7
      %v1370 = vshll.u32 %v1235, 16
      %v1372 = vor.u32 %v1369, %v1370
      %v1373 = vsel %vm1255, %v1365, %v1372
      %v1374 = vrot.slane %v1369, 4
      %v1376 = vshrl.u32 %v1236, 16
      %v1378 = vrot.slane %v1376, 7
      %v1379 = vshll.u32 %v1236, 16
      %v1381 = vor.u32 %v1378, %v1379
      %v1382 = vrot.slane %v1378, 4
      %v1384 = vshrl.u32 %v1237, 16
      %v1386 = vrot.slane %v1384, 7
      %v1387 = vshll.u32 %v1237, 16
      %v1389 = vor.u32 %v1386, %v1387
      %v1390 = vsel %vm1255, %v1382, %v1389
      %v1391 = vrot.slane %v1386, 4
      %v1393 = vshrl.u32 %v1238, 16
      %v1395 = vrot.slane %v1393, 7
      %v1396 = vshll.u32 %v1238, 16
      %v1398 = vor.u32 %v1395, %v1396
      %v1399 = vrot.slane %v1395, 4
      %v1401 = vshrl.u32 %v1239, 16
      %v1403 = vrot.slane %v1401, 7
      %v1404 = vshll.u32 %v1239, 16
      %v1406 = vor.u32 %v1403, %v1404
      %v1407 = vsel %vm1255, %v1399, %v1406
      %v1408 = vrot.slane %v1403, 4
      %v1410 = vshrl.u32 %v1240, 16
      %v1412 = vrot.slane %v1410, 7
      %v1413 = vshll.u32 %v1240, 16
      %v1415 = vor.u32 %v1412, %v1413
      %v1416 = vrot.slane %v1412, 4
      %v1418 = vshrl.u32 %v1241, 16
      %v1420 = vrot.slane %v1418, 7
      %v1421 = vshll.u32 %v1241, 16
      %v1423 = vor.u32 %v1420, %v1421
      %v1424 = vsel %vm1255, %v1416, %v1423
      %v1425 = vrot.slane %v1420, 4
      %v1427 = vshrl.u32 %v1242, 16
      %v1429 = vrot.slane %v1427, 7
      %v1430 = vshll.u32 %v1242, 16
      %v1432 = vor.u32 %v1429, %v1430
      %v1433 = vrot.slane %v1429, 4
      %v1435 = vshrl.u32 %v1243, 16
      %v1437 = vrot.slane %v1435, 7
      %v1438 = vshll.u32 %v1243, 16
      %v1440 = vor.u32 %v1437, %v1438
      %v1441 = vsel %vm1255, %v1433, %v1440
      %v1442 = vrot.slane %v1437, 4
      %v1444 = vshrl.u32 %v1244, 16
      %v1446 = vrot.slane %v1444, 7
      %v1447 = vshll.u32 %v1244, 16
      %v1449 = vor.u32 %v1446, %v1447
      %v1450 = vrot.slane %v1446, 4
      %v1452 = vshrl.u32 %v1245, 16
      %v1454 = vrot.slane %v1452, 7
      %v1455 = vshll.u32 %v1245, 16
      %v1457 = vor.u32 %v1454, %v1455
      %v1458 = vsel %vm1255, %v1450, %v1457
      %v1459 = vrot.slane %v1454, 4
      %v1461 = vshrl.u32 %v1246, 16
      %v1463 = vrot.slane %v1461, 7
      %v1464 = vshll.u32 %v1246, 16
      %v1466 = vor.u32 %v1463, %v1464
      %v1467 = vrot.slane %v1463, 4
      %v1469 = vshrl.u32 %v1247, 16
      %v1471 = vrot.slane %v1469, 7
      %v1472 = vshll.u32 %v1247, 16
      %v1474 = vor.u32 %v1471, %v1472
      %v1475 = vsel %vm1255, %v1467, %v1474
      %v1476 = vrot.slane %v1471, 4
      %v1478 = vshrl.u32 %v1248, 16
      %v1480 = vrot.slane %v1478, 7
      %v1481 = vshll.u32 %v1248, 16
      %v1483 = vor.u32 %v1480, %v1481
      %v1484 = vrot.slane %v1480, 4
      %v1486 = vshrl.u32 %v1249, 16
      %v1488 = vrot.slane %v1486, 7
      %v1489 = vshll.u32 %v1249, 16
      %v1491 = vor.u32 %v1488, %v1489
      %v1492 = vsel %vm1255, %v1484, %v1491
      %v1493 = vrot.slane %v1488, 4
      %v1495 = vshrl.u32 %v1250, 16
      %v1497 = vrot.slane %v1495, 7
      %v1498 = vshll.u32 %v1250, 16
      %v1500 = vor.u32 %v1497, %v1498
      %v1501 = vrot.slane %v1497, 4
      %v1503 = vshrl.u32 %v1251, 16
      %v1505 = vrot.slane %v1503, 7
      %v1506 = vshll.u32 %v1251, 16
      %v1508 = vor.u32 %v1505, %v1506
      %v1509 = vsel %vm1255, %v1501, %v1508
      %v1510 = vrot.slane %v1505, 4
      %v1512 = vshrl.u32 %v1252, 16
      %v1514 = vrot.slane %v1512, 7
      %v1515 = vshll.u32 %v1252, 16
      %v1517 = vor.u32 %v1514, %v1515
      %v1518 = vrot.slane %v1514, 4
      %v1520 = vshrl.u32 %v1253, 16
      %v1522 = vrot.slane %v1520, 7
      %v1523 = vshll.u32 %v1253, 16
      %v1525 = vor.u32 %v1522, %v1523
      %v1526 = vsel %vm1255, %v1518, %v1525
      %v1527 = vrot.slane %v1522, 4
      %vm1576 = vcmask 1043456
      %vm1577 = vmand %vm1576, %vm1172
      %v1578 = vld [vmem:[%s1120] sm:$0xf]
      %v1579 = vsel %vm1577, %v1262, %v1578
      %1580 = vst [vmem:[%s1120] sm:$0xf] %v1579
      %1581 = vst [vmem:[%s1120 + $0x4] sm:$0xf] %v1271
      %v1582 = vld [vmem:[%s1120 + $0x8] sm:$0x1]
      %v1583 = vsel %vm1123, %v1272, %v1582
      %1584 = vst [vmem:[%s1120 + $0x8] sm:$0x1] %v1583
      %v1585 = vld [vmem:[%s1120 + $0xc] sm:$0xf]
      %v1586 = vsel %vm1577, %v1279, %v1585
      %1587 = vst [vmem:[%s1120 + $0xc] sm:$0xf] %v1586
      %1588 = vst [vmem:[%s1120 + $0x10] sm:$0xf] %v1288
      %v1589 = vld [vmem:[%s1120 + $0x14] sm:$0x1]
      %v1590 = vsel %vm1123, %v1289, %v1589
      %1591 = vst [vmem:[%s1120 + $0x14] sm:$0x1] %v1590
      %v1592 = vld [vmem:[%s1120 + $0x18] sm:$0xf]
      %v1593 = vsel %vm1577, %v1296, %v1592
      %1594 = vst [vmem:[%s1120 + $0x18] sm:$0xf] %v1593
      %1595 = vst [vmem:[%s1120 + $0x1c] sm:$0xf] %v1305
      %v1596 = vld [vmem:[%s1120 + $0x20] sm:$0x1]
      %v1597 = vsel %vm1123, %v1306, %v1596
      %1598 = vst [vmem:[%s1120 + $0x20] sm:$0x1] %v1597
      %v1599 = vld [vmem:[%s1120 + $0x24] sm:$0xf]
      %v1600 = vsel %vm1577, %v1313, %v1599
      %1601 = vst [vmem:[%s1120 + $0x24] sm:$0xf] %v1600
      %1602 = vst [vmem:[%s1120 + $0x28] sm:$0xf] %v1322
      %v1603 = vld [vmem:[%s1120 + $0x2c] sm:$0x1]
      %v1604 = vsel %vm1123, %v1323, %v1603
      %1605 = vst [vmem:[%s1120 + $0x2c] sm:$0x1] %v1604
      %v1606 = vld [vmem:[%s1120 + $0x30] sm:$0xf]
      %v1607 = vsel %vm1577, %v1330, %v1606
      %1608 = vst [vmem:[%s1120 + $0x30] sm:$0xf] %v1607
      %1609 = vst [vmem:[%s1120 + $0x34] sm:$0xf] %v1339
      %v1610 = vld [vmem:[%s1120 + $0x38] sm:$0x1]
      %v1611 = vsel %vm1123, %v1340, %v1610
      %1612 = vst [vmem:[%s1120 + $0x38] sm:$0x1] %v1611
      %v1613 = vld [vmem:[%s1120 + $0x3c] sm:$0xf]
      %v1614 = vsel %vm1577, %v1347, %v1613
      %1615 = vst [vmem:[%s1120 + $0x3c] sm:$0xf] %v1614
      %1616 = vst [vmem:[%s1120 + $0x40] sm:$0xf] %v1356
      %v1617 = vld [vmem:[%s1120 + $0x44] sm:$0x1]
      %v1618 = vsel %vm1123, %v1357, %v1617
      %1619 = vst [vmem:[%s1120 + $0x44] sm:$0x1] %v1618
      %v1620 = vld [vmem:[%s1120 + $0x48] sm:$0xf]
      %v1621 = vsel %vm1577, %v1364, %v1620
      %1622 = vst [vmem:[%s1120 + $0x48] sm:$0xf] %v1621
      %1623 = vst [vmem:[%s1120 + $0x4c] sm:$0xf] %v1373
      %v1624 = vld [vmem:[%s1120 + $0x50] sm:$0x1]
      %v1625 = vsel %vm1123, %v1374, %v1624
      %1626 = vst [vmem:[%s1120 + $0x50] sm:$0x1] %v1625
      %v1627 = vld [vmem:[%s1120 + $0x54] sm:$0xf]
      %v1628 = vsel %vm1577, %v1381, %v1627
      %1629 = vst [vmem:[%s1120 + $0x54] sm:$0xf] %v1628
      %1630 = vst [vmem:[%s1120 + $0x58] sm:$0xf] %v1390
      %v1631 = vld [vmem:[%s1120 + $0x5c] sm:$0x1]
      %v1632 = vsel %vm1123, %v1391, %v1631
      %1633 = vst [vmem:[%s1120 + $0x5c] sm:$0x1] %v1632
      %v1634 = vld [vmem:[%s1120 + $0x60] sm:$0xf]
      %v1635 = vsel %vm1577, %v1398, %v1634
      %1636 = vst [vmem:[%s1120 + $0x60] sm:$0xf] %v1635
      %1637 = vst [vmem:[%s1120 + $0x64] sm:$0xf] %v1407
      %v1638 = vld [vmem:[%s1120 + $0x68] sm:$0x1]
      %v1639 = vsel %vm1123, %v1408, %v1638
      %1640 = vst [vmem:[%s1120 + $0x68] sm:$0x1] %v1639
      %v1641 = vld [vmem:[%s1120 + $0x6c] sm:$0xf]
      %v1642 = vsel %vm1577, %v1415, %v1641
      %1643 = vst [vmem:[%s1120 + $0x6c] sm:$0xf] %v1642
      %1644 = vst [vmem:[%s1120 + $0x70] sm:$0xf] %v1424
      %v1645 = vld [vmem:[%s1120 + $0x74] sm:$0x1]
      %v1646 = vsel %vm1123, %v1425, %v1645
      %1647 = vst [vmem:[%s1120 + $0x74] sm:$0x1] %v1646
      %v1648 = vld [vmem:[%s1120 + $0x78] sm:$0xf]
      %v1649 = vsel %vm1577, %v1432, %v1648
      %1650 = vst [vmem:[%s1120 + $0x78] sm:$0xf] %v1649
      %1651 = vst [vmem:[%s1120 + $0x7c] sm:$0xf] %v1441
      %v1652 = vld [vmem:[%s1120 + $0x80] sm:$0x1]
      %v1653 = vsel %vm1123, %v1442, %v1652
      %1654 = vst [vmem:[%s1120 + $0x80] sm:$0x1] %v1653
      %v1655 = vld [vmem:[%s1120 + $0x84] sm:$0xf]
      %v1656 = vsel %vm1577, %v1449, %v1655
      %1657 = vst [vmem:[%s1120 + $0x84] sm:$0xf] %v1656
      %1658 = vst [vmem:[%s1120 + $0x88] sm:$0xf] %v1458
      %v1659 = vld [vmem:[%s1120 + $0x8c] sm:$0x1]
      %v1660 = vsel %vm1123, %v1459, %v1659
      %1661 = vst [vmem:[%s1120 + $0x8c] sm:$0x1] %v1660
      %v1662 = vld [vmem:[%s1120 + $0x90] sm:$0xf]
      %v1663 = vsel %vm1577, %v1466, %v1662
      %1664 = vst [vmem:[%s1120 + $0x90] sm:$0xf] %v1663
      %1665 = vst [vmem:[%s1120 + $0x94] sm:$0xf] %v1475
      %v1666 = vld [vmem:[%s1120 + $0x98] sm:$0x1]
      %v1667 = vsel %vm1123, %v1476, %v1666
      %1668 = vst [vmem:[%s1120 + $0x98] sm:$0x1] %v1667
      %v1669 = vld [vmem:[%s1120 + $0x9c] sm:$0xf]
      %v1670 = vsel %vm1577, %v1483, %v1669
      %1671 = vst [vmem:[%s1120 + $0x9c] sm:$0xf] %v1670
      %1672 = vst [vmem:[%s1120 + $0xa0] sm:$0xf] %v1492
      %v1673 = vld [vmem:[%s1120 + $0xa4] sm:$0x1]
      %v1674 = vsel %vm1123, %v1493, %v1673
      %1675 = vst [vmem:[%s1120 + $0xa4] sm:$0x1] %v1674
      %v1676 = vld [vmem:[%s1120 + $0xa8] sm:$0xf]
      %v1677 = vsel %vm1577, %v1500, %v1676
      %1678 = vst [vmem:[%s1120 + $0xa8] sm:$0xf] %v1677
      %1679 = vst [vmem:[%s1120 + $0xac] sm:$0xf] %v1509
      %v1680 = vld [vmem:[%s1120 + $0xb0] sm:$0x1]
      %v1681 = vsel %vm1123, %v1510, %v1680
      %1682 = vst [vmem:[%s1120 + $0xb0] sm:$0x1] %v1681
      %v1683 = vld [vmem:[%s1120 + $0xb4] sm:$0xf]
      %v1684 = vsel %vm1577, %v1517, %v1683
      %1685 = vst [vmem:[%s1120 + $0xb4] sm:$0xf] %v1684
      %1686 = vst [vmem:[%s1120 + $0xb8] sm:$0xf] %v1526
      %v1687 = vld [vmem:[%s1120 + $0xbc] sm:$0x1]
      %v1688 = vsel %vm1123, %v1527, %v1687
      %1689 = vst [vmem:[%s1120 + $0xbc] sm:$0x1] %v1688
      %v1690 = vld [vmem:[#allocation2] sm:$0xf]
      %v1691 = vld [vmem:[#allocation2 + $0x4] sm:$0xf]
      %v1692 = vld [vmem:[#allocation2 + $0xc] sm:$0xf]
      %v1693 = vld [vmem:[#allocation2 + $0x10] sm:$0xf]
      %v1694 = vld [vmem:[#allocation2 + $0x18] sm:$0xf]
      %v1695 = vld [vmem:[#allocation2 + $0x1c] sm:$0xf]
      %v1696 = vld [vmem:[#allocation2 + $0x24] sm:$0xf]
      %v1697 = vld [vmem:[#allocation2 + $0x28] sm:$0xf]
      %v1698 = vld [vmem:[#allocation2 + $0x30] sm:$0xf]
      %v1699 = vld [vmem:[#allocation2 + $0x34] sm:$0xf]
      %v1700 = vld [vmem:[#allocation2 + $0x3c] sm:$0xf]
      %v1701 = vld [vmem:[#allocation2 + $0x40] sm:$0xf]
      %v1702 = vld [vmem:[#allocation2 + $0x48] sm:$0xf]
      %v1703 = vld [vmem:[#allocation2 + $0x4c] sm:$0xf]
      %v1704 = vld [vmem:[#allocation2 + $0x54] sm:$0xf]
      %v1705 = vld [vmem:[#allocation2 + $0x58] sm:$0xf]
      %v1706 = vld [vmem:[#allocation2 + $0x60] sm:$0xf]
      %v1707 = vld [vmem:[#allocation2 + $0x64] sm:$0xf]
      %v1708 = vld [vmem:[#allocation2 + $0x6c] sm:$0xf]
      %v1709 = vld [vmem:[#allocation2 + $0x70] sm:$0xf]
      %v1710 = vld [vmem:[#allocation2 + $0x78] sm:$0xf]
      %v1711 = vld [vmem:[#allocation2 + $0x7c] sm:$0xf]
      %v1712 = vld [vmem:[#allocation2 + $0x84] sm:$0xf]
      %v1713 = vld [vmem:[#allocation2 + $0x88] sm:$0xf]
      %v1714 = vld [vmem:[#allocation2 + $0x90] sm:$0xf]
      %v1715 = vld [vmem:[#allocation2 + $0x94] sm:$0xf]
      %v1716 = vld [vmem:[#allocation2 + $0x9c] sm:$0xf]
      %v1717 = vld [vmem:[#allocation2 + $0xa0] sm:$0xf]
      %v1718 = vld [vmem:[#allocation2 + $0xa8] sm:$0xf]
      %v1719 = vld [vmem:[#allocation2 + $0xac] sm:$0xf]
      %v1720 = vld [vmem:[#allocation2 + $0xb4] sm:$0xf]
      %v1721 = vld [vmem:[#allocation2 + $0xb8] sm:$0xf]
      %v1722 = vld [vmem:[#allocation2 + $0x8] sm:$0x1]
      %v1723 = vld [vmem:[#allocation2 + $0x14] sm:$0x1]
      %v1724 = vld [vmem:[#allocation2 + $0x20] sm:$0x1]
      %v1725 = vld [vmem:[#allocation2 + $0x2c] sm:$0x1]
      %v1726 = vld [vmem:[#allocation2 + $0x38] sm:$0x1]
      %v1727 = vld [vmem:[#allocation2 + $0x44] sm:$0x1]
      %v1728 = vld [vmem:[#allocation2 + $0x50] sm:$0x1]
      %v1729 = vld [vmem:[#allocation2 + $0x5c] sm:$0x1]
      %v1730 = vld [vmem:[#allocation2 + $0x68] sm:$0x1]
      %v1731 = vld [vmem:[#allocation2 + $0x74] sm:$0x1]
      %v1732 = vld [vmem:[#allocation2 + $0x80] sm:$0x1]
      %v1733 = vld [vmem:[#allocation2 + $0x8c] sm:$0x1]
      %v1734 = vld [vmem:[#allocation2 + $0x98] sm:$0x1]
      %v1735 = vld [vmem:[#allocation2 + $0xa4] sm:$0x1]
      %v1736 = vld [vmem:[#allocation2 + $0xb0] sm:$0x1]
      %v1737 = vld [vmem:[#allocation2 + $0xbc] sm:$0x1]
      %v1738 = vld [vmem:[#allocation2] sm:$0xe]
      %v1739 = vld [vmem:[#allocation2 + $0xc] sm:$0xe]
      %v1740 = vld [vmem:[#allocation2 + $0x18] sm:$0xe]
      %v1741 = vld [vmem:[#allocation2 + $0x24] sm:$0xe]
      %v1742 = vld [vmem:[#allocation2 + $0x30] sm:$0xe]
      %v1743 = vld [vmem:[#allocation2 + $0x3c] sm:$0xe]
      %v1744 = vld [vmem:[#allocation2 + $0x48] sm:$0xe]
      %v1745 = vld [vmem:[#allocation2 + $0x54] sm:$0xe]
      %v1746 = vld [vmem:[#allocation2 + $0x60] sm:$0xe]
      %v1747 = vld [vmem:[#allocation2 + $0x6c] sm:$0xe]
      %v1748 = vld [vmem:[#allocation2 + $0x78] sm:$0xe]
      %v1749 = vld [vmem:[#allocation2 + $0x84] sm:$0xe]
      %v1750 = vld [vmem:[#allocation2 + $0x90] sm:$0xe]
      %v1751 = vld [vmem:[#allocation2 + $0x9c] sm:$0xe]
      %v1752 = vld [vmem:[#allocation2 + $0xa8] sm:$0xe]
      %v1753 = vld [vmem:[#allocation2 + $0xb4] sm:$0xe]
      %v1786 = vunpack.c.l.b16 %v1690
      %v1787 = vunpack.c.l.b16 %v1691
      %v1788 = vunpack.c.l.b16 %v1692
      %v1789 = vunpack.c.l.b16 %v1693
      %v1790 = vunpack.c.l.b16 %v1694
      %v1791 = vunpack.c.l.b16 %v1695
      %v1792 = vunpack.c.l.b16 %v1696
      %v1793 = vunpack.c.l.b16 %v1697
      %v1794 = vunpack.c.l.b16 %v1698
      %v1795 = vunpack.c.l.b16 %v1699
      %v1796 = vunpack.c.l.b16 %v1700
      %v1797 = vunpack.c.l.b16 %v1701
      %v1798 = vunpack.c.l.b16 %v1702
      %v1799 = vunpack.c.l.b16 %v1703
      %v1800 = vunpack.c.l.b16 %v1704
      %v1801 = vunpack.c.l.b16 %v1705
      %v1802 = vunpack.c.l.b16 %v1706
      %v1803 = vunpack.c.l.b16 %v1707
      %v1804 = vunpack.c.l.b16 %v1708
      %v1805 = vunpack.c.l.b16 %v1709
      %v1806 = vunpack.c.l.b16 %v1710
      %v1807 = vunpack.c.l.b16 %v1711
      %v1808 = vunpack.c.l.b16 %v1712
      %v1809 = vunpack.c.l.b16 %v1713
      %v1810 = vunpack.c.l.b16 %v1714
      %v1811 = vunpack.c.l.b16 %v1715
      %v1812 = vunpack.c.l.b16 %v1716
      %v1813 = vunpack.c.l.b16 %v1717
      %v1814 = vunpack.c.l.b16 %v1718
      %v1815 = vunpack.c.l.b16 %v1719
      %v1816 = vunpack.c.l.b16 %v1720
      %v1817 = vunpack.c.l.b16 %v1721
      %v1818 = vpack.c.b16 %v1787, %v1786
      %v1819 = vpack.c.b16 %v1789, %v1788
      %v1820 = vpack.c.b16 %v1791, %v1790
      %v1821 = vpack.c.b16 %v1793, %v1792
      %v1822 = vpack.c.b16 %v1795, %v1794
      %v1823 = vpack.c.b16 %v1797, %v1796
      %v1824 = vpack.c.b16 %v1799, %v1798
      %v1825 = vpack.c.b16 %v1801, %v1800
      %v1826 = vpack.c.b16 %v1803, %v1802
      %v1827 = vpack.c.b16 %v1805, %v1804
      %v1828 = vpack.c.b16 %v1807, %v1806
      %v1829 = vpack.c.b16 %v1809, %v1808
      %v1830 = vpack.c.b16 %v1811, %v1810
      %v1831 = vpack.c.b16 %v1813, %v1812
      %v1832 = vpack.c.b16 %v1815, %v1814
      %v1833 = vpack.c.b16 %v1817, %v1816
      %v1866 = vunpack.c.l.b16 %v1722
      %v1867 = vunpack.c.l.b16 %v1723
      %v1868 = vunpack.c.l.b16 %v1724
      %v1869 = vunpack.c.l.b16 %v1725
      %v1870 = vunpack.c.l.b16 %v1726
      %v1871 = vunpack.c.l.b16 %v1727
      %v1872 = vunpack.c.l.b16 %v1728
      %v1873 = vunpack.c.l.b16 %v1729
      %v1874 = vunpack.c.l.b16 %v1730
      %v1875 = vunpack.c.l.b16 %v1731
      %v1876 = vunpack.c.l.b16 %v1732
      %v1877 = vunpack.c.l.b16 %v1733
      %v1878 = vunpack.c.l.b16 %v1734
      %v1879 = vunpack.c.l.b16 %v1735
      %v1880 = vunpack.c.l.b16 %v1736
      %v1881 = vunpack.c.l.b16 %v1737
      %v1882 = vpack.c.b16 %v1866, %v1866
      %v1883 = vpack.c.b16 %v1867, %v1867
      %v1884 = vpack.c.b16 %v1868, %v1868
      %v1885 = vpack.c.b16 %v1869, %v1869
      %v1886 = vpack.c.b16 %v1870, %v1870
      %v1887 = vpack.c.b16 %v1871, %v1871
      %v1888 = vpack.c.b16 %v1872, %v1872
      %v1889 = vpack.c.b16 %v1873, %v1873
      %v1890 = vpack.c.b16 %v1874, %v1874
      %v1891 = vpack.c.b16 %v1875, %v1875
      %v1892 = vpack.c.b16 %v1876, %v1876
      %v1893 = vpack.c.b16 %v1877, %v1877
      %v1894 = vpack.c.b16 %v1878, %v1878
      %v1895 = vpack.c.b16 %v1879, %v1879
      %v1896 = vpack.c.b16 %v1880, %v1880
      %v1897 = vpack.c.b16 %v1881, %v1881
      %vm1898 = vsmask.f32 7424
      %v1900 = vshrl.u32 %v1818, 16
      %v1902 = vshll.u32 %v1818, 16
      %v1904 = vrot.slane %v1902, 1
      %v1905 = vor.u32 %v1900, %v1904
      %v1907 = vshll.u32 %v1882, 16
      %v1909 = vrot.slane %v1907, 1
      %v1910 = vsel %vm1898, %v1905, %v1909
      %v1912 = vshrl.u32 %v1819, 16
      %v1914 = vshll.u32 %v1819, 16
      %v1916 = vrot.slane %v1914, 1
      %v1917 = vor.u32 %v1912, %v1916
      %v1919 = vshll.u32 %v1883, 16
      %v1921 = vrot.slane %v1919, 1
      %v1922 = vsel %vm1898, %v1917, %v1921
      %v1924 = vshrl.u32 %v1820, 16
      %v1926 = vshll.u32 %v1820, 16
      %v1928 = vrot.slane %v1926, 1
      %v1929 = vor.u32 %v1924, %v1928
      %v1931 = vshll.u32 %v1884, 16
      %v1933 = vrot.slane %v1931, 1
      %v1934 = vsel %vm1898, %v1929, %v1933
      %v1936 = vshrl.u32 %v1821, 16
      %v1938 = vshll.u32 %v1821, 16
      %v1940 = vrot.slane %v1938, 1
      %v1941 = vor.u32 %v1936, %v1940
      %v1943 = vshll.u32 %v1885, 16
      %v1945 = vrot.slane %v1943, 1
      %v1946 = vsel %vm1898, %v1941, %v1945
      %v1948 = vshrl.u32 %v1822, 16
      %v1950 = vshll.u32 %v1822, 16
      %v1952 = vrot.slane %v1950, 1
      %v1953 = vor.u32 %v1948, %v1952
      %v1955 = vshll.u32 %v1886, 16
      %v1957 = vrot.slane %v1955, 1
      %v1958 = vsel %vm1898, %v1953, %v1957
      %v1960 = vshrl.u32 %v1823, 16
      %v1962 = vshll.u32 %v1823, 16
      %v1964 = vrot.slane %v1962, 1
      %v1965 = vor.u32 %v1960, %v1964
      %v1967 = vshll.u32 %v1887, 16
      %v1969 = vrot.slane %v1967, 1
      %v1970 = vsel %vm1898, %v1965, %v1969
      %v1972 = vshrl.u32 %v1824, 16
      %v1974 = vshll.u32 %v1824, 16
      %v1976 = vrot.slane %v1974, 1
      %v1977 = vor.u32 %v1972, %v1976
      %v1979 = vshll.u32 %v1888, 16
      %v1981 = vrot.slane %v1979, 1
      %v1982 = vsel %vm1898, %v1977, %v1981
      %v1984 = vshrl.u32 %v1825, 16
      %v1986 = vshll.u32 %v1825, 16
      %v1988 = vrot.slane %v1986, 1
      %v1989 = vor.u32 %v1984, %v1988
      %v1991 = vshll.u32 %v1889, 16
      %v1993 = vrot.slane %v1991, 1
      %v1994 = vsel %vm1898, %v1989, %v1993
      %v1996 = vshrl.u32 %v1826, 16
      %v1998 = vshll.u32 %v1826, 16
      %v2000 = vrot.slane %v1998, 1
      %v2001 = vor.u32 %v1996, %v2000
      %v2003 = vshll.u32 %v1890, 16
      %v2005 = vrot.slane %v2003, 1
      %v2006 = vsel %vm1898, %v2001, %v2005
      %v2008 = vshrl.u32 %v1827, 16
      %v2010 = vshll.u32 %v1827, 16
      %v2012 = vrot.slane %v2010, 1
      %v2013 = vor.u32 %v2008, %v2012
      %v2015 = vshll.u32 %v1891, 16
      %v2017 = vrot.slane %v2015, 1
      %v2018 = vsel %vm1898, %v2013, %v2017
      %v2020 = vshrl.u32 %v1828, 16
      %v2022 = vshll.u32 %v1828, 16
      %v2024 = vrot.slane %v2022, 1
      %v2025 = vor.u32 %v2020, %v2024
      %v2027 = vshll.u32 %v1892, 16
      %v2029 = vrot.slane %v2027, 1
      %v2030 = vsel %vm1898, %v2025, %v2029
      %v2032 = vshrl.u32 %v1829, 16
      %v2034 = vshll.u32 %v1829, 16
      %v2036 = vrot.slane %v2034, 1
      %v2037 = vor.u32 %v2032, %v2036
      %v2039 = vshll.u32 %v1893, 16
      %v2041 = vrot.slane %v2039, 1
      %v2042 = vsel %vm1898, %v2037, %v2041
      %v2044 = vshrl.u32 %v1830, 16
      %v2046 = vshll.u32 %v1830, 16
      %v2048 = vrot.slane %v2046, 1
      %v2049 = vor.u32 %v2044, %v2048
      %v2051 = vshll.u32 %v1894, 16
      %v2053 = vrot.slane %v2051, 1
      %v2054 = vsel %vm1898, %v2049, %v2053
      %v2056 = vshrl.u32 %v1831, 16
      %v2058 = vshll.u32 %v1831, 16
      %v2060 = vrot.slane %v2058, 1
      %v2061 = vor.u32 %v2056, %v2060
      %v2063 = vshll.u32 %v1895, 16
      %v2065 = vrot.slane %v2063, 1
      %v2066 = vsel %vm1898, %v2061, %v2065
      %v2068 = vshrl.u32 %v1832, 16
      %v2070 = vshll.u32 %v1832, 16
      %v2072 = vrot.slane %v2070, 1
      %v2073 = vor.u32 %v2068, %v2072
      %v2075 = vshll.u32 %v1896, 16
      %v2077 = vrot.slane %v2075, 1
      %v2078 = vsel %vm1898, %v2073, %v2077
      %v2080 = vshrl.u32 %v1833, 16
      %v2082 = vshll.u32 %v1833, 16
      %v2084 = vrot.slane %v2082, 1
      %v2085 = vor.u32 %v2080, %v2084
      %v2087 = vshll.u32 %v1897, 16
      %v2089 = vrot.slane %v2087, 1
      %v2090 = vsel %vm1898, %v2085, %v2089
      %v2123 = vunpack.c.l.b16 %v1738
      %v2124 = vunpack.c.l.b16 %v1739
      %v2125 = vunpack.c.l.b16 %v1740
      %v2126 = vunpack.c.l.b16 %v1741
      %v2127 = vunpack.c.l.b16 %v1742
      %v2128 = vunpack.c.l.b16 %v1743
      %v2129 = vunpack.c.l.b16 %v1744
      %v2130 = vunpack.c.l.b16 %v1745
      %v2131 = vunpack.c.l.b16 %v1746
      %v2132 = vunpack.c.l.b16 %v1747
      %v2133 = vunpack.c.l.b16 %v1748
      %v2134 = vunpack.c.l.b16 %v1749
      %v2135 = vunpack.c.l.b16 %v1750
      %v2136 = vunpack.c.l.b16 %v1751
      %v2137 = vunpack.c.l.b16 %v1752
      %v2138 = vunpack.c.l.b16 %v1753
      %v2139 = vpack.c.b16 %v1787, %v2123
      %v2140 = vpack.c.b16 %v1789, %v2124
      %v2141 = vpack.c.b16 %v1791, %v2125
      %v2142 = vpack.c.b16 %v1793, %v2126
      %v2143 = vpack.c.b16 %v1795, %v2127
      %v2144 = vpack.c.b16 %v1797, %v2128
      %v2145 = vpack.c.b16 %v1799, %v2129
      %v2146 = vpack.c.b16 %v1801, %v2130
      %v2147 = vpack.c.b16 %v1803, %v2131
      %v2148 = vpack.c.b16 %v1805, %v2132
      %v2149 = vpack.c.b16 %v1807, %v2133
      %v2150 = vpack.c.b16 %v1809, %v2134
      %v2151 = vpack.c.b16 %v1811, %v2135
      %v2152 = vpack.c.b16 %v1813, %v2136
      %v2153 = vpack.c.b16 %v1815, %v2137
      %v2154 = vpack.c.b16 %v1817, %v2138
      %vm2155 = vcmask 1046528
      %v2156 = vrot.slane %v2139, 1
      %v2157 = vrot.slane %v1882, 1
      %v2158 = vsel %vm2155, %v2156, %v2157
      %v2159 = vrot.slane %v2140, 1
      %v2160 = vrot.slane %v1883, 1
      %v2161 = vsel %vm2155, %v2159, %v2160
      %v2162 = vrot.slane %v2141, 1
      %v2163 = vrot.slane %v1884, 1
      %v2164 = vsel %vm2155, %v2162, %v2163
      %v2165 = vrot.slane %v2142, 1
      %v2166 = vrot.slane %v1885, 1
      %v2167 = vsel %vm2155, %v2165, %v2166
      %v2168 = vrot.slane %v2143, 1
      %v2169 = vrot.slane %v1886, 1
      %v2170 = vsel %vm2155, %v2168, %v2169
      %v2171 = vrot.slane %v2144, 1
      %v2172 = vrot.slane %v1887, 1
      %v2173 = vsel %vm2155, %v2171, %v2172
      %v2174 = vrot.slane %v2145, 1
      %v2175 = vrot.slane %v1888, 1
      %v2176 = vsel %vm2155, %v2174, %v2175
      %v2177 = vrot.slane %v2146, 1
      %v2178 = vrot.slane %v1889, 1
      %v2179 = vsel %vm2155, %v2177, %v2178
      %v2180 = vrot.slane %v2147, 1
      %v2181 = vrot.slane %v1890, 1
      %v2182 = vsel %vm2155, %v2180, %v2181
      %v2183 = vrot.slane %v2148, 1
      %v2184 = vrot.slane %v1891, 1
      %v2185 = vsel %vm2155, %v2183, %v2184
      %v2186 = vrot.slane %v2149, 1
      %v2187 = vrot.slane %v1892, 1
      %v2188 = vsel %vm2155, %v2186, %v2187
      %v2189 = vrot.slane %v2150, 1
      %v2190 = vrot.slane %v1893, 1
      %v2191 = vsel %vm2155, %v2189, %v2190
      %v2192 = vrot.slane %v2151, 1
      %v2193 = vrot.slane %v1894, 1
      %v2194 = vsel %vm2155, %v2192, %v2193
      %v2195 = vrot.slane %v2152, 1
      %v2196 = vrot.slane %v1895, 1
      %v2197 = vsel %vm2155, %v2195, %v2196
      %v2198 = vrot.slane %v2153, 1
      %v2199 = vrot.slane %v1896, 1
      %v2200 = vsel %vm2155, %v2198, %v2199
      %v2201 = vrot.slane %v2154, 1
      %v2202 = vrot.slane %v1897, 1
      %v2203 = vsel %vm2155, %v2201, %v2202
      %v2220 = vld [vmem:[%s3] sm:$0xf]
      %v2221 = vld [vmem:[%s3 + $0x4] sm:$0xf]
      %v2222 = vld [vmem:[%s3 + $0x8] sm:$0xf]
      %v2223 = vld [vmem:[%s3 + $0xc] sm:$0xf]
      %v2224 = vld [vmem:[%s3 + $0x10] sm:$0xf]
      %v2225 = vld [vmem:[%s3 + $0x14] sm:$0xf]
      %v2226 = vld [vmem:[%s3 + $0x18] sm:$0xf]
      %v2227 = vld [vmem:[%s3 + $0x1c] sm:$0xf]
      %v2228 = vld [vmem:[%s3 + $0x20] sm:$0xf]
      %v2229 = vld [vmem:[%s3 + $0x24] sm:$0xf]
      %v2230 = vld [vmem:[%s3 + $0x28] sm:$0xf]
      %v2231 = vld [vmem:[%s3 + $0x2c] sm:$0xf]
      %v2232 = vld [vmem:[%s3 + $0x30] sm:$0xf]
      %v2233 = vld [vmem:[%s3 + $0x34] sm:$0xf]
      %v2234 = vld [vmem:[%s3 + $0x38] sm:$0xf]
      %v2235 = vld [vmem:[%s3 + $0x3c] sm:$0xf]
      %v2236 = vld [vmem:[%s3 + $0x40] sm:$0xf]
      %v2237 = vld [vmem:[%s3 + $0x44] sm:$0xf]
      %v2238 = vld [vmem:[%s3 + $0x48] sm:$0xf]
      %v2239 = vld [vmem:[%s3 + $0x4c] sm:$0xf]
      %v2240 = vld [vmem:[%s3 + $0x50] sm:$0xf]
      %v2241 = vld [vmem:[%s3 + $0x54] sm:$0xf]
      %v2242 = vld [vmem:[%s3 + $0x58] sm:$0xf]
      %v2243 = vld [vmem:[%s3 + $0x5c] sm:$0xf]
      %v2244 = vld [vmem:[%s3 + $0x60] sm:$0xf]
      %v2245 = vld [vmem:[%s3 + $0x64] sm:$0xf]
      %v2246 = vld [vmem:[%s3 + $0x68] sm:$0xf]
      %v2247 = vld [vmem:[%s3 + $0x6c] sm:$0xf]
      %v2248 = vld [vmem:[%s3 + $0x70] sm:$0xf]
      %v2249 = vld [vmem:[%s3 + $0x74] sm:$0xf]
      %v2250 = vld [vmem:[%s3 + $0x78] sm:$0xf]
      %v2251 = vld [vmem:[%s3 + $0x7c] sm:$0xf]
      %v2252 = vld [vmem:[%s3 + $0x80] sm:$0xf]
      %v2253 = vld [vmem:[%s3 + $0x84] sm:$0xf]
      %v2254 = vld [vmem:[%s3 + $0x88] sm:$0xf]
      %v2255 = vld [vmem:[%s3 + $0x8c] sm:$0xf]
      %v2256 = vld [vmem:[%s3 + $0x90] sm:$0xf]
      %v2257 = vld [vmem:[%s3 + $0x94] sm:$0xf]
      %v2258 = vld [vmem:[%s3 + $0x98] sm:$0xf]
      %v2259 = vld [vmem:[%s3 + $0x9c] sm:$0xf]
      %v2260 = vld [vmem:[%s3 + $0xa0] sm:$0xf]
      %v2261 = vld [vmem:[%s3 + $0xa4] sm:$0xf]
      %v2262 = vld [vmem:[%s3 + $0xa8] sm:$0xf]
      %v2263 = vld [vmem:[%s3 + $0xac] sm:$0xf]
      %v2264 = vld [vmem:[%s3 + $0xb0] sm:$0xf]
      %v2265 = vld [vmem:[%s3 + $0xb4] sm:$0xf]
      %v2266 = vld [vmem:[%s3 + $0xb8] sm:$0xf]
      %v2267 = vld [vmem:[%s3 + $0xbc] sm:$0xf]
      %v2316 = vunpack.c.l.b16 %v2220
      %v2317 = vunpack.c.l.b16 %v2221
      %v2318 = vunpack.c.l.b16 %v2222
      %v2319 = vunpack.c.l.b16 %v2223
      %v2320 = vunpack.c.l.b16 %v2224
      %v2321 = vunpack.c.l.b16 %v2225
      %v2322 = vunpack.c.l.b16 %v2226
      %v2323 = vunpack.c.l.b16 %v2227
      %v2324 = vunpack.c.l.b16 %v2228
      %v2325 = vunpack.c.l.b16 %v2229
      %v2326 = vunpack.c.l.b16 %v2230
      %v2327 = vunpack.c.l.b16 %v2231
      %v2328 = vunpack.c.l.b16 %v2232
      %v2329 = vunpack.c.l.b16 %v2233
      %v2330 = vunpack.c.l.b16 %v2234
      %v2331 = vunpack.c.l.b16 %v2235
      %v2332 = vunpack.c.l.b16 %v2236
      %v2333 = vunpack.c.l.b16 %v2237
      %v2334 = vunpack.c.l.b16 %v2238
      %v2335 = vunpack.c.l.b16 %v2239
      %v2336 = vunpack.c.l.b16 %v2240
      %v2337 = vunpack.c.l.b16 %v2241
      %v2338 = vunpack.c.l.b16 %v2242
      %v2339 = vunpack.c.l.b16 %v2243
      %v2340 = vunpack.c.l.b16 %v2244
      %v2341 = vunpack.c.l.b16 %v2245
      %v2342 = vunpack.c.l.b16 %v2246
      %v2343 = vunpack.c.l.b16 %v2247
      %v2344 = vunpack.c.l.b16 %v2248
      %v2345 = vunpack.c.l.b16 %v2249
      %v2346 = vunpack.c.l.b16 %v2250
      %v2347 = vunpack.c.l.b16 %v2251
      %v2348 = vunpack.c.l.b16 %v2252
      %v2349 = vunpack.c.l.b16 %v2253
      %v2350 = vunpack.c.l.b16 %v2254
      %v2351 = vunpack.c.l.b16 %v2255
      %v2352 = vunpack.c.l.b16 %v2256
      %v2353 = vunpack.c.l.b16 %v2257
      %v2354 = vunpack.c.l.b16 %v2258
      %v2355 = vunpack.c.l.b16 %v2259
      %v2356 = vunpack.c.l.b16 %v2260
      %v2357 = vunpack.c.l.b16 %v2261
      %v2358 = vunpack.c.l.b16 %v2262
      %v2359 = vunpack.c.l.b16 %v2263
      %v2360 = vunpack.c.l.b16 %v2264
      %v2361 = vunpack.c.l.b16 %v2265
      %v2362 = vunpack.c.l.b16 %v2266
      %v2363 = vunpack.c.l.b16 %v2267
      %v2364 = vpack.c.b16 %v2317, %v2316
      %v2365 = vpack.c.b16 %v2319, %v2318
      %v2366 = vpack.c.b16 %v2321, %v2320
      %v2367 = vpack.c.b16 %v2323, %v2322
      %v2368 = vpack.c.b16 %v2325, %v2324
      %v2369 = vpack.c.b16 %v2327, %v2326
      %v2370 = vpack.c.b16 %v2329, %v2328
      %v2371 = vpack.c.b16 %v2331, %v2330
      %v2372 = vpack.c.b16 %v2333, %v2332
      %v2373 = vpack.c.b16 %v2335, %v2334
      %v2374 = vpack.c.b16 %v2337, %v2336
      %v2375 = vpack.c.b16 %v2339, %v2338
      %v2376 = vpack.c.b16 %v2341, %v2340
      %v2377 = vpack.c.b16 %v2343, %v2342
      %v2378 = vpack.c.b16 %v2345, %v2344
      %v2379 = vpack.c.b16 %v2347, %v2346
      %v2380 = vpack.c.b16 %v2349, %v2348
      %v2381 = vpack.c.b16 %v2351, %v2350
      %v2382 = vpack.c.b16 %v2353, %v2352
      %v2383 = vpack.c.b16 %v2355, %v2354
      %v2384 = vpack.c.b16 %v2357, %v2356
      %v2385 = vpack.c.b16 %v2359, %v2358
      %v2386 = vpack.c.b16 %v2361, %v2360
      %v2387 = vpack.c.b16 %v2363, %v2362
      %2412 = vmatpush.bf16.msra.mxu0 %v2371
      %2413 = vmatpush.bf16.msra.mxu0 %v2370
      %2414 = vmatpush.bf16.msra.mxu0 %v2369
      %2415 = vmatpush.bf16.msra.mxu0 %v2368
      %2416 = vmatpush.bf16.msra.mxu0 %v2367
      %2417 = vmatpush.bf16.msra.mxu0 %v2366
      %2418 = vmatpush.bf16.msra.mxu0 %v2365
      %2419 = vmatpush.bf16.msra.mxu0 %v2364
      %2420 = vmatmul.bf16.gmra.mxu0 %v1818
      %v2421 = vpop.f32.mrf.mxu0
      %v2422 = vadd.f32 0.0, %v2421
      %v2423 = vpop.f32.mrf.mxu0
      %v2424 = vadd.f32 0.0, %v2423
      %2425 = vmatmul.bf16.gmra.mxu0 %v1819
      %v2426 = vpop.f32.mrf.mxu0
      %v2427 = vadd.f32 0.0, %v2426
      %v2428 = vpop.f32.mrf.mxu0
      %v2429 = vadd.f32 0.0, %v2428
      %2430 = vmatmul.bf16.gmra.mxu0 %v1820
      %v2431 = vpop.f32.mrf.mxu0
      %v2432 = vadd.f32 0.0, %v2431
      %v2433 = vpop.f32.mrf.mxu0
      %v2434 = vadd.f32 0.0, %v2433
      %2435 = vmatmul.bf16.gmra.mxu0 %v1821
      %v2436 = vpop.f32.mrf.mxu0
      %v2437 = vadd.f32 0.0, %v2436
      %v2438 = vpop.f32.mrf.mxu0
      %v2439 = vadd.f32 0.0, %v2438
      %2440 = vmatmul.bf16.gmra.mxu0 %v1822
      %v2441 = vpop.f32.mrf.mxu0
      %v2442 = vadd.f32 0.0, %v2441
      %v2443 = vpop.f32.mrf.mxu0
      %v2444 = vadd.f32 0.0, %v2443
      %2445 = vmatmul.bf16.gmra.mxu0 %v1823
      %v2446 = vpop.f32.mrf.mxu0
      %v2447 = vadd.f32 0.0, %v2446
      %v2448 = vpop.f32.mrf.mxu0
      %v2449 = vadd.f32 0.0, %v2448
      %2450 = vmatmul.bf16.gmra.mxu0 %v1824
      %v2451 = vpop.f32.mrf.mxu0
      %v2452 = vadd.f32 0.0, %v2451
      %v2453 = vpop.f32.mrf.mxu0
      %v2454 = vadd.f32 0.0, %v2453
      %2455 = vmatmul.bf16.gmra.mxu0 %v1825
      %v2456 = vpop.f32.mrf.mxu0
      %v2457 = vadd.f32 0.0, %v2456
      %v2458 = vpop.f32.mrf.mxu0
      %v2459 = vadd.f32 0.0, %v2458
      %2460 = vmatmul.bf16.gmra.mxu0 %v1826
      %v2461 = vpop.f32.mrf.mxu0
      %v2462 = vadd.f32 0.0, %v2461
      %v2463 = vpop.f32.mrf.mxu0
      %v2464 = vadd.f32 0.0, %v2463
      %2465 = vmatmul.bf16.gmra.mxu0 %v1827
      %v2466 = vpop.f32.mrf.mxu0
      %v2467 = vadd.f32 0.0, %v2466
      %v2468 = vpop.f32.mrf.mxu0
      %v2469 = vadd.f32 0.0, %v2468
      %2470 = vmatmul.bf16.gmra.mxu0 %v1828
      %v2471 = vpop.f32.mrf.mxu0
      %v2472 = vadd.f32 0.0, %v2471
      %v2473 = vpop.f32.mrf.mxu0
      %v2474 = vadd.f32 0.0, %v2473
      %2475 = vmatmul.bf16.gmra.mxu0 %v1829
      %v2476 = vpop.f32.mrf.mxu0
      %v2477 = vadd.f32 0.0, %v2476
      %v2478 = vpop.f32.mrf.mxu0
      %v2479 = vadd.f32 0.0, %v2478
      %2480 = vmatmul.bf16.gmra.mxu0 %v1830
      %v2481 = vpop.f32.mrf.mxu0
      %v2482 = vadd.f32 0.0, %v2481
      %v2483 = vpop.f32.mrf.mxu0
      %v2484 = vadd.f32 0.0, %v2483
      %2485 = vmatmul.bf16.gmra.mxu0 %v1831
      %v2486 = vpop.f32.mrf.mxu0
      %v2487 = vadd.f32 0.0, %v2486
      %v2488 = vpop.f32.mrf.mxu0
      %v2489 = vadd.f32 0.0, %v2488
      %2490 = vmatmul.bf16.gmra.mxu0 %v1832
      %v2491 = vpop.f32.mrf.mxu0
      %v2492 = vadd.f32 0.0, %v2491
      %v2493 = vpop.f32.mrf.mxu0
      %v2494 = vadd.f32 0.0, %v2493
      %2495 = vmatmul.bf16.gmra.mxu0 %v1833
      %v2496 = vpop.f32.mrf.mxu0
      %v2497 = vadd.f32 0.0, %v2496
      %v2498 = vpop.f32.mrf.mxu0
      %v2499 = vadd.f32 0.0, %v2498
      %2500 = vdwg.mxu0
      %2501 = vmatpush.bf16.msra.mxu0 %v2379
      %2502 = vmatpush.bf16.msra.mxu0 %v2378
      %2503 = vmatpush.bf16.msra.mxu0 %v2377
      %2504 = vmatpush.bf16.msra.mxu0 %v2376
      %2505 = vmatpush.bf16.msra.mxu0 %v2375
      %2506 = vmatpush.bf16.msra.mxu0 %v2374
      %2507 = vmatpush.bf16.msra.mxu0 %v2373
      %2508 = vmatpush.bf16.msra.mxu0 %v2372
      %2509 = vmatmul.bf16.gmra.mxu0 %v1910
      %v2510 = vpop.f32.mrf.mxu0
      %v2511 = vadd.f32 %v2422, %v2510
      %v2512 = vpop.f32.mrf.mxu0
      %v2513 = vadd.f32 %v2424, %v2512
      %2514 = vmatmul.bf16.gmra.mxu0 %v1922
      %v2515 = vpop.f32.mrf.mxu0
      %v2516 = vadd.f32 %v2427, %v2515
      %v2517 = vpop.f32.mrf.mxu0
      %v2518 = vadd.f32 %v2429, %v2517
      %2519 = vmatmul.bf16.gmra.mxu0 %v1934
      %v2520 = vpop.f32.mrf.mxu0
      %v2521 = vadd.f32 %v2432, %v2520
      %v2522 = vpop.f32.mrf.mxu0
      %v2523 = vadd.f32 %v2434, %v2522
      %2524 = vmatmul.bf16.gmra.mxu0 %v1946
      %v2525 = vpop.f32.mrf.mxu0
      %v2526 = vadd.f32 %v2437, %v2525
      %v2527 = vpop.f32.mrf.mxu0
      %v2528 = vadd.f32 %v2439, %v2527
      %2529 = vmatmul.bf16.gmra.mxu0 %v1958
      %v2530 = vpop.f32.mrf.mxu0
      %v2531 = vadd.f32 %v2442, %v2530
      %v2532 = vpop.f32.mrf.mxu0
      %v2533 = vadd.f32 %v2444, %v2532
      %2534 = vmatmul.bf16.gmra.mxu0 %v1970
      %v2535 = vpop.f32.mrf.mxu0
      %v2536 = vadd.f32 %v2447, %v2535
      %v2537 = vpop.f32.mrf.mxu0
      %v2538 = vadd.f32 %v2449, %v2537
      %2539 = vmatmul.bf16.gmra.mxu0 %v1982
      %v2540 = vpop.f32.mrf.mxu0
      %v2541 = vadd.f32 %v2452, %v2540
      %v2542 = vpop.f32.mrf.mxu0
      %v2543 = vadd.f32 %v2454, %v2542
      %2544 = vmatmul.bf16.gmra.mxu0 %v1994
      %v2545 = vpop.f32.mrf.mxu0
      %v2546 = vadd.f32 %v2457, %v2545
      %v2547 = vpop.f32.mrf.mxu0
      %v2548 = vadd.f32 %v2459, %v2547
      %2549 = vmatmul.bf16.gmra.mxu0 %v2006
      %v2550 = vpop.f32.mrf.mxu0
      %v2551 = vadd.f32 %v2462, %v2550
      %v2552 = vpop.f32.mrf.mxu0
      %v2553 = vadd.f32 %v2464, %v2552
      %2554 = vmatmul.bf16.gmra.mxu0 %v2018
      %v2555 = vpop.f32.mrf.mxu0
      %v2556 = vadd.f32 %v2467, %v2555
      %v2557 = vpop.f32.mrf.mxu0
      %v2558 = vadd.f32 %v2469, %v2557
      %2559 = vmatmul.bf16.gmra.mxu0 %v2030
      %v2560 = vpop.f32.mrf.mxu0
      %v2561 = vadd.f32 %v2472, %v2560
      %v2562 = vpop.f32.mrf.mxu0
      %v2563 = vadd.f32 %v2474, %v2562
      %2564 = vmatmul.bf16.gmra.mxu0 %v2042
      %v2565 = vpop.f32.mrf.mxu0
      %v2566 = vadd.f32 %v2477, %v2565
      %v2567 = vpop.f32.mrf.mxu0
      %v2568 = vadd.f32 %v2479, %v2567
      %2569 = vmatmul.bf16.gmra.mxu0 %v2054
      %v2570 = vpop.f32.mrf.mxu0
      %v2571 = vadd.f32 %v2482, %v2570
      %v2572 = vpop.f32.mrf.mxu0
      %v2573 = vadd.f32 %v2484, %v2572
      %2574 = vmatmul.bf16.gmra.mxu0 %v2066
      %v2575 = vpop.f32.mrf.mxu0
      %v2576 = vadd.f32 %v2487, %v2575
      %v2577 = vpop.f32.mrf.mxu0
      %v2578 = vadd.f32 %v2489, %v2577
      %2579 = vmatmul.bf16.gmra.mxu0 %v2078
      %v2580 = vpop.f32.mrf.mxu0
      %v2581 = vadd.f32 %v2492, %v2580
      %v2582 = vpop.f32.mrf.mxu0
      %v2583 = vadd.f32 %v2494, %v2582
      %2584 = vmatmul.bf16.gmra.mxu0 %v2090
      %v2585 = vpop.f32.mrf.mxu0
      %v2586 = vadd.f32 %v2497, %v2585
      %v2587 = vpop.f32.mrf.mxu0
      %v2588 = vadd.f32 %v2499, %v2587
      %2589 = vdwg.mxu0
      %2590 = vmatpush.bf16.msra.mxu0 %v2387
      %2591 = vmatpush.bf16.msra.mxu0 %v2386
      %2592 = vmatpush.bf16.msra.mxu0 %v2385
      %2593 = vmatpush.bf16.msra.mxu0 %v2384
      %2594 = vmatpush.bf16.msra.mxu0 %v2383
      %2595 = vmatpush.bf16.msra.mxu0 %v2382
      %2596 = vmatpush.bf16.msra.mxu0 %v2381
      %2597 = vmatpush.bf16.msra.mxu0 %v2380
      %2598 = vmatmul.bf16.gmra.mxu0 %v2158
      %v2599 = vpop.f32.mrf.mxu0
      %v2600 = vadd.f32 %v2511, %v2599
      %v2601 = vpop.f32.mrf.mxu0
      %v2602 = vadd.f32 %v2513, %v2601
      %2603 = vmatmul.bf16.gmra.mxu0 %v2161
      %v2604 = vpop.f32.mrf.mxu0
      %v2605 = vadd.f32 %v2516, %v2604
      %v2606 = vpop.f32.mrf.mxu0
      %v2607 = vadd.f32 %v2518, %v2606
      %2608 = vmatmul.bf16.gmra.mxu0 %v2164
      %v2609 = vpop.f32.mrf.mxu0
      %v2610 = vadd.f32 %v2521, %v2609
      %v2611 = vpop.f32.mrf.mxu0
      %v2612 = vadd.f32 %v2523, %v2611
      %2613 = vmatmul.bf16.gmra.mxu0 %v2167
      %v2614 = vpop.f32.mrf.mxu0
      %v2615 = vadd.f32 %v2526, %v2614
      %v2616 = vpop.f32.mrf.mxu0
      %v2617 = vadd.f32 %v2528, %v2616
      %2618 = vmatmul.bf16.gmra.mxu0 %v2170
      %v2619 = vpop.f32.mrf.mxu0
      %v2620 = vadd.f32 %v2531, %v2619
      %v2621 = vpop.f32.mrf.mxu0
      %v2622 = vadd.f32 %v2533, %v2621
      %2623 = vmatmul.bf16.gmra.mxu0 %v2173
      %v2624 = vpop.f32.mrf.mxu0
      %v2625 = vadd.f32 %v2536, %v2624
      %v2626 = vpop.f32.mrf.mxu0
      %v2627 = vadd.f32 %v2538, %v2626
      %2628 = vmatmul.bf16.gmra.mxu0 %v2176
      %v2629 = vpop.f32.mrf.mxu0
      %v2630 = vadd.f32 %v2541, %v2629
      %v2631 = vpop.f32.mrf.mxu0
      %v2632 = vadd.f32 %v2543, %v2631
      %2633 = vmatmul.bf16.gmra.mxu0 %v2179
      %v2634 = vpop.f32.mrf.mxu0
      %v2635 = vadd.f32 %v2546, %v2634
      %v2636 = vpop.f32.mrf.mxu0
      %v2637 = vadd.f32 %v2548, %v2636
      %2638 = vmatmul.bf16.gmra.mxu0 %v2182
      %v2639 = vpop.f32.mrf.mxu0
      %v2640 = vadd.f32 %v2551, %v2639
      %v2641 = vpop.f32.mrf.mxu0
      %v2642 = vadd.f32 %v2553, %v2641
      %2643 = vmatmul.bf16.gmra.mxu0 %v2185
      %v2644 = vpop.f32.mrf.mxu0
      %v2645 = vadd.f32 %v2556, %v2644
      %v2646 = vpop.f32.mrf.mxu0
      %v2647 = vadd.f32 %v2558, %v2646
      %2648 = vmatmul.bf16.gmra.mxu0 %v2188
      %v2649 = vpop.f32.mrf.mxu0
      %v2650 = vadd.f32 %v2561, %v2649
      %v2651 = vpop.f32.mrf.mxu0
      %v2652 = vadd.f32 %v2563, %v2651
      %2653 = vmatmul.bf16.gmra.mxu0 %v2191
      %v2654 = vpop.f32.mrf.mxu0
      %v2655 = vadd.f32 %v2566, %v2654
      %v2656 = vpop.f32.mrf.mxu0
      %v2657 = vadd.f32 %v2568, %v2656
      %2658 = vmatmul.bf16.gmra.mxu0 %v2194
      %v2659 = vpop.f32.mrf.mxu0
      %v2660 = vadd.f32 %v2571, %v2659
      %v2661 = vpop.f32.mrf.mxu0
      %v2662 = vadd.f32 %v2573, %v2661
      %2663 = vmatmul.bf16.gmra.mxu0 %v2197
      %v2664 = vpop.f32.mrf.mxu0
      %v2665 = vadd.f32 %v2576, %v2664
      %v2666 = vpop.f32.mrf.mxu0
      %v2667 = vadd.f32 %v2578, %v2666
      %2668 = vmatmul.bf16.gmra.mxu0 %v2200
      %v2669 = vpop.f32.mrf.mxu0
      %v2670 = vadd.f32 %v2581, %v2669
      %v2671 = vpop.f32.mrf.mxu0
      %v2672 = vadd.f32 %v2583, %v2671
      %2673 = vmatmul.bf16.gmra.mxu0 %v2203
      %v2674 = vpop.f32.mrf.mxu0
      %v2675 = vadd.f32 %v2586, %v2674
      %v2676 = vpop.f32.mrf.mxu0
      %v2677 = vadd.f32 %v2588, %v2676
      %2678 = vdwg.mxu0
      %2679 = vst [vmem:[#allocation3] sm:$0xff] %v2600
      %2680 = vst [vmem:[#allocation3 + $0x8] sm:$0xff] %v2602
      %2681 = vst [vmem:[#allocation3 + $0x10] sm:$0xff] %v2605
      %2682 = vst [vmem:[#allocation3 + $0x18] sm:$0xff] %v2607
      %2683 = vst [vmem:[#allocation3 + $0x20] sm:$0xff] %v2610
      %2684 = vst [vmem:[#allocation3 + $0x28] sm:$0xff] %v2612
      %2685 = vst [vmem:[#allocation3 + $0x30] sm:$0xff] %v2615
      %2686 = vst [vmem:[#allocation3 + $0x38] sm:$0xff] %v2617
      %2687 = vst [vmem:[#allocation3 + $0x40] sm:$0xff] %v2620
      %2688 = vst [vmem:[#allocation3 + $0x48] sm:$0xff] %v2622
      %2689 = vst [vmem:[#allocation3 + $0x50] sm:$0xff] %v2625
      %2690 = vst [vmem:[#allocation3 + $0x58] sm:$0xff] %v2627
      %2691 = vst [vmem:[#allocation3 + $0x60] sm:$0xff] %v2630
      %2692 = vst [vmem:[#allocation3 + $0x68] sm:$0xff] %v2632
      %2693 = vst [vmem:[#allocation3 + $0x70] sm:$0xff] %v2635
      %2694 = vst [vmem:[#allocation3 + $0x78] sm:$0xff] %v2637
      %2695 = vst [vmem:[#allocation3 + $0x80] sm:$0xff] %v2640
      %2696 = vst [vmem:[#allocation3 + $0x88] sm:$0xff] %v2642
      %2697 = vst [vmem:[#allocation3 + $0x90] sm:$0xff] %v2645
      %2698 = vst [vmem:[#allocation3 + $0x98] sm:$0xff] %v2647
      %2699 = vst [vmem:[#allocation3 + $0xa0] sm:$0xff] %v2650
      %2700 = vst [vmem:[#allocation3 + $0xa8] sm:$0xff] %v2652
      %2701 = vst [vmem:[#allocation3 + $0xb0] sm:$0xff] %v2655
      %2702 = vst [vmem:[#allocation3 + $0xb8] sm:$0xff] %v2657
      %2703 = vst [vmem:[#allocation3 + $0xc0] sm:$0xff] %v2660
      %2704 = vst [vmem:[#allocation3 + $0xc8] sm:$0xff] %v2662
      %2705 = vst [vmem:[#allocation3 + $0xd0] sm:$0xff] %v2665
      %2706 = vst [vmem:[#allocation3 + $0xd8] sm:$0xff] %v2667
      %2707 = vst [vmem:[#allocation3 + $0xe0] sm:$0xff] %v2670
      %2708 = vst [vmem:[#allocation3 + $0xe8] sm:$0xff] %v2672
      %2709 = vst [vmem:[#allocation3 + $0xf0] sm:$0xff] %v2675
      %2710 = vst [vmem:[#allocation3 + $0xf8] sm:$0xff] %v2677
      %v2711 = vld [vmem:[%s1120] sm:$0xf]
      %v2712 = vld [vmem:[%s1120 + $0x4] sm:$0xf]
      %v2713 = vld [vmem:[%s1120 + $0xc] sm:$0xf]
      %v2714 = vld [vmem:[%s1120 + $0x10] sm:$0xf]
      %v2715 = vld [vmem:[%s1120 + $0x18] sm:$0xf]
      %v2716 = vld [vmem:[%s1120 + $0x1c] sm:$0xf]
      %v2717 = vld [vmem:[%s1120 + $0x24] sm:$0xf]
      %v2718 = vld [vmem:[%s1120 + $0x28] sm:$0xf]
      %v2719 = vld [vmem:[%s1120 + $0x30] sm:$0xf]
      %v2720 = vld [vmem:[%s1120 + $0x34] sm:$0xf]
      %v2721 = vld [vmem:[%s1120 + $0x3c] sm:$0xf]
      %v2722 = vld [vmem:[%s1120 + $0x40] sm:$0xf]
      %v2723 = vld [vmem:[%s1120 + $0x48] sm:$0xf]
      %v2724 = vld [vmem:[%s1120 + $0x4c] sm:$0xf]
      %v2725 = vld [vmem:[%s1120 + $0x54] sm:$0xf]
      %v2726 = vld [vmem:[%s1120 + $0x58] sm:$0xf]
      %v2727 = vld [vmem:[%s1120 + $0x60] sm:$0xf]
      %v2728 = vld [vmem:[%s1120 + $0x64] sm:$0xf]
      %v2729 = vld [vmem:[%s1120 + $0x6c] sm:$0xf]
      %v2730 = vld [vmem:[%s1120 + $0x70] sm:$0xf]
      %v2731 = vld [vmem:[%s1120 + $0x78] sm:$0xf]
      %v2732 = vld [vmem:[%s1120 + $0x7c] sm:$0xf]
      %v2733 = vld [vmem:[%s1120 + $0x84] sm:$0xf]
      %v2734 = vld [vmem:[%s1120 + $0x88] sm:$0xf]
      %v2735 = vld [vmem:[%s1120 + $0x90] sm:$0xf]
      %v2736 = vld [vmem:[%s1120 + $0x94] sm:$0xf]
      %v2737 = vld [vmem:[%s1120 + $0x9c] sm:$0xf]
      %v2738 = vld [vmem:[%s1120 + $0xa0] sm:$0xf]
      %v2739 = vld [vmem:[%s1120 + $0xa8] sm:$0xf]
      %v2740 = vld [vmem:[%s1120 + $0xac] sm:$0xf]
      %v2741 = vld [vmem:[%s1120 + $0xb4] sm:$0xf]
      %v2742 = vld [vmem:[%s1120 + $0xb8] sm:$0xf]
      %v2743 = vld [vmem:[%s1120 + $0x8] sm:$0x1]
      %v2744 = vld [vmem:[%s1120 + $0x14] sm:$0x1]
      %v2745 = vld [vmem:[%s1120 + $0x20] sm:$0x1]
      %v2746 = vld [vmem:[%s1120 + $0x2c] sm:$0x1]
      %v2747 = vld [vmem:[%s1120 + $0x38] sm:$0x1]
      %v2748 = vld [vmem:[%s1120 + $0x44] sm:$0x1]
      %v2749 = vld [vmem:[%s1120 + $0x50] sm:$0x1]
      %v2750 = vld [vmem:[%s1120 + $0x5c] sm:$0x1]
      %v2751 = vld [vmem:[%s1120 + $0x68] sm:$0x1]
      %v2752 = vld [vmem:[%s1120 + $0x74] sm:$0x1]
      %v2753 = vld [vmem:[%s1120 + $0x80] sm:$0x1]
      %v2754 = vld [vmem:[%s1120 + $0x8c] sm:$0x1]
      %v2755 = vld [vmem:[%s1120 + $0x98] sm:$0x1]
      %v2756 = vld [vmem:[%s1120 + $0xa4] sm:$0x1]
      %v2757 = vld [vmem:[%s1120 + $0xb0] sm:$0x1]
      %v2758 = vld [vmem:[%s1120 + $0xbc] sm:$0x1]
      %v2759 = vld [vmem:[%s1120] sm:$0xe]
      %v2760 = vld [vmem:[%s1120 + $0xc] sm:$0xe]
      %v2761 = vld [vmem:[%s1120 + $0x18] sm:$0xe]
      %v2762 = vld [vmem:[%s1120 + $0x24] sm:$0xe]
      %v2763 = vld [vmem:[%s1120 + $0x30] sm:$0xe]
      %v2764 = vld [vmem:[%s1120 + $0x3c] sm:$0xe]
      %v2765 = vld [vmem:[%s1120 + $0x48] sm:$0xe]
      %v2766 = vld [vmem:[%s1120 + $0x54] sm:$0xe]
      %v2767 = vld [vmem:[%s1120 + $0x60] sm:$0xe]
      %v2768 = vld [vmem:[%s1120 + $0x6c] sm:$0xe]
      %v2769 = vld [vmem:[%s1120 + $0x78] sm:$0xe]
      %v2770 = vld [vmem:[%s1120 + $0x84] sm:$0xe]
      %v2771 = vld [vmem:[%s1120 + $0x90] sm:$0xe]
      %v2772 = vld [vmem:[%s1120 + $0x9c] sm:$0xe]
      %v2773 = vld [vmem:[%s1120 + $0xa8] sm:$0xe]
      %v2774 = vld [vmem:[%s1120 + $0xb4] sm:$0xe]
      %v2807 = vunpack.c.l.b16 %v2711
      %v2808 = vunpack.c.l.b16 %v2712
      %v2809 = vunpack.c.l.b16 %v2713
      %v2810 = vunpack.c.l.b16 %v2714
      %v2811 = vunpack.c.l.b16 %v2715
      %v2812 = vunpack.c.l.b16 %v2716
      %v2813 = vunpack.c.l.b16 %v2717
      %v2814 = vunpack.c.l.b16 %v2718
      %v2815 = vunpack.c.l.b16 %v2719
      %v2816 = vunpack.c.l.b16 %v2720
      %v2817 = vunpack.c.l.b16 %v2721
      %v2818 = vunpack.c.l.b16 %v2722
      %v2819 = vunpack.c.l.b16 %v2723
      %v2820 = vunpack.c.l.b16 %v2724
      %v2821 = vunpack.c.l.b16 %v2725
      %v2822 = vunpack.c.l.b16 %v2726
      %v2823 = vunpack.c.l.b16 %v2727
      %v2824 = vunpack.c.l.b16 %v2728
      %v2825 = vunpack.c.l.b16 %v2729
      %v2826 = vunpack.c.l.b16 %v2730
      %v2827 = vunpack.c.l.b16 %v2731
      %v2828 = vunpack.c.l.b16 %v2732
      %v2829 = vunpack.c.l.b16 %v2733
      %v2830 = vunpack.c.l.b16 %v2734
      %v2831 = vunpack.c.l.b16 %v2735
      %v2832 = vunpack.c.l.b16 %v2736
      %v2833 = vunpack.c.l.b16 %v2737
      %v2834 = vunpack.c.l.b16 %v2738
      %v2835 = vunpack.c.l.b16 %v2739
      %v2836 = vunpack.c.l.b16 %v2740
      %v2837 = vunpack.c.l.b16 %v2741
      %v2838 = vunpack.c.l.b16 %v2742
      %v2839 = vpack.c.b16 %v2808, %v2807
      %v2840 = vpack.c.b16 %v2810, %v2809
      %v2841 = vpack.c.b16 %v2812, %v2811
      %v2842 = vpack.c.b16 %v2814, %v2813
      %v2843 = vpack.c.b16 %v2816, %v2815
      %v2844 = vpack.c.b16 %v2818, %v2817
      %v2845 = vpack.c.b16 %v2820, %v2819
      %v2846 = vpack.c.b16 %v2822, %v2821
      %v2847 = vpack.c.b16 %v2824, %v2823
      %v2848 = vpack.c.b16 %v2826, %v2825
      %v2849 = vpack.c.b16 %v2828, %v2827
      %v2850 = vpack.c.b16 %v2830, %v2829
      %v2851 = vpack.c.b16 %v2832, %v2831
      %v2852 = vpack.c.b16 %v2834, %v2833
      %v2853 = vpack.c.b16 %v2836, %v2835
      %v2854 = vpack.c.b16 %v2838, %v2837
      %v2887 = vunpack.c.l.b16 %v2743
      %v2888 = vunpack.c.l.b16 %v2744
      %v2889 = vunpack.c.l.b16 %v2745
      %v2890 = vunpack.c.l.b16 %v2746
      %v2891 = vunpack.c.l.b16 %v2747
      %v2892 = vunpack.c.l.b16 %v2748
      %v2893 = vunpack.c.l.b16 %v2749
      %v2894 = vunpack.c.l.b16 %v2750
      %v2895 = vunpack.c.l.b16 %v2751
      %v2896 = vunpack.c.l.b16 %v2752
      %v2897 = vunpack.c.l.b16 %v2753
      %v2898 = vunpack.c.l.b16 %v2754
      %v2899 = vunpack.c.l.b16 %v2755
      %v2900 = vunpack.c.l.b16 %v2756
      %v2901 = vunpack.c.l.b16 %v2757
      %v2902 = vunpack.c.l.b16 %v2758
      %v2903 = vpack.c.b16 %v2887, %v2887
      %v2904 = vpack.c.b16 %v2888, %v2888
      %v2905 = vpack.c.b16 %v2889, %v2889
      %v2906 = vpack.c.b16 %v2890, %v2890
      %v2907 = vpack.c.b16 %v2891, %v2891
      %v2908 = vpack.c.b16 %v2892, %v2892
      %v2909 = vpack.c.b16 %v2893, %v2893
      %v2910 = vpack.c.b16 %v2894, %v2894
      %v2911 = vpack.c.b16 %v2895, %v2895
      %v2912 = vpack.c.b16 %v2896, %v2896
      %v2913 = vpack.c.b16 %v2897, %v2897
      %v2914 = vpack.c.b16 %v2898, %v2898
      %v2915 = vpack.c.b16 %v2899, %v2899
      %v2916 = vpack.c.b16 %v2900, %v2900
      %v2917 = vpack.c.b16 %v2901, %v2901
      %v2918 = vpack.c.b16 %v2902, %v2902
      %v2920 = vshrl.u32 %v2839, 16
      %v2922 = vshll.u32 %v2839, 16
      %v2924 = vrot.slane %v2922, 1
      %v2925 = vor.u32 %v2920, %v2924
      %v2927 = vshll.u32 %v2903, 16
      %v2929 = vrot.slane %v2927, 1
      %v2930 = vsel %vm1898, %v2925, %v2929
      %v2932 = vshrl.u32 %v2840, 16
      %v2934 = vshll.u32 %v2840, 16
      %v2936 = vrot.slane %v2934, 1
      %v2937 = vor.u32 %v2932, %v2936
      %v2939 = vshll.u32 %v2904, 16
      %v2941 = vrot.slane %v2939, 1
      %v2942 = vsel %vm1898, %v2937, %v2941
      %v2944 = vshrl.u32 %v2841, 16
      %v2946 = vshll.u32 %v2841, 16
      %v2948 = vrot.slane %v2946, 1
      %v2949 = vor.u32 %v2944, %v2948
      %v2951 = vshll.u32 %v2905, 16
      %v2953 = vrot.slane %v2951, 1
      %v2954 = vsel %vm1898, %v2949, %v2953
      %v2956 = vshrl.u32 %v2842, 16
      %v2958 = vshll.u32 %v2842, 16
      %v2960 = vrot.slane %v2958, 1
      %v2961 = vor.u32 %v2956, %v2960
      %v2963 = vshll.u32 %v2906, 16
      %v2965 = vrot.slane %v2963, 1
      %v2966 = vsel %vm1898, %v2961, %v2965
      %v2968 = vshrl.u32 %v2843, 16
      %v2970 = vshll.u32 %v2843, 16
      %v2972 = vrot.slane %v2970, 1
      %v2973 = vor.u32 %v2968, %v2972
      %v2975 = vshll.u32 %v2907, 16
      %v2977 = vrot.slane %v2975, 1
      %v2978 = vsel %vm1898, %v2973, %v2977
      %v2980 = vshrl.u32 %v2844, 16
      %v2982 = vshll.u32 %v2844, 16
      %v2984 = vrot.slane %v2982, 1
      %v2985 = vor.u32 %v2980, %v2984
      %v2987 = vshll.u32 %v2908, 16
      %v2989 = vrot.slane %v2987, 1
      %v2990 = vsel %vm1898, %v2985, %v2989
      %v2992 = vshrl.u32 %v2845, 16
      %v2994 = vshll.u32 %v2845, 16
      %v2996 = vrot.slane %v2994, 1
      %v2997 = vor.u32 %v2992, %v2996
      %v2999 = vshll.u32 %v2909, 16
      %v3001 = vrot.slane %v2999, 1
      %v3002 = vsel %vm1898, %v2997, %v3001
      %v3004 = vshrl.u32 %v2846, 16
      %v3006 = vshll.u32 %v2846, 16
      %v3008 = vrot.slane %v3006, 1
      %v3009 = vor.u32 %v3004, %v3008
      %v3011 = vshll.u32 %v2910, 16
      %v3013 = vrot.slane %v3011, 1
      %v3014 = vsel %vm1898, %v3009, %v3013
      %v3016 = vshrl.u32 %v2847, 16
      %v3018 = vshll.u32 %v2847, 16
      %v3020 = vrot.slane %v3018, 1
      %v3021 = vor.u32 %v3016, %v3020
      %v3023 = vshll.u32 %v2911, 16
      %v3025 = vrot.slane %v3023, 1
      %v3026 = vsel %vm1898, %v3021, %v3025
      %v3028 = vshrl.u32 %v2848, 16
      %v3030 = vshll.u32 %v2848, 16
      %v3032 = vrot.slane %v3030, 1
      %v3033 = vor.u32 %v3028, %v3032
      %v3035 = vshll.u32 %v2912, 16
      %v3037 = vrot.slane %v3035, 1
      %v3038 = vsel %vm1898, %v3033, %v3037
      %v3040 = vshrl.u32 %v2849, 16
      %v3042 = vshll.u32 %v2849, 16
      %v3044 = vrot.slane %v3042, 1
      %v3045 = vor.u32 %v3040, %v3044
      %v3047 = vshll.u32 %v2913, 16
      %v3049 = vrot.slane %v3047, 1
      %v3050 = vsel %vm1898, %v3045, %v3049
      %v3052 = vshrl.u32 %v2850, 16
      %v3054 = vshll.u32 %v2850, 16
      %v3056 = vrot.slane %v3054, 1
      %v3057 = vor.u32 %v3052, %v3056
      %v3059 = vshll.u32 %v2914, 16
      %v3061 = vrot.slane %v3059, 1
      %v3062 = vsel %vm1898, %v3057, %v3061
      %v3064 = vshrl.u32 %v2851, 16
      %v3066 = vshll.u32 %v2851, 16
      %v3068 = vrot.slane %v3066, 1
      %v3069 = vor.u32 %v3064, %v3068
      %v3071 = vshll.u32 %v2915, 16
      %v3073 = vrot.slane %v3071, 1
      %v3074 = vsel %vm1898, %v3069, %v3073
      %v3076 = vshrl.u32 %v2852, 16
      %v3078 = vshll.u32 %v2852, 16
      %v3080 = vrot.slane %v3078, 1
      %v3081 = vor.u32 %v3076, %v3080
      %v3083 = vshll.u32 %v2916, 16
      %v3085 = vrot.slane %v3083, 1
      %v3086 = vsel %vm1898, %v3081, %v3085
      %v3088 = vshrl.u32 %v2853, 16
      %v3090 = vshll.u32 %v2853, 16
      %v3092 = vrot.slane %v3090, 1
      %v3093 = vor.u32 %v3088, %v3092
      %v3095 = vshll.u32 %v2917, 16
      %v3097 = vrot.slane %v3095, 1
      %v3098 = vsel %vm1898, %v3093, %v3097
      %v3100 = vshrl.u32 %v2854, 16
      %v3102 = vshll.u32 %v2854, 16
      %v3104 = vrot.slane %v3102, 1
      %v3105 = vor.u32 %v3100, %v3104
      %v3107 = vshll.u32 %v2918, 16
      %v3109 = vrot.slane %v3107, 1
      %v3110 = vsel %vm1898, %v3105, %v3109
      %v3143 = vunpack.c.l.b16 %v2759
      %v3144 = vunpack.c.l.b16 %v2760
      %v3145 = vunpack.c.l.b16 %v2761
      %v3146 = vunpack.c.l.b16 %v2762
      %v3147 = vunpack.c.l.b16 %v2763
      %v3148 = vunpack.c.l.b16 %v2764
      %v3149 = vunpack.c.l.b16 %v2765
      %v3150 = vunpack.c.l.b16 %v2766
      %v3151 = vunpack.c.l.b16 %v2767
      %v3152 = vunpack.c.l.b16 %v2768
      %v3153 = vunpack.c.l.b16 %v2769
      %v3154 = vunpack.c.l.b16 %v2770
      %v3155 = vunpack.c.l.b16 %v2771
      %v3156 = vunpack.c.l.b16 %v2772
      %v3157 = vunpack.c.l.b16 %v2773
      %v3158 = vunpack.c.l.b16 %v2774
      %v3159 = vpack.c.b16 %v2808, %v3143
      %v3160 = vpack.c.b16 %v2810, %v3144
      %v3161 = vpack.c.b16 %v2812, %v3145
      %v3162 = vpack.c.b16 %v2814, %v3146
      %v3163 = vpack.c.b16 %v2816, %v3147
      %v3164 = vpack.c.b16 %v2818, %v3148
      %v3165 = vpack.c.b16 %v2820, %v3149
      %v3166 = vpack.c.b16 %v2822, %v3150
      %v3167 = vpack.c.b16 %v2824, %v3151
      %v3168 = vpack.c.b16 %v2826, %v3152
      %v3169 = vpack.c.b16 %v2828, %v3153
      %v3170 = vpack.c.b16 %v2830, %v3154
      %v3171 = vpack.c.b16 %v2832, %v3155
      %v3172 = vpack.c.b16 %v2834, %v3156
      %v3173 = vpack.c.b16 %v2836, %v3157
      %v3174 = vpack.c.b16 %v2838, %v3158
      %v3175 = vrot.slane %v3159, 1
      %v3176 = vrot.slane %v2903, 1
      %v3177 = vsel %vm2155, %v3175, %v3176
      %v3178 = vrot.slane %v3160, 1
      %v3179 = vrot.slane %v2904, 1
      %v3180 = vsel %vm2155, %v3178, %v3179
      %v3181 = vrot.slane %v3161, 1
      %v3182 = vrot.slane %v2905, 1
      %v3183 = vsel %vm2155, %v3181, %v3182
      %v3184 = vrot.slane %v3162, 1
      %v3185 = vrot.slane %v2906, 1
      %v3186 = vsel %vm2155, %v3184, %v3185
      %v3187 = vrot.slane %v3163, 1
      %v3188 = vrot.slane %v2907, 1
      %v3189 = vsel %vm2155, %v3187, %v3188
      %v3190 = vrot.slane %v3164, 1
      %v3191 = vrot.slane %v2908, 1
      %v3192 = vsel %vm2155, %v3190, %v3191
      %v3193 = vrot.slane %v3165, 1
      %v3194 = vrot.slane %v2909, 1
      %v3195 = vsel %vm2155, %v3193, %v3194
      %v3196 = vrot.slane %v3166, 1
      %v3197 = vrot.slane %v2910, 1
      %v3198 = vsel %vm2155, %v3196, %v3197
      %v3199 = vrot.slane %v3167, 1
      %v3200 = vrot.slane %v2911, 1
      %v3201 = vsel %vm2155, %v3199, %v3200
      %v3202 = vrot.slane %v3168, 1
      %v3203 = vrot.slane %v2912, 1
      %v3204 = vsel %vm2155, %v3202, %v3203
      %v3205 = vrot.slane %v3169, 1
      %v3206 = vrot.slane %v2913, 1
      %v3207 = vsel %vm2155, %v3205, %v3206
      %v3208 = vrot.slane %v3170, 1
      %v3209 = vrot.slane %v2914, 1
      %v3210 = vsel %vm2155, %v3208, %v3209
      %v3211 = vrot.slane %v3171, 1
      %v3212 = vrot.slane %v2915, 1
      %v3213 = vsel %vm2155, %v3211, %v3212
      %v3214 = vrot.slane %v3172, 1
      %v3215 = vrot.slane %v2916, 1
      %v3216 = vsel %vm2155, %v3214, %v3215
      %v3217 = vrot.slane %v3173, 1
      %v3218 = vrot.slane %v2917, 1
      %v3219 = vsel %vm2155, %v3217, %v3218
      %v3220 = vrot.slane %v3174, 1
      %v3221 = vrot.slane %v2918, 1
      %v3222 = vsel %vm2155, %v3220, %v3221
      %s3239 = scalar_lea.vmem %s3, 192
      %v3240 = vld [vmem:[%s3239] sm:$0xf]
      %v3241 = vld [vmem:[%s3239 + $0x4] sm:$0xf]
      %v3242 = vld [vmem:[%s3239 + $0x8] sm:$0xf]
      %v3243 = vld [vmem:[%s3239 + $0xc] sm:$0xf]
      %v3244 = vld [vmem:[%s3239 + $0x10] sm:$0xf]
      %v3245 = vld [vmem:[%s3239 + $0x14] sm:$0xf]
      %v3246 = vld [vmem:[%s3239 + $0x18] sm:$0xf]
      %v3247 = vld [vmem:[%s3239 + $0x1c] sm:$0xf]
      %v3248 = vld [vmem:[%s3239 + $0x20] sm:$0xf]
      %v3249 = vld [vmem:[%s3239 + $0x24] sm:$0xf]
      %v3250 = vld [vmem:[%s3239 + $0x28] sm:$0xf]
      %v3251 = vld [vmem:[%s3239 + $0x2c] sm:$0xf]
      %v3252 = vld [vmem:[%s3239 + $0x30] sm:$0xf]
      %v3253 = vld [vmem:[%s3239 + $0x34] sm:$0xf]
      %v3254 = vld [vmem:[%s3239 + $0x38] sm:$0xf]
      %v3255 = vld [vmem:[%s3239 + $0x3c] sm:$0xf]
      %v3256 = vld [vmem:[%s3239 + $0x40] sm:$0xf]
      %v3257 = vld [vmem:[%s3239 + $0x44] sm:$0xf]
      %v3258 = vld [vmem:[%s3239 + $0x48] sm:$0xf]
      %v3259 = vld [vmem:[%s3239 + $0x4c] sm:$0xf]
      %v3260 = vld [vmem:[%s3239 + $0x50] sm:$0xf]
      %v3261 = vld [vmem:[%s3239 + $0x54] sm:$0xf]
      %v3262 = vld [vmem:[%s3239 + $0x58] sm:$0xf]
      %v3263 = vld [vmem:[%s3239 + $0x5c] sm:$0xf]
      %v3264 = vld [vmem:[%s3239 + $0x60] sm:$0xf]
      %v3265 = vld [vmem:[%s3239 + $0x64] sm:$0xf]
      %v3266 = vld [vmem:[%s3239 + $0x68] sm:$0xf]
      %v3267 = vld [vmem:[%s3239 + $0x6c] sm:$0xf]
      %v3268 = vld [vmem:[%s3239 + $0x70] sm:$0xf]
      %v3269 = vld [vmem:[%s3239 + $0x74] sm:$0xf]
      %v3270 = vld [vmem:[%s3239 + $0x78] sm:$0xf]
      %v3271 = vld [vmem:[%s3239 + $0x7c] sm:$0xf]
      %v3272 = vld [vmem:[%s3239 + $0x80] sm:$0xf]
      %v3273 = vld [vmem:[%s3239 + $0x84] sm:$0xf]
      %v3274 = vld [vmem:[%s3239 + $0x88] sm:$0xf]
      %v3275 = vld [vmem:[%s3239 + $0x8c] sm:$0xf]
      %v3276 = vld [vmem:[%s3239 + $0x90] sm:$0xf]
      %v3277 = vld [vmem:[%s3239 + $0x94] sm:$0xf]
      %v3278 = vld [vmem:[%s3239 + $0x98] sm:$0xf]
      %v3279 = vld [vmem:[%s3239 + $0x9c] sm:$0xf]
      %v3280 = vld [vmem:[%s3239 + $0xa0] sm:$0xf]
      %v3281 = vld [vmem:[%s3239 + $0xa4] sm:$0xf]
      %v3282 = vld [vmem:[%s3239 + $0xa8] sm:$0xf]
      %v3283 = vld [vmem:[%s3239 + $0xac] sm:$0xf]
      %v3284 = vld [vmem:[%s3239 + $0xb0] sm:$0xf]
      %v3285 = vld [vmem:[%s3239 + $0xb4] sm:$0xf]
      %v3286 = vld [vmem:[%s3239 + $0xb8] sm:$0xf]
      %v3287 = vld [vmem:[%s3239 + $0xbc] sm:$0xf]
      %v3336 = vunpack.c.l.b16 %v3240
      %v3337 = vunpack.c.l.b16 %v3241
      %v3338 = vunpack.c.l.b16 %v3242
      %v3339 = vunpack.c.l.b16 %v3243
      %v3340 = vunpack.c.l.b16 %v3244
      %v3341 = vunpack.c.l.b16 %v3245
      %v3342 = vunpack.c.l.b16 %v3246
      %v3343 = vunpack.c.l.b16 %v3247
      %v3344 = vunpack.c.l.b16 %v3248
      %v3345 = vunpack.c.l.b16 %v3249
      %v3346 = vunpack.c.l.b16 %v3250
      %v3347 = vunpack.c.l.b16 %v3251
      %v3348 = vunpack.c.l.b16 %v3252
      %v3349 = vunpack.c.l.b16 %v3253
      %v3350 = vunpack.c.l.b16 %v3254
      %v3351 = vunpack.c.l.b16 %v3255
      %v3352 = vunpack.c.l.b16 %v3256
      %v3353 = vunpack.c.l.b16 %v3257
      %v3354 = vunpack.c.l.b16 %v3258
      %v3355 = vunpack.c.l.b16 %v3259
      %v3356 = vunpack.c.l.b16 %v3260
      %v3357 = vunpack.c.l.b16 %v3261
      %v3358 = vunpack.c.l.b16 %v3262
      %v3359 = vunpack.c.l.b16 %v3263
      %v3360 = vunpack.c.l.b16 %v3264
      %v3361 = vunpack.c.l.b16 %v3265
      %v3362 = vunpack.c.l.b16 %v3266
      %v3363 = vunpack.c.l.b16 %v3267
      %v3364 = vunpack.c.l.b16 %v3268
      %v3365 = vunpack.c.l.b16 %v3269
      %v3366 = vunpack.c.l.b16 %v3270
      %v3367 = vunpack.c.l.b16 %v3271
      %v3368 = vunpack.c.l.b16 %v3272
      %v3369 = vunpack.c.l.b16 %v3273
      %v3370 = vunpack.c.l.b16 %v3274
      %v3371 = vunpack.c.l.b16 %v3275
      %v3372 = vunpack.c.l.b16 %v3276
      %v3373 = vunpack.c.l.b16 %v3277
      %v3374 = vunpack.c.l.b16 %v3278
      %v3375 = vunpack.c.l.b16 %v3279
      %v3376 = vunpack.c.l.b16 %v3280
      %v3377 = vunpack.c.l.b16 %v3281
      %v3378 = vunpack.c.l.b16 %v3282
      %v3379 = vunpack.c.l.b16 %v3283
      %v3380 = vunpack.c.l.b16 %v3284
      %v3381 = vunpack.c.l.b16 %v3285
      %v3382 = vunpack.c.l.b16 %v3286
      %v3383 = vunpack.c.l.b16 %v3287
      %v3384 = vpack.c.b16 %v3337, %v3336
      %v3385 = vpack.c.b16 %v3339, %v3338
      %v3386 = vpack.c.b16 %v3341, %v3340
      %v3387 = vpack.c.b16 %v3343, %v3342
      %v3388 = vpack.c.b16 %v3345, %v3344
      %v3389 = vpack.c.b16 %v3347, %v3346
      %v3390 = vpack.c.b16 %v3349, %v3348
      %v3391 = vpack.c.b16 %v3351, %v3350
      %v3392 = vpack.c.b16 %v3353, %v3352
      %v3393 = vpack.c.b16 %v3355, %v3354
      %v3394 = vpack.c.b16 %v3357, %v3356
      %v3395 = vpack.c.b16 %v3359, %v3358
      %v3396 = vpack.c.b16 %v3361, %v3360
      %v3397 = vpack.c.b16 %v3363, %v3362
      %v3398 = vpack.c.b16 %v3365, %v3364
      %v3399 = vpack.c.b16 %v3367, %v3366
      %v3400 = vpack.c.b16 %v3369, %v3368
      %v3401 = vpack.c.b16 %v3371, %v3370
      %v3402 = vpack.c.b16 %v3373, %v3372
      %v3403 = vpack.c.b16 %v3375, %v3374
      %v3404 = vpack.c.b16 %v3377, %v3376
      %v3405 = vpack.c.b16 %v3379, %v3378
      %v3406 = vpack.c.b16 %v3381, %v3380
      %v3407 = vpack.c.b16 %v3383, %v3382
      %3432 = vmatpush.bf16.msra.mxu0 %v3391
      %3433 = vmatpush.bf16.msra.mxu0 %v3390
      %3434 = vmatpush.bf16.msra.mxu0 %v3389
      %3435 = vmatpush.bf16.msra.mxu0 %v3388
      %3436 = vmatpush.bf16.msra.mxu0 %v3387
      %3437 = vmatpush.bf16.msra.mxu0 %v3386
      %3438 = vmatpush.bf16.msra.mxu0 %v3385
      %3439 = vmatpush.bf16.msra.mxu0 %v3384
      %3440 = vmatmul.bf16.gmra.mxu0 %v2839
      %v3441 = vpop.f32.mrf.mxu0
      %v3442 = vadd.f32 0.0, %v3441
      %v3443 = vpop.f32.mrf.mxu0
      %v3444 = vadd.f32 0.0, %v3443
      %3445 = vmatmul.bf16.gmra.mxu0 %v2840
      %v3446 = vpop.f32.mrf.mxu0
      %v3447 = vadd.f32 0.0, %v3446
      %v3448 = vpop.f32.mrf.mxu0
      %v3449 = vadd.f32 0.0, %v3448
      %3450 = vmatmul.bf16.gmra.mxu0 %v2841
      %v3451 = vpop.f32.mrf.mxu0
      %v3452 = vadd.f32 0.0, %v3451
      %v3453 = vpop.f32.mrf.mxu0
      %v3454 = vadd.f32 0.0, %v3453
      %3455 = vmatmul.bf16.gmra.mxu0 %v2842
      %v3456 = vpop.f32.mrf.mxu0
      %v3457 = vadd.f32 0.0, %v3456
      %v3458 = vpop.f32.mrf.mxu0
      %v3459 = vadd.f32 0.0, %v3458
      %3460 = vmatmul.bf16.gmra.mxu0 %v2843
      %v3461 = vpop.f32.mrf.mxu0
      %v3462 = vadd.f32 0.0, %v3461
      %v3463 = vpop.f32.mrf.mxu0
      %v3464 = vadd.f32 0.0, %v3463
      %3465 = vmatmul.bf16.gmra.mxu0 %v2844
      %v3466 = vpop.f32.mrf.mxu0
      %v3467 = vadd.f32 0.0, %v3466
      %v3468 = vpop.f32.mrf.mxu0
      %v3469 = vadd.f32 0.0, %v3468
      %3470 = vmatmul.bf16.gmra.mxu0 %v2845
      %v3471 = vpop.f32.mrf.mxu0
      %v3472 = vadd.f32 0.0, %v3471
      %v3473 = vpop.f32.mrf.mxu0
      %v3474 = vadd.f32 0.0, %v3473
      %3475 = vmatmul.bf16.gmra.mxu0 %v2846
      %v3476 = vpop.f32.mrf.mxu0
      %v3477 = vadd.f32 0.0, %v3476
      %v3478 = vpop.f32.mrf.mxu0
      %v3479 = vadd.f32 0.0, %v3478
      %3480 = vmatmul.bf16.gmra.mxu0 %v2847
      %v3481 = vpop.f32.mrf.mxu0
      %v3482 = vadd.f32 0.0, %v3481
      %v3483 = vpop.f32.mrf.mxu0
      %v3484 = vadd.f32 0.0, %v3483
      %3485 = vmatmul.bf16.gmra.mxu0 %v2848
      %v3486 = vpop.f32.mrf.mxu0
      %v3487 = vadd.f32 0.0, %v3486
      %v3488 = vpop.f32.mrf.mxu0
      %v3489 = vadd.f32 0.0, %v3488
      %3490 = vmatmul.bf16.gmra.mxu0 %v2849
      %v3491 = vpop.f32.mrf.mxu0
      %v3492 = vadd.f32 0.0, %v3491
      %v3493 = vpop.f32.mrf.mxu0
      %v3494 = vadd.f32 0.0, %v3493
      %3495 = vmatmul.bf16.gmra.mxu0 %v2850
      %v3496 = vpop.f32.mrf.mxu0
      %v3497 = vadd.f32 0.0, %v3496
      %v3498 = vpop.f32.mrf.mxu0
      %v3499 = vadd.f32 0.0, %v3498
      %3500 = vmatmul.bf16.gmra.mxu0 %v2851
      %v3501 = vpop.f32.mrf.mxu0
      %v3502 = vadd.f32 0.0, %v3501
      %v3503 = vpop.f32.mrf.mxu0
      %v3504 = vadd.f32 0.0, %v3503
      %3505 = vmatmul.bf16.gmra.mxu0 %v2852
      %v3506 = vpop.f32.mrf.mxu0
      %v3507 = vadd.f32 0.0, %v3506
      %v3508 = vpop.f32.mrf.mxu0
      %v3509 = vadd.f32 0.0, %v3508
      %3510 = vmatmul.bf16.gmra.mxu0 %v2853
      %v3511 = vpop.f32.mrf.mxu0
      %v3512 = vadd.f32 0.0, %v3511
      %v3513 = vpop.f32.mrf.mxu0
      %v3514 = vadd.f32 0.0, %v3513
      %3515 = vmatmul.bf16.gmra.mxu0 %v2854
      %v3516 = vpop.f32.mrf.mxu0
      %v3517 = vadd.f32 0.0, %v3516
      %v3518 = vpop.f32.mrf.mxu0
      %v3519 = vadd.f32 0.0, %v3518
      %3520 = vdwg.mxu0
      %3521 = vmatpush.bf16.msra.mxu0 %v3399
      %3522 = vmatpush.bf16.msra.mxu0 %v3398
      %3523 = vmatpush.bf16.msra.mxu0 %v3397
      %3524 = vmatpush.bf16.msra.mxu0 %v3396
      %3525 = vmatpush.bf16.msra.mxu0 %v3395
      %3526 = vmatpush.bf16.msra.mxu0 %v3394
      %3527 = vmatpush.bf16.msra.mxu0 %v3393
      %3528 = vmatpush.bf16.msra.mxu0 %v3392
      %3529 = vmatmul.bf16.gmra.mxu0 %v2930
      %v3530 = vpop.f32.mrf.mxu0
      %v3531 = vadd.f32 %v3442, %v3530
      %v3532 = vpop.f32.mrf.mxu0
      %v3533 = vadd.f32 %v3444, %v3532
      %3534 = vmatmul.bf16.gmra.mxu0 %v2942
      %v3535 = vpop.f32.mrf.mxu0
      %v3536 = vadd.f32 %v3447, %v3535
      %v3537 = vpop.f32.mrf.mxu0
      %v3538 = vadd.f32 %v3449, %v3537
      %3539 = vmatmul.bf16.gmra.mxu0 %v2954
      %v3540 = vpop.f32.mrf.mxu0
      %v3541 = vadd.f32 %v3452, %v3540
      %v3542 = vpop.f32.mrf.mxu0
      %v3543 = vadd.f32 %v3454, %v3542
      %3544 = vmatmul.bf16.gmra.mxu0 %v2966
      %v3545 = vpop.f32.mrf.mxu0
      %v3546 = vadd.f32 %v3457, %v3545
      %v3547 = vpop.f32.mrf.mxu0
      %v3548 = vadd.f32 %v3459, %v3547
      %3549 = vmatmul.bf16.gmra.mxu0 %v2978
      %v3550 = vpop.f32.mrf.mxu0
      %v3551 = vadd.f32 %v3462, %v3550
      %v3552 = vpop.f32.mrf.mxu0
      %v3553 = vadd.f32 %v3464, %v3552
      %3554 = vmatmul.bf16.gmra.mxu0 %v2990
      %v3555 = vpop.f32.mrf.mxu0
      %v3556 = vadd.f32 %v3467, %v3555
      %v3557 = vpop.f32.mrf.mxu0
      %v3558 = vadd.f32 %v3469, %v3557
      %3559 = vmatmul.bf16.gmra.mxu0 %v3002
      %v3560 = vpop.f32.mrf.mxu0
      %v3561 = vadd.f32 %v3472, %v3560
      %v3562 = vpop.f32.mrf.mxu0
      %v3563 = vadd.f32 %v3474, %v3562
      %3564 = vmatmul.bf16.gmra.mxu0 %v3014
      %v3565 = vpop.f32.mrf.mxu0
      %v3566 = vadd.f32 %v3477, %v3565
      %v3567 = vpop.f32.mrf.mxu0
      %v3568 = vadd.f32 %v3479, %v3567
      %3569 = vmatmul.bf16.gmra.mxu0 %v3026
      %v3570 = vpop.f32.mrf.mxu0
      %v3571 = vadd.f32 %v3482, %v3570
      %v3572 = vpop.f32.mrf.mxu0
      %v3573 = vadd.f32 %v3484, %v3572
      %3574 = vmatmul.bf16.gmra.mxu0 %v3038
      %v3575 = vpop.f32.mrf.mxu0
      %v3576 = vadd.f32 %v3487, %v3575
      %v3577 = vpop.f32.mrf.mxu0
      %v3578 = vadd.f32 %v3489, %v3577
      %3579 = vmatmul.bf16.gmra.mxu0 %v3050
      %v3580 = vpop.f32.mrf.mxu0
      %v3581 = vadd.f32 %v3492, %v3580
      %v3582 = vpop.f32.mrf.mxu0
      %v3583 = vadd.f32 %v3494, %v3582
      %3584 = vmatmul.bf16.gmra.mxu0 %v3062
      %v3585 = vpop.f32.mrf.mxu0
      %v3586 = vadd.f32 %v3497, %v3585
      %v3587 = vpop.f32.mrf.mxu0
      %v3588 = vadd.f32 %v3499, %v3587
      %3589 = vmatmul.bf16.gmra.mxu0 %v3074
      %v3590 = vpop.f32.mrf.mxu0
      %v3591 = vadd.f32 %v3502, %v3590
      %v3592 = vpop.f32.mrf.mxu0
      %v3593 = vadd.f32 %v3504, %v3592
      %3594 = vmatmul.bf16.gmra.mxu0 %v3086
      %v3595 = vpop.f32.mrf.mxu0
      %v3596 = vadd.f32 %v3507, %v3595
      %v3597 = vpop.f32.mrf.mxu0
      %v3598 = vadd.f32 %v3509, %v3597
      %3599 = vmatmul.bf16.gmra.mxu0 %v3098
      %v3600 = vpop.f32.mrf.mxu0
      %v3601 = vadd.f32 %v3512, %v3600
      %v3602 = vpop.f32.mrf.mxu0
      %v3603 = vadd.f32 %v3514, %v3602
      %3604 = vmatmul.bf16.gmra.mxu0 %v3110
      %v3605 = vpop.f32.mrf.mxu0
      %v3606 = vadd.f32 %v3517, %v3605
      %v3607 = vpop.f32.mrf.mxu0
      %v3608 = vadd.f32 %v3519, %v3607
      %3609 = vdwg.mxu0
      %3610 = vmatpush.bf16.msra.mxu0 %v3407
      %3611 = vmatpush.bf16.msra.mxu0 %v3406
      %3612 = vmatpush.bf16.msra.mxu0 %v3405
      %3613 = vmatpush.bf16.msra.mxu0 %v3404
      %3614 = vmatpush.bf16.msra.mxu0 %v3403
      %3615 = vmatpush.bf16.msra.mxu0 %v3402
      %3616 = vmatpush.bf16.msra.mxu0 %v3401
      %3617 = vmatpush.bf16.msra.mxu0 %v3400
      %3618 = vmatmul.bf16.gmra.mxu0 %v3177
      %v3619 = vpop.f32.mrf.mxu0
      %v3620 = vadd.f32 %v3531, %v3619
      %v3621 = vpop.f32.mrf.mxu0
      %v3622 = vadd.f32 %v3533, %v3621
      %3623 = vmatmul.bf16.gmra.mxu0 %v3180
      %v3624 = vpop.f32.mrf.mxu0
      %v3625 = vadd.f32 %v3536, %v3624
      %v3626 = vpop.f32.mrf.mxu0
      %v3627 = vadd.f32 %v3538, %v3626
      %3628 = vmatmul.bf16.gmra.mxu0 %v3183
      %v3629 = vpop.f32.mrf.mxu0
      %v3630 = vadd.f32 %v3541, %v3629
      %v3631 = vpop.f32.mrf.mxu0
      %v3632 = vadd.f32 %v3543, %v3631
      %3633 = vmatmul.bf16.gmra.mxu0 %v3186
      %v3634 = vpop.f32.mrf.mxu0
      %v3635 = vadd.f32 %v3546, %v3634
      %v3636 = vpop.f32.mrf.mxu0
      %v3637 = vadd.f32 %v3548, %v3636
      %3638 = vmatmul.bf16.gmra.mxu0 %v3189
      %v3639 = vpop.f32.mrf.mxu0
      %v3640 = vadd.f32 %v3551, %v3639
      %v3641 = vpop.f32.mrf.mxu0
      %v3642 = vadd.f32 %v3553, %v3641
      %3643 = vmatmul.bf16.gmra.mxu0 %v3192
      %v3644 = vpop.f32.mrf.mxu0
      %v3645 = vadd.f32 %v3556, %v3644
      %v3646 = vpop.f32.mrf.mxu0
      %v3647 = vadd.f32 %v3558, %v3646
      %3648 = vmatmul.bf16.gmra.mxu0 %v3195
      %v3649 = vpop.f32.mrf.mxu0
      %v3650 = vadd.f32 %v3561, %v3649
      %v3651 = vpop.f32.mrf.mxu0
      %v3652 = vadd.f32 %v3563, %v3651
      %3653 = vmatmul.bf16.gmra.mxu0 %v3198
      %v3654 = vpop.f32.mrf.mxu0
      %v3655 = vadd.f32 %v3566, %v3654
      %v3656 = vpop.f32.mrf.mxu0
      %v3657 = vadd.f32 %v3568, %v3656
      %3658 = vmatmul.bf16.gmra.mxu0 %v3201
      %v3659 = vpop.f32.mrf.mxu0
      %v3660 = vadd.f32 %v3571, %v3659
      %v3661 = vpop.f32.mrf.mxu0
      %v3662 = vadd.f32 %v3573, %v3661
      %3663 = vmatmul.bf16.gmra.mxu0 %v3204
      %v3664 = vpop.f32.mrf.mxu0
      %v3665 = vadd.f32 %v3576, %v3664
      %v3666 = vpop.f32.mrf.mxu0
      %v3667 = vadd.f32 %v3578, %v3666
      %3668 = vmatmul.bf16.gmra.mxu0 %v3207
      %v3669 = vpop.f32.mrf.mxu0
      %v3670 = vadd.f32 %v3581, %v3669
      %v3671 = vpop.f32.mrf.mxu0
      %v3672 = vadd.f32 %v3583, %v3671
      %3673 = vmatmul.bf16.gmra.mxu0 %v3210
      %v3674 = vpop.f32.mrf.mxu0
      %v3675 = vadd.f32 %v3586, %v3674
      %v3676 = vpop.f32.mrf.mxu0
      %v3677 = vadd.f32 %v3588, %v3676
      %3678 = vmatmul.bf16.gmra.mxu0 %v3213
      %v3679 = vpop.f32.mrf.mxu0
      %v3680 = vadd.f32 %v3591, %v3679
      %v3681 = vpop.f32.mrf.mxu0
      %v3682 = vadd.f32 %v3593, %v3681
      %3683 = vmatmul.bf16.gmra.mxu0 %v3216
      %v3684 = vpop.f32.mrf.mxu0
      %v3685 = vadd.f32 %v3596, %v3684
      %v3686 = vpop.f32.mrf.mxu0
      %v3687 = vadd.f32 %v3598, %v3686
      %3688 = vmatmul.bf16.gmra.mxu0 %v3219
      %v3689 = vpop.f32.mrf.mxu0
      %v3690 = vadd.f32 %v3601, %v3689
      %v3691 = vpop.f32.mrf.mxu0
      %v3692 = vadd.f32 %v3603, %v3691
      %3693 = vmatmul.bf16.gmra.mxu0 %v3222
      %v3694 = vpop.f32.mrf.mxu0
      %v3695 = vadd.f32 %v3606, %v3694
      %v3696 = vpop.f32.mrf.mxu0
      %v3697 = vadd.f32 %v3608, %v3696
      %3698 = vdwg.mxu0
      %v3699 = vld [vmem:[#allocation3] sm:$0xff]
      %v3700 = vld [vmem:[#allocation3 + $0x8] sm:$0xff]
      %v3701 = vld [vmem:[#allocation3 + $0x10] sm:$0xff]
      %v3702 = vld [vmem:[#allocation3 + $0x18] sm:$0xff]
      %v3703 = vld [vmem:[#allocation3 + $0x20] sm:$0xff]
      %v3704 = vld [vmem:[#allocation3 + $0x28] sm:$0xff]
      %v3705 = vld [vmem:[#allocation3 + $0x30] sm:$0xff]
      %v3706 = vld [vmem:[#allocation3 + $0x38] sm:$0xff]
      %v3707 = vld [vmem:[#allocation3 + $0x40] sm:$0xff]
      %v3708 = vld [vmem:[#allocation3 + $0x48] sm:$0xff]
      %v3709 = vld [vmem:[#allocation3 + $0x50] sm:$0xff]
      %v3710 = vld [vmem:[#allocation3 + $0x58] sm:$0xff]
      %v3711 = vld [vmem:[#allocation3 + $0x60] sm:$0xff]
      %v3712 = vld [vmem:[#allocation3 + $0x68] sm:$0xff]
      %v3713 = vld [vmem:[#allocation3 + $0x70] sm:$0xff]
      %v3714 = vld [vmem:[#allocation3 + $0x78] sm:$0xff]
      %v3715 = vld [vmem:[#allocation3 + $0x80] sm:$0xff]
      %v3716 = vld [vmem:[#allocation3 + $0x88] sm:$0xff]
      %v3717 = vld [vmem:[#allocation3 + $0x90] sm:$0xff]
      %v3718 = vld [vmem:[#allocation3 + $0x98] sm:$0xff]
      %v3719 = vld [vmem:[#allocation3 + $0xa0] sm:$0xff]
      %v3720 = vld [vmem:[#allocation3 + $0xa8] sm:$0xff]
      %v3721 = vld [vmem:[#allocation3 + $0xb0] sm:$0xff]
      %v3722 = vld [vmem:[#allocation3 + $0xb8] sm:$0xff]
      %v3723 = vld [vmem:[#allocation3 + $0xc0] sm:$0xff]
      %v3724 = vld [vmem:[#allocation3 + $0xc8] sm:$0xff]
      %v3725 = vld [vmem:[#allocation3 + $0xd0] sm:$0xff]
      %v3726 = vld [vmem:[#allocation3 + $0xd8] sm:$0xff]
      %v3727 = vld [vmem:[#allocation3 + $0xe0] sm:$0xff]
      %v3728 = vld [vmem:[#allocation3 + $0xe8] sm:$0xff]
      %v3729 = vld [vmem:[#allocation3 + $0xf0] sm:$0xff]
      %v3730 = vld [vmem:[#allocation3 + $0xf8] sm:$0xff]
      %v3731 = vadd.f32 %v3699, %v3620
      %v3732 = vadd.f32 %v3700, %v3622
      %v3733 = vadd.f32 %v3701, %v3625
      %v3734 = vadd.f32 %v3702, %v3627
      %v3735 = vadd.f32 %v3703, %v3630
      %v3736 = vadd.f32 %v3704, %v3632
      %v3737 = vadd.f32 %v3705, %v3635
      %v3738 = vadd.f32 %v3706, %v3637
      %v3739 = vadd.f32 %v3707, %v3640
      %v3740 = vadd.f32 %v3708, %v3642
      %v3741 = vadd.f32 %v3709, %v3645
      %v3742 = vadd.f32 %v3710, %v3647
      %v3743 = vadd.f32 %v3711, %v3650
      %v3744 = vadd.f32 %v3712, %v3652
      %v3745 = vadd.f32 %v3713, %v3655
      %v3746 = vadd.f32 %v3714, %v3657
      %v3747 = vadd.f32 %v3715, %v3660
      %v3748 = vadd.f32 %v3716, %v3662
      %v3749 = vadd.f32 %v3717, %v3665
      %v3750 = vadd.f32 %v3718, %v3667
      %v3751 = vadd.f32 %v3719, %v3670
      %v3752 = vadd.f32 %v3720, %v3672
      %v3753 = vadd.f32 %v3721, %v3675
      %v3754 = vadd.f32 %v3722, %v3677
      %v3755 = vadd.f32 %v3723, %v3680
      %v3756 = vadd.f32 %v3724, %v3682
      %v3757 = vadd.f32 %v3725, %v3685
      %v3758 = vadd.f32 %v3726, %v3687
      %v3759 = vadd.f32 %v3727, %v3690
      %v3760 = vadd.f32 %v3728, %v3692
      %v3761 = vadd.f32 %v3729, %v3695
      %v3762 = vadd.f32 %v3730, %v3697
      %3763 = vst [vmem:[#allocation3] sm:$0xff] %v3731
      %3764 = vst [vmem:[#allocation3 + $0x8] sm:$0xff] %v3732
      %3765 = vst [vmem:[#allocation3 + $0x10] sm:$0xff] %v3733
      %3766 = vst [vmem:[#allocation3 + $0x18] sm:$0xff] %v3734
      %3767 = vst [vmem:[#allocation3 + $0x20] sm:$0xff] %v3735
      %3768 = vst [vmem:[#allocation3 + $0x28] sm:$0xff] %v3736
      %3769 = vst [vmem:[#allocation3 + $0x30] sm:$0xff] %v3737
      %3770 = vst [vmem:[#allocation3 + $0x38] sm:$0xff] %v3738
      %3771 = vst [vmem:[#allocation3 + $0x40] sm:$0xff] %v3739
      %3772 = vst [vmem:[#allocation3 + $0x48] sm:$0xff] %v3740
      %3773 = vst [vmem:[#allocation3 + $0x50] sm:$0xff] %v3741
      %3774 = vst [vmem:[#allocation3 + $0x58] sm:$0xff] %v3742
      %3775 = vst [vmem:[#allocation3 + $0x60] sm:$0xff] %v3743
      %3776 = vst [vmem:[#allocation3 + $0x68] sm:$0xff] %v3744
      %3777 = vst [vmem:[#allocation3 + $0x70] sm:$0xff] %v3745
      %3778 = vst [vmem:[#allocation3 + $0x78] sm:$0xff] %v3746
      %3779 = vst [vmem:[#allocation3 + $0x80] sm:$0xff] %v3747
      %3780 = vst [vmem:[#allocation3 + $0x88] sm:$0xff] %v3748
      %3781 = vst [vmem:[#allocation3 + $0x90] sm:$0xff] %v3749
      %3782 = vst [vmem:[#allocation3 + $0x98] sm:$0xff] %v3750
      %3783 = vst [vmem:[#allocation3 + $0xa0] sm:$0xff] %v3751
      %3784 = vst [vmem:[#allocation3 + $0xa8] sm:$0xff] %v3752
      %3785 = vst [vmem:[#allocation3 + $0xb0] sm:$0xff] %v3753
      %3786 = vst [vmem:[#allocation3 + $0xb8] sm:$0xff] %v3754
      %3787 = vst [vmem:[#allocation3 + $0xc0] sm:$0xff] %v3755
      %3788 = vst [vmem:[#allocation3 + $0xc8] sm:$0xff] %v3756
      %3789 = vst [vmem:[#allocation3 + $0xd0] sm:$0xff] %v3757
      %3790 = vst [vmem:[#allocation3 + $0xd8] sm:$0xff] %v3758
      %3791 = vst [vmem:[#allocation3 + $0xe0] sm:$0xff] %v3759
      %3792 = vst [vmem:[#allocation3 + $0xe8] sm:$0xff] %v3760
      %3793 = vst [vmem:[#allocation3 + $0xf0] sm:$0xff] %v3761
      %3794 = vst [vmem:[#allocation3 + $0xf8] sm:$0xff] %v3762
      %s3795 = scalar_lea.vmem [#allocation2], 24
      %v3796 = vld [vmem:[%s3795] sm:$0xf]
      %v3797 = vld [vmem:[%s3795 + $0x4] sm:$0xf]
      %v3798 = vld [vmem:[%s3795 + $0xc] sm:$0xf]
      %v3799 = vld [vmem:[%s3795 + $0x10] sm:$0xf]
      %v3800 = vld [vmem:[%s3795 + $0x18] sm:$0xf]
      %v3801 = vld [vmem:[%s3795 + $0x1c] sm:$0xf]
      %v3802 = vld [vmem:[%s3795 + $0x24] sm:$0xf]
      %v3803 = vld [vmem:[%s3795 + $0x28] sm:$0xf]
      %v3804 = vld [vmem:[%s3795 + $0x30] sm:$0xf]
      %v3805 = vld [vmem:[%s3795 + $0x34] sm:$0xf]
      %v3806 = vld [vmem:[%s3795 + $0x3c] sm:$0xf]
      %v3807 = vld [vmem:[%s3795 + $0x40] sm:$0xf]
      %v3808 = vld [vmem:[%s3795 + $0x48] sm:$0xf]
      %v3809 = vld [vmem:[%s3795 + $0x4c] sm:$0xf]
      %v3810 = vld [vmem:[%s3795 + $0x54] sm:$0xf]
      %v3811 = vld [vmem:[%s3795 + $0x58] sm:$0xf]
      %v3812 = vld [vmem:[%s3795 + $0x60] sm:$0xf]
      %v3813 = vld [vmem:[%s3795 + $0x64] sm:$0xf]
      %v3814 = vld [vmem:[%s3795 + $0x6c] sm:$0xf]
      %v3815 = vld [vmem:[%s3795 + $0x70] sm:$0xf]
      %v3816 = vld [vmem:[%s3795 + $0x78] sm:$0xf]
      %v3817 = vld [vmem:[%s3795 + $0x7c] sm:$0xf]
      %v3818 = vld [vmem:[%s3795 + $0x84] sm:$0xf]
      %v3819 = vld [vmem:[%s3795 + $0x88] sm:$0xf]
      %v3820 = vld [vmem:[%s3795 + $0x90] sm:$0xf]
      %v3821 = vld [vmem:[%s3795 + $0x94] sm:$0xf]
      %v3822 = vld [vmem:[%s3795 + $0x9c] sm:$0xf]
      %v3823 = vld [vmem:[%s3795 + $0xa0] sm:$0xf]
      %v3824 = vld [vmem:[%s3795 + $0xa8] sm:$0xf]
      %v3825 = vld [vmem:[%s3795 + $0xac] sm:$0xf]
      %v3826 = vld [vmem:[%s3795 + $0xb4] sm:$0xf]
      %v3827 = vld [vmem:[%s3795 + $0xb8] sm:$0xf]
      %v3828 = vld [vmem:[%s3795 + $0x8] sm:$0x1]
      %v3829 = vld [vmem:[%s3795 + $0x14] sm:$0x1]
      %v3830 = vld [vmem:[%s3795 + $0x20] sm:$0x1]
      %v3831 = vld [vmem:[%s3795 + $0x2c] sm:$0x1]
      %v3832 = vld [vmem:[%s3795 + $0x38] sm:$0x1]
      %v3833 = vld [vmem:[%s3795 + $0x44] sm:$0x1]
      %v3834 = vld [vmem:[%s3795 + $0x50] sm:$0x1]
      %v3835 = vld [vmem:[%s3795 + $0x5c] sm:$0x1]
      %v3836 = vld [vmem:[%s3795 + $0x68] sm:$0x1]
      %v3837 = vld [vmem:[%s3795 + $0x74] sm:$0x1]
      %v3838 = vld [vmem:[%s3795 + $0x80] sm:$0x1]
      %v3839 = vld [vmem:[%s3795 + $0x8c] sm:$0x1]
      %v3840 = vld [vmem:[%s3795 + $0x98] sm:$0x1]
      %v3841 = vld [vmem:[%s3795 + $0xa4] sm:$0x1]
      %v3842 = vld [vmem:[%s3795 + $0xb0] sm:$0x1]
      %v3843 = vld [vmem:[%s3795 + $0xbc] sm:$0x1]
      %v3844 = vld [vmem:[%s3795] sm:$0xe]
      %v3845 = vld [vmem:[%s3795 + $0xc] sm:$0xe]
      %v3846 = vld [vmem:[%s3795 + $0x18] sm:$0xe]
      %v3847 = vld [vmem:[%s3795 + $0x24] sm:$0xe]
      %v3848 = vld [vmem:[%s3795 + $0x30] sm:$0xe]
      %v3849 = vld [vmem:[%s3795 + $0x3c] sm:$0xe]
      %v3850 = vld [vmem:[%s3795 + $0x48] sm:$0xe]
      %v3851 = vld [vmem:[%s3795 + $0x54] sm:$0xe]
      %v3852 = vld [vmem:[%s3795 + $0x60] sm:$0xe]
      %v3853 = vld [vmem:[%s3795 + $0x6c] sm:$0xe]
      %v3854 = vld [vmem:[%s3795 + $0x78] sm:$0xe]
      %v3855 = vld [vmem:[%s3795 + $0x84] sm:$0xe]
      %v3856 = vld [vmem:[%s3795 + $0x90] sm:$0xe]
      %v3857 = vld [vmem:[%s3795 + $0x9c] sm:$0xe]
      %v3858 = vld [vmem:[%s3795 + $0xa8] sm:$0xe]
      %v3859 = vld [vmem:[%s3795 + $0xb4] sm:$0xe]
      %v3892 = vunpack.c.l.b16 %v3796
      %v3893 = vunpack.c.l.b16 %v3797
      %v3894 = vunpack.c.l.b16 %v3798
      %v3895 = vunpack.c.l.b16 %v3799
      %v3896 = vunpack.c.l.b16 %v3800
      %v3897 = vunpack.c.l.b16 %v3801
      %v3898 = vunpack.c.l.b16 %v3802
      %v3899 = vunpack.c.l.b16 %v3803
      %v3900 = vunpack.c.l.b16 %v3804
      %v3901 = vunpack.c.l.b16 %v3805
      %v3902 = vunpack.c.l.b16 %v3806
      %v3903 = vunpack.c.l.b16 %v3807
      %v3904 = vunpack.c.l.b16 %v3808
      %v3905 = vunpack.c.l.b16 %v3809
      %v3906 = vunpack.c.l.b16 %v3810
      %v3907 = vunpack.c.l.b16 %v3811
      %v3908 = vunpack.c.l.b16 %v3812
      %v3909 = vunpack.c.l.b16 %v3813
      %v3910 = vunpack.c.l.b16 %v3814
      %v3911 = vunpack.c.l.b16 %v3815
      %v3912 = vunpack.c.l.b16 %v3816
      %v3913 = vunpack.c.l.b16 %v3817
      %v3914 = vunpack.c.l.b16 %v3818
      %v3915 = vunpack.c.l.b16 %v3819
      %v3916 = vunpack.c.l.b16 %v3820
      %v3917 = vunpack.c.l.b16 %v3821
      %v3918 = vunpack.c.l.b16 %v3822
      %v3919 = vunpack.c.l.b16 %v3823
      %v3920 = vunpack.c.l.b16 %v3824
      %v3921 = vunpack.c.l.b16 %v3825
      %v3922 = vunpack.c.l.b16 %v3826
      %v3923 = vunpack.c.l.b16 %v3827
      %v3924 = vpack.c.b16 %v3893, %v3892
      %v3925 = vpack.c.b16 %v3895, %v3894
      %v3926 = vpack.c.b16 %v3897, %v3896
      %v3927 = vpack.c.b16 %v3899, %v3898
      %v3928 = vpack.c.b16 %v3901, %v3900
      %v3929 = vpack.c.b16 %v3903, %v3902
      %v3930 = vpack.c.b16 %v3905, %v3904
      %v3931 = vpack.c.b16 %v3907, %v3906
      %v3932 = vpack.c.b16 %v3909, %v3908
      %v3933 = vpack.c.b16 %v3911, %v3910
      %v3934 = vpack.c.b16 %v3913, %v3912
      %v3935 = vpack.c.b16 %v3915, %v3914
      %v3936 = vpack.c.b16 %v3917, %v3916
      %v3937 = vpack.c.b16 %v3919, %v3918
      %v3938 = vpack.c.b16 %v3921, %v3920
      %v3939 = vpack.c.b16 %v3923, %v3922
      %v3972 = vunpack.c.l.b16 %v3828
      %v3973 = vunpack.c.l.b16 %v3829
      %v3974 = vunpack.c.l.b16 %v3830
      %v3975 = vunpack.c.l.b16 %v3831
      %v3976 = vunpack.c.l.b16 %v3832
      %v3977 = vunpack.c.l.b16 %v3833
      %v3978 = vunpack.c.l.b16 %v3834
      %v3979 = vunpack.c.l.b16 %v3835
      %v3980 = vunpack.c.l.b16 %v3836
      %v3981 = vunpack.c.l.b16 %v3837
      %v3982 = vunpack.c.l.b16 %v3838
      %v3983 = vunpack.c.l.b16 %v3839
      %v3984 = vunpack.c.l.b16 %v3840
      %v3985 = vunpack.c.l.b16 %v3841
      %v3986 = vunpack.c.l.b16 %v3842
      %v3987 = vunpack.c.l.b16 %v3843
      %v3988 = vpack.c.b16 %v3972, %v3972
      %v3989 = vpack.c.b16 %v3973, %v3973
      %v3990 = vpack.c.b16 %v3974, %v3974
      %v3991 = vpack.c.b16 %v3975, %v3975
      %v3992 = vpack.c.b16 %v3976, %v3976
      %v3993 = vpack.c.b16 %v3977, %v3977
      %v3994 = vpack.c.b16 %v3978, %v3978
      %v3995 = vpack.c.b16 %v3979, %v3979
      %v3996 = vpack.c.b16 %v3980, %v3980
      %v3997 = vpack.c.b16 %v3981, %v3981
      %v3998 = vpack.c.b16 %v3982, %v3982
      %v3999 = vpack.c.b16 %v3983, %v3983
      %v4000 = vpack.c.b16 %v3984, %v3984
      %v4001 = vpack.c.b16 %v3985, %v3985
      %v4002 = vpack.c.b16 %v3986, %v3986
      %v4003 = vpack.c.b16 %v3987, %v3987
      %v4005 = vshrl.u32 %v3924, 16
      %v4007 = vshll.u32 %v3924, 16
      %v4009 = vrot.slane %v4007, 1
      %v4010 = vor.u32 %v4005, %v4009
      %v4012 = vshll.u32 %v3988, 16
      %v4014 = vrot.slane %v4012, 1
      %v4015 = vsel %vm1898, %v4010, %v4014
      %v4017 = vshrl.u32 %v3925, 16
      %v4019 = vshll.u32 %v3925, 16
      %v4021 = vrot.slane %v4019, 1
      %v4022 = vor.u32 %v4017, %v4021
      %v4024 = vshll.u32 %v3989, 16
      %v4026 = vrot.slane %v4024, 1
      %v4027 = vsel %vm1898, %v4022, %v4026
      %v4029 = vshrl.u32 %v3926, 16
      %v4031 = vshll.u32 %v3926, 16
      %v4033 = vrot.slane %v4031, 1
      %v4034 = vor.u32 %v4029, %v4033
      %v4036 = vshll.u32 %v3990, 16
      %v4038 = vrot.slane %v4036, 1
      %v4039 = vsel %vm1898, %v4034, %v4038
      %v4041 = vshrl.u32 %v3927, 16
      %v4043 = vshll.u32 %v3927, 16
      %v4045 = vrot.slane %v4043, 1
      %v4046 = vor.u32 %v4041, %v4045
      %v4048 = vshll.u32 %v3991, 16
      %v4050 = vrot.slane %v4048, 1
      %v4051 = vsel %vm1898, %v4046, %v4050
      %v4053 = vshrl.u32 %v3928, 16
      %v4055 = vshll.u32 %v3928, 16
      %v4057 = vrot.slane %v4055, 1
      %v4058 = vor.u32 %v4053, %v4057
      %v4060 = vshll.u32 %v3992, 16
      %v4062 = vrot.slane %v4060, 1
      %v4063 = vsel %vm1898, %v4058, %v4062
      %v4065 = vshrl.u32 %v3929, 16
      %v4067 = vshll.u32 %v3929, 16
      %v4069 = vrot.slane %v4067, 1
      %v4070 = vor.u32 %v4065, %v4069
      %v4072 = vshll.u32 %v3993, 16
      %v4074 = vrot.slane %v4072, 1
      %v4075 = vsel %vm1898, %v4070, %v4074
      %v4077 = vshrl.u32 %v3930, 16
      %v4079 = vshll.u32 %v3930, 16
      %v4081 = vrot.slane %v4079, 1
      %v4082 = vor.u32 %v4077, %v4081
      %v4084 = vshll.u32 %v3994, 16
      %v4086 = vrot.slane %v4084, 1
      %v4087 = vsel %vm1898, %v4082, %v4086
      %v4089 = vshrl.u32 %v3931, 16
      %v4091 = vshll.u32 %v3931, 16
      %v4093 = vrot.slane %v4091, 1
      %v4094 = vor.u32 %v4089, %v4093
      %v4096 = vshll.u32 %v3995, 16
      %v4098 = vrot.slane %v4096, 1
      %v4099 = vsel %vm1898, %v4094, %v4098
      %v4101 = vshrl.u32 %v3932, 16
      %v4103 = vshll.u32 %v3932, 16
      %v4105 = vrot.slane %v4103, 1
      %v4106 = vor.u32 %v4101, %v4105
      %v4108 = vshll.u32 %v3996, 16
      %v4110 = vrot.slane %v4108, 1
      %v4111 = vsel %vm1898, %v4106, %v4110
      %v4113 = vshrl.u32 %v3933, 16
      %v4115 = vshll.u32 %v3933, 16
      %v4117 = vrot.slane %v4115, 1
      %v4118 = vor.u32 %v4113, %v4117
      %v4120 = vshll.u32 %v3997, 16
      %v4122 = vrot.slane %v4120, 1
      %v4123 = vsel %vm1898, %v4118, %v4122
      %v4125 = vshrl.u32 %v3934, 16
      %v4127 = vshll.u32 %v3934, 16
      %v4129 = vrot.slane %v4127, 1
      %v4130 = vor.u32 %v4125, %v4129
      %v4132 = vshll.u32 %v3998, 16
      %v4134 = vrot.slane %v4132, 1
      %v4135 = vsel %vm1898, %v4130, %v4134
      %v4137 = vshrl.u32 %v3935, 16
      %v4139 = vshll.u32 %v3935, 16
      %v4141 = vrot.slane %v4139, 1
      %v4142 = vor.u32 %v4137, %v4141
      %v4144 = vshll.u32 %v3999, 16
      %v4146 = vrot.slane %v4144, 1
      %v4147 = vsel %vm1898, %v4142, %v4146
      %v4149 = vshrl.u32 %v3936, 16
      %v4151 = vshll.u32 %v3936, 16
      %v4153 = vrot.slane %v4151, 1
      %v4154 = vor.u32 %v4149, %v4153
      %v4156 = vshll.u32 %v4000, 16
      %v4158 = vrot.slane %v4156, 1
      %v4159 = vsel %vm1898, %v4154, %v4158
      %v4161 = vshrl.u32 %v3937, 16
      %v4163 = vshll.u32 %v3937, 16
      %v4165 = vrot.slane %v4163, 1
      %v4166 = vor.u32 %v4161, %v4165
      %v4168 = vshll.u32 %v4001, 16
      %v4170 = vrot.slane %v4168, 1
      %v4171 = vsel %vm1898, %v4166, %v4170
      %v4173 = vshrl.u32 %v3938, 16
      %v4175 = vshll.u32 %v3938, 16
      %v4177 = vrot.slane %v4175, 1
      %v4178 = vor.u32 %v4173, %v4177
      %v4180 = vshll.u32 %v4002, 16
      %v4182 = vrot.slane %v4180, 1
      %v4183 = vsel %vm1898, %v4178, %v4182
      %v4185 = vshrl.u32 %v3939, 16
      %v4187 = vshll.u32 %v3939, 16
      %v4189 = vrot.slane %v4187, 1
      %v4190 = vor.u32 %v4185, %v4189
      %v4192 = vshll.u32 %v4003, 16
      %v4194 = vrot.slane %v4192, 1
      %v4195 = vsel %vm1898, %v4190, %v4194
      %v4228 = vunpack.c.l.b16 %v3844
      %v4229 = vunpack.c.l.b16 %v3845
      %v4230 = vunpack.c.l.b16 %v3846
      %v4231 = vunpack.c.l.b16 %v3847
      %v4232 = vunpack.c.l.b16 %v3848
      %v4233 = vunpack.c.l.b16 %v3849
      %v4234 = vunpack.c.l.b16 %v3850
      %v4235 = vunpack.c.l.b16 %v3851
      %v4236 = vunpack.c.l.b16 %v3852
      %v4237 = vunpack.c.l.b16 %v3853
      %v4238 = vunpack.c.l.b16 %v3854
      %v4239 = vunpack.c.l.b16 %v3855
      %v4240 = vunpack.c.l.b16 %v3856
      %v4241 = vunpack.c.l.b16 %v3857
      %v4242 = vunpack.c.l.b16 %v3858
      %v4243 = vunpack.c.l.b16 %v3859
      %v4244 = vpack.c.b16 %v3893, %v4228
      %v4245 = vpack.c.b16 %v3895, %v4229
      %v4246 = vpack.c.b16 %v3897, %v4230
      %v4247 = vpack.c.b16 %v3899, %v4231
      %v4248 = vpack.c.b16 %v3901, %v4232
      %v4249 = vpack.c.b16 %v3903, %v4233
      %v4250 = vpack.c.b16 %v3905, %v4234
      %v4251 = vpack.c.b16 %v3907, %v4235
      %v4252 = vpack.c.b16 %v3909, %v4236
      %v4253 = vpack.c.b16 %v3911, %v4237
      %v4254 = vpack.c.b16 %v3913, %v4238
      %v4255 = vpack.c.b16 %v3915, %v4239
      %v4256 = vpack.c.b16 %v3917, %v4240
      %v4257 = vpack.c.b16 %v3919, %v4241
      %v4258 = vpack.c.b16 %v3921, %v4242
      %v4259 = vpack.c.b16 %v3923, %v4243
      %v4260 = vrot.slane %v4244, 1
      %v4261 = vrot.slane %v3988, 1
      %v4262 = vsel %vm2155, %v4260, %v4261
      %v4263 = vrot.slane %v4245, 1
      %v4264 = vrot.slane %v3989, 1
      %v4265 = vsel %vm2155, %v4263, %v4264
      %v4266 = vrot.slane %v4246, 1
      %v4267 = vrot.slane %v3990, 1
      %v4268 = vsel %vm2155, %v4266, %v4267
      %v4269 = vrot.slane %v4247, 1
      %v4270 = vrot.slane %v3991, 1
      %v4271 = vsel %vm2155, %v4269, %v4270
      %v4272 = vrot.slane %v4248, 1
      %v4273 = vrot.slane %v3992, 1
      %v4274 = vsel %vm2155, %v4272, %v4273
      %v4275 = vrot.slane %v4249, 1
      %v4276 = vrot.slane %v3993, 1
      %v4277 = vsel %vm2155, %v4275, %v4276
      %v4278 = vrot.slane %v4250, 1
      %v4279 = vrot.slane %v3994, 1
      %v4280 = vsel %vm2155, %v4278, %v4279
      %v4281 = vrot.slane %v4251, 1
      %v4282 = vrot.slane %v3995, 1
      %v4283 = vsel %vm2155, %v4281, %v4282
      %v4284 = vrot.slane %v4252, 1
      %v4285 = vrot.slane %v3996, 1
      %v4286 = vsel %vm2155, %v4284, %v4285
      %v4287 = vrot.slane %v4253, 1
      %v4288 = vrot.slane %v3997, 1
      %v4289 = vsel %vm2155, %v4287, %v4288
      %v4290 = vrot.slane %v4254, 1
      %v4291 = vrot.slane %v3998, 1
      %v4292 = vsel %vm2155, %v4290, %v4291
      %v4293 = vrot.slane %v4255, 1
      %v4294 = vrot.slane %v3999, 1
      %v4295 = vsel %vm2155, %v4293, %v4294
      %v4296 = vrot.slane %v4256, 1
      %v4297 = vrot.slane %v4000, 1
      %v4298 = vsel %vm2155, %v4296, %v4297
      %v4299 = vrot.slane %v4257, 1
      %v4300 = vrot.slane %v4001, 1
      %v4301 = vsel %vm2155, %v4299, %v4300
      %v4302 = vrot.slane %v4258, 1
      %v4303 = vrot.slane %v4002, 1
      %v4304 = vsel %vm2155, %v4302, %v4303
      %v4305 = vrot.slane %v4259, 1
      %v4306 = vrot.slane %v4003, 1
      %v4307 = vsel %vm2155, %v4305, %v4306
      %s4324 = scalar_lea.vmem %s3, 384
      %v4325 = vld [vmem:[%s4324] sm:$0xf]
      %v4326 = vld [vmem:[%s4324 + $0x4] sm:$0xf]
      %v4327 = vld [vmem:[%s4324 + $0x8] sm:$0xf]
      %v4328 = vld [vmem:[%s4324 + $0xc] sm:$0xf]
      %v4329 = vld [vmem:[%s4324 + $0x10] sm:$0xf]
      %v4330 = vld [vmem:[%s4324 + $0x14] sm:$0xf]
      %v4331 = vld [vmem:[%s4324 + $0x18] sm:$0xf]
      %v4332 = vld [vmem:[%s4324 + $0x1c] sm:$0xf]
      %v4333 = vld [vmem:[%s4324 + $0x20] sm:$0xf]
      %v4334 = vld [vmem:[%s4324 + $0x24] sm:$0xf]
      %v4335 = vld [vmem:[%s4324 + $0x28] sm:$0xf]
      %v4336 = vld [vmem:[%s4324 + $0x2c] sm:$0xf]
      %v4337 = vld [vmem:[%s4324 + $0x30] sm:$0xf]
      %v4338 = vld [vmem:[%s4324 + $0x34] sm:$0xf]
      %v4339 = vld [vmem:[%s4324 + $0x38] sm:$0xf]
      %v4340 = vld [vmem:[%s4324 + $0x3c] sm:$0xf]
      %v4341 = vld [vmem:[%s4324 + $0x40] sm:$0xf]
      %v4342 = vld [vmem:[%s4324 + $0x44] sm:$0xf]
      %v4343 = vld [vmem:[%s4324 + $0x48] sm:$0xf]
      %v4344 = vld [vmem:[%s4324 + $0x4c] sm:$0xf]
      %v4345 = vld [vmem:[%s4324 + $0x50] sm:$0xf]
      %v4346 = vld [vmem:[%s4324 + $0x54] sm:$0xf]
      %v4347 = vld [vmem:[%s4324 + $0x58] sm:$0xf]
      %v4348 = vld [vmem:[%s4324 + $0x5c] sm:$0xf]
      %v4349 = vld [vmem:[%s4324 + $0x60] sm:$0xf]
      %v4350 = vld [vmem:[%s4324 + $0x64] sm:$0xf]
      %v4351 = vld [vmem:[%s4324 + $0x68] sm:$0xf]
      %v4352 = vld [vmem:[%s4324 + $0x6c] sm:$0xf]
      %v4353 = vld [vmem:[%s4324 + $0x70] sm:$0xf]
      %v4354 = vld [vmem:[%s4324 + $0x74] sm:$0xf]
      %v4355 = vld [vmem:[%s4324 + $0x78] sm:$0xf]
      %v4356 = vld [vmem:[%s4324 + $0x7c] sm:$0xf]
      %v4357 = vld [vmem:[%s4324 + $0x80] sm:$0xf]
      %v4358 = vld [vmem:[%s4324 + $0x84] sm:$0xf]
      %v4359 = vld [vmem:[%s4324 + $0x88] sm:$0xf]
      %v4360 = vld [vmem:[%s4324 + $0x8c] sm:$0xf]
      %v4361 = vld [vmem:[%s4324 + $0x90] sm:$0xf]
      %v4362 = vld [vmem:[%s4324 + $0x94] sm:$0xf]
      %v4363 = vld [vmem:[%s4324 + $0x98] sm:$0xf]
      %v4364 = vld [vmem:[%s4324 + $0x9c] sm:$0xf]
      %v4365 = vld [vmem:[%s4324 + $0xa0] sm:$0xf]
      %v4366 = vld [vmem:[%s4324 + $0xa4] sm:$0xf]
      %v4367 = vld [vmem:[%s4324 + $0xa8] sm:$0xf]
      %v4368 = vld [vmem:[%s4324 + $0xac] sm:$0xf]
      %v4369 = vld [vmem:[%s4324 + $0xb0] sm:$0xf]
      %v4370 = vld [vmem:[%s4324 + $0xb4] sm:$0xf]
      %v4371 = vld [vmem:[%s4324 + $0xb8] sm:$0xf]
      %v4372 = vld [vmem:[%s4324 + $0xbc] sm:$0xf]
      %v4421 = vunpack.c.l.b16 %v4325
      %v4422 = vunpack.c.l.b16 %v4326
      %v4423 = vunpack.c.l.b16 %v4327
      %v4424 = vunpack.c.l.b16 %v4328
      %v4425 = vunpack.c.l.b16 %v4329
      %v4426 = vunpack.c.l.b16 %v4330
      %v4427 = vunpack.c.l.b16 %v4331
      %v4428 = vunpack.c.l.b16 %v4332
      %v4429 = vunpack.c.l.b16 %v4333
      %v4430 = vunpack.c.l.b16 %v4334
      %v4431 = vunpack.c.l.b16 %v4335
      %v4432 = vunpack.c.l.b16 %v4336
      %v4433 = vunpack.c.l.b16 %v4337
      %v4434 = vunpack.c.l.b16 %v4338
      %v4435 = vunpack.c.l.b16 %v4339
      %v4436 = vunpack.c.l.b16 %v4340
      %v4437 = vunpack.c.l.b16 %v4341
      %v4438 = vunpack.c.l.b16 %v4342
      %v4439 = vunpack.c.l.b16 %v4343
      %v4440 = vunpack.c.l.b16 %v4344
      %v4441 = vunpack.c.l.b16 %v4345
      %v4442 = vunpack.c.l.b16 %v4346
      %v4443 = vunpack.c.l.b16 %v4347
      %v4444 = vunpack.c.l.b16 %v4348
      %v4445 = vunpack.c.l.b16 %v4349
      %v4446 = vunpack.c.l.b16 %v4350
      %v4447 = vunpack.c.l.b16 %v4351
      %v4448 = vunpack.c.l.b16 %v4352
      %v4449 = vunpack.c.l.b16 %v4353
      %v4450 = vunpack.c.l.b16 %v4354
      %v4451 = vunpack.c.l.b16 %v4355
      %v4452 = vunpack.c.l.b16 %v4356
      %v4453 = vunpack.c.l.b16 %v4357
      %v4454 = vunpack.c.l.b16 %v4358
      %v4455 = vunpack.c.l.b16 %v4359
      %v4456 = vunpack.c.l.b16 %v4360
      %v4457 = vunpack.c.l.b16 %v4361
      %v4458 = vunpack.c.l.b16 %v4362
      %v4459 = vunpack.c.l.b16 %v4363
      %v4460 = vunpack.c.l.b16 %v4364
      %v4461 = vunpack.c.l.b16 %v4365
      %v4462 = vunpack.c.l.b16 %v4366
      %v4463 = vunpack.c.l.b16 %v4367
      %v4464 = vunpack.c.l.b16 %v4368
      %v4465 = vunpack.c.l.b16 %v4369
      %v4466 = vunpack.c.l.b16 %v4370
      %v4467 = vunpack.c.l.b16 %v4371
      %v4468 = vunpack.c.l.b16 %v4372
      %v4469 = vpack.c.b16 %v4422, %v4421
      %v4470 = vpack.c.b16 %v4424, %v4423
      %v4471 = vpack.c.b16 %v4426, %v4425
      %v4472 = vpack.c.b16 %v4428, %v4427
      %v4473 = vpack.c.b16 %v4430, %v4429
      %v4474 = vpack.c.b16 %v4432, %v4431
      %v4475 = vpack.c.b16 %v4434, %v4433
      %v4476 = vpack.c.b16 %v4436, %v4435
      %v4477 = vpack.c.b16 %v4438, %v4437
      %v4478 = vpack.c.b16 %v4440, %v4439
      %v4479 = vpack.c.b16 %v4442, %v4441
      %v4480 = vpack.c.b16 %v4444, %v4443
      %v4481 = vpack.c.b16 %v4446, %v4445
      %v4482 = vpack.c.b16 %v4448, %v4447
      %v4483 = vpack.c.b16 %v4450, %v4449
      %v4484 = vpack.c.b16 %v4452, %v4451
      %v4485 = vpack.c.b16 %v4454, %v4453
      %v4486 = vpack.c.b16 %v4456, %v4455
      %v4487 = vpack.c.b16 %v4458, %v4457
      %v4488 = vpack.c.b16 %v4460, %v4459
      %v4489 = vpack.c.b16 %v4462, %v4461
      %v4490 = vpack.c.b16 %v4464, %v4463
      %v4491 = vpack.c.b16 %v4466, %v4465
      %v4492 = vpack.c.b16 %v4468, %v4467
      %4517 = vmatpush.bf16.msra.mxu0 %v4476
      %4518 = vmatpush.bf16.msra.mxu0 %v4475
      %4519 = vmatpush.bf16.msra.mxu0 %v4474
      %4520 = vmatpush.bf16.msra.mxu0 %v4473
      %4521 = vmatpush.bf16.msra.mxu0 %v4472
      %4522 = vmatpush.bf16.msra.mxu0 %v4471
      %4523 = vmatpush.bf16.msra.mxu0 %v4470
      %4524 = vmatpush.bf16.msra.mxu0 %v4469
      %4525 = vmatmul.bf16.gmra.mxu0 %v3924
      %v4526 = vpop.f32.mrf.mxu0
      %v4527 = vadd.f32 0.0, %v4526
      %v4528 = vpop.f32.mrf.mxu0
      %v4529 = vadd.f32 0.0, %v4528
      %4530 = vmatmul.bf16.gmra.mxu0 %v3925
      %v4531 = vpop.f32.mrf.mxu0
      %v4532 = vadd.f32 0.0, %v4531
      %v4533 = vpop.f32.mrf.mxu0
      %v4534 = vadd.f32 0.0, %v4533
      %4535 = vmatmul.bf16.gmra.mxu0 %v3926
      %v4536 = vpop.f32.mrf.mxu0
      %v4537 = vadd.f32 0.0, %v4536
      %v4538 = vpop.f32.mrf.mxu0
      %v4539 = vadd.f32 0.0, %v4538
      %4540 = vmatmul.bf16.gmra.mxu0 %v3927
      %v4541 = vpop.f32.mrf.mxu0
      %v4542 = vadd.f32 0.0, %v4541
      %v4543 = vpop.f32.mrf.mxu0
      %v4544 = vadd.f32 0.0, %v4543
      %4545 = vmatmul.bf16.gmra.mxu0 %v3928
      %v4546 = vpop.f32.mrf.mxu0
      %v4547 = vadd.f32 0.0, %v4546
      %v4548 = vpop.f32.mrf.mxu0
      %v4549 = vadd.f32 0.0, %v4548
      %4550 = vmatmul.bf16.gmra.mxu0 %v3929
      %v4551 = vpop.f32.mrf.mxu0
      %v4552 = vadd.f32 0.0, %v4551
      %v4553 = vpop.f32.mrf.mxu0
      %v4554 = vadd.f32 0.0, %v4553
      %4555 = vmatmul.bf16.gmra.mxu0 %v3930
      %v4556 = vpop.f32.mrf.mxu0
      %v4557 = vadd.f32 0.0, %v4556
      %v4558 = vpop.f32.mrf.mxu0
      %v4559 = vadd.f32 0.0, %v4558
      %4560 = vmatmul.bf16.gmra.mxu0 %v3931
      %v4561 = vpop.f32.mrf.mxu0
      %v4562 = vadd.f32 0.0, %v4561
      %v4563 = vpop.f32.mrf.mxu0
      %v4564 = vadd.f32 0.0, %v4563
      %4565 = vmatmul.bf16.gmra.mxu0 %v3932
      %v4566 = vpop.f32.mrf.mxu0
      %v4567 = vadd.f32 0.0, %v4566
      %v4568 = vpop.f32.mrf.mxu0
      %v4569 = vadd.f32 0.0, %v4568
      %4570 = vmatmul.bf16.gmra.mxu0 %v3933
      %v4571 = vpop.f32.mrf.mxu0
      %v4572 = vadd.f32 0.0, %v4571
      %v4573 = vpop.f32.mrf.mxu0
      %v4574 = vadd.f32 0.0, %v4573
      %4575 = vmatmul.bf16.gmra.mxu0 %v3934
      %v4576 = vpop.f32.mrf.mxu0
      %v4577 = vadd.f32 0.0, %v4576
      %v4578 = vpop.f32.mrf.mxu0
      %v4579 = vadd.f32 0.0, %v4578
      %4580 = vmatmul.bf16.gmra.mxu0 %v3935
      %v4581 = vpop.f32.mrf.mxu0
      %v4582 = vadd.f32 0.0, %v4581
      %v4583 = vpop.f32.mrf.mxu0
      %v4584 = vadd.f32 0.0, %v4583
      %4585 = vmatmul.bf16.gmra.mxu0 %v3936
      %v4586 = vpop.f32.mrf.mxu0
      %v4587 = vadd.f32 0.0, %v4586
      %v4588 = vpop.f32.mrf.mxu0
      %v4589 = vadd.f32 0.0, %v4588
      %4590 = vmatmul.bf16.gmra.mxu0 %v3937
      %v4591 = vpop.f32.mrf.mxu0
      %v4592 = vadd.f32 0.0, %v4591
      %v4593 = vpop.f32.mrf.mxu0
      %v4594 = vadd.f32 0.0, %v4593
      %4595 = vmatmul.bf16.gmra.mxu0 %v3938
      %v4596 = vpop.f32.mrf.mxu0
      %v4597 = vadd.f32 0.0, %v4596
      %v4598 = vpop.f32.mrf.mxu0
      %v4599 = vadd.f32 0.0, %v4598
      %4600 = vmatmul.bf16.gmra.mxu0 %v3939
      %v4601 = vpop.f32.mrf.mxu0
      %v4602 = vadd.f32 0.0, %v4601
      %v4603 = vpop.f32.mrf.mxu0
      %v4604 = vadd.f32 0.0, %v4603
      %4605 = vdwg.mxu0
      %4606 = vmatpush.bf16.msra.mxu0 %v4484
      %4607 = vmatpush.bf16.msra.mxu0 %v4483
      %4608 = vmatpush.bf16.msra.mxu0 %v4482
      %4609 = vmatpush.bf16.msra.mxu0 %v4481
      %4610 = vmatpush.bf16.msra.mxu0 %v4480
      %4611 = vmatpush.bf16.msra.mxu0 %v4479
      %4612 = vmatpush.bf16.msra.mxu0 %v4478
      %4613 = vmatpush.bf16.msra.mxu0 %v4477
      %4614 = vmatmul.bf16.gmra.mxu0 %v4015
      %v4615 = vpop.f32.mrf.mxu0
      %v4616 = vadd.f32 %v4527, %v4615
      %v4617 = vpop.f32.mrf.mxu0
      %v4618 = vadd.f32 %v4529, %v4617
      %4619 = vmatmul.bf16.gmra.mxu0 %v4027
      %v4620 = vpop.f32.mrf.mxu0
      %v4621 = vadd.f32 %v4532, %v4620
      %v4622 = vpop.f32.mrf.mxu0
      %v4623 = vadd.f32 %v4534, %v4622
      %4624 = vmatmul.bf16.gmra.mxu0 %v4039
      %v4625 = vpop.f32.mrf.mxu0
      %v4626 = vadd.f32 %v4537, %v4625
      %v4627 = vpop.f32.mrf.mxu0
      %v4628 = vadd.f32 %v4539, %v4627
      %4629 = vmatmul.bf16.gmra.mxu0 %v4051
      %v4630 = vpop.f32.mrf.mxu0
      %v4631 = vadd.f32 %v4542, %v4630
      %v4632 = vpop.f32.mrf.mxu0
      %v4633 = vadd.f32 %v4544, %v4632
      %4634 = vmatmul.bf16.gmra.mxu0 %v4063
      %v4635 = vpop.f32.mrf.mxu0
      %v4636 = vadd.f32 %v4547, %v4635
      %v4637 = vpop.f32.mrf.mxu0
      %v4638 = vadd.f32 %v4549, %v4637
      %4639 = vmatmul.bf16.gmra.mxu0 %v4075
      %v4640 = vpop.f32.mrf.mxu0
      %v4641 = vadd.f32 %v4552, %v4640
      %v4642 = vpop.f32.mrf.mxu0
      %v4643 = vadd.f32 %v4554, %v4642
      %4644 = vmatmul.bf16.gmra.mxu0 %v4087
      %v4645 = vpop.f32.mrf.mxu0
      %v4646 = vadd.f32 %v4557, %v4645
      %v4647 = vpop.f32.mrf.mxu0
      %v4648 = vadd.f32 %v4559, %v4647
      %4649 = vmatmul.bf16.gmra.mxu0 %v4099
      %v4650 = vpop.f32.mrf.mxu0
      %v4651 = vadd.f32 %v4562, %v4650
      %v4652 = vpop.f32.mrf.mxu0
      %v4653 = vadd.f32 %v4564, %v4652
      %4654 = vmatmul.bf16.gmra.mxu0 %v4111
      %v4655 = vpop.f32.mrf.mxu0
      %v4656 = vadd.f32 %v4567, %v4655
      %v4657 = vpop.f32.mrf.mxu0
      %v4658 = vadd.f32 %v4569, %v4657
      %4659 = vmatmul.bf16.gmra.mxu0 %v4123
      %v4660 = vpop.f32.mrf.mxu0
      %v4661 = vadd.f32 %v4572, %v4660
      %v4662 = vpop.f32.mrf.mxu0
      %v4663 = vadd.f32 %v4574, %v4662
      %4664 = vmatmul.bf16.gmra.mxu0 %v4135
      %v4665 = vpop.f32.mrf.mxu0
      %v4666 = vadd.f32 %v4577, %v4665
      %v4667 = vpop.f32.mrf.mxu0
      %v4668 = vadd.f32 %v4579, %v4667
      %4669 = vmatmul.bf16.gmra.mxu0 %v4147
      %v4670 = vpop.f32.mrf.mxu0
      %v4671 = vadd.f32 %v4582, %v4670
      %v4672 = vpop.f32.mrf.mxu0
      %v4673 = vadd.f32 %v4584, %v4672
      %4674 = vmatmul.bf16.gmra.mxu0 %v4159
      %v4675 = vpop.f32.mrf.mxu0
      %v4676 = vadd.f32 %v4587, %v4675
      %v4677 = vpop.f32.mrf.mxu0
      %v4678 = vadd.f32 %v4589, %v4677
      %4679 = vmatmul.bf16.gmra.mxu0 %v4171
      %v4680 = vpop.f32.mrf.mxu0
      %v4681 = vadd.f32 %v4592, %v4680
      %v4682 = vpop.f32.mrf.mxu0
      %v4683 = vadd.f32 %v4594, %v4682
      %4684 = vmatmul.bf16.gmra.mxu0 %v4183
      %v4685 = vpop.f32.mrf.mxu0
      %v4686 = vadd.f32 %v4597, %v4685
      %v4687 = vpop.f32.mrf.mxu0
      %v4688 = vadd.f32 %v4599, %v4687
      %4689 = vmatmul.bf16.gmra.mxu0 %v4195
      %v4690 = vpop.f32.mrf.mxu0
      %v4691 = vadd.f32 %v4602, %v4690
      %v4692 = vpop.f32.mrf.mxu0
      %v4693 = vadd.f32 %v4604, %v4692
      %4694 = vdwg.mxu0
      %4695 = vmatpush.bf16.msra.mxu0 %v4492
      %4696 = vmatpush.bf16.msra.mxu0 %v4491
      %4697 = vmatpush.bf16.msra.mxu0 %v4490
      %4698 = vmatpush.bf16.msra.mxu0 %v4489
      %4699 = vmatpush.bf16.msra.mxu0 %v4488
      %4700 = vmatpush.bf16.msra.mxu0 %v4487
      %4701 = vmatpush.bf16.msra.mxu0 %v4486
      %4702 = vmatpush.bf16.msra.mxu0 %v4485
      %4703 = vmatmul.bf16.gmra.mxu0 %v4262
      %v4704 = vpop.f32.mrf.mxu0
      %v4705 = vadd.f32 %v4616, %v4704
      %v4706 = vpop.f32.mrf.mxu0
      %v4707 = vadd.f32 %v4618, %v4706
      %4708 = vmatmul.bf16.gmra.mxu0 %v4265
      %v4709 = vpop.f32.mrf.mxu0
      %v4710 = vadd.f32 %v4621, %v4709
      %v4711 = vpop.f32.mrf.mxu0
      %v4712 = vadd.f32 %v4623, %v4711
      %4713 = vmatmul.bf16.gmra.mxu0 %v4268
      %v4714 = vpop.f32.mrf.mxu0
      %v4715 = vadd.f32 %v4626, %v4714
      %v4716 = vpop.f32.mrf.mxu0
      %v4717 = vadd.f32 %v4628, %v4716
      %4718 = vmatmul.bf16.gmra.mxu0 %v4271
      %v4719 = vpop.f32.mrf.mxu0
      %v4720 = vadd.f32 %v4631, %v4719
      %v4721 = vpop.f32.mrf.mxu0
      %v4722 = vadd.f32 %v4633, %v4721
      %4723 = vmatmul.bf16.gmra.mxu0 %v4274
      %v4724 = vpop.f32.mrf.mxu0
      %v4725 = vadd.f32 %v4636, %v4724
      %v4726 = vpop.f32.mrf.mxu0
      %v4727 = vadd.f32 %v4638, %v4726
      %4728 = vmatmul.bf16.gmra.mxu0 %v4277
      %v4729 = vpop.f32.mrf.mxu0
      %v4730 = vadd.f32 %v4641, %v4729
      %v4731 = vpop.f32.mrf.mxu0
      %v4732 = vadd.f32 %v4643, %v4731
      %4733 = vmatmul.bf16.gmra.mxu0 %v4280
      %v4734 = vpop.f32.mrf.mxu0
      %v4735 = vadd.f32 %v4646, %v4734
      %v4736 = vpop.f32.mrf.mxu0
      %v4737 = vadd.f32 %v4648, %v4736
      %4738 = vmatmul.bf16.gmra.mxu0 %v4283
      %v4739 = vpop.f32.mrf.mxu0
      %v4740 = vadd.f32 %v4651, %v4739
      %v4741 = vpop.f32.mrf.mxu0
      %v4742 = vadd.f32 %v4653, %v4741
      %4743 = vmatmul.bf16.gmra.mxu0 %v4286
      %v4744 = vpop.f32.mrf.mxu0
      %v4745 = vadd.f32 %v4656, %v4744
      %v4746 = vpop.f32.mrf.mxu0
      %v4747 = vadd.f32 %v4658, %v4746
      %4748 = vmatmul.bf16.gmra.mxu0 %v4289
      %v4749 = vpop.f32.mrf.mxu0
      %v4750 = vadd.f32 %v4661, %v4749
      %v4751 = vpop.f32.mrf.mxu0
      %v4752 = vadd.f32 %v4663, %v4751
      %4753 = vmatmul.bf16.gmra.mxu0 %v4292
      %v4754 = vpop.f32.mrf.mxu0
      %v4755 = vadd.f32 %v4666, %v4754
      %v4756 = vpop.f32.mrf.mxu0
      %v4757 = vadd.f32 %v4668, %v4756
      %4758 = vmatmul.bf16.gmra.mxu0 %v4295
      %v4759 = vpop.f32.mrf.mxu0
      %v4760 = vadd.f32 %v4671, %v4759
      %v4761 = vpop.f32.mrf.mxu0
      %v4762 = vadd.f32 %v4673, %v4761
      %4763 = vmatmul.bf16.gmra.mxu0 %v4298
      %v4764 = vpop.f32.mrf.mxu0
      %v4765 = vadd.f32 %v4676, %v4764
      %v4766 = vpop.f32.mrf.mxu0
      %v4767 = vadd.f32 %v4678, %v4766
      %4768 = vmatmul.bf16.gmra.mxu0 %v4301
      %v4769 = vpop.f32.mrf.mxu0
      %v4770 = vadd.f32 %v4681, %v4769
      %v4771 = vpop.f32.mrf.mxu0
      %v4772 = vadd.f32 %v4683, %v4771
      %4773 = vmatmul.bf16.gmra.mxu0 %v4304
      %v4774 = vpop.f32.mrf.mxu0
      %v4775 = vadd.f32 %v4686, %v4774
      %v4776 = vpop.f32.mrf.mxu0
      %v4777 = vadd.f32 %v4688, %v4776
      %4778 = vmatmul.bf16.gmra.mxu0 %v4307
      %v4779 = vpop.f32.mrf.mxu0
      %v4780 = vadd.f32 %v4691, %v4779
      %v4781 = vpop.f32.mrf.mxu0
      %v4782 = vadd.f32 %v4693, %v4781
      %4783 = vdwg.mxu0
      %v4784 = vld [vmem:[#allocation3] sm:$0xff]
      %v4785 = vld [vmem:[#allocation3 + $0x8] sm:$0xff]
      %v4786 = vld [vmem:[#allocation3 + $0x10] sm:$0xff]
      %v4787 = vld [vmem:[#allocation3 + $0x18] sm:$0xff]
      %v4788 = vld [vmem:[#allocation3 + $0x20] sm:$0xff]
      %v4789 = vld [vmem:[#allocation3 + $0x28] sm:$0xff]
      %v4790 = vld [vmem:[#allocation3 + $0x30] sm:$0xff]
      %v4791 = vld [vmem:[#allocation3 + $0x38] sm:$0xff]
      %v4792 = vld [vmem:[#allocation3 + $0x40] sm:$0xff]
      %v4793 = vld [vmem:[#allocation3 + $0x48] sm:$0xff]
      %v4794 = vld [vmem:[#allocation3 + $0x50] sm:$0xff]
      %v4795 = vld [vmem:[#allocation3 + $0x58] sm:$0xff]
      %v4796 = vld [vmem:[#allocation3 + $0x60] sm:$0xff]
      %v4797 = vld [vmem:[#allocation3 + $0x68] sm:$0xff]
      %v4798 = vld [vmem:[#allocation3 + $0x70] sm:$0xff]
      %v4799 = vld [vmem:[#allocation3 + $0x78] sm:$0xff]
      %v4800 = vld [vmem:[#allocation3 + $0x80] sm:$0xff]
      %v4801 = vld [vmem:[#allocation3 + $0x88] sm:$0xff]
      %v4802 = vld [vmem:[#allocation3 + $0x90] sm:$0xff]
      %v4803 = vld [vmem:[#allocation3 + $0x98] sm:$0xff]
      %v4804 = vld [vmem:[#allocation3 + $0xa0] sm:$0xff]
      %v4805 = vld [vmem:[#allocation3 + $0xa8] sm:$0xff]
      %v4806 = vld [vmem:[#allocation3 + $0xb0] sm:$0xff]
      %v4807 = vld [vmem:[#allocation3 + $0xb8] sm:$0xff]
      %v4808 = vld [vmem:[#allocation3 + $0xc0] sm:$0xff]
      %v4809 = vld [vmem:[#allocation3 + $0xc8] sm:$0xff]
      %v4810 = vld [vmem:[#allocation3 + $0xd0] sm:$0xff]
      %v4811 = vld [vmem:[#allocation3 + $0xd8] sm:$0xff]
      %v4812 = vld [vmem:[#allocation3 + $0xe0] sm:$0xff]
      %v4813 = vld [vmem:[#allocation3 + $0xe8] sm:$0xff]
      %v4814 = vld [vmem:[#allocation3 + $0xf0] sm:$0xff]
      %v4815 = vld [vmem:[#allocation3 + $0xf8] sm:$0xff]
      %v4816 = vadd.f32 %v4784, %v4705
      %v4817 = vadd.f32 %v4785, %v4707
      %v4818 = vadd.f32 %v4786, %v4710
      %v4819 = vadd.f32 %v4787, %v4712
      %v4820 = vadd.f32 %v4788, %v4715
      %v4821 = vadd.f32 %v4789, %v4717
      %v4822 = vadd.f32 %v4790, %v4720
      %v4823 = vadd.f32 %v4791, %v4722
      %v4824 = vadd.f32 %v4792, %v4725
      %v4825 = vadd.f32 %v4793, %v4727
      %v4826 = vadd.f32 %v4794, %v4730
      %v4827 = vadd.f32 %v4795, %v4732
      %v4828 = vadd.f32 %v4796, %v4735
      %v4829 = vadd.f32 %v4797, %v4737
      %v4830 = vadd.f32 %v4798, %v4740
      %v4831 = vadd.f32 %v4799, %v4742
      %v4832 = vadd.f32 %v4800, %v4745
      %v4833 = vadd.f32 %v4801, %v4747
      %v4834 = vadd.f32 %v4802, %v4750
      %v4835 = vadd.f32 %v4803, %v4752
      %v4836 = vadd.f32 %v4804, %v4755
      %v4837 = vadd.f32 %v4805, %v4757
      %v4838 = vadd.f32 %v4806, %v4760
      %v4839 = vadd.f32 %v4807, %v4762
      %v4840 = vadd.f32 %v4808, %v4765
      %v4841 = vadd.f32 %v4809, %v4767
      %v4842 = vadd.f32 %v4810, %v4770
      %v4843 = vadd.f32 %v4811, %v4772
      %v4844 = vadd.f32 %v4812, %v4775
      %v4845 = vadd.f32 %v4813, %v4777
      %v4846 = vadd.f32 %v4814, %v4780
      %v4847 = vadd.f32 %v4815, %v4782
      %4848 = vst [vmem:[#allocation3] sm:$0xff] %v4816
      %4849 = vst [vmem:[#allocation3 + $0x8] sm:$0xff] %v4817
      %4850 = vst [vmem:[#allocation3 + $0x10] sm:$0xff] %v4818
      %4851 = vst [vmem:[#allocation3 + $0x18] sm:$0xff] %v4819
      %4852 = vst [vmem:[#allocation3 + $0x20] sm:$0xff] %v4820
      %4853 = vst [vmem:[#allocation3 + $0x28] sm:$0xff] %v4821
      %4854 = vst [vmem:[#allocation3 + $0x30] sm:$0xff] %v4822
      %4855 = vst [vmem:[#allocation3 + $0x38] sm:$0xff] %v4823
      %4856 = vst [vmem:[#allocation3 + $0x40] sm:$0xff] %v4824
      %4857 = vst [vmem:[#allocation3 + $0x48] sm:$0xff] %v4825
      %4858 = vst [vmem:[#allocation3 + $0x50] sm:$0xff] %v4826
      %4859 = vst [vmem:[#allocation3 + $0x58] sm:$0xff] %v4827
      %4860 = vst [vmem:[#allocation3 + $0x60] sm:$0xff] %v4828
      %4861 = vst [vmem:[#allocation3 + $0x68] sm:$0xff] %v4829
      %4862 = vst [vmem:[#allocation3 + $0x70] sm:$0xff] %v4830
      %4863 = vst [vmem:[#allocation3 + $0x78] sm:$0xff] %v4831
      %4864 = vst [vmem:[#allocation3 + $0x80] sm:$0xff] %v4832
      %4865 = vst [vmem:[#allocation3 + $0x88] sm:$0xff] %v4833
      %4866 = vst [vmem:[#allocation3 + $0x90] sm:$0xff] %v4834
      %4867 = vst [vmem:[#allocation3 + $0x98] sm:$0xff] %v4835
      %4868 = vst [vmem:[#allocation3 + $0xa0] sm:$0xff] %v4836
      %4869 = vst [vmem:[#allocation3 + $0xa8] sm:$0xff] %v4837
      %4870 = vst [vmem:[#allocation3 + $0xb0] sm:$0xff] %v4838
      %4871 = vst [vmem:[#allocation3 + $0xb8] sm:$0xff] %v4839
      %4872 = vst [vmem:[#allocation3 + $0xc0] sm:$0xff] %v4840
      %4873 = vst [vmem:[#allocation3 + $0xc8] sm:$0xff] %v4841
      %4874 = vst [vmem:[#allocation3 + $0xd0] sm:$0xff] %v4842
      %4875 = vst [vmem:[#allocation3 + $0xd8] sm:$0xff] %v4843
      %4876 = vst [vmem:[#allocation3 + $0xe0] sm:$0xff] %v4844
      %4877 = vst [vmem:[#allocation3 + $0xe8] sm:$0xff] %v4845
      %4878 = vst [vmem:[#allocation3 + $0xf0] sm:$0xff] %v4846
      %4879 = vst [vmem:[#allocation3 + $0xf8] sm:$0xff] %v4847
      %v4880 = vld [vmem:[#allocation3] sm:$0xff]
      %v4881 = vld [vmem:[#allocation3 + $0x8] sm:$0xff]
      %v4882 = vld [vmem:[#allocation3 + $0x10] sm:$0xff]
      %v4883 = vld [vmem:[#allocation3 + $0x18] sm:$0xff]
      %v4884 = vld [vmem:[#allocation3 + $0x20] sm:$0xff]
      %v4885 = vld [vmem:[#allocation3 + $0x28] sm:$0xff]
      %v4886 = vld [vmem:[#allocation3 + $0x30] sm:$0xff]
      %v4887 = vld [vmem:[#allocation3 + $0x38] sm:$0xff]
      %v4888 = vld [vmem:[#allocation3 + $0x40] sm:$0xff]
      %v4889 = vld [vmem:[#allocation3 + $0x48] sm:$0xff]
      %v4890 = vld [vmem:[#allocation3 + $0x50] sm:$0xff]
      %v4891 = vld [vmem:[#allocation3 + $0x58] sm:$0xff]
      %v4892 = vld [vmem:[#allocation3 + $0x60] sm:$0xff]
      %v4893 = vld [vmem:[#allocation3 + $0x68] sm:$0xff]
      %v4894 = vld [vmem:[#allocation3 + $0x70] sm:$0xff]
      %v4895 = vld [vmem:[#allocation3 + $0x78] sm:$0xff]
      %v4896 = vld [vmem:[#allocation3 + $0x80] sm:$0xff]
      %v4897 = vld [vmem:[#allocation3 + $0x88] sm:$0xff]
      %v4898 = vld [vmem:[#allocation3 + $0x90] sm:$0xff]
      %v4899 = vld [vmem:[#allocation3 + $0x98] sm:$0xff]
      %v4900 = vld [vmem:[#allocation3 + $0xa0] sm:$0xff]
      %v4901 = vld [vmem:[#allocation3 + $0xa8] sm:$0xff]
      %v4902 = vld [vmem:[#allocation3 + $0xb0] sm:$0xff]
      %v4903 = vld [vmem:[#allocation3 + $0xb8] sm:$0xff]
      %v4904 = vld [vmem:[#allocation3 + $0xc0] sm:$0xff]
      %v4905 = vld [vmem:[#allocation3 + $0xc8] sm:$0xff]
      %v4906 = vld [vmem:[#allocation3 + $0xd0] sm:$0xff]
      %v4907 = vld [vmem:[#allocation3 + $0xd8] sm:$0xff]
      %v4908 = vld [vmem:[#allocation3 + $0xe0] sm:$0xff]
      %v4909 = vld [vmem:[#allocation3 + $0xe8] sm:$0xff]
      %v4910 = vld [vmem:[#allocation3 + $0xf0] sm:$0xff]
      %v4911 = vld [vmem:[#allocation3 + $0xf8] sm:$0xff]
      %v4912 = vpack.c.bf16 %v4880, %v4880
      %v4913 = vpack.c.bf16 %v4881, %v4881
      %v4914 = vpack.c.bf16 %v4882, %v4882
      %v4915 = vpack.c.bf16 %v4883, %v4883
      %v4916 = vpack.c.bf16 %v4884, %v4884
      %v4917 = vpack.c.bf16 %v4885, %v4885
      %v4918 = vpack.c.bf16 %v4886, %v4886
      %v4919 = vpack.c.bf16 %v4887, %v4887
      %v4920 = vpack.c.bf16 %v4888, %v4888
      %v4921 = vpack.c.bf16 %v4889, %v4889
      %v4922 = vpack.c.bf16 %v4890, %v4890
      %v4923 = vpack.c.bf16 %v4891, %v4891
      %v4924 = vpack.c.bf16 %v4892, %v4892
      %v4925 = vpack.c.bf16 %v4893, %v4893
      %v4926 = vpack.c.bf16 %v4894, %v4894
      %v4927 = vpack.c.bf16 %v4895, %v4895
      %v4928 = vpack.c.bf16 %v4896, %v4896
      %v4929 = vpack.c.bf16 %v4897, %v4897
      %v4930 = vpack.c.bf16 %v4898, %v4898
      %v4931 = vpack.c.bf16 %v4899, %v4899
      %v4932 = vpack.c.bf16 %v4900, %v4900
      %v4933 = vpack.c.bf16 %v4901, %v4901
      %v4934 = vpack.c.bf16 %v4902, %v4902
      %v4935 = vpack.c.bf16 %v4903, %v4903
      %v4936 = vpack.c.bf16 %v4904, %v4904
      %v4937 = vpack.c.bf16 %v4905, %v4905
      %v4938 = vpack.c.bf16 %v4906, %v4906
      %v4939 = vpack.c.bf16 %v4907, %v4907
      %v4940 = vpack.c.bf16 %v4908, %v4908
      %v4941 = vpack.c.bf16 %v4909, %v4909
      %v4942 = vpack.c.bf16 %v4910, %v4910
      %v4943 = vpack.c.bf16 %v4911, %v4911
      %4944 = vst [vmem:[%s231] sm:$0xf] %v4912
      %4945 = vst [vmem:[%s231 + $0x4] sm:$0xf] %v4913
      %4946 = vst [vmem:[%s231 + $0x8] sm:$0xf] %v4914
      %4947 = vst [vmem:[%s231 + $0xc] sm:$0xf] %v4915
      %4948 = vst [vmem:[%s231 + $0x10] sm:$0xf] %v4916
      %4949 = vst [vmem:[%s231 + $0x14] sm:$0xf] %v4917
      %4950 = vst [vmem:[%s231 + $0x18] sm:$0xf] %v4918
      %4951 = vst [vmem:[%s231 + $0x1c] sm:$0xf] %v4919
      %4952 = vst [vmem:[%s231 + $0x20] sm:$0xf] %v4920
      %4953 = vst [vmem:[%s231 + $0x24] sm:$0xf] %v4921
      %4954 = vst [vmem:[%s231 + $0x28] sm:$0xf] %v4922
      %4955 = vst [vmem:[%s231 + $0x2c] sm:$0xf] %v4923
      %4956 = vst [vmem:[%s231 + $0x30] sm:$0xf] %v4924
      %4957 = vst [vmem:[%s231 + $0x34] sm:$0xf] %v4925
      %4958 = vst [vmem:[%s231 + $0x38] sm:$0xf] %v4926
      %4959 = vst [vmem:[%s231 + $0x3c] sm:$0xf] %v4927
      %4960 = vst [vmem:[%s231 + $0x40] sm:$0xf] %v4928
      %4961 = vst [vmem:[%s231 + $0x44] sm:$0xf] %v4929
      %4962 = vst [vmem:[%s231 + $0x48] sm:$0xf] %v4930
      %4963 = vst [vmem:[%s231 + $0x4c] sm:$0xf] %v4931
      %4964 = vst [vmem:[%s231 + $0x50] sm:$0xf] %v4932
      %4965 = vst [vmem:[%s231 + $0x54] sm:$0xf] %v4933
      %4966 = vst [vmem:[%s231 + $0x58] sm:$0xf] %v4934
      %4967 = vst [vmem:[%s231 + $0x5c] sm:$0xf] %v4935
      %4968 = vst [vmem:[%s231 + $0x60] sm:$0xf] %v4936
      %4969 = vst [vmem:[%s231 + $0x64] sm:$0xf] %v4937
      %4970 = vst [vmem:[%s231 + $0x68] sm:$0xf] %v4938
      %4971 = vst [vmem:[%s231 + $0x6c] sm:$0xf] %v4939
      %4972 = vst [vmem:[%s231 + $0x70] sm:$0xf] %v4940
      %4973 = vst [vmem:[%s231 + $0x74] sm:$0xf] %v4941
      %4974 = vst [vmem:[%s231 + $0x78] sm:$0xf] %v4942
      %4975 = vst [vmem:[%s231 + $0x7c] sm:$0xf] %v4943
      %v4976 = vadd.f32 %v4880, %v4881
      %v4977 = vadd.f32 %v4976, %v4882
      %v4978 = vadd.f32 %v4977, %v4883
      %v4979 = vadd.f32 %v4978, %v4884
      %v4980 = vadd.f32 %v4979, %v4885
      %v4981 = vadd.f32 %v4980, %v4886
      %v4982 = vadd.f32 %v4981, %v4887
      %v4983 = vadd.f32 %v4982, %v4888
      %v4984 = vadd.f32 %v4983, %v4889
      %v4985 = vadd.f32 %v4984, %v4890
      %v4986 = vadd.f32 %v4985, %v4891
      %v4987 = vadd.f32 %v4986, %v4892
      %v4988 = vadd.f32 %v4987, %v4893
      %v4989 = vadd.f32 %v4988, %v4894
      %v4990 = vadd.f32 %v4989, %v4895
      %v4991 = vadd.f32 %v4990, %v4896
      %v4992 = vadd.f32 %v4991, %v4897
      %v4993 = vadd.f32 %v4992, %v4898
      %v4994 = vadd.f32 %v4993, %v4899
      %v4995 = vadd.f32 %v4994, %v4900
      %v4996 = vadd.f32 %v4995, %v4901
      %v4997 = vadd.f32 %v4996, %v4902
      %v4998 = vadd.f32 %v4997, %v4903
      %v4999 = vadd.f32 %v4998, %v4904
      %v5000 = vadd.f32 %v4999, %v4905
      %v5001 = vadd.f32 %v5000, %v4906
      %v5002 = vadd.f32 %v5001, %v4907
      %v5003 = vadd.f32 %v5002, %v4908
      %v5004 = vadd.f32 %v5003, %v4909
      %v5005 = vadd.f32 %v5004, %v4910
      %v5006 = vadd.f32 %v5005, %v4911
      %v5007 = vrot.slane %v5006, 4
      %v5008 = vadd.f32 %v5006, %v5007
      %v5009 = vrot.slane %v5008, 2
      %v5010 = vadd.f32 %v5008, %v5009
      %v5011 = vrot.slane %v5010, 1
      %v5012 = vadd.f32 %v5010, %v5011
      %v5013 = vmul.f32 %v4880, %v4880
      %v5014 = vmul.f32 %v4881, %v4881
      %v5015 = vmul.f32 %v4882, %v4882
      %v5016 = vmul.f32 %v4883, %v4883
      %v5017 = vmul.f32 %v4884, %v4884
      %v5018 = vmul.f32 %v4885, %v4885
      %v5019 = vmul.f32 %v4886, %v4886
      %v5020 = vmul.f32 %v4887, %v4887
      %v5021 = vmul.f32 %v4888, %v4888
      %v5022 = vmul.f32 %v4889, %v4889
      %v5023 = vmul.f32 %v4890, %v4890
      %v5024 = vmul.f32 %v4891, %v4891
      %v5025 = vmul.f32 %v4892, %v4892
      %v5026 = vmul.f32 %v4893, %v4893
      %v5027 = vmul.f32 %v4894, %v4894
      %v5028 = vmul.f32 %v4895, %v4895
      %v5029 = vmul.f32 %v4896, %v4896
      %v5030 = vmul.f32 %v4897, %v4897
      %v5031 = vmul.f32 %v4898, %v4898
      %v5032 = vmul.f32 %v4899, %v4899
      %v5033 = vmul.f32 %v4900, %v4900
      %v5034 = vmul.f32 %v4901, %v4901
      %v5035 = vmul.f32 %v4902, %v4902
      %v5036 = vmul.f32 %v4903, %v4903
      %v5037 = vmul.f32 %v4904, %v4904
      %v5038 = vmul.f32 %v4905, %v4905
      %v5039 = vmul.f32 %v4906, %v4906
      %v5040 = vmul.f32 %v4907, %v4907
      %v5041 = vmul.f32 %v4908, %v4908
      %v5042 = vmul.f32 %v4909, %v4909
      %v5043 = vmul.f32 %v4910, %v4910
      %v5044 = vmul.f32 %v4911, %v4911
      %v5045 = vadd.f32 %v5013, %v5014
      %v5046 = vadd.f32 %v5045, %v5015
      %v5047 = vadd.f32 %v5046, %v5016
      %v5048 = vadd.f32 %v5047, %v5017
      %v5049 = vadd.f32 %v5048, %v5018
      %v5050 = vadd.f32 %v5049, %v5019
      %v5051 = vadd.f32 %v5050, %v5020
      %v5052 = vadd.f32 %v5051, %v5021
      %v5053 = vadd.f32 %v5052, %v5022
      %v5054 = vadd.f32 %v5053, %v5023
      %v5055 = vadd.f32 %v5054, %v5024
      %v5056 = vadd.f32 %v5055, %v5025
      %v5057 = vadd.f32 %v5056, %v5026
      %v5058 = vadd.f32 %v5057, %v5027
      %v5059 = vadd.f32 %v5058, %v5028
      %v5060 = vadd.f32 %v5059, %v5029
      %v5061 = vadd.f32 %v5060, %v5030
      %v5062 = vadd.f32 %v5061, %v5031
      %v5063 = vadd.f32 %v5062, %v5032
      %v5064 = vadd.f32 %v5063, %v5033
      %v5065 = vadd.f32 %v5064, %v5034
      %v5066 = vadd.f32 %v5065, %v5035
      %v5067 = vadd.f32 %v5066, %v5036
      %v5068 = vadd.f32 %v5067, %v5037
      %v5069 = vadd.f32 %v5068, %v5038
      %v5070 = vadd.f32 %v5069, %v5039
      %v5071 = vadd.f32 %v5070, %v5040
      %v5072 = vadd.f32 %v5071, %v5041
      %v5073 = vadd.f32 %v5072, %v5042
      %v5074 = vadd.f32 %v5073, %v5043
      %v5075 = vadd.f32 %v5074, %v5044
      %v5076 = vrot.slane %v5075, 4
      %v5077 = vadd.f32 %v5075, %v5076
      %v5078 = vrot.slane %v5077, 2
      %v5079 = vadd.f32 %v5077, %v5078
      %v5080 = vrot.slane %v5079, 1
      %v5081 = vadd.f32 %v5079, %v5080
      %vm5082 = vcmask 1040384
      %v5083 = vsel %vm5082, %v5012, %v5081
      %5084 = vst [vmem:[%s235] sm:$0x3] %v5083
      %p5085 = scmp.lt.s32.totalorder %s17, 1
      %s5086 = scalar_select %p5085, %s17, 1
      %s5087 = smul.addr %s5086, 32
      %s5088 = smul.addr %s5087, 4
      %s5089 = scalar_lea.vmem %s4, %s5088
      %p5090 = scmp.lt.s32.totalorder %s17, 1
      %s5091 = scalar_select %p5090, %s17, 1
      %s5092 = smul.addr %s5091, 2
      %s5093 = scalar_lea.vmem %s5, %s5092
      // Predicated region
      $region37: #{res_block_forward.4} parent=35 // pred_check
        %p5094 = pneg %p124
      $region38: #{res_block_forward.4} parent=35 // pred_check_branch
        %5096 = sbr.rel (%p5094) target = $region40
      $region39: #{res_block_forward.4} parent=35 // pred_region
        _
      $region40: #{res_block_forward.4} parent=35 // pred_fallthru
        _
      // Predicated region
      $region41: #{res_block_forward.4} parent=35 // pred_check
        %p5097 = pneg %p150
      $region42: #{res_block_forward.4} parent=35 // pred_check_branch
        %5099 = sbr.rel (%p5097) target = $region44
      $region43: #{res_block_forward.4} parent=35 // pred_region
        _
      $region44: #{res_block_forward.4} parent=35 // pred_fallthru
        _
    $region36: #{res_block_forward.4} parent=5 // pred_fallthru
      _
    %p5100 = scmp.le.s32.totalorder 2, %s12
    // Predicated region
    $region45: #{res_block_forward.4} parent=5 // pred_check
      %p5101 = pneg %p5100
    $region46: #{res_block_forward.4} parent=5 // pred_check_branch
      %5103 = sbr.rel (%p5101) target = $region48
    $region47: #{res_block_forward.4} parent=5 // pred_region
      %s5104 = ssub.s32 %s12, 2
      // Predicated region
      $region49: #{res_block_forward.4} parent=47 // pred_check
        %p5105 = pneg %p130
      $region50: #{res_block_forward.4} parent=47 // pred_check_branch
        %5107 = sbr.rel (%p5105) target = $region52
      $region51: #{res_block_forward.4} parent=47 // pred_region
        %p5108 = scmp.lt.s32.totalorder %s18, 1
        %s5109 = scalar_select %p5108, %s18, 1
        %s5110 = smul.addr %s5109, 32
        %s5111 = smul.addr %s5110, 4
        %s5112 = scalar_lea.vmem %s4, %s5111
      $region52: #{res_block_forward.4} parent=47 // pred_fallthru
        _
      // Predicated region
      $region53: #{res_block_forward.4} parent=47 // pred_check
        %p5113 = pneg %p156
      $region54: #{res_block_forward.4} parent=47 // pred_check_branch
        %5115 = sbr.rel (%p5113) target = $region56
      $region55: #{res_block_forward.4} parent=47 // pred_region
        %p5116 = scmp.lt.s32.totalorder %s18, 1
        %s5117 = scalar_select %p5116, %s18, 1
        %s5118 = smul.addr %s5117, 2
        %s5119 = scalar_lea.vmem %s5, %s5118
      $region56: #{res_block_forward.4} parent=47 // pred_fallthru
        _
    $region48: #{res_block_forward.4} parent=5 // pred_fallthru
      _
  $region6: #{res_block_forward.4} parent=0 // loop_footer
    %s16 = sadd.s32 1, %s12
  $region7: #{res_block_forward.4} parent=0 // loop_footer_branch
    %11 = sbr.rel target = $region3
  $region8: #{res_block_forward.4} parent=0 // loop_exit
    _

</llo_original>
